<compile_context>
chip_gen: v6e
topology: v6e:2x2x1
jax: 0.10.0
libtpu: 0.0.40
codegen_flags: <defaults>
</compile_context>

<pallas_src>
import jax
import jax.numpy as jnp
from jax import lax
from jax.experimental import pallas as pl
from jax.experimental.pallas import tpu as pltpu


# ----------------------------------------------------------------------------
# utilities
# ----------------------------------------------------------------------------
def _largest_divisor(n, cap):
    for t in range(max(1, min(n, cap)), 0, -1):
        if n % t == 0:
            return t
    return 1


def _pick_tile(dim, candidates):
    for t in candidates:
        if dim % t == 0:
            return t
    return dim


def _compute_vmem_limit():
    # ~3/4 of physical VMEM with a hard cap: ~48 MiB on v7x (64 MiB/TC),
    # up to ~96 MiB on v5e/v6e (128 MiB).  Fallback is safe everywhere.
    try:
        cap = int(pltpu.get_tpu_info().vmem_capacity_bytes)
    except Exception:
        cap = 64 * 1024 * 1024
    return max(32 * 1024 * 1024, min((cap * 3) // 4, 100 * 1024 * 1024))


_VMEM_LIMIT = _compute_vmem_limit()


# ----------------------------------------------------------------------------
# Phase-plane construction: a stride-s KxK window op becomes min(K,s)^2
# stride-1 planes; total HBM size ~1x the activation (vs K*K for im2col).
# ----------------------------------------------------------------------------
def _fit_hw(x, rows, cols, value):
    x = x[:, :rows, :cols, :]
    pr, pc = rows - x.shape[1], cols - x.shape[2]
    if pr or pc:
        x = jnp.pad(x, ((0, 0), (0, pr), (0, pc), (0, 0)), constant_values=value)
    return x


def _build_phases(x, k, stride, pad, pad_value, extra_rows):
    n, h, w, c = x.shape
    oh = (h + 2 * pad - k) // stride + 1
    ow = (w + 2 * pad - k) // stride + 1
    q = (k - 1) // stride
    hc, wc = oh + q, ow + q
    pa = min(k, stride)
    xp = x if pad == 0 else jnp.pad(
        x, ((0, 0), (pad, pad), (pad, pad), (0, 0)), constant_values=pad_value)
    planes = []
    for a in range(pa):
        for b in range(pa):
            ph = xp[:, a::stride, b::stride, :]
            planes.append(_fit_hw(ph, hc + extra_rows, wc, pad_value))
    phases = jnp.stack(planes, axis=1)          # (N, pa*pa, hc+extra, wc, C)
    return phases, oh, ow, hc, wc, pa


# ----------------------------------------------------------------------------
# Conv (bf16 MXU matmuls, f32 accumulation in the resident out block) with BN
# batch statistics fused into the epilogue.  One grid step = one image.
# ----------------------------------------------------------------------------
def _make_conv_kernel(k, stride, pa, oh, ow, wc, mplane):
    mout = oh * wc

    def kernel(x_ref, w_ref, o_ref, s_ref):
        first = True
        for di in range(k):
            for dj in range(k):
                a, oi = di % stride, di // stride
                b, oj = dj % stride, dj // stride
                p = a * pa + b
                r0 = p * mplane + oi * wc + oj
                av = x_ref[0, r0:r0 + mout, :]                    # (mout, Cin) bf16
                d = jnp.dot(av, w_ref[di * k + dj],
                            preferred_element_type=jnp.float32)
                if first:
                    o_ref[0] = d
                    first = False
                else:
                    o_ref[0] += d
        # fused per-image BN statistics (mask out the full-width garbage cols)
        acc = o_ref[0]
        if wc > ow:
            col = lax.broadcasted_iota(jnp.int32, (mout, 1), 0) % wc
            acc = jnp.where(col < ow, acc, 0.0)
        s_ref[0, 0:1, :] = jnp.sum(acc, axis=0, keepdims=True)
        s_ref[0, 1:2, :] = jnp.sum(acc * acc, axis=0, keepdims=True)

    return kernel


def conv2d_stats(x, w, k, stride, pad):
    """x: (N,H,W,Cin) (any float dtype), w: (K*K, Cin, Cout) bf16.
    Returns (full-width f32 conv output (N, OH*Wc, Cout), BN stats (2, Cout),
    OH, OW, Wc)."""
    n = x.shape[0]
    cin = x.shape[-1]
    cout = w.shape[-1]
    x = x.astype(jnp.bfloat16)
    if cin < 8:                      # tiny stem channel count: pad with zeros
        x = jnp.pad(x, ((0, 0), (0, 0), (0, 0), (0, 8 - cin)))
        w = jnp.pad(w, ((0, 0), (0, 8 - cin), (0, 0)))
        cin = 8
    phases, oh, ow, hc, wc, pa = _build_phases(x, k, stride, pad, 0.0, 1)
    p2 = pa * pa
    mplane = (hc + 1) * wc
    xf = phases.reshape(n, p2 * mplane, cin)
    mout = oh * wc

    conv_full, stats_n = pl.pallas_call(
        _make_conv_kernel(k, stride, pa, oh, ow, wc, mplane),
        out_shape=(jax.ShapeDtypeStruct((n, mout, cout), jnp.float32),
                   jax.ShapeDtypeStruct((n, 2, cout), jnp.float32)),
        grid_spec=pltpu.PrefetchScalarGridSpec(
            num_scalar_prefetch=0,
            grid=(n,),
            in_specs=[pl.BlockSpec((1, p2 * mplane, cin), lambda i: (i, 0, 0)),
                      pl.BlockSpec((k * k, cin, cout), lambda i: (0, 0, 0))],
            out_specs=(pl.BlockSpec((1, mout, cout), lambda i: (i, 0, 0)),
                       pl.BlockSpec((1, 2, cout), lambda i: (i, 0, 0)))),
        compiler_params=pltpu.CompilerParams(
            dimension_semantics=("parallel",),
            vmem_limit_bytes=_VMEM_LIMIT),
    )(xf, w)
    stats = jnp.sum(stats_n, axis=0)             # tiny (N,2,C) -> (2,C) reduce
    return conv_full, stats, oh, ow, wc


# ----------------------------------------------------------------------------
# BatchNorm apply: normalize + affine (+ residual) (+ ReLU), writes bf16.
# ----------------------------------------------------------------------------
def _make_bn_apply_kernel(count, eps, relu, with_res, ow):
    inv_cnt = 1.0 / float(count)

    def kernel(*refs):
        if with_res:
            x_ref, s_ref, g_ref, b_ref, r_ref, o_ref = refs
        else:
            x_ref, s_ref, g_ref, b_ref, o_ref = refs
        s = s_ref[...]                                    # (2, C): sum, sum(x^2)
        mean = s[0:1, :] * inv_cnt
        var = jnp.maximum(s[1:2, :] * inv_cnt - mean * mean, 0.0)
        scale = g_ref[...] * lax.rsqrt(var + eps)
        shift = b_ref[...] - mean * scale
        y = x_ref[0, :, 0:ow, :] * scale + shift          # crop garbage columns
        if with_res:
            y = y + r_ref[0].astype(jnp.float32)
        if relu:
            y = jnp.maximum(y, 0.0)
        o_ref[0] = y.astype(o_ref.dtype)

    return kernel


def bn_apply(conv_full, stats, gamma, beta, n, oh, ow, wc,
             residual=None, relu=True, eps=1e-5):
    c = gamma.shape[0]
    x4 = conv_full.reshape(n, oh, wc, c)
    toh = _largest_divisor(oh, max(1, (2 << 20) // (wc * c * 4)))
    in_specs = [pl.BlockSpec((1, toh, wc, c), lambda i, j: (i, j, 0, 0)),
                pl.BlockSpec((2, c), lambda i, j: (0, 0)),
                pl.BlockSpec((1, c), lambda i, j: (0, 0)),
                pl.BlockSpec((1, c), lambda i, j: (0, 0))]
    args = [x4, stats, gamma.reshape(1, c), beta.reshape(1, c)]
    if residual is not None:
        in_specs.append(pl.BlockSpec((1, toh, ow, c), lambda i, j: (i, j, 0, 0)))
        args.append(residual)
    return pl.pallas_call(
        _make_bn_apply_kernel(n * oh * ow, eps, relu, residual is not None, ow),
        out_shape=jax.ShapeDtypeStruct((n, oh, ow, c), jnp.bfloat16),
        grid_spec=pltpu.PrefetchScalarGridSpec(
            num_scalar_prefetch=0,
            grid=(n, oh // toh),
            in_specs=in_specs,
            out_specs=pl.BlockSpec((1, toh, ow, c), lambda i, j: (i, j, 0, 0))),
        compiler_params=pltpu.CompilerParams(
            dimension_semantics=("parallel", "parallel"),
            vmem_limit_bytes=_VMEM_LIMIT),
    )(*args)


# ----------------------------------------------------------------------------
# Max-pool: 9 shifted in-kernel maxima over bf16 phase planes (no patch blowup)
# ----------------------------------------------------------------------------
def _make_maxpool_kernel(k, stride, pa, oh, ow, hc):
    def kernel(x_ref, o_ref):
        r = None
        for di in range(k):
            for dj in range(k):
                a, oi = di % stride, di // stride
                b, oj = dj % stride, dj // stride
                p = a * pa + b
                v = x_ref[0, p * hc + oi:p * hc + oi + oh, oj:oj + ow, :]
                r = v if r is None else jnp.maximum(r, v)
        o_ref[0] = r

    return kernel


def pallas_maxpool(x, k=3, stride=2, pad=1):
    n, h, w, c = x.shape
    phases, oh, ow, hc, wc, pa = _build_phases(x, k, stride, pad,
                                               float('-inf'), 0)
    p2 = pa * pa
    xf = phases.reshape(n, p2 * hc, wc, c)
    return pl.pallas_call(
        _make_maxpool_kernel(k, stride, pa, oh, ow, hc),
        out_shape=jax.ShapeDtypeStruct((n, oh, ow, c), x.dtype),
        grid_spec=pltpu.PrefetchScalarGridSpec(
            num_scalar_prefetch=0,
            grid=(n,),
            in_specs=[pl.BlockSpec((1, p2 * hc, wc, c), lambda i: (i, 0, 0, 0))],
            out_specs=pl.BlockSpec((1, oh, ow, c), lambda i: (i, 0, 0, 0))),
        compiler_params=pltpu.CompilerParams(
            dimension_semantics=("parallel",),
            vmem_limit_bytes=_VMEM_LIMIT),
    )(xf)


# ----------------------------------------------------------------------------
# Global average pool
# ----------------------------------------------------------------------------
def _avgpool_kernel(x_ref, o_ref):
    o_ref[...] = jnp.mean(x_ref[...].astype(jnp.float32), axis=1)


def pallas_avgpool(x):
    n, h, w, c = x.shape
    hw = h * w
    x3 = x.reshape(n, hw, c)
    bn = _pick_tile(n, (8,))
    return pl.pallas_call(
        _avgpool_kernel,
        out_shape=jax.ShapeDtypeStruct((n, c), jnp.float32),
        grid_spec=pltpu.PrefetchScalarGridSpec(
            num_scalar_prefetch=0,
            grid=(n // bn,),
            in_specs=[pl.BlockSpec((bn, hw, c), lambda i: (i, 0, 0))],
            out_specs=pl.BlockSpec((bn, c), lambda i: (i, 0))),
        compiler_params=pltpu.CompilerParams(
            dimension_semantics=("parallel",),
            vmem_limit_bytes=_VMEM_LIMIT),
    )(x3)


# ----------------------------------------------------------------------------
# Final linear layer (tiled MXU matmul + bias)
# ----------------------------------------------------------------------------
def _matmul_bias_kernel(a_ref, b_ref, bias_ref, o_ref):
    @pl.when(pl.program_id(2) == 0)
    def _():
        o_ref[...] = jnp.zeros_like(o_ref)

    o_ref[...] += jnp.dot(a_ref[...], b_ref[...],
                          preferred_element_type=jnp.float32)

    @pl.when(pl.program_id(2) == pl.num_programs(2) - 1)
    def _():
        o_ref[...] += bias_ref[...]


def pallas_matmul_bias(a, b, bias):
    m, k = a.shape
    _, n = b.shape
    a = a.astype(jnp.bfloat16)
    b = b.astype(jnp.bfloat16)
    tm = _pick_tile(m, (512, 256, 128, 64, 32, 16, 8))
    tn = _pick_tile(n, (256, 128))
    tk = _pick_tile(k, (512, 256, 128))
    return pl.pallas_call(
        _matmul_bias_kernel,
        out_shape=jax.ShapeDtypeStruct((m, n), jnp.float32),
        grid_spec=pltpu.PrefetchScalarGridSpec(
            num_scalar_prefetch=0,
            grid=(m // tm, n // tn, k // tk),
            in_specs=[pl.BlockSpec((tm, tk), lambda i, j, kk: (i, kk)),
                      pl.BlockSpec((tk, tn), lambda i, j, kk: (kk, j)),
                      pl.BlockSpec((1, tn), lambda i, j, kk: (0, j))],
            out_specs=pl.BlockSpec((tm, tn), lambda i, j, kk: (i, j))),
        compiler_params=pltpu.CompilerParams(
            dimension_semantics=("parallel", "parallel", "arbitrary"),
            vmem_limit_bytes=_VMEM_LIMIT),
    )(a, b, bias.reshape(1, n).astype(jnp.float32))


# ----------------------------------------------------------------------------
# Parameters (deterministic synthetic init; conv weights stored (K*K, Cin, Cout) bf16)
# ----------------------------------------------------------------------------
def _conv_w(key, cout, cin, k):
    std = (2.0 / (cin * k * k)) ** 0.5
    w = jax.random.normal(key, (cout, cin, k, k), jnp.float32) * std
    w = jnp.transpose(w, (2, 3, 1, 0)).reshape(k * k, cin, cout)
    return w.astype(jnp.bfloat16)


def _bn(c):
    return (jnp.ones((c,), jnp.float32), jnp.zeros((c,), jnp.float32))


def _basic_block(keys, cin, cout, stride):
    blk = {
        "conv1": _conv_w(next(keys), cout, cin, 3),
        "bn1": _bn(cout),
        "conv2": _conv_w(next(keys), cout, cout, 3),
        "bn2": _bn(cout),
        "stride": stride,
    }
    if stride != 1 or cin != cout:
        blk["down_conv"] = _conv_w(next(keys), cout, cin, 1)
        blk["down_bn"] = _bn(cout)
    return blk


def init_params(key, num_channels=4, n_classes=10):
    keys = iter(jax.random.split(key, 64))
    params = {"conv1": _conv_w(next(keys), 64, num_channels, 7), "bn1": _bn(64)}
    cfg = [("layer1", 64, 64, 1), ("layer2", 64, 128, 2),
           ("layer3", 128, 256, 2), ("layer4", 256, 512, 2)]
    for name, cin, cout, stride in cfg:
        params[name] = [_basic_block(keys, cin, cout, stride),
                        _basic_block(keys, cout, cout, 1)]
    params["fc_w"] = (jax.random.normal(next(keys), (512, n_classes), jnp.float32)
                      * (1.0 / 512.0 ** 0.5)).astype(jnp.bfloat16)
    params["fc_b"] = jax.random.normal(next(keys), (n_classes,), jnp.float32) * 0.01
    return params


# ----------------------------------------------------------------------------
# Forward pass
# ----------------------------------------------------------------------------
def basic_block_forward(x, blk):
    n = x.shape[0]
    identity = x
    cf, st, oh, ow, wc = conv2d_stats(x, blk["conv1"], 3, blk["stride"], 1)
    out = bn_apply(cf, st, blk["bn1"][0], blk["bn1"][1], n, oh, ow, wc, relu=True)
    cf2, st2, oh2, ow2, wc2 = conv2d_stats(out, blk["conv2"], 3, 1, 1)
    if "down_conv" in blk:
        cfd, std_, ohd, owd, wcd = conv2d_stats(x, blk["down_conv"], 1,
                                                blk["stride"], 0)
        identity = bn_apply(cfd, std_, blk["down_bn"][0], blk["down_bn"][1],
                            n, ohd, owd, wcd, relu=False)
    # bn2 + residual add + relu fused; output bf16
    return bn_apply(cf2, st2, blk["bn2"][0], blk["bn2"][1], n, oh2, ow2, wc2,
                    residual=identity, relu=True)


def resnet_forward(params, x_nchw):
    x = jnp.transpose(x_nchw, (0, 2, 3, 1)).astype(jnp.bfloat16)   # NCHW -> NHWC
    n = x.shape[0]
    # Replaced conv1: k=7, stride=2, padding = stride = 2 (per the module spec).
    cf, st, oh, ow, wc = conv2d_stats(x, params["conv1"], 7, 2, 2)
    x = bn_apply(cf, st, params["bn1"][0], params["bn1"][1], n, oh, ow, wc,
                 relu=True)
    x = pallas_maxpool(x, 3, 2, 1)
    for layer in ("layer1", "layer2", "layer3", "layer4"):
        for blk in params[layer]:
            x = basic_block_forward(x, blk)
    x = pallas_avgpool(x)                                          # (N, 512) f32
    return pallas_matmul_bias(x, params["fc_w"], params["fc_b"])   # (N, classes)


if __name__ == "__main__":
    batch, num_channels, spatial, n_classes = 2, 4, 16, 10
    x = jax.random.normal(jax.random.PRNGKey(0),
                          (batch, num_channels, spatial, spatial), jnp.float32)
    params = init_params(jax.random.PRNGKey(42),
                         num_channels=num_channels, n_classes=n_classes)
    logits = resnet_forward(params, x)
    logits = jax.block_until_ready(logits)
    assert logits.shape == (batch, n_classes), logits.shape
    assert bool(jnp.all(jnp.isfinite(logits)))
    print("KERNEL_OK")
</pallas_src>

<mosaic_0001>
module attributes {stable_mosaic.version = 11 : i64} {
  func.func @kernel(%arg0: i32, %arg1: memref<1x440x8xbf16, #tpu.memory_space<vmem>>, %arg2: memref<49x8x64xbf16, #tpu.memory_space<vmem>>, %arg3: memref<1x70x64xf32, #tpu.memory_space<vmem>>, %arg4: memref<1x2x64xf32, #tpu.memory_space<vmem>>) attributes {dimension_semantics = [#tpu.dimension_semantics<parallel>], iteration_bounds = array<i64: 2>, scalar_prefetch = 0 : i64, scratch_operands = 0 : i64, tpu.core_type = #tpu.core_type<tc>, window_params = [{transform_indices = @transform_0, window_bounds = array<i64: 1, 440, 8>}, {pipeline_mode = #tpu.pipeline_mode<synchronous>, transform_indices = @transform_1, window_bounds = array<i64: 49, 8, 64>}, {transform_indices = @transform_2, window_bounds = array<i64: 1, 70, 64>}, {transform_indices = @transform_3, window_bounds = array<i64: 1, 2, 64>}]} {
    %c0 = arith.constant 0 : index
    %c0_0 = arith.constant 0 : index
    %c0_1 = arith.constant 0 : index
    %0 = vector.load %arg1[%c0, %c0_0, %c0_1] : memref<1x440x8xbf16, #tpu.memory_space<vmem>>, vector<1x70x8xbf16>
    %1 = vector.shape_cast %0 : vector<1x70x8xbf16> to vector<70x8xbf16>
    %c0_2 = arith.constant 0 : index
    %c0_3 = arith.constant 0 : index
    %c0_4 = arith.constant 0 : index
    %2 = vector.load %arg2[%c0_2, %c0_3, %c0_4] : memref<49x8x64xbf16, #tpu.memory_space<vmem>>, vector<1x8x64xbf16>
    %3 = vector.shape_cast %2 : vector<1x8x64xbf16> to vector<8x64xbf16>
    %cst = arith.constant dense<0.000000e+00> : vector<70x64xf32>
    %4 = tpu.matmul %1, %3, %cst {dimension_numbers = #tpu.dot_dimension_numbers<[1], [0], [0], [1], [0, 0, 1, 1], [], []>} : vector<70x8xbf16>, vector<8x64xbf16>, vector<70x64xf32> -> vector<70x64xf32>
    %c0_5 = arith.constant 0 : index
    %c0_6 = arith.constant 0 : index
    %c0_7 = arith.constant 0 : index
    %5 = vector.load %arg3[%c0_5, %c0_6, %c0_7] : memref<1x70x64xf32, #tpu.memory_space<vmem>>, vector<1x70x64xf32>
    %6 = vector.shape_cast %5 : vector<1x70x64xf32> to vector<70x64xf32>
    %7 = vector.shape_cast %4 : vector<70x64xf32> to vector<1x70x64xf32>
    tpu.vector_store %arg3[%c0_5, %c0_6, %c0_7], %7 {strides = array<i32>} : memref<1x70x64xf32, #tpu.memory_space<vmem>>, vector<1x70x64xf32>,
    %c0_8 = arith.constant 0 : index
    %c110 = arith.constant 110 : index
    %c0_9 = arith.constant 0 : index
    %8 = vector.load %arg1[%c0_8, %c110, %c0_9] : memref<1x440x8xbf16, #tpu.memory_space<vmem>>, vector<1x70x8xbf16>
    %9 = vector.shape_cast %8 : vector<1x70x8xbf16> to vector<70x8xbf16>
    %c1 = arith.constant 1 : index
    %c0_10 = arith.constant 0 : index
    %c0_11 = arith.constant 0 : index
    %10 = vector.load %arg2[%c1, %c0_10, %c0_11] : memref<49x8x64xbf16, #tpu.memory_space<vmem>>, vector<1x8x64xbf16>
    %11 = vector.shape_cast %10 : vector<1x8x64xbf16> to vector<8x64xbf16>
    %cst_12 = arith.constant dense<0.000000e+00> : vector<70x64xf32>
    %12 = tpu.matmul %9, %11, %cst_12 {dimension_numbers = #tpu.dot_dimension_numbers<[1], [0], [0], [1], [0, 0, 1, 1], [], []>} : vector<70x8xbf16>, vector<8x64xbf16>, vector<70x64xf32> -> vector<70x64xf32>
    %c0_13 = arith.constant 0 : index
    %c0_14 = arith.constant 0 : index
    %c0_15 = arith.constant 0 : index
    %13 = vector.load %arg3[%c0_13, %c0_14, %c0_15] : memref<1x70x64xf32, #tpu.memory_space<vmem>>, vector<1x70x64xf32>
    %14 = vector.shape_cast %13 : vector<1x70x64xf32> to vector<70x64xf32>
    %15 = arith.addf %14, %12 : vector<70x64xf32>
    %c0_16 = arith.constant 0 : index
    %c0_17 = arith.constant 0 : index
    %c0_18 = arith.constant 0 : index
    %16 = vector.load %arg3[%c0_16, %c0_17, %c0_18] : memref<1x70x64xf32, #tpu.memory_space<vmem>>, vector<1x70x64xf32>
    %17 = vector.shape_cast %16 : vector<1x70x64xf32> to vector<70x64xf32>
    %18 = vector.shape_cast %15 : vector<70x64xf32> to vector<1x70x64xf32>
    tpu.vector_store %arg3[%c0_16, %c0_17, %c0_18], %18 {strides = array<i32>} : memref<1x70x64xf32, #tpu.memory_space<vmem>>, vector<1x70x64xf32>,
    %c0_19 = arith.constant 0 : index
    %c1_20 = arith.constant 1 : index
    %c0_21 = arith.constant 0 : index
    %19 = vector.load %arg1[%c0_19, %c1_20, %c0_21] : memref<1x440x8xbf16, #tpu.memory_space<vmem>>, vector<1x70x8xbf16>
    %20 = vector.shape_cast %19 : vector<1x70x8xbf16> to vector<70x8xbf16>
    %c2 = arith.constant 2 : index
    %c0_22 = arith.constant 0 : index
    %c0_23 = arith.constant 0 : index
    %21 = vector.load %arg2[%c2, %c0_22, %c0_23] : memref<49x8x64xbf16, #tpu.memory_space<vmem>>, vector<1x8x64xbf16>
    %22 = vector.shape_cast %21 : vector<1x8x64xbf16> to vector<8x64xbf16>
    %cst_24 = arith.constant dense<0.000000e+00> : vector<70x64xf32>
    %23 = tpu.matmul %20, %22, %cst_24 {dimension_numbers = #tpu.dot_dimension_numbers<[1], [0], [0], [1], [0, 0, 1, 1], [], []>} : vector<70x8xbf16>, vector<8x64xbf16>, vector<70x64xf32> -> vector<70x64xf32>
    %c0_25 = arith.constant 0 : index
    %c0_26 = arith.constant 0 : index
    %c0_27 = arith.constant 0 : index
    %24 = vector.load %arg3[%c0_25, %c0_26, %c0_27] : memref<1x70x64xf32, #tpu.memory_space<vmem>>, vector<1x70x64xf32>
    %25 = vector.shape_cast %24 : vector<1x70x64xf32> to vector<70x64xf32>
    %26 = arith.addf %25, %23 : vector<70x64xf32>
    %c0_28 = arith.constant 0 : index
    %c0_29 = arith.constant 0 : index
    %c0_30 = arith.constant 0 : index
    %27 = vector.load %arg3[%c0_28, %c0_29, %c0_30] : memref<1x70x64xf32, #tpu.memory_space<vmem>>, vector<1x70x64xf32>
    %28 = vector.shape_cast %27 : vector<1x70x64xf32> to vector<70x64xf32>
    %29 = vector.shape_cast %26 : vector<70x64xf32> to vector<1x70x64xf32>
    tpu.vector_store %arg3[%c0_28, %c0_29, %c0_30], %29 {strides = array<i32>} : memref<1x70x64xf32, #tpu.memory_space<vmem>>, vector<1x70x64xf32>,
    %c0_31 = arith.constant 0 : index
    %c111 = arith.constant 111 : index
    %c0_32 = arith.constant 0 : index
    %30 = vector.load %arg1[%c0_31, %c111, %c0_32] : memref<1x440x8xbf16, #tpu.memory_space<vmem>>, vector<1x70x8xbf16>
    %31 = vector.shape_cast %30 : vector<1x70x8xbf16> to vector<70x8xbf16>
    %c3 = arith.constant 3 : index
    %c0_33 = arith.constant 0 : index
    %c0_34 = arith.constant 0 : index
    %32 = vector.load %arg2[%c3, %c0_33, %c0_34] : memref<49x8x64xbf16, #tpu.memory_space<vmem>>, vector<1x8x64xbf16>
    %33 = vector.shape_cast %32 : vector<1x8x64xbf16> to vector<8x64xbf16>
    %cst_35 = arith.constant dense<0.000000e+00> : vector<70x64xf32>
    %34 = tpu.matmul %31, %33, %cst_35 {dimension_numbers = #tpu.dot_dimension_numbers<[1], [0], [0], [1], [0, 0, 1, 1], [], []>} : vector<70x8xbf16>, vector<8x64xbf16>, vector<70x64xf32> -> vector<70x64xf32>
    %c0_36 = arith.constant 0 : index
    %c0_37 = arith.constant 0 : index
    %c0_38 = arith.constant 0 : index
    %35 = vector.load %arg3[%c0_36, %c0_37, %c0_38] : memref<1x70x64xf32, #tpu.memory_space<vmem>>, vector<1x70x64xf32>
    %36 = vector.shape_cast %35 : vector<1x70x64xf32> to vector<70x64xf32>
    %37 = arith.addf %36, %34 : vector<70x64xf32>
    %c0_39 = arith.constant 0 : index
    %c0_40 = arith.constant 0 : index
    %c0_41 = arith.constant 0 : index
    %38 = vector.load %arg3[%c0_39, %c0_40, %c0_41] : memref<1x70x64xf32, #tpu.memory_space<vmem>>, vector<1x70x64xf32>
    %39 = vector.shape_cast %38 : vector<1x70x64xf32> to vector<70x64xf32>
    %40 = vector.shape_cast %37 : vector<70x64xf32> to vector<1x70x64xf32>
    tpu.vector_store %arg3[%c0_39, %c0_40, %c0_41], %40 {strides = array<i32>} : memref<1x70x64xf32, #tpu.memory_space<vmem>>, vector<1x70x64xf32>,
    %c0_42 = arith.constant 0 : index
    %c2_43 = arith.constant 2 : index
    %c0_44 = arith.constant 0 : index
    %41 = vector.load %arg1[%c0_42, %c2_43, %c0_44] : memref<1x440x8xbf16, #tpu.memory_space<vmem>>, vector<1x70x8xbf16>
    %42 = vector.shape_cast %41 : vector<1x70x8xbf16> to vector<70x8xbf16>
    %c4 = arith.constant 4 : index
    %c0_45 = arith.constant 0 : index
    %c0_46 = arith.constant 0 : index
    %43 = vector.load %arg2[%c4, %c0_45, %c0_46] : memref<49x8x64xbf16, #tpu.memory_space<vmem>>, vector<1x8x64xbf16>
    %44 = vector.shape_cast %43 : vector<1x8x64xbf16> to vector<8x64xbf16>
    %cst_47 = arith.constant dense<0.000000e+00> : vector<70x64xf32>
    %45 = tpu.matmul %42, %44, %cst_47 {dimension_numbers = #tpu.dot_dimension_numbers<[1], [0], [0], [1], [0, 0, 1, 1], [], []>} : vector<70x8xbf16>, vector<8x64xbf16>, vector<70x64xf32> -> vector<70x64xf32>
    %c0_48 = arith.constant 0 : index
    %c0_49 = arith.constant 0 : index
    %c0_50 = arith.constant 0 : index
    %46 = vector.load %arg3[%c0_48, %c0_49, %c0_50] : memref<1x70x64xf32, #tpu.memory_space<vmem>>, vector<1x70x64xf32>
    %47 = vector.shape_cast %46 : vector<1x70x64xf32> to vector<70x64xf32>
    %48 = arith.addf %47, %45 : vector<70x64xf32>
    %c0_51 = arith.constant 0 : index
    %c0_52 = arith.constant 0 : index
    %c0_53 = arith.constant 0 : index
    %49 = vector.load %arg3[%c0_51, %c0_52, %c0_53] : memref<1x70x64xf32, #tpu.memory_space<vmem>>, vector<1x70x64xf32>
    %50 = vector.shape_cast %49 : vector<1x70x64xf32> to vector<70x64xf32>
    %51 = vector.shape_cast %48 : vector<70x64xf32> to vector<1x70x64xf32>
    tpu.vector_store %arg3[%c0_51, %c0_52, %c0_53], %51 {strides = array<i32>} : memref<1x70x64xf32, #tpu.memory_space<vmem>>, vector<1x70x64xf32>,
    %c0_54 = arith.constant 0 : index
    %c112 = arith.constant 112 : index
    %c0_55 = arith.constant 0 : index
    %52 = vector.load %arg1[%c0_54, %c112, %c0_55] : memref<1x440x8xbf16, #tpu.memory_space<vmem>>, vector<1x70x8xbf16>
    %53 = vector.shape_cast %52 : vector<1x70x8xbf16> to vector<70x8xbf16>
    %c5 = arith.constant 5 : index
    %c0_56 = arith.constant 0 : index
    %c0_57 = arith.constant 0 : index
    %54 = vector.load %arg2[%c5, %c0_56, %c0_57] : memref<49x8x64xbf16, #tpu.memory_space<vmem>>, vector<1x8x64xbf16>
    %55 = vector.shape_cast %54 : vector<1x8x64xbf16> to vector<8x64xbf16>
    %cst_58 = arith.constant dense<0.000000e+00> : vector<70x64xf32>
    %56 = tpu.matmul %53, %55, %cst_58 {dimension_numbers = #tpu.dot_dimension_numbers<[1], [0], [0], [1], [0, 0, 1, 1], [], []>} : vector<70x8xbf16>, vector<8x64xbf16>, vector<70x64xf32> -> vector<70x64xf32>
    %c0_59 = arith.constant 0 : index
    %c0_60 = arith.constant 0 : index
    %c0_61 = arith.constant 0 : index
    %57 = vector.load %arg3[%c0_59, %c0_60, %c0_61] : memref<1x70x64xf32, #tpu.memory_space<vmem>>, vector<1x70x64xf32>
    %58 = vector.shape_cast %57 : vector<1x70x64xf32> to vector<70x64xf32>
    %59 = arith.addf %58, %56 : vector<70x64xf32>
    %c0_62 = arith.constant 0 : index
    %c0_63 = arith.constant 0 : index
    %c0_64 = arith.constant 0 : index
    %60 = vector.load %arg3[%c0_62, %c0_63, %c0_64] : memref<1x70x64xf32, #tpu.memory_space<vmem>>, vector<1x70x64xf32>
    %61 = vector.shape_cast %60 : vector<1x70x64xf32> to vector<70x64xf32>
    %62 = vector.shape_cast %59 : vector<70x64xf32> to vector<1x70x64xf32>
    tpu.vector_store %arg3[%c0_62, %c0_63, %c0_64], %62 {strides = array<i32>} : memref<1x70x64xf32, #tpu.memory_space<vmem>>, vector<1x70x64xf32>,
    %c0_65 = arith.constant 0 : index
    %c3_66 = arith.constant 3 : index
    %c0_67 = arith.constant 0 : index
    %63 = vector.load %arg1[%c0_65, %c3_66, %c0_67] : memref<1x440x8xbf16, #tpu.memory_space<vmem>>, vector<1x70x8xbf16>
    %64 = vector.shape_cast %63 : vector<1x70x8xbf16> to vector<70x8xbf16>
    %c6 = arith.constant 6 : index
    %c0_68 = arith.constant 0 : index
    %c0_69 = arith.constant 0 : index
    %65 = vector.load %arg2[%c6, %c0_68, %c0_69] : memref<49x8x64xbf16, #tpu.memory_space<vmem>>, vector<1x8x64xbf16>
    %66 = vector.shape_cast %65 : vector<1x8x64xbf16> to vector<8x64xbf16>
    %cst_70 = arith.constant dense<0.000000e+00> : vector<70x64xf32>
    %67 = tpu.matmul %64, %66, %cst_70 {dimension_numbers = #tpu.dot_dimension_numbers<[1], [0], [0], [1], [0, 0, 1, 1], [], []>} : vector<70x8xbf16>, vector<8x64xbf16>, vector<70x64xf32> -> vector<70x64xf32>
    %c0_71 = arith.constant 0 : index
    %c0_72 = arith.constant 0 : index
    %c0_73 = arith.constant 0 : index
    %68 = vector.load %arg3[%c0_71, %c0_72, %c0_73] : memref<1x70x64xf32, #tpu.memory_space<vmem>>, vector<1x70x64xf32>
    %69 = vector.shape_cast %68 : vector<1x70x64xf32> to vector<70x64xf32>
    %70 = arith.addf %69, %67 : vector<70x64xf32>
    %c0_74 = arith.constant 0 : index
    %c0_75 = arith.constant 0 : index
    %c0_76 = arith.constant 0 : index
    %71 = vector.load %arg3[%c0_74, %c0_75, %c0_76] : memref<1x70x64xf32, #tpu.memory_space<vmem>>, vector<1x70x64xf32>
    %72 = vector.shape_cast %71 : vector<1x70x64xf32> to vector<70x64xf32>
    %73 = vector.shape_cast %70 : vector<70x64xf32> to vector<1x70x64xf32>
    tpu.vector_store %arg3[%c0_74, %c0_75, %c0_76], %73 {strides = array<i32>} : memref<1x70x64xf32, #tpu.memory_space<vmem>>, vector<1x70x64xf32>,
    %c0_77 = arith.constant 0 : index
    %c220 = arith.constant 220 : index
    %c0_78 = arith.constant 0 : index
    %74 = vector.load %arg1[%c0_77, %c220, %c0_78] : memref<1x440x8xbf16, #tpu.memory_space<vmem>>, vector<1x70x8xbf16>
    %75 = vector.shape_cast %74 : vector<1x70x8xbf16> to vector<70x8xbf16>
    %c7 = arith.constant 7 : index
    %c0_79 = arith.constant 0 : index
    %c0_80 = arith.constant 0 : index
    %76 = vector.load %arg2[%c7, %c0_79, %c0_80] : memref<49x8x64xbf16, #tpu.memory_space<vmem>>, vector<1x8x64xbf16>
    %77 = vector.shape_cast %76 : vector<1x8x64xbf16> to vector<8x64xbf16>
    %cst_81 = arith.constant dense<0.000000e+00> : vector<70x64xf32>
    %78 = tpu.matmul %75, %77, %cst_81 {dimension_numbers = #tpu.dot_dimension_numbers<[1], [0], [0], [1], [0, 0, 1, 1], [], []>} : vector<70x8xbf16>, vector<8x64xbf16>, vector<70x64xf32> -> vector<70x64xf32>
    %c0_82 = arith.constant 0 : index
    %c0_83 = arith.constant 0 : index
    %c0_84 = arith.constant 0 : index
    %79 = vector.load %arg3[%c0_82, %c0_83, %c0_84] : memref<1x70x64xf32, #tpu.memory_space<vmem>>, vector<1x70x64xf32>
    %80 = vector.shape_cast %79 : vector<1x70x64xf32> to vector<70x64xf32>
    %81 = arith.addf %80, %78 : vector<70x64xf32>
    %c0_85 = arith.constant 0 : index
    %c0_86 = arith.constant 0 : index
    %c0_87 = arith.constant 0 : index
    %82 = vector.load %arg3[%c0_85, %c0_86, %c0_87] : memref<1x70x64xf32, #tpu.memory_space<vmem>>, vector<1x70x64xf32>
    %83 = vector.shape_cast %82 : vector<1x70x64xf32> to vector<70x64xf32>
    %84 = vector.shape_cast %81 : vector<70x64xf32> to vector<1x70x64xf32>
    tpu.vector_store %arg3[%c0_85, %c0_86, %c0_87], %84 {strides = array<i32>} : memref<1x70x64xf32, #tpu.memory_space<vmem>>, vector<1x70x64xf32>,
    %c0_88 = arith.constant 0 : index
    %c330 = arith.constant 330 : index
    %c0_89 = arith.constant 0 : index
    %85 = vector.load %arg1[%c0_88, %c330, %c0_89] : memref<1x440x8xbf16, #tpu.memory_space<vmem>>, vector<1x70x8xbf16>
    %86 = vector.shape_cast %85 : vector<1x70x8xbf16> to vector<70x8xbf16>
    %c8 = arith.constant 8 : index
    %c0_90 = arith.constant 0 : index
    %c0_91 = arith.constant 0 : index
    %87 = vector.load %arg2[%c8, %c0_90, %c0_91] : memref<49x8x64xbf16, #tpu.memory_space<vmem>>, vector<1x8x64xbf16>
    %88 = vector.shape_cast %87 : vector<1x8x64xbf16> to vector<8x64xbf16>
    %cst_92 = arith.constant dense<0.000000e+00> : vector<70x64xf32>
    %89 = tpu.matmul %86, %88, %cst_92 {dimension_numbers = #tpu.dot_dimension_numbers<[1], [0], [0], [1], [0, 0, 1, 1], [], []>} : vector<70x8xbf16>, vector<8x64xbf16>, vector<70x64xf32> -> vector<70x64xf32>
    %c0_93 = arith.constant 0 : index
    %c0_94 = arith.constant 0 : index
    %c0_95 = arith.constant 0 : index
    %90 = vector.load %arg3[%c0_93, %c0_94, %c0_95] : memref<1x70x64xf32, #tpu.memory_space<vmem>>, vector<1x70x64xf32>
    %91 = vector.shape_cast %90 : vector<1x70x64xf32> to vector<70x64xf32>
    %92 = arith.addf %91, %89 : vector<70x64xf32>
    %c0_96 = arith.constant 0 : index
    %c0_97 = arith.constant 0 : index
    %c0_98 = arith.constant 0 : index
    %93 = vector.load %arg3[%c0_96, %c0_97, %c0_98] : memref<1x70x64xf32, #tpu.memory_space<vmem>>, vector<1x70x64xf32>
    %94 = vector.shape_cast %93 : vector<1x70x64xf32> to vector<70x64xf32>
    %95 = vector.shape_cast %92 : vector<70x64xf32> to vector<1x70x64xf32>
    tpu.vector_store %arg3[%c0_96, %c0_97, %c0_98], %95 {strides = array<i32>} : memref<1x70x64xf32, #tpu.memory_space<vmem>>, vector<1x70x64xf32>,
    %c0_99 = arith.constant 0 : index
    %c221 = arith.constant 221 : index
    %c0_100 = arith.constant 0 : index
    %96 = vector.load %arg1[%c0_99, %c221, %c0_100] : memref<1x440x8xbf16, #tpu.memory_space<vmem>>, vector<1x70x8xbf16>
    %97 = vector.shape_cast %96 : vector<1x70x8xbf16> to vector<70x8xbf16>
    %c9 = arith.constant 9 : index
    %c0_101 = arith.constant 0 : index
    %c0_102 = arith.constant 0 : index
    %98 = vector.load %arg2[%c9, %c0_101, %c0_102] : memref<49x8x64xbf16, #tpu.memory_space<vmem>>, vector<1x8x64xbf16>
    %99 = vector.shape_cast %98 : vector<1x8x64xbf16> to vector<8x64xbf16>
    %cst_103 = arith.constant dense<0.000000e+00> : vector<70x64xf32>
    %100 = tpu.matmul %97, %99, %cst_103 {dimension_numbers = #tpu.dot_dimension_numbers<[1], [0], [0], [1], [0, 0, 1, 1], [], []>} : vector<70x8xbf16>, vector<8x64xbf16>, vector<70x64xf32> -> vector<70x64xf32>
    %c0_104 = arith.constant 0 : index
    %c0_105 = arith.constant 0 : index
    %c0_106 = arith.constant 0 : index
    %101 = vector.load %arg3[%c0_104, %c0_105, %c0_106] : memref<1x70x64xf32, #tpu.memory_space<vmem>>, vector<1x70x64xf32>
    %102 = vector.shape_cast %101 : vector<1x70x64xf32> to vector<70x64xf32>
    %103 = arith.addf %102, %100 : vector<70x64xf32>
    %c0_107 = arith.constant 0 : index
    %c0_108 = arith.constant 0 : index
    %c0_109 = arith.constant 0 : index
    %104 = vector.load %arg3[%c0_107, %c0_108, %c0_109] : memref<1x70x64xf32, #tpu.memory_space<vmem>>, vector<1x70x64xf32>
    %105 = vector.shape_cast %104 : vector<1x70x64xf32> to vector<70x64xf32>
    %106 = vector.shape_cast %103 : vector<70x64xf32> to vector<1x70x64xf32>
    tpu.vector_store %arg3[%c0_107, %c0_108, %c0_109], %106 {strides = array<i32>} : memref<1x70x64xf32, #tpu.memory_space<vmem>>, vector<1x70x64xf32>,
    %c0_110 = arith.constant 0 : index
    %c331 = arith.constant 331 : index
    %c0_111 = arith.constant 0 : index
    %107 = vector.load %arg1[%c0_110, %c331, %c0_111] : memref<1x440x8xbf16, #tpu.memory_space<vmem>>, vector<1x70x8xbf16>
    %108 = vector.shape_cast %107 : vector<1x70x8xbf16> to vector<70x8xbf16>
    %c10 = arith.constant 10 : index
    %c0_112 = arith.constant 0 : index
    %c0_113 = arith.constant 0 : index
    %109 = vector.load %arg2[%c10, %c0_112, %c0_113] : memref<49x8x64xbf16, #tpu.memory_space<vmem>>, vector<1x8x64xbf16>
    %110 = vector.shape_cast %109 : vector<1x8x64xbf16> to vector<8x64xbf16>
    %cst_114 = arith.constant dense<0.000000e+00> : vector<70x64xf32>
    %111 = tpu.matmul %108, %110, %cst_114 {dimension_numbers = #tpu.dot_dimension_numbers<[1], [0], [0], [1], [0, 0, 1, 1], [], []>} : vector<70x8xbf16>, vector<8x64xbf16>, vector<70x64xf32> -> vector<70x64xf32>
    %c0_115 = arith.constant 0 : index
    %c0_116 = arith.constant 0 : index
    %c0_117 = arith.constant 0 : index
    %112 = vector.load %arg3[%c0_115, %c0_116, %c0_117] : memref<1x70x64xf32, #tpu.memory_space<vmem>>, vector<1x70x64xf32>
    %113 = vector.shape_cast %112 : vector<1x70x64xf32> to vector<70x64xf32>
    %114 = arith.addf %113, %111 : vector<70x64xf32>
    %c0_118 = arith.constant 0 : index
    %c0_119 = arith.constant 0 : index
    %c0_120 = arith.constant 0 : index
    %115 = vector.load %arg3[%c0_118, %c0_119, %c0_120] : memref<1x70x64xf32, #tpu.memory_space<vmem>>, vector<1x70x64xf32>
    %116 = vector.shape_cast %115 : vector<1x70x64xf32> to vector<70x64xf32>
    %117 = vector.shape_cast %114 : vector<70x64xf32> to vector<1x70x64xf32>
    tpu.vector_store %arg3[%c0_118, %c0_119, %c0_120], %117 {strides = array<i32>} : memref<1x70x64xf32, #tpu.memory_space<vmem>>, vector<1x70x64xf32>,
    %c0_121 = arith.constant 0 : index
    %c222 = arith.constant 222 : index
    %c0_122 = arith.constant 0 : index
    %118 = vector.load %arg1[%c0_121, %c222, %c0_122] : memref<1x440x8xbf16, #tpu.memory_space<vmem>>, vector<1x70x8xbf16>
    %119 = vector.shape_cast %118 : vector<1x70x8xbf16> to vector<70x8xbf16>
    %c11 = arith.constant 11 : index
    %c0_123 = arith.constant 0 : index
    %c0_124 = arith.constant 0 : index
    %120 = vector.load %arg2[%c11, %c0_123, %c0_124] : memref<49x8x64xbf16, #tpu.memory_space<vmem>>, vector<1x8x64xbf16>
    %121 = vector.shape_cast %120 : vector<1x8x64xbf16> to vector<8x64xbf16>
    %cst_125 = arith.constant dense<0.000000e+00> : vector<70x64xf32>
    %122 = tpu.matmul %119, %121, %cst_125 {dimension_numbers = #tpu.dot_dimension_numbers<[1], [0], [0], [1], [0, 0, 1, 1], [], []>} : vector<70x8xbf16>, vector<8x64xbf16>, vector<70x64xf32> -> vector<70x64xf32>
    %c0_126 = arith.constant 0 : index
    %c0_127 = arith.constant 0 : index
    %c0_128 = arith.constant 0 : index
    %123 = vector.load %arg3[%c0_126, %c0_127, %c0_128] : memref<1x70x64xf32, #tpu.memory_space<vmem>>, vector<1x70x64xf32>
    %124 = vector.shape_cast %123 : vector<1x70x64xf32> to vector<70x64xf32>
    %125 = arith.addf %124, %122 : vector<70x64xf32>
    %c0_129 = arith.constant 0 : index
    %c0_130 = arith.constant 0 : index
    %c0_131 = arith.constant 0 : index
    %126 = vector.load %arg3[%c0_129, %c0_130, %c0_131] : memref<1x70x64xf32, #tpu.memory_space<vmem>>, vector<1x70x64xf32>
    %127 = vector.shape_cast %126 : vector<1x70x64xf32> to vector<70x64xf32>
    %128 = vector.shape_cast %125 : vector<70x64xf32> to vector<1x70x64xf32>
    tpu.vector_store %arg3[%c0_129, %c0_130, %c0_131], %128 {strides = array<i32>} : memref<1x70x64xf32, #tpu.memory_space<vmem>>, vector<1x70x64xf32>,
    %c0_132 = arith.constant 0 : index
    %c332 = arith.constant 332 : index
    %c0_133 = arith.constant 0 : index
    %129 = vector.load %arg1[%c0_132, %c332, %c0_133] : memref<1x440x8xbf16, #tpu.memory_space<vmem>>, vector<1x70x8xbf16>
    %130 = vector.shape_cast %129 : vector<1x70x8xbf16> to vector<70x8xbf16>
    %c12 = arith.constant 12 : index
    %c0_134 = arith.constant 0 : index
    %c0_135 = arith.constant 0 : index
    %131 = vector.load %arg2[%c12, %c0_134, %c0_135] : memref<49x8x64xbf16, #tpu.memory_space<vmem>>, vector<1x8x64xbf16>
    %132 = vector.shape_cast %131 : vector<1x8x64xbf16> to vector<8x64xbf16>
    %cst_136 = arith.constant dense<0.000000e+00> : vector<70x64xf32>
    %133 = tpu.matmul %130, %132, %cst_136 {dimension_numbers = #tpu.dot_dimension_numbers<[1], [0], [0], [1], [0, 0, 1, 1], [], []>} : vector<70x8xbf16>, vector<8x64xbf16>, vector<70x64xf32> -> vector<70x64xf32>
    %c0_137 = arith.constant 0 : index
    %c0_138 = arith.constant 0 : index
    %c0_139 = arith.constant 0 : index
    %134 = vector.load %arg3[%c0_137, %c0_138, %c0_139] : memref<1x70x64xf32, #tpu.memory_space<vmem>>, vector<1x70x64xf32>
    %135 = vector.shape_cast %134 : vector<1x70x64xf32> to vector<70x64xf32>
    %136 = arith.addf %135, %133 : vector<70x64xf32>
    %c0_140 = arith.constant 0 : index
    %c0_141 = arith.constant 0 : index
    %c0_142 = arith.constant 0 : index
    %137 = vector.load %arg3[%c0_140, %c0_141, %c0_142] : memref<1x70x64xf32, #tpu.memory_space<vmem>>, vector<1x70x64xf32>
    %138 = vector.shape_cast %137 : vector<1x70x64xf32> to vector<70x64xf32>
    %139 = vector.shape_cast %136 : vector<70x64xf32> to vector<1x70x64xf32>
    tpu.vector_store %arg3[%c0_140, %c0_141, %c0_142], %139 {strides = array<i32>} : memref<1x70x64xf32, #tpu.memory_space<vmem>>, vector<1x70x64xf32>,
    %c0_143 = arith.constant 0 : index
    %c223 = arith.constant 223 : index
    %c0_144 = arith.constant 0 : index
    %140 = vector.load %arg1[%c0_143, %c223, %c0_144] : memref<1x440x8xbf16, #tpu.memory_space<vmem>>, vector<1x70x8xbf16>
    %141 = vector.shape_cast %140 : vector<1x70x8xbf16> to vector<70x8xbf16>
    %c13 = arith.constant 13 : index
    %c0_145 = arith.constant 0 : index
    %c0_146 = arith.constant 0 : index
    %142 = vector.load %arg2[%c13, %c0_145, %c0_146] : memref<49x8x64xbf16, #tpu.memory_space<vmem>>, vector<1x8x64xbf16>
    %143 = vector.shape_cast %142 : vector<1x8x64xbf16> to vector<8x64xbf16>
    %cst_147 = arith.constant dense<0.000000e+00> : vector<70x64xf32>
    %144 = tpu.matmul %141, %143, %cst_147 {dimension_numbers = #tpu.dot_dimension_numbers<[1], [0], [0], [1], [0, 0, 1, 1], [], []>} : vector<70x8xbf16>, vector<8x64xbf16>, vector<70x64xf32> -> vector<70x64xf32>
    %c0_148 = arith.constant 0 : index
    %c0_149 = arith.constant 0 : index
    %c0_150 = arith.constant 0 : index
    %145 = vector.load %arg3[%c0_148, %c0_149, %c0_150] : memref<1x70x64xf32, #tpu.memory_space<vmem>>, vector<1x70x64xf32>
    %146 = vector.shape_cast %145 : vector<1x70x64xf32> to vector<70x64xf32>
    %147 = arith.addf %146, %144 : vector<70x64xf32>
    %c0_151 = arith.constant 0 : index
    %c0_152 = arith.constant 0 : index
    %c0_153 = arith.constant 0 : index
    %148 = vector.load %arg3[%c0_151, %c0_152, %c0_153] : memref<1x70x64xf32, #tpu.memory_space<vmem>>, vector<1x70x64xf32>
    %149 = vector.shape_cast %148 : vector<1x70x64xf32> to vector<70x64xf32>
    %150 = vector.shape_cast %147 : vector<70x64xf32> to vector<1x70x64xf32>
    tpu.vector_store %arg3[%c0_151, %c0_152, %c0_153], %150 {strides = array<i32>} : memref<1x70x64xf32, #tpu.memory_space<vmem>>, vector<1x70x64xf32>,
    %c0_154 = arith.constant 0 : index
    %c10_155 = arith.constant 10 : index
    %c0_156 = arith.constant 0 : index
    %151 = vector.load %arg1[%c0_154, %c10_155, %c0_156] : memref<1x440x8xbf16, #tpu.memory_space<vmem>>, vector<1x70x8xbf16>
    %152 = vector.shape_cast %151 : vector<1x70x8xbf16> to vector<70x8xbf16>
    %c14 = arith.constant 14 : index
    %c0_157 = arith.constant 0 : index
    %c0_158 = arith.constant 0 : index
    %153 = vector.load %arg2[%c14, %c0_157, %c0_158] : memref<49x8x64xbf16, #tpu.memory_space<vmem>>, vector<1x8x64xbf16>
    %154 = vector.shape_cast %153 : vector<1x8x64xbf16> to vector<8x64xbf16>
    %cst_159 = arith.constant dense<0.000000e+00> : vector<70x64xf32>
    %155 = tpu.matmul %152, %154, %cst_159 {dimension_numbers = #tpu.dot_dimension_numbers<[1], [0], [0], [1], [0, 0, 1, 1], [], []>} : vector<70x8xbf16>, vector<8x64xbf16>, vector<70x64xf32> -> vector<70x64xf32>
    %c0_160 = arith.constant 0 : index
    %c0_161 = arith.constant 0 : index
    %c0_162 = arith.constant 0 : index
    %156 = vector.load %arg3[%c0_160, %c0_161, %c0_162] : memref<1x70x64xf32, #tpu.memory_space<vmem>>, vector<1x70x64xf32>
    %157 = vector.shape_cast %156 : vector<1x70x64xf32> to vector<70x64xf32>
    %158 = arith.addf %157, %155 : vector<70x64xf32>
    %c0_163 = arith.constant 0 : index
    %c0_164 = arith.constant 0 : index
    %c0_165 = arith.constant 0 : index
    %159 = vector.load %arg3[%c0_163, %c0_164, %c0_165] : memref<1x70x64xf32, #tpu.memory_space<vmem>>, vector<1x70x64xf32>
    %160 = vector.shape_cast %159 : vector<1x70x64xf32> to vector<70x64xf32>
    %161 = vector.shape_cast %158 : vector<70x64xf32> to vector<1x70x64xf32>
    tpu.vector_store %arg3[%c0_163, %c0_164, %c0_165], %161 {strides = array<i32>} : memref<1x70x64xf32, #tpu.memory_space<vmem>>, vector<1x70x64xf32>,
    %c0_166 = arith.constant 0 : index
    %c120 = arith.constant 120 : index
    %c0_167 = arith.constant 0 : index
    %162 = vector.load %arg1[%c0_166, %c120, %c0_167] : memref<1x440x8xbf16, #tpu.memory_space<vmem>>, vector<1x70x8xbf16>
    %163 = vector.shape_cast %162 : vector<1x70x8xbf16> to vector<70x8xbf16>
    %c15 = arith.constant 15 : index
    %c0_168 = arith.constant 0 : index
    %c0_169 = arith.constant 0 : index
    %164 = vector.load %arg2[%c15, %c0_168, %c0_169] : memref<49x8x64xbf16, #tpu.memory_space<vmem>>, vector<1x8x64xbf16>
    %165 = vector.shape_cast %164 : vector<1x8x64xbf16> to vector<8x64xbf16>
    %cst_170 = arith.constant dense<0.000000e+00> : vector<70x64xf32>
    %166 = tpu.matmul %163, %165, %cst_170 {dimension_numbers = #tpu.dot_dimension_numbers<[1], [0], [0], [1], [0, 0, 1, 1], [], []>} : vector<70x8xbf16>, vector<8x64xbf16>, vector<70x64xf32> -> vector<70x64xf32>
    %c0_171 = arith.constant 0 : index
    %c0_172 = arith.constant 0 : index
    %c0_173 = arith.constant 0 : index
    %167 = vector.load %arg3[%c0_171, %c0_172, %c0_173] : memref<1x70x64xf32, #tpu.memory_space<vmem>>, vector<1x70x64xf32>
    %168 = vector.shape_cast %167 : vector<1x70x64xf32> to vector<70x64xf32>
    %169 = arith.addf %168, %166 : vector<70x64xf32>
    %c0_174 = arith.constant 0 : index
    %c0_175 = arith.constant 0 : index
    %c0_176 = arith.constant 0 : index
    %170 = vector.load %arg3[%c0_174, %c0_175, %c0_176] : memref<1x70x64xf32, #tpu.memory_space<vmem>>, vector<1x70x64xf32>
    %171 = vector.shape_cast %170 : vector<1x70x64xf32> to vector<70x64xf32>
    %172 = vector.shape_cast %169 : vector<70x64xf32> to vector<1x70x64xf32>
    tpu.vector_store %arg3[%c0_174, %c0_175, %c0_176], %172 {strides = array<i32>} : memref<1x70x64xf32, #tpu.memory_space<vmem>>, vector<1x70x64xf32>,
    %c0_177 = arith.constant 0 : index
    %c11_178 = arith.constant 11 : index
    %c0_179 = arith.constant 0 : index
    %173 = vector.load %arg1[%c0_177, %c11_178, %c0_179] : memref<1x440x8xbf16, #tpu.memory_space<vmem>>, vector<1x70x8xbf16>
    %174 = vector.shape_cast %173 : vector<1x70x8xbf16> to vector<70x8xbf16>
    %c16 = arith.constant 16 : index
    %c0_180 = arith.constant 0 : index
    %c0_181 = arith.constant 0 : index
    %175 = vector.load %arg2[%c16, %c0_180, %c0_181] : memref<49x8x64xbf16, #tpu.memory_space<vmem>>, vector<1x8x64xbf16>
    %176 = vector.shape_cast %175 : vector<1x8x64xbf16> to vector<8x64xbf16>
    %cst_182 = arith.constant dense<0.000000e+00> : vector<70x64xf32>
    %177 = tpu.matmul %174, %176, %cst_182 {dimension_numbers = #tpu.dot_dimension_numbers<[1], [0], [0], [1], [0, 0, 1, 1], [], []>} : vector<70x8xbf16>, vector<8x64xbf16>, vector<70x64xf32> -> vector<70x64xf32>
    %c0_183 = arith.constant 0 : index
    %c0_184 = arith.constant 0 : index
    %c0_185 = arith.constant 0 : index
    %178 = vector.load %arg3[%c0_183, %c0_184, %c0_185] : memref<1x70x64xf32, #tpu.memory_space<vmem>>, vector<1x70x64xf32>
    %179 = vector.shape_cast %178 : vector<1x70x64xf32> to vector<70x64xf32>
    %180 = arith.addf %179, %177 : vector<70x64xf32>
    %c0_186 = arith.constant 0 : index
    %c0_187 = arith.constant 0 : index
    %c0_188 = arith.constant 0 : index
    %181 = vector.load %arg3[%c0_186, %c0_187, %c0_188] : memref<1x70x64xf32, #tpu.memory_space<vmem>>, vector<1x70x64xf32>
    %182 = vector.shape_cast %181 : vector<1x70x64xf32> to vector<70x64xf32>
    %183 = vector.shape_cast %180 : vector<70x64xf32> to vector<1x70x64xf32>
    tpu.vector_store %arg3[%c0_186, %c0_187, %c0_188], %183 {strides = array<i32>} : memref<1x70x64xf32, #tpu.memory_space<vmem>>, vector<1x70x64xf32>,
    %c0_189 = arith.constant 0 : index
    %c121 = arith.constant 121 : index
    %c0_190 = arith.constant 0 : index
    %184 = vector.load %arg1[%c0_189, %c121, %c0_190] : memref<1x440x8xbf16, #tpu.memory_space<vmem>>, vector<1x70x8xbf16>
    %185 = vector.shape_cast %184 : vector<1x70x8xbf16> to vector<70x8xbf16>
    %c17 = arith.constant 17 : index
    %c0_191 = arith.constant 0 : index
    %c0_192 = arith.constant 0 : index
    %186 = vector.load %arg2[%c17, %c0_191, %c0_192] : memref<49x8x64xbf16, #tpu.memory_space<vmem>>, vector<1x8x64xbf16>
    %187 = vector.shape_cast %186 : vector<1x8x64xbf16> to vector<8x64xbf16>
    %cst_193 = arith.constant dense<0.000000e+00> : vector<70x64xf32>
    %188 = tpu.matmul %185, %187, %cst_193 {dimension_numbers = #tpu.dot_dimension_numbers<[1], [0], [0], [1], [0, 0, 1, 1], [], []>} : vector<70x8xbf16>, vector<8x64xbf16>, vector<70x64xf32> -> vector<70x64xf32>
    %c0_194 = arith.constant 0 : index
    %c0_195 = arith.constant 0 : index
    %c0_196 = arith.constant 0 : index
    %189 = vector.load %arg3[%c0_194, %c0_195, %c0_196] : memref<1x70x64xf32, #tpu.memory_space<vmem>>, vector<1x70x64xf32>
    %190 = vector.shape_cast %189 : vector<1x70x64xf32> to vector<70x64xf32>
    %191 = arith.addf %190, %188 : vector<70x64xf32>
    %c0_197 = arith.constant 0 : index
    %c0_198 = arith.constant 0 : index
    %c0_199 = arith.constant 0 : index
    %192 = vector.load %arg3[%c0_197, %c0_198, %c0_199] : memref<1x70x64xf32, #tpu.memory_space<vmem>>, vector<1x70x64xf32>
    %193 = vector.shape_cast %192 : vector<1x70x64xf32> to vector<70x64xf32>
    %194 = vector.shape_cast %191 : vector<70x64xf32> to vector<1x70x64xf32>
    tpu.vector_store %arg3[%c0_197, %c0_198, %c0_199], %194 {strides = array<i32>} : memref<1x70x64xf32, #tpu.memory_space<vmem>>, vector<1x70x64xf32>,
    %c0_200 = arith.constant 0 : index
    %c12_201 = arith.constant 12 : index
    %c0_202 = arith.constant 0 : index
    %195 = vector.load %arg1[%c0_200, %c12_201, %c0_202] : memref<1x440x8xbf16, #tpu.memory_space<vmem>>, vector<1x70x8xbf16>
    %196 = vector.shape_cast %195 : vector<1x70x8xbf16> to vector<70x8xbf16>
    %c18 = arith.constant 18 : index
    %c0_203 = arith.constant 0 : index
    %c0_204 = arith.constant 0 : index
    %197 = vector.load %arg2[%c18, %c0_203, %c0_204] : memref<49x8x64xbf16, #tpu.memory_space<vmem>>, vector<1x8x64xbf16>
    %198 = vector.shape_cast %197 : vector<1x8x64xbf16> to vector<8x64xbf16>
    %cst_205 = arith.constant dense<0.000000e+00> : vector<70x64xf32>
    %199 = tpu.matmul %196, %198, %cst_205 {dimension_numbers = #tpu.dot_dimension_numbers<[1], [0], [0], [1], [0, 0, 1, 1], [], []>} : vector<70x8xbf16>, vector<8x64xbf16>, vector<70x64xf32> -> vector<70x64xf32>
    %c0_206 = arith.constant 0 : index
    %c0_207 = arith.constant 0 : index
    %c0_208 = arith.constant 0 : index
    %200 = vector.load %arg3[%c0_206, %c0_207, %c0_208] : memref<1x70x64xf32, #tpu.memory_space<vmem>>, vector<1x70x64xf32>
    %201 = vector.shape_cast %200 : vector<1x70x64xf32> to vector<70x64xf32>
    %202 = arith.addf %201, %199 : vector<70x64xf32>
    %c0_209 = arith.constant 0 : index
    %c0_210 = arith.constant 0 : index
    %c0_211 = arith.constant 0 : index
    %203 = vector.load %arg3[%c0_209, %c0_210, %c0_211] : memref<1x70x64xf32, #tpu.memory_space<vmem>>, vector<1x70x64xf32>
    %204 = vector.shape_cast %203 : vector<1x70x64xf32> to vector<70x64xf32>
    %205 = vector.shape_cast %202 : vector<70x64xf32> to vector<1x70x64xf32>
    tpu.vector_store %arg3[%c0_209, %c0_210, %c0_211], %205 {strides = array<i32>} : memref<1x70x64xf32, #tpu.memory_space<vmem>>, vector<1x70x64xf32>,
    %c0_212 = arith.constant 0 : index
    %c122 = arith.constant 122 : index
    %c0_213 = arith.constant 0 : index
    %206 = vector.load %arg1[%c0_212, %c122, %c0_213] : memref<1x440x8xbf16, #tpu.memory_space<vmem>>, vector<1x70x8xbf16>
    %207 = vector.shape_cast %206 : vector<1x70x8xbf16> to vector<70x8xbf16>
    %c19 = arith.constant 19 : index
    %c0_214 = arith.constant 0 : index
    %c0_215 = arith.constant 0 : index
    %208 = vector.load %arg2[%c19, %c0_214, %c0_215] : memref<49x8x64xbf16, #tpu.memory_space<vmem>>, vector<1x8x64xbf16>
    %209 = vector.shape_cast %208 : vector<1x8x64xbf16> to vector<8x64xbf16>
    %cst_216 = arith.constant dense<0.000000e+00> : vector<70x64xf32>
    %210 = tpu.matmul %207, %209, %cst_216 {dimension_numbers = #tpu.dot_dimension_numbers<[1], [0], [0], [1], [0, 0, 1, 1], [], []>} : vector<70x8xbf16>, vector<8x64xbf16>, vector<70x64xf32> -> vector<70x64xf32>
    %c0_217 = arith.constant 0 : index
    %c0_218 = arith.constant 0 : index
    %c0_219 = arith.constant 0 : index
    %211 = vector.load %arg3[%c0_217, %c0_218, %c0_219] : memref<1x70x64xf32, #tpu.memory_space<vmem>>, vector<1x70x64xf32>
    %212 = vector.shape_cast %211 : vector<1x70x64xf32> to vector<70x64xf32>
    %213 = arith.addf %212, %210 : vector<70x64xf32>
    %c0_220 = arith.constant 0 : index
    %c0_221 = arith.constant 0 : index
    %c0_222 = arith.constant 0 : index
    %214 = vector.load %arg3[%c0_220, %c0_221, %c0_222] : memref<1x70x64xf32, #tpu.memory_space<vmem>>, vector<1x70x64xf32>
    %215 = vector.shape_cast %214 : vector<1x70x64xf32> to vector<70x64xf32>
    %216 = vector.shape_cast %213 : vector<70x64xf32> to vector<1x70x64xf32>
    tpu.vector_store %arg3[%c0_220, %c0_221, %c0_222], %216 {strides = array<i32>} : memref<1x70x64xf32, #tpu.memory_space<vmem>>, vector<1x70x64xf32>,
    %c0_223 = arith.constant 0 : index
    %c13_224 = arith.constant 13 : index
    %c0_225 = arith.constant 0 : index
    %217 = vector.load %arg1[%c0_223, %c13_224, %c0_225] : memref<1x440x8xbf16, #tpu.memory_space<vmem>>, vector<1x70x8xbf16>
    %218 = vector.shape_cast %217 : vector<1x70x8xbf16> to vector<70x8xbf16>
    %c20 = arith.constant 20 : index
    %c0_226 = arith.constant 0 : index
    %c0_227 = arith.constant 0 : index
    %219 = vector.load %arg2[%c20, %c0_226, %c0_227] : memref<49x8x64xbf16, #tpu.memory_space<vmem>>, vector<1x8x64xbf16>
    %220 = vector.shape_cast %219 : vector<1x8x64xbf16> to vector<8x64xbf16>
    %cst_228 = arith.constant dense<0.000000e+00> : vector<70x64xf32>
    %221 = tpu.matmul %218, %220, %cst_228 {dimension_numbers = #tpu.dot_dimension_numbers<[1], [0], [0], [1], [0, 0, 1, 1], [], []>} : vector<70x8xbf16>, vector<8x64xbf16>, vector<70x64xf32> -> vector<70x64xf32>
    %c0_229 = arith.constant 0 : index
    %c0_230 = arith.constant 0 : index
    %c0_231 = arith.constant 0 : index
    %222 = vector.load %arg3[%c0_229, %c0_230, %c0_231] : memref<1x70x64xf32, #tpu.memory_space<vmem>>, vector<1x70x64xf32>
    %223 = vector.shape_cast %222 : vector<1x70x64xf32> to vector<70x64xf32>
    %224 = arith.addf %223, %221 : vector<70x64xf32>
    %c0_232 = arith.constant 0 : index
    %c0_233 = arith.constant 0 : index
    %c0_234 = arith.constant 0 : index
    %225 = vector.load %arg3[%c0_232, %c0_233, %c0_234] : memref<1x70x64xf32, #tpu.memory_space<vmem>>, vector<1x70x64xf32>
    %226 = vector.shape_cast %225 : vector<1x70x64xf32> to vector<70x64xf32>
    %227 = vector.shape_cast %224 : vector<70x64xf32> to vector<1x70x64xf32>
    tpu.vector_store %arg3[%c0_232, %c0_233, %c0_234], %227 {strides = array<i32>} : memref<1x70x64xf32, #tpu.memory_space<vmem>>, vector<1x70x64xf32>,
    %c0_235 = arith.constant 0 : index
    %c230 = arith.constant 230 : index
    %c0_236 = arith.constant 0 : index
    %228 = vector.load %arg1[%c0_235, %c230, %c0_236] : memref<1x440x8xbf16, #tpu.memory_space<vmem>>, vector<1x70x8xbf16>
    %229 = vector.shape_cast %228 : vector<1x70x8xbf16> to vector<70x8xbf16>
    %c21 = arith.constant 21 : index
    %c0_237 = arith.constant 0 : index
    %c0_238 = arith.constant 0 : index
    %230 = vector.load %arg2[%c21, %c0_237, %c0_238] : memref<49x8x64xbf16, #tpu.memory_space<vmem>>, vector<1x8x64xbf16>
    %231 = vector.shape_cast %230 : vector<1x8x64xbf16> to vector<8x64xbf16>
    %cst_239 = arith.constant dense<0.000000e+00> : vector<70x64xf32>
    %232 = tpu.matmul %229, %231, %cst_239 {dimension_numbers = #tpu.dot_dimension_numbers<[1], [0], [0], [1], [0, 0, 1, 1], [], []>} : vector<70x8xbf16>, vector<8x64xbf16>, vector<70x64xf32> -> vector<70x64xf32>
    %c0_240 = arith.constant 0 : index
    %c0_241 = arith.constant 0 : index
    %c0_242 = arith.constant 0 : index
    %233 = vector.load %arg3[%c0_240, %c0_241, %c0_242] : memref<1x70x64xf32, #tpu.memory_space<vmem>>, vector<1x70x64xf32>
    %234 = vector.shape_cast %233 : vector<1x70x64xf32> to vector<70x64xf32>
    %235 = arith.addf %234, %232 : vector<70x64xf32>
    %c0_243 = arith.constant 0 : index
    %c0_244 = arith.constant 0 : index
    %c0_245 = arith.constant 0 : index
    %236 = vector.load %arg3[%c0_243, %c0_244, %c0_245] : memref<1x70x64xf32, #tpu.memory_space<vmem>>, vector<1x70x64xf32>
    %237 = vector.shape_cast %236 : vector<1x70x64xf32> to vector<70x64xf32>
    %238 = vector.shape_cast %235 : vector<70x64xf32> to vector<1x70x64xf32>
    tpu.vector_store %arg3[%c0_243, %c0_244, %c0_245], %238 {strides = array<i32>} : memref<1x70x64xf32, #tpu.memory_space<vmem>>, vector<1x70x64xf32>,
    %c0_246 = arith.constant 0 : index
    %c340 = arith.constant 340 : index
    %c0_247 = arith.constant 0 : index
    %239 = vector.load %arg1[%c0_246, %c340, %c0_247] : memref<1x440x8xbf16, #tpu.memory_space<vmem>>, vector<1x70x8xbf16>
    %240 = vector.shape_cast %239 : vector<1x70x8xbf16> to vector<70x8xbf16>
    %c22 = arith.constant 22 : index
    %c0_248 = arith.constant 0 : index
    %c0_249 = arith.constant 0 : index
    %241 = vector.load %arg2[%c22, %c0_248, %c0_249] : memref<49x8x64xbf16, #tpu.memory_space<vmem>>, vector<1x8x64xbf16>
    %242 = vector.shape_cast %241 : vector<1x8x64xbf16> to vector<8x64xbf16>
    %cst_250 = arith.constant dense<0.000000e+00> : vector<70x64xf32>
    %243 = tpu.matmul %240, %242, %cst_250 {dimension_numbers = #tpu.dot_dimension_numbers<[1], [0], [0], [1], [0, 0, 1, 1], [], []>} : vector<70x8xbf16>, vector<8x64xbf16>, vector<70x64xf32> -> vector<70x64xf32>
    %c0_251 = arith.constant 0 : index
    %c0_252 = arith.constant 0 : index
    %c0_253 = arith.constant 0 : index
    %244 = vector.load %arg3[%c0_251, %c0_252, %c0_253] : memref<1x70x64xf32, #tpu.memory_space<vmem>>, vector<1x70x64xf32>
    %245 = vector.shape_cast %244 : vector<1x70x64xf32> to vector<70x64xf32>
    %246 = arith.addf %245, %243 : vector<70x64xf32>
    %c0_254 = arith.constant 0 : index
    %c0_255 = arith.constant 0 : index
    %c0_256 = arith.constant 0 : index
    %247 = vector.load %arg3[%c0_254, %c0_255, %c0_256] : memref<1x70x64xf32, #tpu.memory_space<vmem>>, vector<1x70x64xf32>
    %248 = vector.shape_cast %247 : vector<1x70x64xf32> to vector<70x64xf32>
    %249 = vector.shape_cast %246 : vector<70x64xf32> to vector<1x70x64xf32>
    tpu.vector_store %arg3[%c0_254, %c0_255, %c0_256], %249 {strides = array<i32>} : memref<1x70x64xf32, #tpu.memory_space<vmem>>, vector<1x70x64xf32>,
    %c0_257 = arith.constant 0 : index
    %c231 = arith.constant 231 : index
    %c0_258 = arith.constant 0 : index
    %250 = vector.load %arg1[%c0_257, %c231, %c0_258] : memref<1x440x8xbf16, #tpu.memory_space<vmem>>, vector<1x70x8xbf16>
    %251 = vector.shape_cast %250 : vector<1x70x8xbf16> to vector<70x8xbf16>
    %c23 = arith.constant 23 : index
    %c0_259 = arith.constant 0 : index
    %c0_260 = arith.constant 0 : index
    %252 = vector.load %arg2[%c23, %c0_259, %c0_260] : memref<49x8x64xbf16, #tpu.memory_space<vmem>>, vector<1x8x64xbf16>
    %253 = vector.shape_cast %252 : vector<1x8x64xbf16> to vector<8x64xbf16>
    %cst_261 = arith.constant dense<0.000000e+00> : vector<70x64xf32>
    %254 = tpu.matmul %251, %253, %cst_261 {dimension_numbers = #tpu.dot_dimension_numbers<[1], [0], [0], [1], [0, 0, 1, 1], [], []>} : vector<70x8xbf16>, vector<8x64xbf16>, vector<70x64xf32> -> vector<70x64xf32>
    %c0_262 = arith.constant 0 : index
    %c0_263 = arith.constant 0 : index
    %c0_264 = arith.constant 0 : index
    %255 = vector.load %arg3[%c0_262, %c0_263, %c0_264] : memref<1x70x64xf32, #tpu.memory_space<vmem>>, vector<1x70x64xf32>
    %256 = vector.shape_cast %255 : vector<1x70x64xf32> to vector<70x64xf32>
    %257 = arith.addf %256, %254 : vector<70x64xf32>
    %c0_265 = arith.constant 0 : index
    %c0_266 = arith.constant 0 : index
    %c0_267 = arith.constant 0 : index
    %258 = vector.load %arg3[%c0_265, %c0_266, %c0_267] : memref<1x70x64xf32, #tpu.memory_space<vmem>>, vector<1x70x64xf32>
    %259 = vector.shape_cast %258 : vector<1x70x64xf32> to vector<70x64xf32>
    %260 = vector.shape_cast %257 : vector<70x64xf32> to vector<1x70x64xf32>
    tpu.vector_store %arg3[%c0_265, %c0_266, %c0_267], %260 {strides = array<i32>} : memref<1x70x64xf32, #tpu.memory_space<vmem>>, vector<1x70x64xf32>,
    %c0_268 = arith.constant 0 : index
    %c341 = arith.constant 341 : index
    %c0_269 = arith.constant 0 : index
    %261 = vector.load %arg1[%c0_268, %c341, %c0_269] : memref<1x440x8xbf16, #tpu.memory_space<vmem>>, vector<1x70x8xbf16>
    %262 = vector.shape_cast %261 : vector<1x70x8xbf16> to vector<70x8xbf16>
    %c24 = arith.constant 24 : index
    %c0_270 = arith.constant 0 : index
    %c0_271 = arith.constant 0 : index
    %263 = vector.load %arg2[%c24, %c0_270, %c0_271] : memref<49x8x64xbf16, #tpu.memory_space<vmem>>, vector<1x8x64xbf16>
    %264 = vector.shape_cast %263 : vector<1x8x64xbf16> to vector<8x64xbf16>
    %cst_272 = arith.constant dense<0.000000e+00> : vector<70x64xf32>
    %265 = tpu.matmul %262, %264, %cst_272 {dimension_numbers = #tpu.dot_dimension_numbers<[1], [0], [0], [1], [0, 0, 1, 1], [], []>} : vector<70x8xbf16>, vector<8x64xbf16>, vector<70x64xf32> -> vector<70x64xf32>
    %c0_273 = arith.constant 0 : index
    %c0_274 = arith.constant 0 : index
    %c0_275 = arith.constant 0 : index
    %266 = vector.load %arg3[%c0_273, %c0_274, %c0_275] : memref<1x70x64xf32, #tpu.memory_space<vmem>>, vector<1x70x64xf32>
    %267 = vector.shape_cast %266 : vector<1x70x64xf32> to vector<70x64xf32>
    %268 = arith.addf %267, %265 : vector<70x64xf32>
    %c0_276 = arith.constant 0 : index
    %c0_277 = arith.constant 0 : index
    %c0_278 = arith.constant 0 : index
    %269 = vector.load %arg3[%c0_276, %c0_277, %c0_278] : memref<1x70x64xf32, #tpu.memory_space<vmem>>, vector<1x70x64xf32>
    %270 = vector.shape_cast %269 : vector<1x70x64xf32> to vector<70x64xf32>
    %271 = vector.shape_cast %268 : vector<70x64xf32> to vector<1x70x64xf32>
    tpu.vector_store %arg3[%c0_276, %c0_277, %c0_278], %271 {strides = array<i32>} : memref<1x70x64xf32, #tpu.memory_space<vmem>>, vector<1x70x64xf32>,
    %c0_279 = arith.constant 0 : index
    %c232 = arith.constant 232 : index
    %c0_280 = arith.constant 0 : index
    %272 = vector.load %arg1[%c0_279, %c232, %c0_280] : memref<1x440x8xbf16, #tpu.memory_space<vmem>>, vector<1x70x8xbf16>
    %273 = vector.shape_cast %272 : vector<1x70x8xbf16> to vector<70x8xbf16>
    %c25 = arith.constant 25 : index
    %c0_281 = arith.constant 0 : index
    %c0_282 = arith.constant 0 : index
    %274 = vector.load %arg2[%c25, %c0_281, %c0_282] : memref<49x8x64xbf16, #tpu.memory_space<vmem>>, vector<1x8x64xbf16>
    %275 = vector.shape_cast %274 : vector<1x8x64xbf16> to vector<8x64xbf16>
    %cst_283 = arith.constant dense<0.000000e+00> : vector<70x64xf32>
    %276 = tpu.matmul %273, %275, %cst_283 {dimension_numbers = #tpu.dot_dimension_numbers<[1], [0], [0], [1], [0, 0, 1, 1], [], []>} : vector<70x8xbf16>, vector<8x64xbf16>, vector<70x64xf32> -> vector<70x64xf32>
    %c0_284 = arith.constant 0 : index
    %c0_285 = arith.constant 0 : index
    %c0_286 = arith.constant 0 : index
    %277 = vector.load %arg3[%c0_284, %c0_285, %c0_286] : memref<1x70x64xf32, #tpu.memory_space<vmem>>, vector<1x70x64xf32>
    %278 = vector.shape_cast %277 : vector<1x70x64xf32> to vector<70x64xf32>
    %279 = arith.addf %278, %276 : vector<70x64xf32>
    %c0_287 = arith.constant 0 : index
    %c0_288 = arith.constant 0 : index
    %c0_289 = arith.constant 0 : index
    %280 = vector.load %arg3[%c0_287, %c0_288, %c0_289] : memref<1x70x64xf32, #tpu.memory_space<vmem>>, vector<1x70x64xf32>
    %281 = vector.shape_cast %280 : vector<1x70x64xf32> to vector<70x64xf32>
    %282 = vector.shape_cast %279 : vector<70x64xf32> to vector<1x70x64xf32>
    tpu.vector_store %arg3[%c0_287, %c0_288, %c0_289], %282 {strides = array<i32>} : memref<1x70x64xf32, #tpu.memory_space<vmem>>, vector<1x70x64xf32>,
    %c0_290 = arith.constant 0 : index
    %c342 = arith.constant 342 : index
    %c0_291 = arith.constant 0 : index
    %283 = vector.load %arg1[%c0_290, %c342, %c0_291] : memref<1x440x8xbf16, #tpu.memory_space<vmem>>, vector<1x70x8xbf16>
    %284 = vector.shape_cast %283 : vector<1x70x8xbf16> to vector<70x8xbf16>
    %c26 = arith.constant 26 : index
    %c0_292 = arith.constant 0 : index
    %c0_293 = arith.constant 0 : index
    %285 = vector.load %arg2[%c26, %c0_292, %c0_293] : memref<49x8x64xbf16, #tpu.memory_space<vmem>>, vector<1x8x64xbf16>
    %286 = vector.shape_cast %285 : vector<1x8x64xbf16> to vector<8x64xbf16>
    %cst_294 = arith.constant dense<0.000000e+00> : vector<70x64xf32>
    %287 = tpu.matmul %284, %286, %cst_294 {dimension_numbers = #tpu.dot_dimension_numbers<[1], [0], [0], [1], [0, 0, 1, 1], [], []>} : vector<70x8xbf16>, vector<8x64xbf16>, vector<70x64xf32> -> vector<70x64xf32>
    %c0_295 = arith.constant 0 : index
    %c0_296 = arith.constant 0 : index
    %c0_297 = arith.constant 0 : index
    %288 = vector.load %arg3[%c0_295, %c0_296, %c0_297] : memref<1x70x64xf32, #tpu.memory_space<vmem>>, vector<1x70x64xf32>
    %289 = vector.shape_cast %288 : vector<1x70x64xf32> to vector<70x64xf32>
    %290 = arith.addf %289, %287 : vector<70x64xf32>
    %c0_298 = arith.constant 0 : index
    %c0_299 = arith.constant 0 : index
    %c0_300 = arith.constant 0 : index
    %291 = vector.load %arg3[%c0_298, %c0_299, %c0_300] : memref<1x70x64xf32, #tpu.memory_space<vmem>>, vector<1x70x64xf32>
    %292 = vector.shape_cast %291 : vector<1x70x64xf32> to vector<70x64xf32>
    %293 = vector.shape_cast %290 : vector<70x64xf32> to vector<1x70x64xf32>
    tpu.vector_store %arg3[%c0_298, %c0_299, %c0_300], %293 {strides = array<i32>} : memref<1x70x64xf32, #tpu.memory_space<vmem>>, vector<1x70x64xf32>,
    %c0_301 = arith.constant 0 : index
    %c233 = arith.constant 233 : index
    %c0_302 = arith.constant 0 : index
    %294 = vector.load %arg1[%c0_301, %c233, %c0_302] : memref<1x440x8xbf16, #tpu.memory_space<vmem>>, vector<1x70x8xbf16>
    %295 = vector.shape_cast %294 : vector<1x70x8xbf16> to vector<70x8xbf16>
    %c27 = arith.constant 27 : index
    %c0_303 = arith.constant 0 : index
    %c0_304 = arith.constant 0 : index
    %296 = vector.load %arg2[%c27, %c0_303, %c0_304] : memref<49x8x64xbf16, #tpu.memory_space<vmem>>, vector<1x8x64xbf16>
    %297 = vector.shape_cast %296 : vector<1x8x64xbf16> to vector<8x64xbf16>
    %cst_305 = arith.constant dense<0.000000e+00> : vector<70x64xf32>
    %298 = tpu.matmul %295, %297, %cst_305 {dimension_numbers = #tpu.dot_dimension_numbers<[1], [0], [0], [1], [0, 0, 1, 1], [], []>} : vector<70x8xbf16>, vector<8x64xbf16>, vector<70x64xf32> -> vector<70x64xf32>
    %c0_306 = arith.constant 0 : index
    %c0_307 = arith.constant 0 : index
    %c0_308 = arith.constant 0 : index
    %299 = vector.load %arg3[%c0_306, %c0_307, %c0_308] : memref<1x70x64xf32, #tpu.memory_space<vmem>>, vector<1x70x64xf32>
    %300 = vector.shape_cast %299 : vector<1x70x64xf32> to vector<70x64xf32>
    %301 = arith.addf %300, %298 : vector<70x64xf32>
    %c0_309 = arith.constant 0 : index
    %c0_310 = arith.constant 0 : index
    %c0_311 = arith.constant 0 : index
    %302 = vector.load %arg3[%c0_309, %c0_310, %c0_311] : memref<1x70x64xf32, #tpu.memory_space<vmem>>, vector<1x70x64xf32>
    %303 = vector.shape_cast %302 : vector<1x70x64xf32> to vector<70x64xf32>
    %304 = vector.shape_cast %301 : vector<70x64xf32> to vector<1x70x64xf32>
    tpu.vector_store %arg3[%c0_309, %c0_310, %c0_311], %304 {strides = array<i32>} : memref<1x70x64xf32, #tpu.memory_space<vmem>>, vector<1x70x64xf32>,
    %c0_312 = arith.constant 0 : index
    %c20_313 = arith.constant 20 : index
    %c0_314 = arith.constant 0 : index
    %305 = vector.load %arg1[%c0_312, %c20_313, %c0_314] : memref<1x440x8xbf16, #tpu.memory_space<vmem>>, vector<1x70x8xbf16>
    %306 = vector.shape_cast %305 : vector<1x70x8xbf16> to vector<70x8xbf16>
    %c28 = arith.constant 28 : index
    %c0_315 = arith.constant 0 : index
    %c0_316 = arith.constant 0 : index
    %307 = vector.load %arg2[%c28, %c0_315, %c0_316] : memref<49x8x64xbf16, #tpu.memory_space<vmem>>, vector<1x8x64xbf16>
    %308 = vector.shape_cast %307 : vector<1x8x64xbf16> to vector<8x64xbf16>
    %cst_317 = arith.constant dense<0.000000e+00> : vector<70x64xf32>
    %309 = tpu.matmul %306, %308, %cst_317 {dimension_numbers = #tpu.dot_dimension_numbers<[1], [0], [0], [1], [0, 0, 1, 1], [], []>} : vector<70x8xbf16>, vector<8x64xbf16>, vector<70x64xf32> -> vector<70x64xf32>
    %c0_318 = arith.constant 0 : index
    %c0_319 = arith.constant 0 : index
    %c0_320 = arith.constant 0 : index
    %310 = vector.load %arg3[%c0_318, %c0_319, %c0_320] : memref<1x70x64xf32, #tpu.memory_space<vmem>>, vector<1x70x64xf32>
    %311 = vector.shape_cast %310 : vector<1x70x64xf32> to vector<70x64xf32>
    %312 = arith.addf %311, %309 : vector<70x64xf32>
    %c0_321 = arith.constant 0 : index
    %c0_322 = arith.constant 0 : index
    %c0_323 = arith.constant 0 : index
    %313 = vector.load %arg3[%c0_321, %c0_322, %c0_323] : memref<1x70x64xf32, #tpu.memory_space<vmem>>, vector<1x70x64xf32>
    %314 = vector.shape_cast %313 : vector<1x70x64xf32> to vector<70x64xf32>
    %315 = vector.shape_cast %312 : vector<70x64xf32> to vector<1x70x64xf32>
    tpu.vector_store %arg3[%c0_321, %c0_322, %c0_323], %315 {strides = array<i32>} : memref<1x70x64xf32, #tpu.memory_space<vmem>>, vector<1x70x64xf32>,
    %c0_324 = arith.constant 0 : index
    %c130 = arith.constant 130 : index
    %c0_325 = arith.constant 0 : index
    %316 = vector.load %arg1[%c0_324, %c130, %c0_325] : memref<1x440x8xbf16, #tpu.memory_space<vmem>>, vector<1x70x8xbf16>
    %317 = vector.shape_cast %316 : vector<1x70x8xbf16> to vector<70x8xbf16>
    %c29 = arith.constant 29 : index
    %c0_326 = arith.constant 0 : index
    %c0_327 = arith.constant 0 : index
    %318 = vector.load %arg2[%c29, %c0_326, %c0_327] : memref<49x8x64xbf16, #tpu.memory_space<vmem>>, vector<1x8x64xbf16>
    %319 = vector.shape_cast %318 : vector<1x8x64xbf16> to vector<8x64xbf16>
    %cst_328 = arith.constant dense<0.000000e+00> : vector<70x64xf32>
    %320 = tpu.matmul %317, %319, %cst_328 {dimension_numbers = #tpu.dot_dimension_numbers<[1], [0], [0], [1], [0, 0, 1, 1], [], []>} : vector<70x8xbf16>, vector<8x64xbf16>, vector<70x64xf32> -> vector<70x64xf32>
    %c0_329 = arith.constant 0 : index
    %c0_330 = arith.constant 0 : index
    %c0_331 = arith.constant 0 : index
    %321 = vector.load %arg3[%c0_329, %c0_330, %c0_331] : memref<1x70x64xf32, #tpu.memory_space<vmem>>, vector<1x70x64xf32>
    %322 = vector.shape_cast %321 : vector<1x70x64xf32> to vector<70x64xf32>
    %323 = arith.addf %322, %320 : vector<70x64xf32>
    %c0_332 = arith.constant 0 : index
    %c0_333 = arith.constant 0 : index
    %c0_334 = arith.constant 0 : index
    %324 = vector.load %arg3[%c0_332, %c0_333, %c0_334] : memref<1x70x64xf32, #tpu.memory_space<vmem>>, vector<1x70x64xf32>
    %325 = vector.shape_cast %324 : vector<1x70x64xf32> to vector<70x64xf32>
    %326 = vector.shape_cast %323 : vector<70x64xf32> to vector<1x70x64xf32>
    tpu.vector_store %arg3[%c0_332, %c0_333, %c0_334], %326 {strides = array<i32>} : memref<1x70x64xf32, #tpu.memory_space<vmem>>, vector<1x70x64xf32>,
    %c0_335 = arith.constant 0 : index
    %c21_336 = arith.constant 21 : index
    %c0_337 = arith.constant 0 : index
    %327 = vector.load %arg1[%c0_335, %c21_336, %c0_337] : memref<1x440x8xbf16, #tpu.memory_space<vmem>>, vector<1x70x8xbf16>
    %328 = vector.shape_cast %327 : vector<1x70x8xbf16> to vector<70x8xbf16>
    %c30 = arith.constant 30 : index
    %c0_338 = arith.constant 0 : index
    %c0_339 = arith.constant 0 : index
    %329 = vector.load %arg2[%c30, %c0_338, %c0_339] : memref<49x8x64xbf16, #tpu.memory_space<vmem>>, vector<1x8x64xbf16>
    %330 = vector.shape_cast %329 : vector<1x8x64xbf16> to vector<8x64xbf16>
    %cst_340 = arith.constant dense<0.000000e+00> : vector<70x64xf32>
    %331 = tpu.matmul %328, %330, %cst_340 {dimension_numbers = #tpu.dot_dimension_numbers<[1], [0], [0], [1], [0, 0, 1, 1], [], []>} : vector<70x8xbf16>, vector<8x64xbf16>, vector<70x64xf32> -> vector<70x64xf32>
    %c0_341 = arith.constant 0 : index
    %c0_342 = arith.constant 0 : index
    %c0_343 = arith.constant 0 : index
    %332 = vector.load %arg3[%c0_341, %c0_342, %c0_343] : memref<1x70x64xf32, #tpu.memory_space<vmem>>, vector<1x70x64xf32>
    %333 = vector.shape_cast %332 : vector<1x70x64xf32> to vector<70x64xf32>
    %334 = arith.addf %333, %331 : vector<70x64xf32>
    %c0_344 = arith.constant 0 : index
    %c0_345 = arith.constant 0 : index
    %c0_346 = arith.constant 0 : index
    %335 = vector.load %arg3[%c0_344, %c0_345, %c0_346] : memref<1x70x64xf32, #tpu.memory_space<vmem>>, vector<1x70x64xf32>
    %336 = vector.shape_cast %335 : vector<1x70x64xf32> to vector<70x64xf32>
    %337 = vector.shape_cast %334 : vector<70x64xf32> to vector<1x70x64xf32>
    tpu.vector_store %arg3[%c0_344, %c0_345, %c0_346], %337 {strides = array<i32>} : memref<1x70x64xf32, #tpu.memory_space<vmem>>, vector<1x70x64xf32>,
    %c0_347 = arith.constant 0 : index
    %c131 = arith.constant 131 : index
    %c0_348 = arith.constant 0 : index
    %338 = vector.load %arg1[%c0_347, %c131, %c0_348] : memref<1x440x8xbf16, #tpu.memory_space<vmem>>, vector<1x70x8xbf16>
    %339 = vector.shape_cast %338 : vector<1x70x8xbf16> to vector<70x8xbf16>
    %c31 = arith.constant 31 : index
    %c0_349 = arith.constant 0 : index
    %c0_350 = arith.constant 0 : index
    %340 = vector.load %arg2[%c31, %c0_349, %c0_350] : memref<49x8x64xbf16, #tpu.memory_space<vmem>>, vector<1x8x64xbf16>
    %341 = vector.shape_cast %340 : vector<1x8x64xbf16> to vector<8x64xbf16>
    %cst_351 = arith.constant dense<0.000000e+00> : vector<70x64xf32>
    %342 = tpu.matmul %339, %341, %cst_351 {dimension_numbers = #tpu.dot_dimension_numbers<[1], [0], [0], [1], [0, 0, 1, 1], [], []>} : vector<70x8xbf16>, vector<8x64xbf16>, vector<70x64xf32> -> vector<70x64xf32>
    %c0_352 = arith.constant 0 : index
    %c0_353 = arith.constant 0 : index
    %c0_354 = arith.constant 0 : index
    %343 = vector.load %arg3[%c0_352, %c0_353, %c0_354] : memref<1x70x64xf32, #tpu.memory_space<vmem>>, vector<1x70x64xf32>
    %344 = vector.shape_cast %343 : vector<1x70x64xf32> to vector<70x64xf32>
    %345 = arith.addf %344, %342 : vector<70x64xf32>
    %c0_355 = arith.constant 0 : index
    %c0_356 = arith.constant 0 : index
    %c0_357 = arith.constant 0 : index
    %346 = vector.load %arg3[%c0_355, %c0_356, %c0_357] : memref<1x70x64xf32, #tpu.memory_space<vmem>>, vector<1x70x64xf32>
    %347 = vector.shape_cast %346 : vector<1x70x64xf32> to vector<70x64xf32>
    %348 = vector.shape_cast %345 : vector<70x64xf32> to vector<1x70x64xf32>
    tpu.vector_store %arg3[%c0_355, %c0_356, %c0_357], %348 {strides = array<i32>} : memref<1x70x64xf32, #tpu.memory_space<vmem>>, vector<1x70x64xf32>,
    %c0_358 = arith.constant 0 : index
    %c22_359 = arith.constant 22 : index
    %c0_360 = arith.constant 0 : index
    %349 = vector.load %arg1[%c0_358, %c22_359, %c0_360] : memref<1x440x8xbf16, #tpu.memory_space<vmem>>, vector<1x70x8xbf16>
    %350 = vector.shape_cast %349 : vector<1x70x8xbf16> to vector<70x8xbf16>
    %c32 = arith.constant 32 : index
    %c0_361 = arith.constant 0 : index
    %c0_362 = arith.constant 0 : index
    %351 = vector.load %arg2[%c32, %c0_361, %c0_362] : memref<49x8x64xbf16, #tpu.memory_space<vmem>>, vector<1x8x64xbf16>
    %352 = vector.shape_cast %351 : vector<1x8x64xbf16> to vector<8x64xbf16>
    %cst_363 = arith.constant dense<0.000000e+00> : vector<70x64xf32>
    %353 = tpu.matmul %350, %352, %cst_363 {dimension_numbers = #tpu.dot_dimension_numbers<[1], [0], [0], [1], [0, 0, 1, 1], [], []>} : vector<70x8xbf16>, vector<8x64xbf16>, vector<70x64xf32> -> vector<70x64xf32>
    %c0_364 = arith.constant 0 : index
    %c0_365 = arith.constant 0 : index
    %c0_366 = arith.constant 0 : index
    %354 = vector.load %arg3[%c0_364, %c0_365, %c0_366] : memref<1x70x64xf32, #tpu.memory_space<vmem>>, vector<1x70x64xf32>
    %355 = vector.shape_cast %354 : vector<1x70x64xf32> to vector<70x64xf32>
    %356 = arith.addf %355, %353 : vector<70x64xf32>
    %c0_367 = arith.constant 0 : index
    %c0_368 = arith.constant 0 : index
    %c0_369 = arith.constant 0 : index
    %357 = vector.load %arg3[%c0_367, %c0_368, %c0_369] : memref<1x70x64xf32, #tpu.memory_space<vmem>>, vector<1x70x64xf32>
    %358 = vector.shape_cast %357 : vector<1x70x64xf32> to vector<70x64xf32>
    %359 = vector.shape_cast %356 : vector<70x64xf32> to vector<1x70x64xf32>
    tpu.vector_store %arg3[%c0_367, %c0_368, %c0_369], %359 {strides = array<i32>} : memref<1x70x64xf32, #tpu.memory_space<vmem>>, vector<1x70x64xf32>,
    %c0_370 = arith.constant 0 : index
    %c132 = arith.constant 132 : index
    %c0_371 = arith.constant 0 : index
    %360 = vector.load %arg1[%c0_370, %c132, %c0_371] : memref<1x440x8xbf16, #tpu.memory_space<vmem>>, vector<1x70x8xbf16>
    %361 = vector.shape_cast %360 : vector<1x70x8xbf16> to vector<70x8xbf16>
    %c33 = arith.constant 33 : index
    %c0_372 = arith.constant 0 : index
    %c0_373 = arith.constant 0 : index
    %362 = vector.load %arg2[%c33, %c0_372, %c0_373] : memref<49x8x64xbf16, #tpu.memory_space<vmem>>, vector<1x8x64xbf16>
    %363 = vector.shape_cast %362 : vector<1x8x64xbf16> to vector<8x64xbf16>
    %cst_374 = arith.constant dense<0.000000e+00> : vector<70x64xf32>
    %364 = tpu.matmul %361, %363, %cst_374 {dimension_numbers = #tpu.dot_dimension_numbers<[1], [0], [0], [1], [0, 0, 1, 1], [], []>} : vector<70x8xbf16>, vector<8x64xbf16>, vector<70x64xf32> -> vector<70x64xf32>
    %c0_375 = arith.constant 0 : index
    %c0_376 = arith.constant 0 : index
    %c0_377 = arith.constant 0 : index
    %365 = vector.load %arg3[%c0_375, %c0_376, %c0_377] : memref<1x70x64xf32, #tpu.memory_space<vmem>>, vector<1x70x64xf32>
    %366 = vector.shape_cast %365 : vector<1x70x64xf32> to vector<70x64xf32>
    %367 = arith.addf %366, %364 : vector<70x64xf32>
    %c0_378 = arith.constant 0 : index
    %c0_379 = arith.constant 0 : index
    %c0_380 = arith.constant 0 : index
    %368 = vector.load %arg3[%c0_378, %c0_379, %c0_380] : memref<1x70x64xf32, #tpu.memory_space<vmem>>, vector<1x70x64xf32>
    %369 = vector.shape_cast %368 : vector<1x70x64xf32> to vector<70x64xf32>
    %370 = vector.shape_cast %367 : vector<70x64xf32> to vector<1x70x64xf32>
    tpu.vector_store %arg3[%c0_378, %c0_379, %c0_380], %370 {strides = array<i32>} : memref<1x70x64xf32, #tpu.memory_space<vmem>>, vector<1x70x64xf32>,
    %c0_381 = arith.constant 0 : index
    %c23_382 = arith.constant 23 : index
    %c0_383 = arith.constant 0 : index
    %371 = vector.load %arg1[%c0_381, %c23_382, %c0_383] : memref<1x440x8xbf16, #tpu.memory_space<vmem>>, vector<1x70x8xbf16>
    %372 = vector.shape_cast %371 : vector<1x70x8xbf16> to vector<70x8xbf16>
    %c34 = arith.constant 34 : index
    %c0_384 = arith.constant 0 : index
    %c0_385 = arith.constant 0 : index
    %373 = vector.load %arg2[%c34, %c0_384, %c0_385] : memref<49x8x64xbf16, #tpu.memory_space<vmem>>, vector<1x8x64xbf16>
    %374 = vector.shape_cast %373 : vector<1x8x64xbf16> to vector<8x64xbf16>
    %cst_386 = arith.constant dense<0.000000e+00> : vector<70x64xf32>
    %375 = tpu.matmul %372, %374, %cst_386 {dimension_numbers = #tpu.dot_dimension_numbers<[1], [0], [0], [1], [0, 0, 1, 1], [], []>} : vector<70x8xbf16>, vector<8x64xbf16>, vector<70x64xf32> -> vector<70x64xf32>
    %c0_387 = arith.constant 0 : index
    %c0_388 = arith.constant 0 : index
    %c0_389 = arith.constant 0 : index
    %376 = vector.load %arg3[%c0_387, %c0_388, %c0_389] : memref<1x70x64xf32, #tpu.memory_space<vmem>>, vector<1x70x64xf32>
    %377 = vector.shape_cast %376 : vector<1x70x64xf32> to vector<70x64xf32>
    %378 = arith.addf %377, %375 : vector<70x64xf32>
    %c0_390 = arith.constant 0 : index
    %c0_391 = arith.constant 0 : index
    %c0_392 = arith.constant 0 : index
    %379 = vector.load %arg3[%c0_390, %c0_391, %c0_392] : memref<1x70x64xf32, #tpu.memory_space<vmem>>, vector<1x70x64xf32>
    %380 = vector.shape_cast %379 : vector<1x70x64xf32> to vector<70x64xf32>
    %381 = vector.shape_cast %378 : vector<70x64xf32> to vector<1x70x64xf32>
    tpu.vector_store %arg3[%c0_390, %c0_391, %c0_392], %381 {strides = array<i32>} : memref<1x70x64xf32, #tpu.memory_space<vmem>>, vector<1x70x64xf32>,
    %c0_393 = arith.constant 0 : index
    %c240 = arith.constant 240 : index
    %c0_394 = arith.constant 0 : index
    %382 = vector.load %arg1[%c0_393, %c240, %c0_394] : memref<1x440x8xbf16, #tpu.memory_space<vmem>>, vector<1x70x8xbf16>
    %383 = vector.shape_cast %382 : vector<1x70x8xbf16> to vector<70x8xbf16>
    %c35 = arith.constant 35 : index
    %c0_395 = arith.constant 0 : index
    %c0_396 = arith.constant 0 : index
    %384 = vector.load %arg2[%c35, %c0_395, %c0_396] : memref<49x8x64xbf16, #tpu.memory_space<vmem>>, vector<1x8x64xbf16>
    %385 = vector.shape_cast %384 : vector<1x8x64xbf16> to vector<8x64xbf16>
    %cst_397 = arith.constant dense<0.000000e+00> : vector<70x64xf32>
    %386 = tpu.matmul %383, %385, %cst_397 {dimension_numbers = #tpu.dot_dimension_numbers<[1], [0], [0], [1], [0, 0, 1, 1], [], []>} : vector<70x8xbf16>, vector<8x64xbf16>, vector<70x64xf32> -> vector<70x64xf32>
    %c0_398 = arith.constant 0 : index
    %c0_399 = arith.constant 0 : index
    %c0_400 = arith.constant 0 : index
    %387 = vector.load %arg3[%c0_398, %c0_399, %c0_400] : memref<1x70x64xf32, #tpu.memory_space<vmem>>, vector<1x70x64xf32>
    %388 = vector.shape_cast %387 : vector<1x70x64xf32> to vector<70x64xf32>
    %389 = arith.addf %388, %386 : vector<70x64xf32>
    %c0_401 = arith.constant 0 : index
    %c0_402 = arith.constant 0 : index
    %c0_403 = arith.constant 0 : index
    %390 = vector.load %arg3[%c0_401, %c0_402, %c0_403] : memref<1x70x64xf32, #tpu.memory_space<vmem>>, vector<1x70x64xf32>
    %391 = vector.shape_cast %390 : vector<1x70x64xf32> to vector<70x64xf32>
    %392 = vector.shape_cast %389 : vector<70x64xf32> to vector<1x70x64xf32>
    tpu.vector_store %arg3[%c0_401, %c0_402, %c0_403], %392 {strides = array<i32>} : memref<1x70x64xf32, #tpu.memory_space<vmem>>, vector<1x70x64xf32>,
    %c0_404 = arith.constant 0 : index
    %c350 = arith.constant 350 : index
    %c0_405 = arith.constant 0 : index
    %393 = vector.load %arg1[%c0_404, %c350, %c0_405] : memref<1x440x8xbf16, #tpu.memory_space<vmem>>, vector<1x70x8xbf16>
    %394 = vector.shape_cast %393 : vector<1x70x8xbf16> to vector<70x8xbf16>
    %c36 = arith.constant 36 : index
    %c0_406 = arith.constant 0 : index
    %c0_407 = arith.constant 0 : index
    %395 = vector.load %arg2[%c36, %c0_406, %c0_407] : memref<49x8x64xbf16, #tpu.memory_space<vmem>>, vector<1x8x64xbf16>
    %396 = vector.shape_cast %395 : vector<1x8x64xbf16> to vector<8x64xbf16>
    %cst_408 = arith.constant dense<0.000000e+00> : vector<70x64xf32>
    %397 = tpu.matmul %394, %396, %cst_408 {dimension_numbers = #tpu.dot_dimension_numbers<[1], [0], [0], [1], [0, 0, 1, 1], [], []>} : vector<70x8xbf16>, vector<8x64xbf16>, vector<70x64xf32> -> vector<70x64xf32>
    %c0_409 = arith.constant 0 : index
    %c0_410 = arith.constant 0 : index
    %c0_411 = arith.constant 0 : index
    %398 = vector.load %arg3[%c0_409, %c0_410, %c0_411] : memref<1x70x64xf32, #tpu.memory_space<vmem>>, vector<1x70x64xf32>
    %399 = vector.shape_cast %398 : vector<1x70x64xf32> to vector<70x64xf32>
    %400 = arith.addf %399, %397 : vector<70x64xf32>
    %c0_412 = arith.constant 0 : index
    %c0_413 = arith.constant 0 : index
    %c0_414 = arith.constant 0 : index
    %401 = vector.load %arg3[%c0_412, %c0_413, %c0_414] : memref<1x70x64xf32, #tpu.memory_space<vmem>>, vector<1x70x64xf32>
    %402 = vector.shape_cast %401 : vector<1x70x64xf32> to vector<70x64xf32>
    %403 = vector.shape_cast %400 : vector<70x64xf32> to vector<1x70x64xf32>
    tpu.vector_store %arg3[%c0_412, %c0_413, %c0_414], %403 {strides = array<i32>} : memref<1x70x64xf32, #tpu.memory_space<vmem>>, vector<1x70x64xf32>,
    %c0_415 = arith.constant 0 : index
    %c241 = arith.constant 241 : index
    %c0_416 = arith.constant 0 : index
    %404 = vector.load %arg1[%c0_415, %c241, %c0_416] : memref<1x440x8xbf16, #tpu.memory_space<vmem>>, vector<1x70x8xbf16>
    %405 = vector.shape_cast %404 : vector<1x70x8xbf16> to vector<70x8xbf16>
    %c37 = arith.constant 37 : index
    %c0_417 = arith.constant 0 : index
    %c0_418 = arith.constant 0 : index
    %406 = vector.load %arg2[%c37, %c0_417, %c0_418] : memref<49x8x64xbf16, #tpu.memory_space<vmem>>, vector<1x8x64xbf16>
    %407 = vector.shape_cast %406 : vector<1x8x64xbf16> to vector<8x64xbf16>
    %cst_419 = arith.constant dense<0.000000e+00> : vector<70x64xf32>
    %408 = tpu.matmul %405, %407, %cst_419 {dimension_numbers = #tpu.dot_dimension_numbers<[1], [0], [0], [1], [0, 0, 1, 1], [], []>} : vector<70x8xbf16>, vector<8x64xbf16>, vector<70x64xf32> -> vector<70x64xf32>
    %c0_420 = arith.constant 0 : index
    %c0_421 = arith.constant 0 : index
    %c0_422 = arith.constant 0 : index
    %409 = vector.load %arg3[%c0_420, %c0_421, %c0_422] : memref<1x70x64xf32, #tpu.memory_space<vmem>>, vector<1x70x64xf32>
    %410 = vector.shape_cast %409 : vector<1x70x64xf32> to vector<70x64xf32>
    %411 = arith.addf %410, %408 : vector<70x64xf32>
    %c0_423 = arith.constant 0 : index
    %c0_424 = arith.constant 0 : index
    %c0_425 = arith.constant 0 : index
    %412 = vector.load %arg3[%c0_423, %c0_424, %c0_425] : memref<1x70x64xf32, #tpu.memory_space<vmem>>, vector<1x70x64xf32>
    %413 = vector.shape_cast %412 : vector<1x70x64xf32> to vector<70x64xf32>
    %414 = vector.shape_cast %411 : vector<70x64xf32> to vector<1x70x64xf32>
    tpu.vector_store %arg3[%c0_423, %c0_424, %c0_425], %414 {strides = array<i32>} : memref<1x70x64xf32, #tpu.memory_space<vmem>>, vector<1x70x64xf32>,
    %c0_426 = arith.constant 0 : index
    %c351 = arith.constant 351 : index
    %c0_427 = arith.constant 0 : index
    %415 = vector.load %arg1[%c0_426, %c351, %c0_427] : memref<1x440x8xbf16, #tpu.memory_space<vmem>>, vector<1x70x8xbf16>
    %416 = vector.shape_cast %415 : vector<1x70x8xbf16> to vector<70x8xbf16>
    %c38 = arith.constant 38 : index
    %c0_428 = arith.constant 0 : index
    %c0_429 = arith.constant 0 : index
    %417 = vector.load %arg2[%c38, %c0_428, %c0_429] : memref<49x8x64xbf16, #tpu.memory_space<vmem>>, vector<1x8x64xbf16>
    %418 = vector.shape_cast %417 : vector<1x8x64xbf16> to vector<8x64xbf16>
    %cst_430 = arith.constant dense<0.000000e+00> : vector<70x64xf32>
    %419 = tpu.matmul %416, %418, %cst_430 {dimension_numbers = #tpu.dot_dimension_numbers<[1], [0], [0], [1], [0, 0, 1, 1], [], []>} : vector<70x8xbf16>, vector<8x64xbf16>, vector<70x64xf32> -> vector<70x64xf32>
    %c0_431 = arith.constant 0 : index
    %c0_432 = arith.constant 0 : index
    %c0_433 = arith.constant 0 : index
    %420 = vector.load %arg3[%c0_431, %c0_432, %c0_433] : memref<1x70x64xf32, #tpu.memory_space<vmem>>, vector<1x70x64xf32>
    %421 = vector.shape_cast %420 : vector<1x70x64xf32> to vector<70x64xf32>
    %422 = arith.addf %421, %419 : vector<70x64xf32>
    %c0_434 = arith.constant 0 : index
    %c0_435 = arith.constant 0 : index
    %c0_436 = arith.constant 0 : index
    %423 = vector.load %arg3[%c0_434, %c0_435, %c0_436] : memref<1x70x64xf32, #tpu.memory_space<vmem>>, vector<1x70x64xf32>
    %424 = vector.shape_cast %423 : vector<1x70x64xf32> to vector<70x64xf32>
    %425 = vector.shape_cast %422 : vector<70x64xf32> to vector<1x70x64xf32>
    tpu.vector_store %arg3[%c0_434, %c0_435, %c0_436], %425 {strides = array<i32>} : memref<1x70x64xf32, #tpu.memory_space<vmem>>, vector<1x70x64xf32>,
    %c0_437 = arith.constant 0 : index
    %c242 = arith.constant 242 : index
    %c0_438 = arith.constant 0 : index
    %426 = vector.load %arg1[%c0_437, %c242, %c0_438] : memref<1x440x8xbf16, #tpu.memory_space<vmem>>, vector<1x70x8xbf16>
    %427 = vector.shape_cast %426 : vector<1x70x8xbf16> to vector<70x8xbf16>
    %c39 = arith.constant 39 : index
    %c0_439 = arith.constant 0 : index
    %c0_440 = arith.constant 0 : index
    %428 = vector.load %arg2[%c39, %c0_439, %c0_440] : memref<49x8x64xbf16, #tpu.memory_space<vmem>>, vector<1x8x64xbf16>
    %429 = vector.shape_cast %428 : vector<1x8x64xbf16> to vector<8x64xbf16>
    %cst_441 = arith.constant dense<0.000000e+00> : vector<70x64xf32>
    %430 = tpu.matmul %427, %429, %cst_441 {dimension_numbers = #tpu.dot_dimension_numbers<[1], [0], [0], [1], [0, 0, 1, 1], [], []>} : vector<70x8xbf16>, vector<8x64xbf16>, vector<70x64xf32> -> vector<70x64xf32>
    %c0_442 = arith.constant 0 : index
    %c0_443 = arith.constant 0 : index
    %c0_444 = arith.constant 0 : index
    %431 = vector.load %arg3[%c0_442, %c0_443, %c0_444] : memref<1x70x64xf32, #tpu.memory_space<vmem>>, vector<1x70x64xf32>
    %432 = vector.shape_cast %431 : vector<1x70x64xf32> to vector<70x64xf32>
    %433 = arith.addf %432, %430 : vector<70x64xf32>
    %c0_445 = arith.constant 0 : index
    %c0_446 = arith.constant 0 : index
    %c0_447 = arith.constant 0 : index
    %434 = vector.load %arg3[%c0_445, %c0_446, %c0_447] : memref<1x70x64xf32, #tpu.memory_space<vmem>>, vector<1x70x64xf32>
    %435 = vector.shape_cast %434 : vector<1x70x64xf32> to vector<70x64xf32>
    %436 = vector.shape_cast %433 : vector<70x64xf32> to vector<1x70x64xf32>
    tpu.vector_store %arg3[%c0_445, %c0_446, %c0_447], %436 {strides = array<i32>} : memref<1x70x64xf32, #tpu.memory_space<vmem>>, vector<1x70x64xf32>,
    %c0_448 = arith.constant 0 : index
    %c352 = arith.constant 352 : index
    %c0_449 = arith.constant 0 : index
    %437 = vector.load %arg1[%c0_448, %c352, %c0_449] : memref<1x440x8xbf16, #tpu.memory_space<vmem>>, vector<1x70x8xbf16>
    %438 = vector.shape_cast %437 : vector<1x70x8xbf16> to vector<70x8xbf16>
    %c40 = arith.constant 40 : index
    %c0_450 = arith.constant 0 : index
    %c0_451 = arith.constant 0 : index
    %439 = vector.load %arg2[%c40, %c0_450, %c0_451] : memref<49x8x64xbf16, #tpu.memory_space<vmem>>, vector<1x8x64xbf16>
    %440 = vector.shape_cast %439 : vector<1x8x64xbf16> to vector<8x64xbf16>
    %cst_452 = arith.constant dense<0.000000e+00> : vector<70x64xf32>
    %441 = tpu.matmul %438, %440, %cst_452 {dimension_numbers = #tpu.dot_dimension_numbers<[1], [0], [0], [1], [0, 0, 1, 1], [], []>} : vector<70x8xbf16>, vector<8x64xbf16>, vector<70x64xf32> -> vector<70x64xf32>
    %c0_453 = arith.constant 0 : index
    %c0_454 = arith.constant 0 : index
    %c0_455 = arith.constant 0 : index
    %442 = vector.load %arg3[%c0_453, %c0_454, %c0_455] : memref<1x70x64xf32, #tpu.memory_space<vmem>>, vector<1x70x64xf32>
    %443 = vector.shape_cast %442 : vector<1x70x64xf32> to vector<70x64xf32>
    %444 = arith.addf %443, %441 : vector<70x64xf32>
    %c0_456 = arith.constant 0 : index
    %c0_457 = arith.constant 0 : index
    %c0_458 = arith.constant 0 : index
    %445 = vector.load %arg3[%c0_456, %c0_457, %c0_458] : memref<1x70x64xf32, #tpu.memory_space<vmem>>, vector<1x70x64xf32>
    %446 = vector.shape_cast %445 : vector<1x70x64xf32> to vector<70x64xf32>
    %447 = vector.shape_cast %444 : vector<70x64xf32> to vector<1x70x64xf32>
    tpu.vector_store %arg3[%c0_456, %c0_457, %c0_458], %447 {strides = array<i32>} : memref<1x70x64xf32, #tpu.memory_space<vmem>>, vector<1x70x64xf32>,
    %c0_459 = arith.constant 0 : index
    %c243 = arith.constant 243 : index
    %c0_460 = arith.constant 0 : index
    %448 = vector.load %arg1[%c0_459, %c243, %c0_460] : memref<1x440x8xbf16, #tpu.memory_space<vmem>>, vector<1x70x8xbf16>
    %449 = vector.shape_cast %448 : vector<1x70x8xbf16> to vector<70x8xbf16>
    %c41 = arith.constant 41 : index
    %c0_461 = arith.constant 0 : index
    %c0_462 = arith.constant 0 : index
    %450 = vector.load %arg2[%c41, %c0_461, %c0_462] : memref<49x8x64xbf16, #tpu.memory_space<vmem>>, vector<1x8x64xbf16>
    %451 = vector.shape_cast %450 : vector<1x8x64xbf16> to vector<8x64xbf16>
    %cst_463 = arith.constant dense<0.000000e+00> : vector<70x64xf32>
    %452 = tpu.matmul %449, %451, %cst_463 {dimension_numbers = #tpu.dot_dimension_numbers<[1], [0], [0], [1], [0, 0, 1, 1], [], []>} : vector<70x8xbf16>, vector<8x64xbf16>, vector<70x64xf32> -> vector<70x64xf32>
    %c0_464 = arith.constant 0 : index
    %c0_465 = arith.constant 0 : index
    %c0_466 = arith.constant 0 : index
    %453 = vector.load %arg3[%c0_464, %c0_465, %c0_466] : memref<1x70x64xf32, #tpu.memory_space<vmem>>, vector<1x70x64xf32>
    %454 = vector.shape_cast %453 : vector<1x70x64xf32> to vector<70x64xf32>
    %455 = arith.addf %454, %452 : vector<70x64xf32>
    %c0_467 = arith.constant 0 : index
    %c0_468 = arith.constant 0 : index
    %c0_469 = arith.constant 0 : index
    %456 = vector.load %arg3[%c0_467, %c0_468, %c0_469] : memref<1x70x64xf32, #tpu.memory_space<vmem>>, vector<1x70x64xf32>
    %457 = vector.shape_cast %456 : vector<1x70x64xf32> to vector<70x64xf32>
    %458 = vector.shape_cast %455 : vector<70x64xf32> to vector<1x70x64xf32>
    tpu.vector_store %arg3[%c0_467, %c0_468, %c0_469], %458 {strides = array<i32>} : memref<1x70x64xf32, #tpu.memory_space<vmem>>, vector<1x70x64xf32>,
    %c0_470 = arith.constant 0 : index
    %c30_471 = arith.constant 30 : index
    %c0_472 = arith.constant 0 : index
    %459 = vector.load %arg1[%c0_470, %c30_471, %c0_472] : memref<1x440x8xbf16, #tpu.memory_space<vmem>>, vector<1x70x8xbf16>
    %460 = vector.shape_cast %459 : vector<1x70x8xbf16> to vector<70x8xbf16>
    %c42 = arith.constant 42 : index
    %c0_473 = arith.constant 0 : index
    %c0_474 = arith.constant 0 : index
    %461 = vector.load %arg2[%c42, %c0_473, %c0_474] : memref<49x8x64xbf16, #tpu.memory_space<vmem>>, vector<1x8x64xbf16>
    %462 = vector.shape_cast %461 : vector<1x8x64xbf16> to vector<8x64xbf16>
    %cst_475 = arith.constant dense<0.000000e+00> : vector<70x64xf32>
    %463 = tpu.matmul %460, %462, %cst_475 {dimension_numbers = #tpu.dot_dimension_numbers<[1], [0], [0], [1], [0, 0, 1, 1], [], []>} : vector<70x8xbf16>, vector<8x64xbf16>, vector<70x64xf32> -> vector<70x64xf32>
    %c0_476 = arith.constant 0 : index
    %c0_477 = arith.constant 0 : index
    %c0_478 = arith.constant 0 : index
    %464 = vector.load %arg3[%c0_476, %c0_477, %c0_478] : memref<1x70x64xf32, #tpu.memory_space<vmem>>, vector<1x70x64xf32>
    %465 = vector.shape_cast %464 : vector<1x70x64xf32> to vector<70x64xf32>
    %466 = arith.addf %465, %463 : vector<70x64xf32>
    %c0_479 = arith.constant 0 : index
    %c0_480 = arith.constant 0 : index
    %c0_481 = arith.constant 0 : index
    %467 = vector.load %arg3[%c0_479, %c0_480, %c0_481] : memref<1x70x64xf32, #tpu.memory_space<vmem>>, vector<1x70x64xf32>
    %468 = vector.shape_cast %467 : vector<1x70x64xf32> to vector<70x64xf32>
    %469 = vector.shape_cast %466 : vector<70x64xf32> to vector<1x70x64xf32>
    tpu.vector_store %arg3[%c0_479, %c0_480, %c0_481], %469 {strides = array<i32>} : memref<1x70x64xf32, #tpu.memory_space<vmem>>, vector<1x70x64xf32>,
    %c0_482 = arith.constant 0 : index
    %c140 = arith.constant 140 : index
    %c0_483 = arith.constant 0 : index
    %470 = vector.load %arg1[%c0_482, %c140, %c0_483] : memref<1x440x8xbf16, #tpu.memory_space<vmem>>, vector<1x70x8xbf16>
    %471 = vector.shape_cast %470 : vector<1x70x8xbf16> to vector<70x8xbf16>
    %c43 = arith.constant 43 : index
    %c0_484 = arith.constant 0 : index
    %c0_485 = arith.constant 0 : index
    %472 = vector.load %arg2[%c43, %c0_484, %c0_485] : memref<49x8x64xbf16, #tpu.memory_space<vmem>>, vector<1x8x64xbf16>
    %473 = vector.shape_cast %472 : vector<1x8x64xbf16> to vector<8x64xbf16>
    %cst_486 = arith.constant dense<0.000000e+00> : vector<70x64xf32>
    %474 = tpu.matmul %471, %473, %cst_486 {dimension_numbers = #tpu.dot_dimension_numbers<[1], [0], [0], [1], [0, 0, 1, 1], [], []>} : vector<70x8xbf16>, vector<8x64xbf16>, vector<70x64xf32> -> vector<70x64xf32>
    %c0_487 = arith.constant 0 : index
    %c0_488 = arith.constant 0 : index
    %c0_489 = arith.constant 0 : index
    %475 = vector.load %arg3[%c0_487, %c0_488, %c0_489] : memref<1x70x64xf32, #tpu.memory_space<vmem>>, vector<1x70x64xf32>
    %476 = vector.shape_cast %475 : vector<1x70x64xf32> to vector<70x64xf32>
    %477 = arith.addf %476, %474 : vector<70x64xf32>
    %c0_490 = arith.constant 0 : index
    %c0_491 = arith.constant 0 : index
    %c0_492 = arith.constant 0 : index
    %478 = vector.load %arg3[%c0_490, %c0_491, %c0_492] : memref<1x70x64xf32, #tpu.memory_space<vmem>>, vector<1x70x64xf32>
    %479 = vector.shape_cast %478 : vector<1x70x64xf32> to vector<70x64xf32>
    %480 = vector.shape_cast %477 : vector<70x64xf32> to vector<1x70x64xf32>
    tpu.vector_store %arg3[%c0_490, %c0_491, %c0_492], %480 {strides = array<i32>} : memref<1x70x64xf32, #tpu.memory_space<vmem>>, vector<1x70x64xf32>,
    %c0_493 = arith.constant 0 : index
    %c31_494 = arith.constant 31 : index
    %c0_495 = arith.constant 0 : index
    %481 = vector.load %arg1[%c0_493, %c31_494, %c0_495] : memref<1x440x8xbf16, #tpu.memory_space<vmem>>, vector<1x70x8xbf16>
    %482 = vector.shape_cast %481 : vector<1x70x8xbf16> to vector<70x8xbf16>
    %c44 = arith.constant 44 : index
    %c0_496 = arith.constant 0 : index
    %c0_497 = arith.constant 0 : index
    %483 = vector.load %arg2[%c44, %c0_496, %c0_497] : memref<49x8x64xbf16, #tpu.memory_space<vmem>>, vector<1x8x64xbf16>
    %484 = vector.shape_cast %483 : vector<1x8x64xbf16> to vector<8x64xbf16>
    %cst_498 = arith.constant dense<0.000000e+00> : vector<70x64xf32>
    %485 = tpu.matmul %482, %484, %cst_498 {dimension_numbers = #tpu.dot_dimension_numbers<[1], [0], [0], [1], [0, 0, 1, 1], [], []>} : vector<70x8xbf16>, vector<8x64xbf16>, vector<70x64xf32> -> vector<70x64xf32>
    %c0_499 = arith.constant 0 : index
    %c0_500 = arith.constant 0 : index
    %c0_501 = arith.constant 0 : index
    %486 = vector.load %arg3[%c0_499, %c0_500, %c0_501] : memref<1x70x64xf32, #tpu.memory_space<vmem>>, vector<1x70x64xf32>
    %487 = vector.shape_cast %486 : vector<1x70x64xf32> to vector<70x64xf32>
    %488 = arith.addf %487, %485 : vector<70x64xf32>
    %c0_502 = arith.constant 0 : index
    %c0_503 = arith.constant 0 : index
    %c0_504 = arith.constant 0 : index
    %489 = vector.load %arg3[%c0_502, %c0_503, %c0_504] : memref<1x70x64xf32, #tpu.memory_space<vmem>>, vector<1x70x64xf32>
    %490 = vector.shape_cast %489 : vector<1x70x64xf32> to vector<70x64xf32>
    %491 = vector.shape_cast %488 : vector<70x64xf32> to vector<1x70x64xf32>
    tpu.vector_store %arg3[%c0_502, %c0_503, %c0_504], %491 {strides = array<i32>} : memref<1x70x64xf32, #tpu.memory_space<vmem>>, vector<1x70x64xf32>,
    %c0_505 = arith.constant 0 : index
    %c141 = arith.constant 141 : index
    %c0_506 = arith.constant 0 : index
    %492 = vector.load %arg1[%c0_505, %c141, %c0_506] : memref<1x440x8xbf16, #tpu.memory_space<vmem>>, vector<1x70x8xbf16>
    %493 = vector.shape_cast %492 : vector<1x70x8xbf16> to vector<70x8xbf16>
    %c45 = arith.constant 45 : index
    %c0_507 = arith.constant 0 : index
    %c0_508 = arith.constant 0 : index
    %494 = vector.load %arg2[%c45, %c0_507, %c0_508] : memref<49x8x64xbf16, #tpu.memory_space<vmem>>, vector<1x8x64xbf16>
    %495 = vector.shape_cast %494 : vector<1x8x64xbf16> to vector<8x64xbf16>
    %cst_509 = arith.constant dense<0.000000e+00> : vector<70x64xf32>
    %496 = tpu.matmul %493, %495, %cst_509 {dimension_numbers = #tpu.dot_dimension_numbers<[1], [0], [0], [1], [0, 0, 1, 1], [], []>} : vector<70x8xbf16>, vector<8x64xbf16>, vector<70x64xf32> -> vector<70x64xf32>
    %c0_510 = arith.constant 0 : index
    %c0_511 = arith.constant 0 : index
    %c0_512 = arith.constant 0 : index
    %497 = vector.load %arg3[%c0_510, %c0_511, %c0_512] : memref<1x70x64xf32, #tpu.memory_space<vmem>>, vector<1x70x64xf32>
    %498 = vector.shape_cast %497 : vector<1x70x64xf32> to vector<70x64xf32>
    %499 = arith.addf %498, %496 : vector<70x64xf32>
    %c0_513 = arith.constant 0 : index
    %c0_514 = arith.constant 0 : index
    %c0_515 = arith.constant 0 : index
    %500 = vector.load %arg3[%c0_513, %c0_514, %c0_515] : memref<1x70x64xf32, #tpu.memory_space<vmem>>, vector<1x70x64xf32>
    %501 = vector.shape_cast %500 : vector<1x70x64xf32> to vector<70x64xf32>
    %502 = vector.shape_cast %499 : vector<70x64xf32> to vector<1x70x64xf32>
    tpu.vector_store %arg3[%c0_513, %c0_514, %c0_515], %502 {strides = array<i32>} : memref<1x70x64xf32, #tpu.memory_space<vmem>>, vector<1x70x64xf32>,
    %c0_516 = arith.constant 0 : index
    %c32_517 = arith.constant 32 : index
    %c0_518 = arith.constant 0 : index
    %503 = vector.load %arg1[%c0_516, %c32_517, %c0_518] : memref<1x440x8xbf16, #tpu.memory_space<vmem>>, vector<1x70x8xbf16>
    %504 = vector.shape_cast %503 : vector<1x70x8xbf16> to vector<70x8xbf16>
    %c46 = arith.constant 46 : index
    %c0_519 = arith.constant 0 : index
    %c0_520 = arith.constant 0 : index
    %505 = vector.load %arg2[%c46, %c0_519, %c0_520] : memref<49x8x64xbf16, #tpu.memory_space<vmem>>, vector<1x8x64xbf16>
    %506 = vector.shape_cast %505 : vector<1x8x64xbf16> to vector<8x64xbf16>
    %cst_521 = arith.constant dense<0.000000e+00> : vector<70x64xf32>
    %507 = tpu.matmul %504, %506, %cst_521 {dimension_numbers = #tpu.dot_dimension_numbers<[1], [0], [0], [1], [0, 0, 1, 1], [], []>} : vector<70x8xbf16>, vector<8x64xbf16>, vector<70x64xf32> -> vector<70x64xf32>
    %c0_522 = arith.constant 0 : index
    %c0_523 = arith.constant 0 : index
    %c0_524 = arith.constant 0 : index
    %508 = vector.load %arg3[%c0_522, %c0_523, %c0_524] : memref<1x70x64xf32, #tpu.memory_space<vmem>>, vector<1x70x64xf32>
    %509 = vector.shape_cast %508 : vector<1x70x64xf32> to vector<70x64xf32>
    %510 = arith.addf %509, %507 : vector<70x64xf32>
    %c0_525 = arith.constant 0 : index
    %c0_526 = arith.constant 0 : index
    %c0_527 = arith.constant 0 : index
    %511 = vector.load %arg3[%c0_525, %c0_526, %c0_527] : memref<1x70x64xf32, #tpu.memory_space<vmem>>, vector<1x70x64xf32>
    %512 = vector.shape_cast %511 : vector<1x70x64xf32> to vector<70x64xf32>
    %513 = vector.shape_cast %510 : vector<70x64xf32> to vector<1x70x64xf32>
    tpu.vector_store %arg3[%c0_525, %c0_526, %c0_527], %513 {strides = array<i32>} : memref<1x70x64xf32, #tpu.memory_space<vmem>>, vector<1x70x64xf32>,
    %c0_528 = arith.constant 0 : index
    %c142 = arith.constant 142 : index
    %c0_529 = arith.constant 0 : index
    %514 = vector.load %arg1[%c0_528, %c142, %c0_529] : memref<1x440x8xbf16, #tpu.memory_space<vmem>>, vector<1x70x8xbf16>
    %515 = vector.shape_cast %514 : vector<1x70x8xbf16> to vector<70x8xbf16>
    %c47 = arith.constant 47 : index
    %c0_530 = arith.constant 0 : index
    %c0_531 = arith.constant 0 : index
    %516 = vector.load %arg2[%c47, %c0_530, %c0_531] : memref<49x8x64xbf16, #tpu.memory_space<vmem>>, vector<1x8x64xbf16>
    %517 = vector.shape_cast %516 : vector<1x8x64xbf16> to vector<8x64xbf16>
    %cst_532 = arith.constant dense<0.000000e+00> : vector<70x64xf32>
    %518 = tpu.matmul %515, %517, %cst_532 {dimension_numbers = #tpu.dot_dimension_numbers<[1], [0], [0], [1], [0, 0, 1, 1], [], []>} : vector<70x8xbf16>, vector<8x64xbf16>, vector<70x64xf32> -> vector<70x64xf32>
    %c0_533 = arith.constant 0 : index
    %c0_534 = arith.constant 0 : index
    %c0_535 = arith.constant 0 : index
    %519 = vector.load %arg3[%c0_533, %c0_534, %c0_535] : memref<1x70x64xf32, #tpu.memory_space<vmem>>, vector<1x70x64xf32>
    %520 = vector.shape_cast %519 : vector<1x70x64xf32> to vector<70x64xf32>
    %521 = arith.addf %520, %518 : vector<70x64xf32>
    %c0_536 = arith.constant 0 : index
    %c0_537 = arith.constant 0 : index
    %c0_538 = arith.constant 0 : index
    %522 = vector.load %arg3[%c0_536, %c0_537, %c0_538] : memref<1x70x64xf32, #tpu.memory_space<vmem>>, vector<1x70x64xf32>
    %523 = vector.shape_cast %522 : vector<1x70x64xf32> to vector<70x64xf32>
    %524 = vector.shape_cast %521 : vector<70x64xf32> to vector<1x70x64xf32>
    tpu.vector_store %arg3[%c0_536, %c0_537, %c0_538], %524 {strides = array<i32>} : memref<1x70x64xf32, #tpu.memory_space<vmem>>, vector<1x70x64xf32>,
    %c0_539 = arith.constant 0 : index
    %c33_540 = arith.constant 33 : index
    %c0_541 = arith.constant 0 : index
    %525 = vector.load %arg1[%c0_539, %c33_540, %c0_541] : memref<1x440x8xbf16, #tpu.memory_space<vmem>>, vector<1x70x8xbf16>
    %526 = vector.shape_cast %525 : vector<1x70x8xbf16> to vector<70x8xbf16>
    %c48 = arith.constant 48 : index
    %c0_542 = arith.constant 0 : index
    %c0_543 = arith.constant 0 : index
    %527 = vector.load %arg2[%c48, %c0_542, %c0_543] : memref<49x8x64xbf16, #tpu.memory_space<vmem>>, vector<1x8x64xbf16>
    %528 = vector.shape_cast %527 : vector<1x8x64xbf16> to vector<8x64xbf16>
    %cst_544 = arith.constant dense<0.000000e+00> : vector<70x64xf32>
    %529 = tpu.matmul %526, %528, %cst_544 {dimension_numbers = #tpu.dot_dimension_numbers<[1], [0], [0], [1], [0, 0, 1, 1], [], []>} : vector<70x8xbf16>, vector<8x64xbf16>, vector<70x64xf32> -> vector<70x64xf32>
    %c0_545 = arith.constant 0 : index
    %c0_546 = arith.constant 0 : index
    %c0_547 = arith.constant 0 : index
    %530 = vector.load %arg3[%c0_545, %c0_546, %c0_547] : memref<1x70x64xf32, #tpu.memory_space<vmem>>, vector<1x70x64xf32>
    %531 = vector.shape_cast %530 : vector<1x70x64xf32> to vector<70x64xf32>
    %532 = arith.addf %531, %529 : vector<70x64xf32>
    %c0_548 = arith.constant 0 : index
    %c0_549 = arith.constant 0 : index
    %c0_550 = arith.constant 0 : index
    %533 = vector.load %arg3[%c0_548, %c0_549, %c0_550] : memref<1x70x64xf32, #tpu.memory_space<vmem>>, vector<1x70x64xf32>
    %534 = vector.shape_cast %533 : vector<1x70x64xf32> to vector<70x64xf32>
    %535 = vector.shape_cast %532 : vector<70x64xf32> to vector<1x70x64xf32>
    tpu.vector_store %arg3[%c0_548, %c0_549, %c0_550], %535 {strides = array<i32>} : memref<1x70x64xf32, #tpu.memory_space<vmem>>, vector<1x70x64xf32>,
    %c0_551 = arith.constant 0 : index
    %c0_552 = arith.constant 0 : index
    %c0_553 = arith.constant 0 : index
    %536 = vector.load %arg3[%c0_551, %c0_552, %c0_553] : memref<1x70x64xf32, #tpu.memory_space<vmem>>, vector<1x70x64xf32>
    %537 = vector.shape_cast %536 : vector<1x70x64xf32> to vector<70x64xf32>
    %538 = tpu.iota {dimensions = array<i32: 0>} : vector<70x1xi32>
    %c10_i32 = arith.constant 10 : i32
    %c0_i32 = arith.constant 0 : i32
    %539 = arith.cmpi eq, %c10_i32, %c0_i32 : i32
    %c1_i32 = arith.constant 1 : i32
    %540 = arith.select %539, %c1_i32, %c10_i32 : i32
    %541 = vector.broadcast %540 : i32 to vector<70x1xi32>
    %542 = arith.remsi %538, %541 : vector<70x1xi32>
    %c0_i32_554 = arith.constant 0 : i32
    %543 = vector.broadcast %c0_i32_554 : i32 to vector<70x1xi32>
    %544 = arith.cmpi ne, %542, %543 : vector<70x1xi32>
    %c0_i32_555 = arith.constant 0 : i32
    %545 = vector.broadcast %c0_i32_555 : i32 to vector<70x1xi32>
    %546 = arith.cmpi slt, %542, %545 : vector<70x1xi32>
    %c0_i32_556 = arith.constant 0 : i32
    %547 = arith.cmpi slt, %540, %c0_i32_556 : i32
    %548 = vector.broadcast %547 : i1 to vector<70x1xi1>
    %549 = vector.broadcast %548 : vector<70x1xi1> to vector<70x1xi1>
    %550 = arith.xori %546, %549 : vector<70x1xi1>
    %551 = arith.andi %550, %544 : vector<70x1xi1>
    %552 = vector.broadcast %540 : i32 to vector<70x1xi32>
    %553 = arith.addi %542, %552 : vector<70x1xi32>
    %554 = arith.select %551, %553, %542 : vector<70x1xi1>, vector<70x1xi32>
    %c7_i32 = arith.constant 7 : i32
    %555 = vector.broadcast %c7_i32 : i32 to vector<70x1xi32>
    %556 = arith.cmpi slt, %554, %555 : vector<70x1xi32>
    %cst_557 = arith.constant 0.000000e+00 : f32
    %557 = vector.shape_cast %556 : vector<70x1xi1> to vector<70x1xi1>
    %558 = vector.broadcast %557 : vector<70x1xi1> to vector<70x64xi1>
    %559 = vector.broadcast %cst_557 : f32 to vector<70x64xf32>
    %560 = arith.select %558, %537, %559 : vector<70x64xi1>, vector<70x64xf32>
    %cst_558 = arith.constant dense<0.000000e+00> : vector<64xf32>
    %561 = vector.multi_reduction <add>, %560, %cst_558 [0] : vector<70x64xf32> to vector<64xf32>
    %562 = vector.shape_cast %561 : vector<64xf32> to vector<1x64xf32>
    %c0_559 = arith.constant 0 : index
    %c0_560 = arith.constant 0 : index
    %c0_561 = arith.constant 0 : index
    %563 = vector.load %arg4[%c0_559, %c0_560, %c0_561] : memref<1x2x64xf32, #tpu.memory_space<vmem>>, vector<1x1x64xf32>
    %564 = vector.shape_cast %563 : vector<1x1x64xf32> to vector<1x64xf32>
    %565 = vector.shape_cast %562 : vector<1x64xf32> to vector<1x1x64xf32>
    tpu.vector_store %arg4[%c0_559, %c0_560, %c0_561], %565 {strides = array<i32>} : memref<1x2x64xf32, #tpu.memory_space<vmem>>, vector<1x1x64xf32>,
    %566 = arith.mulf %560, %560 : vector<70x64xf32>
    %cst_562 = arith.constant dense<0.000000e+00> : vector<64xf32>
    %567 = vector.multi_reduction <add>, %566, %cst_562 [0] : vector<70x64xf32> to vector<64xf32>
    %568 = vector.shape_cast %567 : vector<64xf32> to vector<1x64xf32>
    %c0_563 = arith.constant 0 : index
    %c1_564 = arith.constant 1 : index
    %c0_565 = arith.constant 0 : index
    %569 = vector.load %arg4[%c0_563, %c1_564, %c0_565] : memref<1x2x64xf32, #tpu.memory_space<vmem>>, vector<1x1x64xf32>
    %570 = vector.shape_cast %569 : vector<1x1x64xf32> to vector<1x64xf32>
    %571 = vector.shape_cast %568 : vector<1x64xf32> to vector<1x1x64xf32>
    tpu.vector_store %arg4[%c0_563, %c1_564, %c0_565], %571 {strides = array<i32>} : memref<1x2x64xf32, #tpu.memory_space<vmem>>, vector<1x1x64xf32>,
    return
  }
  func.func @transform_0(%arg0: i32) -> (i32, i32, i32) {
    %c0_i32 = arith.constant 0 : i32
    %c0_i32_0 = arith.constant 0 : i32
    %c0_i32_1 = arith.constant 0 : i32
    return %arg0, %c0_i32, %c0_i32_0 : i32, i32, i32
  }
  func.func @transform_1(%arg0: i32) -> (i32, i32, i32) {
    %c0_i32 = arith.constant 0 : i32
    %c0_i32_0 = arith.constant 0 : i32
    %c0_i32_1 = arith.constant 0 : i32
    %c0_i32_2 = arith.constant 0 : i32
    return %c0_i32, %c0_i32_0, %c0_i32_1 : i32, i32, i32
  }
  func.func @transform_2(%arg0: i32) -> (i32, i32, i32) {
    %c0_i32 = arith.constant 0 : i32
    %c0_i32_0 = arith.constant 0 : i32
    %c0_i32_1 = arith.constant 0 : i32
    return %arg0, %c0_i32, %c0_i32_0 : i32, i32, i32
  }
  func.func @transform_3(%arg0: i32) -> (i32, i32, i32) {
    %c0_i32 = arith.constant 0 : i32
    %c0_i32_0 = arith.constant 0 : i32
    %c0_i32_1 = arith.constant 0 : i32
    return %arg0, %c0_i32, %c0_i32_0 : i32, i32, i32
  }
}

</mosaic_0001>

<llo_original>
// kernel: tpu_custom_call.1
$region0: #{tpu_custom_call.1}
  #allocation0 [shape = 'u32[]', space=smem, size = 0x4, offset = 0x4, fixed_abs, tag = 'smem constant byte address 0x4 - core index']
  #allocation1 [shape = 'u32[144,128]{1,0:T(1,128)}', space=vmem, size = 0x12000, scoped, tag = 'internal scratch']
  %s0 = inlined_call_operand.vmem [shape: bf16[2,440,8], index: 0, kind: input, shape index: {}]
  %s1 = inlined_call_operand.vmem [shape: bf16[49,8,64], index: 1, kind: input, shape index: {}]
  %s2 = inlined_call_operand.vmem [shape: f32[2,70,64], index: 2, kind: output, shape index: {0}]
  %s3 = inlined_call_operand.hbm [shape: f32[2,2,64], index: 3, kind: output, shape index: {1}]
  %4 = xla_tuple %s2, %s3
  %s5 = sld [smem:[#allocation0]]
  $region49: #{tpu_custom_call.1} parent=0
    _
  %s7 = ssub.s32 1, %s5
  %s8 = scalar_select 0, %s7, %s5
  $region1: #{tpu_custom_call.1} parent=0
    #allocation2 [shape = 'u8[2048]{0}', space=vmem, size = 0x800, scoped, tag = 'output window, operand 1']
    #allocation3 [shape = 's32[2]{0}', space=sflag, size = 0x8, scoped, tag = 'scoped memory for tpu_custom_call.1']
    %9 = vsyncpa [#allocation3], 0
    %s10 = scalar_lea.sflag [#allocation3], 1
    %11 = vsyncpa %s10, 0
    loop: start=0, step=1, limit=4
    $region2: #{tpu_custom_call.1} parent=1 // loop_pre_header
      _
    $region3: #{tpu_custom_call.1} parent=1 // loop_header
      %s13 = sphi 0, %s17
      %p14 = scmp.ge.s32.totalorder %s13, 4
      %s23 = sphi 0, %s25
      %s26 = sphi 0, %s23
      %s27 = sphi 0, %s26
      %s43 = sphi 0, %s27
      %s47 = sphi 0, %s47
      %s49 = sphi 0, %s47
      %s50 = sphi 0, %s49
      %s64 = sphi 0, %s50
      %s70 = sphi 0, %s72
      %s73 = sphi 0, %s70
      %s74 = sphi 0, %s73
      %s90 = sphi 0, %s74
      %s96 = sphi 0, %s98
      %s99 = sphi 0, %s96
      %s100 = sphi 0, %s99
      %s116 = sphi 0, %s100
    $region4: #{tpu_custom_call.1} parent=1 // loop_header_branch
      %16 = sbr.rel (%p14) target = $region8
    $region5: #{tpu_custom_call.1} parent=1 // loop_body
      %s18 = ssub.s32 %s13, 1
      %s19 = ssub.s32 %s13, 2
      %s20 = sadd.s32 %s13, 1
      %s21 = ssub.s32 %s13, %s20
      %p22 = scmp.eq.s32.totalorder %s21, 0
      %s24 = sadd.s32 %s23, 1
      %s25 = scalar_select %p22, %s23, %s24
      %p28 = pneg %p22
      %p29 = scmp.eq.s32.totalorder %s13, 1
      %p30 = por %p28, %p29
      %p31 = scmp.ne.s32.totalorder %s23, %s26
      %p32 = scmp.eq.s32.totalorder %s13, 0
      %p33 = por %p31, %p32
      %p34 = scmp.ne.s32.totalorder %s23, %s26
      %p35 = scmp.eq.s32.totalorder %s18, 1
      %p36 = por %p34, %p35
      %p37 = scmp.ne.s32.totalorder %s26, %s27
      %p38 = scmp.eq.s32.totalorder %s18, 0
      %p39 = por %p37, %p38
      %p40 = scmp.ne.s32.totalorder %s26, %s27
      %p41 = scmp.eq.s32.totalorder %s19, 1
      %p42 = por %p40, %p41
      %p44 = scmp.ne.s32.totalorder %s27, %s43
      %p45 = scmp.eq.s32.totalorder %s19, 0
      %p46 = por %p44, %p45
      %s48 = sadd.s32 %s47, 1
      %p51 = scmp.eq.s32.totalorder %s13, 1
      %p52 = scmp.ne.s32.totalorder %s47, %s49
      %p53 = scmp.eq.s32.totalorder %s13, 0
      %p54 = por %p52, %p53
      %p55 = scmp.ne.s32.totalorder %s47, %s49
      %p56 = scmp.eq.s32.totalorder %s18, 1
      %p57 = por %p55, %p56
      %p58 = scmp.ne.s32.totalorder %s49, %s50
      %p59 = scmp.eq.s32.totalorder %s18, 0
      %p60 = por %p58, %p59
      %p61 = scmp.ne.s32.totalorder %s49, %s50
      %p62 = scmp.eq.s32.totalorder %s19, 1
      %p63 = por %p61, %p62
      %p65 = scmp.ne.s32.totalorder %s50, %s64
      %p66 = scmp.eq.s32.totalorder %s19, 0
      %p67 = por %p65, %p66
      %s68 = ssub.s32 %s13, %s20
      %p69 = scmp.eq.s32.totalorder %s68, 0
      %s71 = sadd.s32 %s70, 1
      %s72 = scalar_select %p69, %s70, %s71
      %p75 = pneg %p69
      %p76 = scmp.eq.s32.totalorder %s13, 1
      %p77 = por %p75, %p76
      %p78 = scmp.ne.s32.totalorder %s70, %s73
      %p79 = scmp.eq.s32.totalorder %s13, 0
      %p80 = por %p78, %p79
      %p81 = scmp.ne.s32.totalorder %s70, %s73
      %p82 = scmp.eq.s32.totalorder %s18, 1
      %p83 = por %p81, %p82
      %p84 = scmp.ne.s32.totalorder %s73, %s74
      %p85 = scmp.eq.s32.totalorder %s18, 0
      %p86 = por %p84, %p85
      %p87 = scmp.ne.s32.totalorder %s73, %s74
      %p88 = scmp.eq.s32.totalorder %s19, 1
      %p89 = por %p87, %p88
      %p91 = scmp.ne.s32.totalorder %s74, %s90
      %p92 = scmp.eq.s32.totalorder %s19, 0
      %p93 = por %p91, %p92
      %s94 = ssub.s32 %s13, %s20
      %p95 = scmp.eq.s32.totalorder %s94, 0
      %s97 = sadd.s32 %s96, 1
      %s98 = scalar_select %p95, %s96, %s97
      %p101 = pneg %p95
      %p102 = scmp.eq.s32.totalorder %s13, 1
      %p103 = por %p101, %p102
      %p104 = scmp.ne.s32.totalorder %s96, %s99
      %p105 = scmp.eq.s32.totalorder %s13, 0
      %p106 = por %p104, %p105
      %p107 = scmp.ne.s32.totalorder %s96, %s99
      %p108 = scmp.eq.s32.totalorder %s18, 1
      %p109 = por %p107, %p108
      %p110 = scmp.ne.s32.totalorder %s99, %s100
      %p111 = scmp.eq.s32.totalorder %s18, 0
      %p112 = por %p110, %p111
      %p113 = scmp.ne.s32.totalorder %s99, %s100
      %p114 = scmp.eq.s32.totalorder %s19, 1
      %p115 = por %p113, %p114
      %p117 = scmp.ne.s32.totalorder %s100, %s116
      %p118 = scmp.eq.s32.totalorder %s19, 0
      %p119 = por %p117, %p118
      %p120 = scmp.le.s32.totalorder 1, %s13
      %p121 = scmp.lt.s32.totalorder %s13, 3
      %p122 = pnand %p120, %p121
      %p123 = pneg %p122
      // Predicated region
      $region9: #{tpu_custom_call.1} parent=5 // pred_check
        _
      $region10: #{tpu_custom_call.1} parent=5 // pred_check_branch
        %125 = sbr.rel (%p122) target = $region12
      $region11: #{tpu_custom_call.1} parent=5 // pred_region
        %s126 = ssub.s32 %s13, 1
        // Predicated region
        $region13: #{tpu_custom_call.1} parent=11 // pred_check
          %p127 = pneg %p60
        $region14: #{tpu_custom_call.1} parent=11 // pred_check_branch
          %129 = sbr.rel (%p127) target = $region16
        $region15: #{tpu_custom_call.1} parent=11 // pred_region
          _
        $region16: #{tpu_custom_call.1} parent=11 // pred_fallthru
          _
      $region12: #{tpu_custom_call.1} parent=5 // pred_fallthru
        _
      %p130 = scmp.lt.s32.totalorder %s13, 2
      // Predicated region
      $region17: #{tpu_custom_call.1} parent=5 // pred_check
        %p131 = pneg %p130
      $region18: #{tpu_custom_call.1} parent=5 // pred_check_branch
        %133 = sbr.rel (%p131) target = $region20
      $region19: #{tpu_custom_call.1} parent=5 // pred_region
        // Predicated region
        $region21: #{tpu_custom_call.1} parent=19 // pred_check
          %p134 = pneg %p33
        $region22: #{tpu_custom_call.1} parent=19 // pred_check_branch
          %136 = sbr.rel (%p134) target = $region24
        $region23: #{tpu_custom_call.1} parent=19 // pred_region
          %p137 = scmp.lt.s32.totalorder %s13, 1
          %s138 = scalar_select %p137, %s13, 1
          %s139 = smul.addr %s138, 55
          %s140 = smul.addr %s139, 4
          %s141 = scalar_lea.vmem %s0, %s140
        $region24: #{tpu_custom_call.1} parent=19 // pred_fallthru
          _
      $region20: #{tpu_custom_call.1} parent=5 // pred_fallthru
        _
      %p142 = scmp.le.s32.totalorder 1, %s13
      %p143 = scmp.lt.s32.totalorder %s13, 3
      %p144 = pnand %p142, %p143
      %p145 = pneg %p144
      // Predicated region
      $region25: #{tpu_custom_call.1} parent=5 // pred_check
        _
      $region26: #{tpu_custom_call.1} parent=5 // pred_check_branch
        %147 = sbr.rel (%p144) target = $region28
      $region27: #{tpu_custom_call.1} parent=5 // pred_region
        %s148 = ssub.s32 %s13, 1
        %p149 = scmp.lt.s32.totalorder %s18, 1
        %s150 = scalar_select %p149, %s18, 1
        %s151 = smul.addr %s150, 55
        %s152 = smul.addr %s151, 4
        %s153 = scalar_lea.vmem %s0, %s152
        %p154 = pneg %p39
        %p155 = pneg %p36
        %p156 = pneg %p60
        %p157 = pneg %p57
        %p158 = pneg %p86
        %p159 = pneg %p83
        %p160 = scmp.lt.s32.totalorder %s18, 1
        %s161 = scalar_select %p160, %s18, 1
        %s162 = smul.addr %s161, 9
        %s163 = smul.addr %s162, 8
        %s164 = scalar_lea.vmem %s2, %s163
        %p165 = pneg %p112
        %p166 = pneg %p109
        %s167 = sand.u32 %s99, 1
        %s168 = scalar_lea.sflag [#allocation3], %s167
        %s169 = sand.u32 %s99, 1
        %s170 = smul.addr %s169, 2
        %s171 = scalar_lea.vmem [#allocation2], %s170
        %p172 = scmp.lt.s32.totalorder %s18, 1
        %s173 = scalar_select %p172, %s18, 1
        %s174 = smul.addr %s173, 55
        %s175 = smul.addr %s174, 4
        %s176 = scalar_lea.vmem %s0, %s175
        %p177 = scmp.lt.s32.totalorder %s18, 1
        %s178 = scalar_select %p177, %s18, 1
        %s179 = smul.addr %s178, 9
        %s180 = smul.addr %s179, 8
        %s181 = scalar_lea.vmem %s2, %s180
        %v183 = vld [vmem:[%s176] sm:$0xf]
        %v184 = vld [vmem:[%s176 + $0x4] sm:$0xf]
        %v185 = vld [vmem:[%s176 + $0x8] sm:$0xf]
        %v186 = vld [vmem:[%s176 + $0xc] sm:$0xf]
        %v187 = vld [vmem:[%s176 + $0x10] sm:$0xf]
        %v188 = vld [vmem:[%s176 + $0x14] sm:$0xf]
        %v189 = vld [vmem:[%s176 + $0x18] sm:$0xf]
        %v190 = vld [vmem:[%s176 + $0x1c] sm:$0xf]
        %v191 = vld [vmem:[%s176 + $0x20] sm:$0x7]
        %v192 = vld [vmem:[%s1] sm:$0xf]
        %v202 = vunpack.c.l.b16 %v183
        %v203 = vunpack.c.l.b16 %v184
        %v204 = vunpack.c.l.b16 %v185
        %v205 = vunpack.c.l.b16 %v186
        %v206 = vunpack.c.l.b16 %v187
        %v207 = vunpack.c.l.b16 %v188
        %v208 = vunpack.c.l.b16 %v189
        %v209 = vunpack.c.l.b16 %v190
        %v210 = vunpack.c.l.b16 %v191
        %v211 = vpack.c.b16 %v203, %v202
        %v212 = vpack.c.b16 %v205, %v204
        %v213 = vpack.c.b16 %v207, %v206
        %v214 = vpack.c.b16 %v209, %v208
        %v215 = vpack.c.b16 %v210, %v210
        %vm216 = vcmask 64512
        %v218 = vsel %vm216, %v211, 0
        %v221 = vsel %vm216, %v212, 0
        %v224 = vsel %vm216, %v213, 0
        %v227 = vsel %vm216, %v214, 0
        %v230 = vsel %vm216, %v215, 0
        %vm232 = vcmask 1043456
        %v234 = vsel %vm232, %v192, 0
        %236 = vmatprep.subr.bf16.mxu0 0
        %237 = vmatpush1.bf16.msra.mxu0 0
        %238 = vmatprep.subr.bf16.mxu0 0
        %239 = vmatpush1.bf16.msra.mxu0 0
        %240 = vmatprep.subr.bf16.mxu0 0
        %241 = vmatpush1.bf16.msra.mxu0 0
        %242 = vmatprep.subr.bf16.mxu0 0
        %243 = vmatpush1.bf16.msra.mxu0 0
        %244 = vmatprep.subr.bf16.mxu0 0
        %245 = vmatpush1.bf16.msra.mxu0 0
        %246 = vmatprep.subr.bf16.mxu0 0
        %247 = vmatpush1.bf16.msra.mxu0 0
        %248 = vmatprep.subr.bf16.mxu0 0
        %249 = vmatpush1.bf16.msra.mxu0 0
        %250 = vmatprep.subr.bf16.mxu0 0
        %251 = vmatpush1.bf16.msra.mxu0 %v234
        %252 = vmatprep.subr.bf16.mxu0 0
        %253 = vmatpush2.bf16.msra.mxu0 0
        %254 = vmatprep.subr.bf16.mxu0 0
        %255 = vmatpush2.bf16.msra.mxu0 0
        %256 = vmatprep.subr.bf16.mxu0 0
        %257 = vmatpush2.bf16.msra.mxu0 0
        %258 = vmatprep.subr.bf16.mxu0 0
        %259 = vmatpush2.bf16.msra.mxu0 0
        %260 = vmatprep.subr.bf16.mxu0 0
        %261 = vmatpush2.bf16.msra.mxu0 0
        %262 = vmatprep.subr.bf16.mxu0 0
        %263 = vmatpush2.bf16.msra.mxu0 0
        %264 = vmatprep.subr.bf16.mxu0 0
        %265 = vmatpush2.bf16.msra.mxu0 0
        %266 = vmatprep.subr.bf16.mxu0 0
        %267 = vmatpush2.bf16.msra.mxu0 0
        %268 = vmatprep.mubr.bf16.mxu0 0
        %269 = vmatmul.mubr.bf16.gmra.mxu0 %v218
        %v270 = vpop.f32.mrf.mxu0
        %v271 = vadd.f32 0.0, %v270
        %v272 = vpop.f32.mrf.mxu0
        %v273 = vpop.f32.mrf.mxu0
        %v274 = vadd.f32 0.0, %v273
        %v275 = vpop.f32.mrf.mxu0
        %276 = vmatprep.mubr.bf16.mxu0 0
        %277 = vmatmul.mubr.bf16.gmra.mxu0 %v221
        %v278 = vpop.f32.mrf.mxu0
        %v279 = vadd.f32 0.0, %v278
        %v280 = vpop.f32.mrf.mxu0
        %v281 = vpop.f32.mrf.mxu0
        %v282 = vadd.f32 0.0, %v281
        %v283 = vpop.f32.mrf.mxu0
        %284 = vmatprep.mubr.bf16.mxu0 0
        %285 = vmatmul.mubr.bf16.gmra.mxu0 %v224
        %v286 = vpop.f32.mrf.mxu0
        %v287 = vadd.f32 0.0, %v286
        %v288 = vpop.f32.mrf.mxu0
        %v289 = vpop.f32.mrf.mxu0
        %v290 = vadd.f32 0.0, %v289
        %v291 = vpop.f32.mrf.mxu0
        %292 = vmatprep.mubr.bf16.mxu0 0
        %293 = vmatmul.mubr.bf16.gmra.mxu0 %v227
        %v294 = vpop.f32.mrf.mxu0
        %v295 = vadd.f32 0.0, %v294
        %v296 = vpop.f32.mrf.mxu0
        %v297 = vpop.f32.mrf.mxu0
        %v298 = vadd.f32 0.0, %v297
        %v299 = vpop.f32.mrf.mxu0
        %300 = vmatprep.mubr.bf16.mxu0 0
        %301 = vmatmul.mubr.bf16.gmra.mxu0 %v230
        %v302 = vpop.f32.mrf.mxu0
        %v303 = vadd.f32 0.0, %v302
        %v304 = vpop.f32.mrf.mxu0
        %v305 = vpop.f32.mrf.mxu0
        %v306 = vpop.f32.mrf.mxu0
        %307 = vdwg.mxu0
        %vm308 = vcmask 523264
        %309 = vst.msk [vmem:[%s181] sm:$0xff] %vm308, %v271
        %310 = vst.msk [vmem:[%s181 + $0x8] sm:$0xff] %vm308, %v274
        %311 = vst.msk [vmem:[%s181 + $0x10] sm:$0xff] %vm308, %v279
        %312 = vst.msk [vmem:[%s181 + $0x18] sm:$0xff] %vm308, %v282
        %313 = vst.msk [vmem:[%s181 + $0x20] sm:$0xff] %vm308, %v287
        %314 = vst.msk [vmem:[%s181 + $0x28] sm:$0xff] %vm308, %v290
        %315 = vst.msk [vmem:[%s181 + $0x30] sm:$0xff] %vm308, %v295
        %316 = vst.msk [vmem:[%s181 + $0x38] sm:$0xff] %vm308, %v298
        %vm317 = vcmask 521216
        %318 = vst.msk [vmem:[%s181 + $0x40] sm:$0x3f] %vm317, %v303
        %v319 = vld [vmem:[%s176 + $0x34] sm:$0x8]
        %v320 = vld [vmem:[%s176 + $0x38] sm:$0xf]
        %v321 = vld [vmem:[%s176 + $0x3c] sm:$0xf]
        %v322 = vld [vmem:[%s176 + $0x40] sm:$0xf]
        %v323 = vld [vmem:[%s176 + $0x44] sm:$0xf]
        %v324 = vld [vmem:[%s176 + $0x48] sm:$0xf]
        %v325 = vld [vmem:[%s176 + $0x4c] sm:$0xf]
        %v326 = vld [vmem:[%s176 + $0x50] sm:$0xf]
        %v327 = vld [vmem:[%s176 + $0x54] sm:$0xf]
        %v328 = vld [vmem:[%s176 + $0x58] sm:$0x3]
        %s329 = scalar_lea.vmem %s1, 4
        %v330 = vld [vmem:[%s329] sm:$0xf]
        %v341 = vunpack.c.l.b16 %v319
        %v342 = vunpack.c.l.b16 %v320
        %v343 = vunpack.c.l.b16 %v321
        %v344 = vunpack.c.l.b16 %v322
        %v345 = vunpack.c.l.b16 %v323
        %v346 = vunpack.c.l.b16 %v324
        %v347 = vunpack.c.l.b16 %v325
        %v348 = vunpack.c.l.b16 %v326
        %v349 = vunpack.c.l.b16 %v327
        %v350 = vunpack.c.l.b16 %v328
        %v351 = vpack.c.b16 %v342, %v341
        %v352 = vpack.c.b16 %v344, %v343
        %v353 = vpack.c.b16 %v346, %v345
        %v354 = vpack.c.b16 %v348, %v347
        %v355 = vpack.c.b16 %v350, %v349
        %vm356 = vcmask 1044480
        %v357 = vrot.slane %v351, 3
        %v358 = vrot.slane %v352, 3
        %v359 = vsel %vm356, %v357, %v358
        %v360 = vrot.slane %v353, 3
        %v361 = vsel %vm356, %v358, %v360
        %v362 = vrot.slane %v354, 3
        %v363 = vsel %vm356, %v360, %v362
        %v364 = vrot.slane %v355, 3
        %v365 = vsel %vm356, %v362, %v364
        %v367 = vsel %vm216, %v359, 0
        %v370 = vsel %vm216, %v361, 0
        %v373 = vsel %vm216, %v363, 0
        %v376 = vsel %vm216, %v365, 0
        %v379 = vsel %vm216, %v364, 0
        %v382 = vsel %vm232, %v330, 0
        %384 = vmatprep.subr.bf16.mxu0 0
        %385 = vmatpush1.bf16.msra.mxu0 0
        %386 = vmatprep.subr.bf16.mxu0 0
        %387 = vmatpush1.bf16.msra.mxu0 0
        %388 = vmatprep.subr.bf16.mxu0 0
        %389 = vmatpush1.bf16.msra.mxu0 0
        %390 = vmatprep.subr.bf16.mxu0 0
        %391 = vmatpush1.bf16.msra.mxu0 0
        %392 = vmatprep.subr.bf16.mxu0 0
        %393 = vmatpush1.bf16.msra.mxu0 0
        %394 = vmatprep.subr.bf16.mxu0 0
        %395 = vmatpush1.bf16.msra.mxu0 0
        %396 = vmatprep.subr.bf16.mxu0 0
        %397 = vmatpush1.bf16.msra.mxu0 0
        %398 = vmatprep.subr.bf16.mxu0 0
        %399 = vmatpush1.bf16.msra.mxu0 %v382
        %400 = vmatprep.subr.bf16.mxu0 0
        %401 = vmatpush2.bf16.msra.mxu0 0
        %402 = vmatprep.subr.bf16.mxu0 0
        %403 = vmatpush2.bf16.msra.mxu0 0
        %404 = vmatprep.subr.bf16.mxu0 0
        %405 = vmatpush2.bf16.msra.mxu0 0
        %406 = vmatprep.subr.bf16.mxu0 0
        %407 = vmatpush2.bf16.msra.mxu0 0
        %408 = vmatprep.subr.bf16.mxu0 0
        %409 = vmatpush2.bf16.msra.mxu0 0
        %410 = vmatprep.subr.bf16.mxu0 0
        %411 = vmatpush2.bf16.msra.mxu0 0
        %412 = vmatprep.subr.bf16.mxu0 0
        %413 = vmatpush2.bf16.msra.mxu0 0
        %414 = vmatprep.subr.bf16.mxu0 0
        %415 = vmatpush2.bf16.msra.mxu0 0
        %416 = vmatprep.mubr.bf16.mxu0 0
        %417 = vmatmul.mubr.bf16.gmra.mxu0 %v367
        %v418 = vpop.f32.mrf.mxu0
        %v419 = vadd.f32 0.0, %v418
        %v420 = vpop.f32.mrf.mxu0
        %v421 = vpop.f32.mrf.mxu0
        %v422 = vadd.f32 0.0, %v421
        %v423 = vpop.f32.mrf.mxu0
        %424 = vmatprep.mubr.bf16.mxu0 0
        %425 = vmatmul.mubr.bf16.gmra.mxu0 %v370
        %v426 = vpop.f32.mrf.mxu0
        %v427 = vadd.f32 0.0, %v426
        %v428 = vpop.f32.mrf.mxu0
        %v429 = vpop.f32.mrf.mxu0
        %v430 = vadd.f32 0.0, %v429
        %v431 = vpop.f32.mrf.mxu0
        %432 = vmatprep.mubr.bf16.mxu0 0
        %433 = vmatmul.mubr.bf16.gmra.mxu0 %v373
        %v434 = vpop.f32.mrf.mxu0
        %v435 = vadd.f32 0.0, %v434
        %v436 = vpop.f32.mrf.mxu0
        %v437 = vpop.f32.mrf.mxu0
        %v438 = vadd.f32 0.0, %v437
        %v439 = vpop.f32.mrf.mxu0
        %440 = vmatprep.mubr.bf16.mxu0 0
        %441 = vmatmul.mubr.bf16.gmra.mxu0 %v376
        %v442 = vpop.f32.mrf.mxu0
        %v443 = vadd.f32 0.0, %v442
        %v444 = vpop.f32.mrf.mxu0
        %v445 = vpop.f32.mrf.mxu0
        %v446 = vadd.f32 0.0, %v445
        %v447 = vpop.f32.mrf.mxu0
        %448 = vmatprep.mubr.bf16.mxu0 0
        %449 = vmatmul.mubr.bf16.gmra.mxu0 %v379
        %v450 = vpop.f32.mrf.mxu0
        %v451 = vadd.f32 0.0, %v450
        %v452 = vpop.f32.mrf.mxu0
        %v453 = vpop.f32.mrf.mxu0
        %v454 = vpop.f32.mrf.mxu0
        %455 = vdwg.mxu0
        %v456 = vld [vmem:[%s181] sm:$0xff]
        %v457 = vld [vmem:[%s181 + $0x8] sm:$0xff]
        %v458 = vld [vmem:[%s181 + $0x10] sm:$0xff]
        %v459 = vld [vmem:[%s181 + $0x18] sm:$0xff]
        %v460 = vld [vmem:[%s181 + $0x20] sm:$0xff]
        %v461 = vld [vmem:[%s181 + $0x28] sm:$0xff]
        %v462 = vld [vmem:[%s181 + $0x30] sm:$0xff]
        %v463 = vld [vmem:[%s181 + $0x38] sm:$0xff]
        %v464 = vld [vmem:[%s181 + $0x40] sm:$0x3f]
        %v465 = vadd.f32 %v456, %v419
        %v466 = vadd.f32 %v457, %v422
        %v467 = vadd.f32 %v458, %v427
        %v468 = vadd.f32 %v459, %v430
        %v469 = vadd.f32 %v460, %v435
        %v470 = vadd.f32 %v461, %v438
        %v471 = vadd.f32 %v462, %v443
        %v472 = vadd.f32 %v463, %v446
        %v473 = vadd.f32 %v464, %v451
        %474 = vst.msk [vmem:[%s181] sm:$0xff] %vm308, %v465
        %475 = vst.msk [vmem:[%s181 + $0x8] sm:$0xff] %vm308, %v466
        %476 = vst.msk [vmem:[%s181 + $0x10] sm:$0xff] %vm308, %v467
        %477 = vst.msk [vmem:[%s181 + $0x18] sm:$0xff] %vm308, %v468
        %478 = vst.msk [vmem:[%s181 + $0x20] sm:$0xff] %vm308, %v469
        %479 = vst.msk [vmem:[%s181 + $0x28] sm:$0xff] %vm308, %v470
        %480 = vst.msk [vmem:[%s181 + $0x30] sm:$0xff] %vm308, %v471
        %481 = vst.msk [vmem:[%s181 + $0x38] sm:$0xff] %vm308, %v472
        %482 = vst.msk [vmem:[%s181 + $0x40] sm:$0x3f] %vm317, %v473
        %v483 = vld [vmem:[%s176] sm:$0xf]
        %v484 = vld [vmem:[%s176 + $0x4] sm:$0xf]
        %v485 = vld [vmem:[%s176 + $0x8] sm:$0xf]
        %v486 = vld [vmem:[%s176 + $0xc] sm:$0xf]
        %v487 = vld [vmem:[%s176 + $0x10] sm:$0xf]
        %v488 = vld [vmem:[%s176 + $0x14] sm:$0xf]
        %v489 = vld [vmem:[%s176 + $0x18] sm:$0xf]
        %v490 = vld [vmem:[%s176 + $0x1c] sm:$0xf]
        %v491 = vld [vmem:[%s176 + $0x20] sm:$0xf]
        %s492 = scalar_lea.vmem %s1, 8
        %v493 = vld [vmem:[%s492] sm:$0xf]
        %v503 = vunpack.c.l.b16 %v483
        %v504 = vunpack.c.l.b16 %v484
        %v505 = vunpack.c.l.b16 %v485
        %v506 = vunpack.c.l.b16 %v486
        %v507 = vunpack.c.l.b16 %v487
        %v508 = vunpack.c.l.b16 %v488
        %v509 = vunpack.c.l.b16 %v489
        %v510 = vunpack.c.l.b16 %v490
        %v511 = vunpack.c.l.b16 %v491
        %v512 = vpack.c.b16 %v504, %v503
        %v513 = vpack.c.b16 %v506, %v505
        %v514 = vpack.c.b16 %v508, %v507
        %v515 = vpack.c.b16 %v510, %v509
        %v516 = vpack.c.b16 %v511, %v511
        %vm517 = vsmask.f32 7424
        %v519 = vshrl.u32 %v512, 16
        %v521 = vshll.u32 %v512, 16
        %v523 = vrot.slane %v521, 1
        %v524 = vor.u32 %v519, %v523
        %v526 = vshll.u32 %v513, 16
        %v528 = vrot.slane %v526, 1
        %v529 = vsel %vm517, %v524, %v528
        %v530 = vshrl.u32 %v513, 16
        %v532 = vor.u32 %v530, %v528
        %v534 = vshll.u32 %v514, 16
        %v536 = vrot.slane %v534, 1
        %v537 = vsel %vm517, %v532, %v536
        %v538 = vshrl.u32 %v514, 16
        %v540 = vor.u32 %v538, %v536
        %v542 = vshll.u32 %v515, 16
        %v544 = vrot.slane %v542, 1
        %v545 = vsel %vm517, %v540, %v544
        %v546 = vshrl.u32 %v515, 16
        %v548 = vor.u32 %v546, %v544
        %v550 = vshll.u32 %v516, 16
        %v552 = vrot.slane %v550, 1
        %v553 = vsel %vm517, %v548, %v552
        %v554 = vshrl.u32 %v516, 16
        %v556 = vor.u32 %v554, %v552
        %v558 = vsel %vm216, %v529, 0
        %v561 = vsel %vm216, %v537, 0
        %v564 = vsel %vm216, %v545, 0
        %v567 = vsel %vm216, %v553, 0
        %v570 = vsel %vm216, %v556, 0
        %v573 = vsel %vm232, %v493, 0
        %575 = vmatprep.subr.bf16.mxu0 0
        %576 = vmatpush1.bf16.msra.mxu0 0
        %577 = vmatprep.subr.bf16.mxu0 0
        %578 = vmatpush1.bf16.msra.mxu0 0
        %579 = vmatprep.subr.bf16.mxu0 0
        %580 = vmatpush1.bf16.msra.mxu0 0
        %581 = vmatprep.subr.bf16.mxu0 0
        %582 = vmatpush1.bf16.msra.mxu0 0
        %583 = vmatprep.subr.bf16.mxu0 0
        %584 = vmatpush1.bf16.msra.mxu0 0
        %585 = vmatprep.subr.bf16.mxu0 0
        %586 = vmatpush1.bf16.msra.mxu0 0
        %587 = vmatprep.subr.bf16.mxu0 0
        %588 = vmatpush1.bf16.msra.mxu0 0
        %589 = vmatprep.subr.bf16.mxu0 0
        %590 = vmatpush1.bf16.msra.mxu0 %v573
        %591 = vmatprep.subr.bf16.mxu0 0
        %592 = vmatpush2.bf16.msra.mxu0 0
        %593 = vmatprep.subr.bf16.mxu0 0
        %594 = vmatpush2.bf16.msra.mxu0 0
        %595 = vmatprep.subr.bf16.mxu0 0
        %596 = vmatpush2.bf16.msra.mxu0 0
        %597 = vmatprep.subr.bf16.mxu0 0
        %598 = vmatpush2.bf16.msra.mxu0 0
        %599 = vmatprep.subr.bf16.mxu0 0
        %600 = vmatpush2.bf16.msra.mxu0 0
        %601 = vmatprep.subr.bf16.mxu0 0
        %602 = vmatpush2.bf16.msra.mxu0 0
        %603 = vmatprep.subr.bf16.mxu0 0
        %604 = vmatpush2.bf16.msra.mxu0 0
        %605 = vmatprep.subr.bf16.mxu0 0
        %606 = vmatpush2.bf16.msra.mxu0 0
        %607 = vmatprep.mubr.bf16.mxu0 0
        %608 = vmatmul.mubr.bf16.gmra.mxu0 %v558
        %v609 = vpop.f32.mrf.mxu0
        %v610 = vadd.f32 0.0, %v609
        %v611 = vpop.f32.mrf.mxu0
        %v612 = vpop.f32.mrf.mxu0
        %v613 = vadd.f32 0.0, %v612
        %v614 = vpop.f32.mrf.mxu0
        %615 = vmatprep.mubr.bf16.mxu0 0
        %616 = vmatmul.mubr.bf16.gmra.mxu0 %v561
        %v617 = vpop.f32.mrf.mxu0
        %v618 = vadd.f32 0.0, %v617
        %v619 = vpop.f32.mrf.mxu0
        %v620 = vpop.f32.mrf.mxu0
        %v621 = vadd.f32 0.0, %v620
        %v622 = vpop.f32.mrf.mxu0
        %623 = vmatprep.mubr.bf16.mxu0 0
        %624 = vmatmul.mubr.bf16.gmra.mxu0 %v564
        %v625 = vpop.f32.mrf.mxu0
        %v626 = vadd.f32 0.0, %v625
        %v627 = vpop.f32.mrf.mxu0
        %v628 = vpop.f32.mrf.mxu0
        %v629 = vadd.f32 0.0, %v628
        %v630 = vpop.f32.mrf.mxu0
        %631 = vmatprep.mubr.bf16.mxu0 0
        %632 = vmatmul.mubr.bf16.gmra.mxu0 %v567
        %v633 = vpop.f32.mrf.mxu0
        %v634 = vadd.f32 0.0, %v633
        %v635 = vpop.f32.mrf.mxu0
        %v636 = vpop.f32.mrf.mxu0
        %v637 = vadd.f32 0.0, %v636
        %v638 = vpop.f32.mrf.mxu0
        %639 = vmatprep.mubr.bf16.mxu0 0
        %640 = vmatmul.mubr.bf16.gmra.mxu0 %v570
        %v641 = vpop.f32.mrf.mxu0
        %v642 = vadd.f32 0.0, %v641
        %v643 = vpop.f32.mrf.mxu0
        %v644 = vpop.f32.mrf.mxu0
        %v645 = vpop.f32.mrf.mxu0
        %646 = vdwg.mxu0
        %v647 = vld [vmem:[%s181] sm:$0xff]
        %v648 = vld [vmem:[%s181 + $0x8] sm:$0xff]
        %v649 = vld [vmem:[%s181 + $0x10] sm:$0xff]
        %v650 = vld [vmem:[%s181 + $0x18] sm:$0xff]
        %v651 = vld [vmem:[%s181 + $0x20] sm:$0xff]
        %v652 = vld [vmem:[%s181 + $0x28] sm:$0xff]
        %v653 = vld [vmem:[%s181 + $0x30] sm:$0xff]
        %v654 = vld [vmem:[%s181 + $0x38] sm:$0xff]
        %v655 = vld [vmem:[%s181 + $0x40] sm:$0x3f]
        %v656 = vadd.f32 %v647, %v610
        %v657 = vadd.f32 %v648, %v613
        %v658 = vadd.f32 %v649, %v618
        %v659 = vadd.f32 %v650, %v621
        %v660 = vadd.f32 %v651, %v626
        %v661 = vadd.f32 %v652, %v629
        %v662 = vadd.f32 %v653, %v634
        %v663 = vadd.f32 %v654, %v637
        %v664 = vadd.f32 %v655, %v642
        %665 = vst.msk [vmem:[%s181] sm:$0xff] %vm308, %v656
        %666 = vst.msk [vmem:[%s181 + $0x8] sm:$0xff] %vm308, %v657
        %667 = vst.msk [vmem:[%s181 + $0x10] sm:$0xff] %vm308, %v658
        %668 = vst.msk [vmem:[%s181 + $0x18] sm:$0xff] %vm308, %v659
        %669 = vst.msk [vmem:[%s181 + $0x20] sm:$0xff] %vm308, %v660
        %670 = vst.msk [vmem:[%s181 + $0x28] sm:$0xff] %vm308, %v661
        %671 = vst.msk [vmem:[%s181 + $0x30] sm:$0xff] %vm308, %v662
        %672 = vst.msk [vmem:[%s181 + $0x38] sm:$0xff] %vm308, %v663
        %673 = vst.msk [vmem:[%s181 + $0x40] sm:$0x3f] %vm317, %v664
        %v674 = vld [vmem:[%s176 + $0x34] sm:$0x8]
        %v675 = vld [vmem:[%s176 + $0x38] sm:$0xf]
        %v676 = vld [vmem:[%s176 + $0x3c] sm:$0xf]
        %v677 = vld [vmem:[%s176 + $0x40] sm:$0xf]
        %v678 = vld [vmem:[%s176 + $0x44] sm:$0xf]
        %v679 = vld [vmem:[%s176 + $0x48] sm:$0xf]
        %v680 = vld [vmem:[%s176 + $0x4c] sm:$0xf]
        %v681 = vld [vmem:[%s176 + $0x50] sm:$0xf]
        %v682 = vld [vmem:[%s176 + $0x54] sm:$0xf]
        %v683 = vld [vmem:[%s176 + $0x58] sm:$0x7]
        %s684 = scalar_lea.vmem %s1, 12
        %v685 = vld [vmem:[%s684] sm:$0xf]
        %v696 = vunpack.c.l.b16 %v674
        %v697 = vunpack.c.l.b16 %v675
        %v698 = vunpack.c.l.b16 %v676
        %v699 = vunpack.c.l.b16 %v677
        %v700 = vunpack.c.l.b16 %v678
        %v701 = vunpack.c.l.b16 %v679
        %v702 = vunpack.c.l.b16 %v680
        %v703 = vunpack.c.l.b16 %v681
        %v704 = vunpack.c.l.b16 %v682
        %v705 = vunpack.c.l.b16 %v683
        %v706 = vpack.c.b16 %v697, %v696
        %v707 = vpack.c.b16 %v699, %v698
        %v708 = vpack.c.b16 %v701, %v700
        %v709 = vpack.c.b16 %v703, %v702
        %v710 = vpack.c.b16 %v705, %v704
        %vm711 = vsmask.f32 4352
        %v713 = vshrl.u32 %v706, 16
        %v715 = vrot.slane %v713, 3
        %v716 = vshll.u32 %v706, 16
        %v718 = vrot.slane %v716, 4
        %v719 = vor.u32 %v715, %v718
        %v721 = vshrl.u32 %v707, 16
        %v723 = vrot.slane %v721, 3
        %v724 = vshll.u32 %v707, 16
        %v726 = vrot.slane %v724, 4
        %v727 = vor.u32 %v723, %v726
        %v728 = vsel %vm711, %v719, %v727
        %v730 = vshrl.u32 %v708, 16
        %v732 = vrot.slane %v730, 3
        %v733 = vshll.u32 %v708, 16
        %v735 = vrot.slane %v733, 4
        %v736 = vor.u32 %v732, %v735
        %v737 = vsel %vm711, %v727, %v736
        %v739 = vshrl.u32 %v709, 16
        %v741 = vrot.slane %v739, 3
        %v742 = vshll.u32 %v709, 16
        %v744 = vrot.slane %v742, 4
        %v745 = vor.u32 %v741, %v744
        %v746 = vsel %vm711, %v736, %v745
        %v748 = vshrl.u32 %v710, 16
        %v750 = vrot.slane %v748, 3
        %v751 = vshll.u32 %v710, 16
        %v753 = vrot.slane %v751, 4
        %v754 = vor.u32 %v750, %v753
        %v755 = vsel %vm711, %v745, %v754
        %v757 = vsel %vm216, %v728, 0
        %v760 = vsel %vm216, %v737, 0
        %v763 = vsel %vm216, %v746, 0
        %v766 = vsel %vm216, %v755, 0
        %v769 = vsel %vm216, %v754, 0
        %v772 = vsel %vm232, %v685, 0
        %774 = vmatprep.subr.bf16.mxu0 0
        %775 = vmatpush1.bf16.msra.mxu0 0
        %776 = vmatprep.subr.bf16.mxu0 0
        %777 = vmatpush1.bf16.msra.mxu0 0
        %778 = vmatprep.subr.bf16.mxu0 0
        %779 = vmatpush1.bf16.msra.mxu0 0
        %780 = vmatprep.subr.bf16.mxu0 0
        %781 = vmatpush1.bf16.msra.mxu0 0
        %782 = vmatprep.subr.bf16.mxu0 0
        %783 = vmatpush1.bf16.msra.mxu0 0
        %784 = vmatprep.subr.bf16.mxu0 0
        %785 = vmatpush1.bf16.msra.mxu0 0
        %786 = vmatprep.subr.bf16.mxu0 0
        %787 = vmatpush1.bf16.msra.mxu0 0
        %788 = vmatprep.subr.bf16.mxu0 0
        %789 = vmatpush1.bf16.msra.mxu0 %v772
        %790 = vmatprep.subr.bf16.mxu0 0
        %791 = vmatpush2.bf16.msra.mxu0 0
        %792 = vmatprep.subr.bf16.mxu0 0
        %793 = vmatpush2.bf16.msra.mxu0 0
        %794 = vmatprep.subr.bf16.mxu0 0
        %795 = vmatpush2.bf16.msra.mxu0 0
        %796 = vmatprep.subr.bf16.mxu0 0
        %797 = vmatpush2.bf16.msra.mxu0 0
        %798 = vmatprep.subr.bf16.mxu0 0
        %799 = vmatpush2.bf16.msra.mxu0 0
        %800 = vmatprep.subr.bf16.mxu0 0
        %801 = vmatpush2.bf16.msra.mxu0 0
        %802 = vmatprep.subr.bf16.mxu0 0
        %803 = vmatpush2.bf16.msra.mxu0 0
        %804 = vmatprep.subr.bf16.mxu0 0
        %805 = vmatpush2.bf16.msra.mxu0 0
        %806 = vmatprep.mubr.bf16.mxu0 0
        %807 = vmatmul.mubr.bf16.gmra.mxu0 %v757
        %v808 = vpop.f32.mrf.mxu0
        %v809 = vadd.f32 0.0, %v808
        %v810 = vpop.f32.mrf.mxu0
        %v811 = vpop.f32.mrf.mxu0
        %v812 = vadd.f32 0.0, %v811
        %v813 = vpop.f32.mrf.mxu0
        %814 = vmatprep.mubr.bf16.mxu0 0
        %815 = vmatmul.mubr.bf16.gmra.mxu0 %v760
        %v816 = vpop.f32.mrf.mxu0
        %v817 = vadd.f32 0.0, %v816
        %v818 = vpop.f32.mrf.mxu0
        %v819 = vpop.f32.mrf.mxu0
        %v820 = vadd.f32 0.0, %v819
        %v821 = vpop.f32.mrf.mxu0
        %822 = vmatprep.mubr.bf16.mxu0 0
        %823 = vmatmul.mubr.bf16.gmra.mxu0 %v763
        %v824 = vpop.f32.mrf.mxu0
        %v825 = vadd.f32 0.0, %v824
        %v826 = vpop.f32.mrf.mxu0
        %v827 = vpop.f32.mrf.mxu0
        %v828 = vadd.f32 0.0, %v827
        %v829 = vpop.f32.mrf.mxu0
        %830 = vmatprep.mubr.bf16.mxu0 0
        %831 = vmatmul.mubr.bf16.gmra.mxu0 %v766
        %v832 = vpop.f32.mrf.mxu0
        %v833 = vadd.f32 0.0, %v832
        %v834 = vpop.f32.mrf.mxu0
        %v835 = vpop.f32.mrf.mxu0
        %v836 = vadd.f32 0.0, %v835
        %v837 = vpop.f32.mrf.mxu0
        %838 = vmatprep.mubr.bf16.mxu0 0
        %839 = vmatmul.mubr.bf16.gmra.mxu0 %v769
        %v840 = vpop.f32.mrf.mxu0
        %v841 = vadd.f32 0.0, %v840
        %v842 = vpop.f32.mrf.mxu0
        %v843 = vpop.f32.mrf.mxu0
        %v844 = vpop.f32.mrf.mxu0
        %845 = vdwg.mxu0
        %v846 = vld [vmem:[%s181] sm:$0xff]
        %v847 = vld [vmem:[%s181 + $0x8] sm:$0xff]
        %v848 = vld [vmem:[%s181 + $0x10] sm:$0xff]
        %v849 = vld [vmem:[%s181 + $0x18] sm:$0xff]
        %v850 = vld [vmem:[%s181 + $0x20] sm:$0xff]
        %v851 = vld [vmem:[%s181 + $0x28] sm:$0xff]
        %v852 = vld [vmem:[%s181 + $0x30] sm:$0xff]
        %v853 = vld [vmem:[%s181 + $0x38] sm:$0xff]
        %v854 = vld [vmem:[%s181 + $0x40] sm:$0x3f]
        %v855 = vadd.f32 %v846, %v809
        %v856 = vadd.f32 %v847, %v812
        %v857 = vadd.f32 %v848, %v817
        %v858 = vadd.f32 %v849, %v820
        %v859 = vadd.f32 %v850, %v825
        %v860 = vadd.f32 %v851, %v828
        %v861 = vadd.f32 %v852, %v833
        %v862 = vadd.f32 %v853, %v836
        %v863 = vadd.f32 %v854, %v841
        %864 = vst.msk [vmem:[%s181] sm:$0xff] %vm308, %v855
        %865 = vst.msk [vmem:[%s181 + $0x8] sm:$0xff] %vm308, %v856
        %866 = vst.msk [vmem:[%s181 + $0x10] sm:$0xff] %vm308, %v857
        %867 = vst.msk [vmem:[%s181 + $0x18] sm:$0xff] %vm308, %v858
        %868 = vst.msk [vmem:[%s181 + $0x20] sm:$0xff] %vm308, %v859
        %869 = vst.msk [vmem:[%s181 + $0x28] sm:$0xff] %vm308, %v860
        %870 = vst.msk [vmem:[%s181 + $0x30] sm:$0xff] %vm308, %v861
        %871 = vst.msk [vmem:[%s181 + $0x38] sm:$0xff] %vm308, %v862
        %872 = vst.msk [vmem:[%s181 + $0x40] sm:$0x3f] %vm317, %v863
        %v873 = vld [vmem:[%s176] sm:$0xe]
        %v874 = vld [vmem:[%s176 + $0x4] sm:$0xf]
        %v875 = vld [vmem:[%s176 + $0x8] sm:$0xf]
        %v876 = vld [vmem:[%s176 + $0xc] sm:$0xf]
        %v877 = vld [vmem:[%s176 + $0x10] sm:$0xf]
        %v878 = vld [vmem:[%s176 + $0x14] sm:$0xf]
        %v879 = vld [vmem:[%s176 + $0x18] sm:$0xf]
        %v880 = vld [vmem:[%s176 + $0x1c] sm:$0xf]
        %v881 = vld [vmem:[%s176 + $0x20] sm:$0xf]
        %s882 = scalar_lea.vmem %s1, 16
        %v883 = vld [vmem:[%s882] sm:$0xf]
        %v893 = vunpack.c.l.b16 %v873
        %v894 = vunpack.c.l.b16 %v874
        %v895 = vunpack.c.l.b16 %v875
        %v896 = vunpack.c.l.b16 %v876
        %v897 = vunpack.c.l.b16 %v877
        %v898 = vunpack.c.l.b16 %v878
        %v899 = vunpack.c.l.b16 %v879
        %v900 = vunpack.c.l.b16 %v880
        %v901 = vunpack.c.l.b16 %v881
        %v902 = vpack.c.b16 %v894, %v893
        %v903 = vpack.c.b16 %v896, %v895
        %v904 = vpack.c.b16 %v898, %v897
        %v905 = vpack.c.b16 %v900, %v899
        %v906 = vpack.c.b16 %v901, %v901
        %vm907 = vcmask 1046528
        %v908 = vrot.slane %v902, 1
        %v909 = vrot.slane %v903, 1
        %v910 = vsel %vm907, %v908, %v909
        %v911 = vrot.slane %v904, 1
        %v912 = vsel %vm907, %v909, %v911
        %v913 = vrot.slane %v905, 1
        %v914 = vsel %vm907, %v911, %v913
        %v915 = vrot.slane %v906, 1
        %v916 = vsel %vm907, %v913, %v915
        %v918 = vsel %vm216, %v910, 0
        %v921 = vsel %vm216, %v912, 0
        %v924 = vsel %vm216, %v914, 0
        %v927 = vsel %vm216, %v916, 0
        %v930 = vsel %vm216, %v915, 0
        %v933 = vsel %vm232, %v883, 0
        %935 = vmatprep.subr.bf16.mxu0 0
        %936 = vmatpush1.bf16.msra.mxu0 0
        %937 = vmatprep.subr.bf16.mxu0 0
        %938 = vmatpush1.bf16.msra.mxu0 0
        %939 = vmatprep.subr.bf16.mxu0 0
        %940 = vmatpush1.bf16.msra.mxu0 0
        %941 = vmatprep.subr.bf16.mxu0 0
        %942 = vmatpush1.bf16.msra.mxu0 0
        %943 = vmatprep.subr.bf16.mxu0 0
        %944 = vmatpush1.bf16.msra.mxu0 0
        %945 = vmatprep.subr.bf16.mxu0 0
        %946 = vmatpush1.bf16.msra.mxu0 0
        %947 = vmatprep.subr.bf16.mxu0 0
        %948 = vmatpush1.bf16.msra.mxu0 0
        %949 = vmatprep.subr.bf16.mxu0 0
        %950 = vmatpush1.bf16.msra.mxu0 %v933
        %951 = vmatprep.subr.bf16.mxu0 0
        %952 = vmatpush2.bf16.msra.mxu0 0
        %953 = vmatprep.subr.bf16.mxu0 0
        %954 = vmatpush2.bf16.msra.mxu0 0
        %955 = vmatprep.subr.bf16.mxu0 0
        %956 = vmatpush2.bf16.msra.mxu0 0
        %957 = vmatprep.subr.bf16.mxu0 0
        %958 = vmatpush2.bf16.msra.mxu0 0
        %959 = vmatprep.subr.bf16.mxu0 0
        %960 = vmatpush2.bf16.msra.mxu0 0
        %961 = vmatprep.subr.bf16.mxu0 0
        %962 = vmatpush2.bf16.msra.mxu0 0
        %963 = vmatprep.subr.bf16.mxu0 0
        %964 = vmatpush2.bf16.msra.mxu0 0
        %965 = vmatprep.subr.bf16.mxu0 0
        %966 = vmatpush2.bf16.msra.mxu0 0
        %967 = vmatprep.mubr.bf16.mxu0 0
        %968 = vmatmul.mubr.bf16.gmra.mxu0 %v918
        %v969 = vpop.f32.mrf.mxu0
        %v970 = vadd.f32 0.0, %v969
        %v971 = vpop.f32.mrf.mxu0
        %v972 = vpop.f32.mrf.mxu0
        %v973 = vadd.f32 0.0, %v972
        %v974 = vpop.f32.mrf.mxu0
        %975 = vmatprep.mubr.bf16.mxu0 0
        %976 = vmatmul.mubr.bf16.gmra.mxu0 %v921
        %v977 = vpop.f32.mrf.mxu0
        %v978 = vadd.f32 0.0, %v977
        %v979 = vpop.f32.mrf.mxu0
        %v980 = vpop.f32.mrf.mxu0
        %v981 = vadd.f32 0.0, %v980
        %v982 = vpop.f32.mrf.mxu0
        %983 = vmatprep.mubr.bf16.mxu0 0
        %984 = vmatmul.mubr.bf16.gmra.mxu0 %v924
        %v985 = vpop.f32.mrf.mxu0
        %v986 = vadd.f32 0.0, %v985
        %v987 = vpop.f32.mrf.mxu0
        %v988 = vpop.f32.mrf.mxu0
        %v989 = vadd.f32 0.0, %v988
        %v990 = vpop.f32.mrf.mxu0
        %991 = vmatprep.mubr.bf16.mxu0 0
        %992 = vmatmul.mubr.bf16.gmra.mxu0 %v927
        %v993 = vpop.f32.mrf.mxu0
        %v994 = vadd.f32 0.0, %v993
        %v995 = vpop.f32.mrf.mxu0
        %v996 = vpop.f32.mrf.mxu0
        %v997 = vadd.f32 0.0, %v996
        %v998 = vpop.f32.mrf.mxu0
        %999 = vmatprep.mubr.bf16.mxu0 0
        %1000 = vmatmul.mubr.bf16.gmra.mxu0 %v930
        %v1001 = vpop.f32.mrf.mxu0
        %v1002 = vadd.f32 0.0, %v1001
        %v1003 = vpop.f32.mrf.mxu0
        %v1004 = vpop.f32.mrf.mxu0
        %v1005 = vpop.f32.mrf.mxu0
        %1006 = vdwg.mxu0
        %v1007 = vld [vmem:[%s181] sm:$0xff]
        %v1008 = vld [vmem:[%s181 + $0x8] sm:$0xff]
        %v1009 = vld [vmem:[%s181 + $0x10] sm:$0xff]
        %v1010 = vld [vmem:[%s181 + $0x18] sm:$0xff]
        %v1011 = vld [vmem:[%s181 + $0x20] sm:$0xff]
        %v1012 = vld [vmem:[%s181 + $0x28] sm:$0xff]
        %v1013 = vld [vmem:[%s181 + $0x30] sm:$0xff]
        %v1014 = vld [vmem:[%s181 + $0x38] sm:$0xff]
        %v1015 = vld [vmem:[%s181 + $0x40] sm:$0x3f]
        %v1016 = vadd.f32 %v1007, %v970
        %v1017 = vadd.f32 %v1008, %v973
        %v1018 = vadd.f32 %v1009, %v978
        %v1019 = vadd.f32 %v1010, %v981
        %v1020 = vadd.f32 %v1011, %v986
        %v1021 = vadd.f32 %v1012, %v989
        %v1022 = vadd.f32 %v1013, %v994
        %v1023 = vadd.f32 %v1014, %v997
        %v1024 = vadd.f32 %v1015, %v1002
        %1025 = vst.msk [vmem:[%s181] sm:$0xff] %vm308, %v1016
        %1026 = vst.msk [vmem:[%s181 + $0x8] sm:$0xff] %vm308, %v1017
        %1027 = vst.msk [vmem:[%s181 + $0x10] sm:$0xff] %vm308, %v1018
        %1028 = vst.msk [vmem:[%s181 + $0x18] sm:$0xff] %vm308, %v1019
        %1029 = vst.msk [vmem:[%s181 + $0x20] sm:$0xff] %vm308, %v1020
        %1030 = vst.msk [vmem:[%s181 + $0x28] sm:$0xff] %vm308, %v1021
        %1031 = vst.msk [vmem:[%s181 + $0x30] sm:$0xff] %vm308, %v1022
        %1032 = vst.msk [vmem:[%s181 + $0x38] sm:$0xff] %vm308, %v1023
        %1033 = vst.msk [vmem:[%s181 + $0x40] sm:$0x3f] %vm317, %v1024
        %v1034 = vld [vmem:[%s176 + $0x38] sm:$0xf]
        %v1035 = vld [vmem:[%s176 + $0x3c] sm:$0xf]
        %v1036 = vld [vmem:[%s176 + $0x40] sm:$0xf]
        %v1037 = vld [vmem:[%s176 + $0x44] sm:$0xf]
        %v1038 = vld [vmem:[%s176 + $0x48] sm:$0xf]
        %v1039 = vld [vmem:[%s176 + $0x4c] sm:$0xf]
        %v1040 = vld [vmem:[%s176 + $0x50] sm:$0xf]
        %v1041 = vld [vmem:[%s176 + $0x54] sm:$0xf]
        %v1042 = vld [vmem:[%s176 + $0x58] sm:$0x7]
        %s1043 = scalar_lea.vmem %s1, 20
        %v1044 = vld [vmem:[%s1043] sm:$0xf]
        %v1054 = vunpack.c.l.b16 %v1034
        %v1055 = vunpack.c.l.b16 %v1035
        %v1056 = vunpack.c.l.b16 %v1036
        %v1057 = vunpack.c.l.b16 %v1037
        %v1058 = vunpack.c.l.b16 %v1038
        %v1059 = vunpack.c.l.b16 %v1039
        %v1060 = vunpack.c.l.b16 %v1040
        %v1061 = vunpack.c.l.b16 %v1041
        %v1062 = vunpack.c.l.b16 %v1042
        %v1063 = vpack.c.b16 %v1055, %v1054
        %v1064 = vpack.c.b16 %v1057, %v1056
        %v1065 = vpack.c.b16 %v1059, %v1058
        %v1066 = vpack.c.b16 %v1061, %v1060
        %v1067 = vpack.c.b16 %v1062, %v1062
        %v1069 = vsel %vm216, %v1063, 0
        %v1072 = vsel %vm216, %v1064, 0
        %v1075 = vsel %vm216, %v1065, 0
        %v1078 = vsel %vm216, %v1066, 0
        %v1081 = vsel %vm216, %v1067, 0
        %v1084 = vsel %vm232, %v1044, 0
        %1086 = vmatprep.subr.bf16.mxu0 0
        %1087 = vmatpush1.bf16.msra.mxu0 0
        %1088 = vmatprep.subr.bf16.mxu0 0
        %1089 = vmatpush1.bf16.msra.mxu0 0
        %1090 = vmatprep.subr.bf16.mxu0 0
        %1091 = vmatpush1.bf16.msra.mxu0 0
        %1092 = vmatprep.subr.bf16.mxu0 0
        %1093 = vmatpush1.bf16.msra.mxu0 0
        %1094 = vmatprep.subr.bf16.mxu0 0
        %1095 = vmatpush1.bf16.msra.mxu0 0
        %1096 = vmatprep.subr.bf16.mxu0 0
        %1097 = vmatpush1.bf16.msra.mxu0 0
        %1098 = vmatprep.subr.bf16.mxu0 0
        %1099 = vmatpush1.bf16.msra.mxu0 0
        %1100 = vmatprep.subr.bf16.mxu0 0
        %1101 = vmatpush1.bf16.msra.mxu0 %v1084
        %1102 = vmatprep.subr.bf16.mxu0 0
        %1103 = vmatpush2.bf16.msra.mxu0 0
        %1104 = vmatprep.subr.bf16.mxu0 0
        %1105 = vmatpush2.bf16.msra.mxu0 0
        %1106 = vmatprep.subr.bf16.mxu0 0
        %1107 = vmatpush2.bf16.msra.mxu0 0
        %1108 = vmatprep.subr.bf16.mxu0 0
        %1109 = vmatpush2.bf16.msra.mxu0 0
        %1110 = vmatprep.subr.bf16.mxu0 0
        %1111 = vmatpush2.bf16.msra.mxu0 0
        %1112 = vmatprep.subr.bf16.mxu0 0
        %1113 = vmatpush2.bf16.msra.mxu0 0
        %1114 = vmatprep.subr.bf16.mxu0 0
        %1115 = vmatpush2.bf16.msra.mxu0 0
        %1116 = vmatprep.subr.bf16.mxu0 0
        %1117 = vmatpush2.bf16.msra.mxu0 0
        %1118 = vmatprep.mubr.bf16.mxu0 0
        %1119 = vmatmul.mubr.bf16.gmra.mxu0 %v1069
        %v1120 = vpop.f32.mrf.mxu0
        %v1121 = vadd.f32 0.0, %v1120
        %v1122 = vpop.f32.mrf.mxu0
        %v1123 = vpop.f32.mrf.mxu0
        %v1124 = vadd.f32 0.0, %v1123
        %v1125 = vpop.f32.mrf.mxu0
        %1126 = vmatprep.mubr.bf16.mxu0 0
        %1127 = vmatmul.mubr.bf16.gmra.mxu0 %v1072
        %v1128 = vpop.f32.mrf.mxu0
        %v1129 = vadd.f32 0.0, %v1128
        %v1130 = vpop.f32.mrf.mxu0
        %v1131 = vpop.f32.mrf.mxu0
        %v1132 = vadd.f32 0.0, %v1131
        %v1133 = vpop.f32.mrf.mxu0
        %1134 = vmatprep.mubr.bf16.mxu0 0
        %1135 = vmatmul.mubr.bf16.gmra.mxu0 %v1075
        %v1136 = vpop.f32.mrf.mxu0
        %v1137 = vadd.f32 0.0, %v1136
        %v1138 = vpop.f32.mrf.mxu0
        %v1139 = vpop.f32.mrf.mxu0
        %v1140 = vadd.f32 0.0, %v1139
        %v1141 = vpop.f32.mrf.mxu0
        %1142 = vmatprep.mubr.bf16.mxu0 0
        %1143 = vmatmul.mubr.bf16.gmra.mxu0 %v1078
        %v1144 = vpop.f32.mrf.mxu0
        %v1145 = vadd.f32 0.0, %v1144
        %v1146 = vpop.f32.mrf.mxu0
        %v1147 = vpop.f32.mrf.mxu0
        %v1148 = vadd.f32 0.0, %v1147
        %v1149 = vpop.f32.mrf.mxu0
        %1150 = vmatprep.mubr.bf16.mxu0 0
        %1151 = vmatmul.mubr.bf16.gmra.mxu0 %v1081
        %v1152 = vpop.f32.mrf.mxu0
        %v1153 = vadd.f32 0.0, %v1152
        %v1154 = vpop.f32.mrf.mxu0
        %v1155 = vpop.f32.mrf.mxu0
        %v1156 = vpop.f32.mrf.mxu0
        %1157 = vdwg.mxu0
        %v1158 = vld [vmem:[%s181] sm:$0xff]
        %v1159 = vld [vmem:[%s181 + $0x8] sm:$0xff]
        %v1160 = vld [vmem:[%s181 + $0x10] sm:$0xff]
        %v1161 = vld [vmem:[%s181 + $0x18] sm:$0xff]
        %v1162 = vld [vmem:[%s181 + $0x20] sm:$0xff]
        %v1163 = vld [vmem:[%s181 + $0x28] sm:$0xff]
        %v1164 = vld [vmem:[%s181 + $0x30] sm:$0xff]
        %v1165 = vld [vmem:[%s181 + $0x38] sm:$0xff]
        %v1166 = vld [vmem:[%s181 + $0x40] sm:$0x3f]
        %v1167 = vadd.f32 %v1158, %v1121
        %v1168 = vadd.f32 %v1159, %v1124
        %v1169 = vadd.f32 %v1160, %v1129
        %v1170 = vadd.f32 %v1161, %v1132
        %v1171 = vadd.f32 %v1162, %v1137
        %v1172 = vadd.f32 %v1163, %v1140
        %v1173 = vadd.f32 %v1164, %v1145
        %v1174 = vadd.f32 %v1165, %v1148
        %v1175 = vadd.f32 %v1166, %v1153
        %1176 = vst.msk [vmem:[%s181] sm:$0xff] %vm308, %v1167
        %1177 = vst.msk [vmem:[%s181 + $0x8] sm:$0xff] %vm308, %v1168
        %1178 = vst.msk [vmem:[%s181 + $0x10] sm:$0xff] %vm308, %v1169
        %1179 = vst.msk [vmem:[%s181 + $0x18] sm:$0xff] %vm308, %v1170
        %1180 = vst.msk [vmem:[%s181 + $0x20] sm:$0xff] %vm308, %v1171
        %1181 = vst.msk [vmem:[%s181 + $0x28] sm:$0xff] %vm308, %v1172
        %1182 = vst.msk [vmem:[%s181 + $0x30] sm:$0xff] %vm308, %v1173
        %1183 = vst.msk [vmem:[%s181 + $0x38] sm:$0xff] %vm308, %v1174
        %1184 = vst.msk [vmem:[%s181 + $0x40] sm:$0x3f] %vm317, %v1175
        %v1185 = vld [vmem:[%s176] sm:$0xe]
        %v1186 = vld [vmem:[%s176 + $0x4] sm:$0xf]
        %v1187 = vld [vmem:[%s176 + $0x8] sm:$0xf]
        %v1188 = vld [vmem:[%s176 + $0xc] sm:$0xf]
        %v1189 = vld [vmem:[%s176 + $0x10] sm:$0xf]
        %v1190 = vld [vmem:[%s176 + $0x14] sm:$0xf]
        %v1191 = vld [vmem:[%s176 + $0x18] sm:$0xf]
        %v1192 = vld [vmem:[%s176 + $0x1c] sm:$0xf]
        %v1193 = vld [vmem:[%s176 + $0x20] sm:$0xf]
        %v1194 = vld [vmem:[%s176 + $0x24] sm:$0x1]
        %s1195 = scalar_lea.vmem %s1, 24
        %v1196 = vld [vmem:[%s1195] sm:$0xf]
        %v1207 = vunpack.c.l.b16 %v1185
        %v1208 = vunpack.c.l.b16 %v1186
        %v1209 = vunpack.c.l.b16 %v1187
        %v1210 = vunpack.c.l.b16 %v1188
        %v1211 = vunpack.c.l.b16 %v1189
        %v1212 = vunpack.c.l.b16 %v1190
        %v1213 = vunpack.c.l.b16 %v1191
        %v1214 = vunpack.c.l.b16 %v1192
        %v1215 = vunpack.c.l.b16 %v1193
        %v1216 = vunpack.c.l.b16 %v1194
        %v1217 = vpack.c.b16 %v1208, %v1207
        %v1218 = vpack.c.b16 %v1210, %v1209
        %v1219 = vpack.c.b16 %v1212, %v1211
        %v1220 = vpack.c.b16 %v1214, %v1213
        %v1221 = vpack.c.b16 %v1216, %v1215
        %vm1222 = vsmask.f32 6400
        %v1224 = vshrl.u32 %v1217, 16
        %v1226 = vrot.slane %v1224, 1
        %v1227 = vshll.u32 %v1217, 16
        %v1229 = vrot.slane %v1227, 2
        %v1230 = vor.u32 %v1226, %v1229
        %v1232 = vshrl.u32 %v1218, 16
        %v1234 = vrot.slane %v1232, 1
        %v1235 = vshll.u32 %v1218, 16
        %v1237 = vrot.slane %v1235, 2
        %v1238 = vor.u32 %v1234, %v1237
        %v1239 = vsel %vm1222, %v1230, %v1238
        %v1241 = vshrl.u32 %v1219, 16
        %v1243 = vrot.slane %v1241, 1
        %v1244 = vshll.u32 %v1219, 16
        %v1246 = vrot.slane %v1244, 2
        %v1247 = vor.u32 %v1243, %v1246
        %v1248 = vsel %vm1222, %v1238, %v1247
        %v1250 = vshrl.u32 %v1220, 16
        %v1252 = vrot.slane %v1250, 1
        %v1253 = vshll.u32 %v1220, 16
        %v1255 = vrot.slane %v1253, 2
        %v1256 = vor.u32 %v1252, %v1255
        %v1257 = vsel %vm1222, %v1247, %v1256
        %v1259 = vshrl.u32 %v1221, 16
        %v1261 = vrot.slane %v1259, 1
        %v1262 = vshll.u32 %v1221, 16
        %v1264 = vrot.slane %v1262, 2
        %v1265 = vor.u32 %v1261, %v1264
        %v1266 = vsel %vm1222, %v1256, %v1265
        %v1268 = vsel %vm216, %v1239, 0
        %v1271 = vsel %vm216, %v1248, 0
        %v1274 = vsel %vm216, %v1257, 0
        %v1277 = vsel %vm216, %v1266, 0
        %v1280 = vsel %vm216, %v1265, 0
        %v1283 = vsel %vm232, %v1196, 0
        %1285 = vmatprep.subr.bf16.mxu0 0
        %1286 = vmatpush1.bf16.msra.mxu0 0
        %1287 = vmatprep.subr.bf16.mxu0 0
        %1288 = vmatpush1.bf16.msra.mxu0 0
        %1289 = vmatprep.subr.bf16.mxu0 0
        %1290 = vmatpush1.bf16.msra.mxu0 0
        %1291 = vmatprep.subr.bf16.mxu0 0
        %1292 = vmatpush1.bf16.msra.mxu0 0
        %1293 = vmatprep.subr.bf16.mxu0 0
        %1294 = vmatpush1.bf16.msra.mxu0 0
        %1295 = vmatprep.subr.bf16.mxu0 0
        %1296 = vmatpush1.bf16.msra.mxu0 0
        %1297 = vmatprep.subr.bf16.mxu0 0
        %1298 = vmatpush1.bf16.msra.mxu0 0
        %1299 = vmatprep.subr.bf16.mxu0 0
        %1300 = vmatpush1.bf16.msra.mxu0 %v1283
        %1301 = vmatprep.subr.bf16.mxu0 0
        %1302 = vmatpush2.bf16.msra.mxu0 0
        %1303 = vmatprep.subr.bf16.mxu0 0
        %1304 = vmatpush2.bf16.msra.mxu0 0
        %1305 = vmatprep.subr.bf16.mxu0 0
        %1306 = vmatpush2.bf16.msra.mxu0 0
        %1307 = vmatprep.subr.bf16.mxu0 0
        %1308 = vmatpush2.bf16.msra.mxu0 0
        %1309 = vmatprep.subr.bf16.mxu0 0
        %1310 = vmatpush2.bf16.msra.mxu0 0
        %1311 = vmatprep.subr.bf16.mxu0 0
        %1312 = vmatpush2.bf16.msra.mxu0 0
        %1313 = vmatprep.subr.bf16.mxu0 0
        %1314 = vmatpush2.bf16.msra.mxu0 0
        %1315 = vmatprep.subr.bf16.mxu0 0
        %1316 = vmatpush2.bf16.msra.mxu0 0
        %1317 = vmatprep.mubr.bf16.mxu0 0
        %1318 = vmatmul.mubr.bf16.gmra.mxu0 %v1268
        %v1319 = vpop.f32.mrf.mxu0
        %v1320 = vadd.f32 0.0, %v1319
        %v1321 = vpop.f32.mrf.mxu0
        %v1322 = vpop.f32.mrf.mxu0
        %v1323 = vadd.f32 0.0, %v1322
        %v1324 = vpop.f32.mrf.mxu0
        %1325 = vmatprep.mubr.bf16.mxu0 0
        %1326 = vmatmul.mubr.bf16.gmra.mxu0 %v1271
        %v1327 = vpop.f32.mrf.mxu0
        %v1328 = vadd.f32 0.0, %v1327
        %v1329 = vpop.f32.mrf.mxu0
        %v1330 = vpop.f32.mrf.mxu0
        %v1331 = vadd.f32 0.0, %v1330
        %v1332 = vpop.f32.mrf.mxu0
        %1333 = vmatprep.mubr.bf16.mxu0 0
        %1334 = vmatmul.mubr.bf16.gmra.mxu0 %v1274
        %v1335 = vpop.f32.mrf.mxu0
        %v1336 = vadd.f32 0.0, %v1335
        %v1337 = vpop.f32.mrf.mxu0
        %v1338 = vpop.f32.mrf.mxu0
        %v1339 = vadd.f32 0.0, %v1338
        %v1340 = vpop.f32.mrf.mxu0
        %1341 = vmatprep.mubr.bf16.mxu0 0
        %1342 = vmatmul.mubr.bf16.gmra.mxu0 %v1277
        %v1343 = vpop.f32.mrf.mxu0
        %v1344 = vadd.f32 0.0, %v1343
        %v1345 = vpop.f32.mrf.mxu0
        %v1346 = vpop.f32.mrf.mxu0
        %v1347 = vadd.f32 0.0, %v1346
        %v1348 = vpop.f32.mrf.mxu0
        %1349 = vmatprep.mubr.bf16.mxu0 0
        %1350 = vmatmul.mubr.bf16.gmra.mxu0 %v1280
        %v1351 = vpop.f32.mrf.mxu0
        %v1352 = vadd.f32 0.0, %v1351
        %v1353 = vpop.f32.mrf.mxu0
        %v1354 = vpop.f32.mrf.mxu0
        %v1355 = vpop.f32.mrf.mxu0
        %1356 = vdwg.mxu0
        %v1357 = vld [vmem:[%s181] sm:$0xff]
        %v1358 = vld [vmem:[%s181 + $0x8] sm:$0xff]
        %v1359 = vld [vmem:[%s181 + $0x10] sm:$0xff]
        %v1360 = vld [vmem:[%s181 + $0x18] sm:$0xff]
        %v1361 = vld [vmem:[%s181 + $0x20] sm:$0xff]
        %v1362 = vld [vmem:[%s181 + $0x28] sm:$0xff]
        %v1363 = vld [vmem:[%s181 + $0x30] sm:$0xff]
        %v1364 = vld [vmem:[%s181 + $0x38] sm:$0xff]
        %v1365 = vld [vmem:[%s181 + $0x40] sm:$0x3f]
        %v1366 = vadd.f32 %v1357, %v1320
        %v1367 = vadd.f32 %v1358, %v1323
        %v1368 = vadd.f32 %v1359, %v1328
        %v1369 = vadd.f32 %v1360, %v1331
        %v1370 = vadd.f32 %v1361, %v1336
        %v1371 = vadd.f32 %v1362, %v1339
        %v1372 = vadd.f32 %v1363, %v1344
        %v1373 = vadd.f32 %v1364, %v1347
        %v1374 = vadd.f32 %v1365, %v1352
        %1375 = vst.msk [vmem:[%s181] sm:$0xff] %vm308, %v1366
        %1376 = vst.msk [vmem:[%s181 + $0x8] sm:$0xff] %vm308, %v1367
        %1377 = vst.msk [vmem:[%s181 + $0x10] sm:$0xff] %vm308, %v1368
        %1378 = vst.msk [vmem:[%s181 + $0x18] sm:$0xff] %vm308, %v1369
        %1379 = vst.msk [vmem:[%s181 + $0x20] sm:$0xff] %vm308, %v1370
        %1380 = vst.msk [vmem:[%s181 + $0x28] sm:$0xff] %vm308, %v1371
        %1381 = vst.msk [vmem:[%s181 + $0x30] sm:$0xff] %vm308, %v1372
        %1382 = vst.msk [vmem:[%s181 + $0x38] sm:$0xff] %vm308, %v1373
        %1383 = vst.msk [vmem:[%s181 + $0x40] sm:$0x3f] %vm317, %v1374
        %v1384 = vld [vmem:[%s176 + $0x6c] sm:$0xc]
        %v1385 = vld [vmem:[%s176 + $0x70] sm:$0xf]
        %v1386 = vld [vmem:[%s176 + $0x74] sm:$0xf]
        %v1387 = vld [vmem:[%s176 + $0x78] sm:$0xf]
        %v1388 = vld [vmem:[%s176 + $0x7c] sm:$0xf]
        %v1389 = vld [vmem:[%s176 + $0x80] sm:$0xf]
        %v1390 = vld [vmem:[%s176 + $0x84] sm:$0xf]
        %v1391 = vld [vmem:[%s176 + $0x88] sm:$0xf]
        %v1392 = vld [vmem:[%s176 + $0x8c] sm:$0xf]
        %v1393 = vld [vmem:[%s176 + $0x90] sm:$0x1]
        %s1394 = scalar_lea.vmem %s1, 28
        %v1395 = vld [vmem:[%s1394] sm:$0xf]
        %v1406 = vunpack.c.l.b16 %v1384
        %v1407 = vunpack.c.l.b16 %v1385
        %v1408 = vunpack.c.l.b16 %v1386
        %v1409 = vunpack.c.l.b16 %v1387
        %v1410 = vunpack.c.l.b16 %v1388
        %v1411 = vunpack.c.l.b16 %v1389
        %v1412 = vunpack.c.l.b16 %v1390
        %v1413 = vunpack.c.l.b16 %v1391
        %v1414 = vunpack.c.l.b16 %v1392
        %v1415 = vunpack.c.l.b16 %v1393
        %v1416 = vpack.c.b16 %v1407, %v1406
        %v1417 = vpack.c.b16 %v1409, %v1408
        %v1418 = vpack.c.b16 %v1411, %v1410
        %v1419 = vpack.c.b16 %v1413, %v1412
        %v1420 = vpack.c.b16 %v1415, %v1414
        %vm1421 = vcmask 1045504
        %v1422 = vrot.slane %v1416, 2
        %v1423 = vrot.slane %v1417, 2
        %v1424 = vsel %vm1421, %v1422, %v1423
        %v1425 = vrot.slane %v1418, 2
        %v1426 = vsel %vm1421, %v1423, %v1425
        %v1427 = vrot.slane %v1419, 2
        %v1428 = vsel %vm1421, %v1425, %v1427
        %v1429 = vrot.slane %v1420, 2
        %v1430 = vsel %vm1421, %v1427, %v1429
        %v1432 = vsel %vm216, %v1424, 0
        %v1435 = vsel %vm216, %v1426, 0
        %v1438 = vsel %vm216, %v1428, 0
        %v1441 = vsel %vm216, %v1430, 0
        %v1444 = vsel %vm216, %v1429, 0
        %v1447 = vsel %vm232, %v1395, 0
        %1449 = vmatprep.subr.bf16.mxu0 0
        %1450 = vmatpush1.bf16.msra.mxu0 0
        %1451 = vmatprep.subr.bf16.mxu0 0
        %1452 = vmatpush1.bf16.msra.mxu0 0
        %1453 = vmatprep.subr.bf16.mxu0 0
        %1454 = vmatpush1.bf16.msra.mxu0 0
        %1455 = vmatprep.subr.bf16.mxu0 0
        %1456 = vmatpush1.bf16.msra.mxu0 0
        %1457 = vmatprep.subr.bf16.mxu0 0
        %1458 = vmatpush1.bf16.msra.mxu0 0
        %1459 = vmatprep.subr.bf16.mxu0 0
        %1460 = vmatpush1.bf16.msra.mxu0 0
        %1461 = vmatprep.subr.bf16.mxu0 0
        %1462 = vmatpush1.bf16.msra.mxu0 0
        %1463 = vmatprep.subr.bf16.mxu0 0
        %1464 = vmatpush1.bf16.msra.mxu0 %v1447
        %1465 = vmatprep.subr.bf16.mxu0 0
        %1466 = vmatpush2.bf16.msra.mxu0 0
        %1467 = vmatprep.subr.bf16.mxu0 0
        %1468 = vmatpush2.bf16.msra.mxu0 0
        %1469 = vmatprep.subr.bf16.mxu0 0
        %1470 = vmatpush2.bf16.msra.mxu0 0
        %1471 = vmatprep.subr.bf16.mxu0 0
        %1472 = vmatpush2.bf16.msra.mxu0 0
        %1473 = vmatprep.subr.bf16.mxu0 0
        %1474 = vmatpush2.bf16.msra.mxu0 0
        %1475 = vmatprep.subr.bf16.mxu0 0
        %1476 = vmatpush2.bf16.msra.mxu0 0
        %1477 = vmatprep.subr.bf16.mxu0 0
        %1478 = vmatpush2.bf16.msra.mxu0 0
        %1479 = vmatprep.subr.bf16.mxu0 0
        %1480 = vmatpush2.bf16.msra.mxu0 0
        %1481 = vmatprep.mubr.bf16.mxu0 0
        %1482 = vmatmul.mubr.bf16.gmra.mxu0 %v1432
        %v1483 = vpop.f32.mrf.mxu0
        %v1484 = vadd.f32 0.0, %v1483
        %v1485 = vpop.f32.mrf.mxu0
        %v1486 = vpop.f32.mrf.mxu0
        %v1487 = vadd.f32 0.0, %v1486
        %v1488 = vpop.f32.mrf.mxu0
        %1489 = vmatprep.mubr.bf16.mxu0 0
        %1490 = vmatmul.mubr.bf16.gmra.mxu0 %v1435
        %v1491 = vpop.f32.mrf.mxu0
        %v1492 = vadd.f32 0.0, %v1491
        %v1493 = vpop.f32.mrf.mxu0
        %v1494 = vpop.f32.mrf.mxu0
        %v1495 = vadd.f32 0.0, %v1494
        %v1496 = vpop.f32.mrf.mxu0
        %1497 = vmatprep.mubr.bf16.mxu0 0
        %1498 = vmatmul.mubr.bf16.gmra.mxu0 %v1438
        %v1499 = vpop.f32.mrf.mxu0
        %v1500 = vadd.f32 0.0, %v1499
        %v1501 = vpop.f32.mrf.mxu0
        %v1502 = vpop.f32.mrf.mxu0
        %v1503 = vadd.f32 0.0, %v1502
        %v1504 = vpop.f32.mrf.mxu0
        %1505 = vmatprep.mubr.bf16.mxu0 0
        %1506 = vmatmul.mubr.bf16.gmra.mxu0 %v1441
        %v1507 = vpop.f32.mrf.mxu0
        %v1508 = vadd.f32 0.0, %v1507
        %v1509 = vpop.f32.mrf.mxu0
        %v1510 = vpop.f32.mrf.mxu0
        %v1511 = vadd.f32 0.0, %v1510
        %v1512 = vpop.f32.mrf.mxu0
        %1513 = vmatprep.mubr.bf16.mxu0 0
        %1514 = vmatmul.mubr.bf16.gmra.mxu0 %v1444
        %v1515 = vpop.f32.mrf.mxu0
        %v1516 = vadd.f32 0.0, %v1515
        %v1517 = vpop.f32.mrf.mxu0
        %v1518 = vpop.f32.mrf.mxu0
        %v1519 = vpop.f32.mrf.mxu0
        %1520 = vdwg.mxu0
        %v1521 = vld [vmem:[%s181] sm:$0xff]
        %v1522 = vld [vmem:[%s181 + $0x8] sm:$0xff]
        %v1523 = vld [vmem:[%s181 + $0x10] sm:$0xff]
        %v1524 = vld [vmem:[%s181 + $0x18] sm:$0xff]
        %v1525 = vld [vmem:[%s181 + $0x20] sm:$0xff]
        %v1526 = vld [vmem:[%s181 + $0x28] sm:$0xff]
        %v1527 = vld [vmem:[%s181 + $0x30] sm:$0xff]
        %v1528 = vld [vmem:[%s181 + $0x38] sm:$0xff]
        %v1529 = vld [vmem:[%s181 + $0x40] sm:$0x3f]
        %v1530 = vadd.f32 %v1521, %v1484
        %v1531 = vadd.f32 %v1522, %v1487
        %v1532 = vadd.f32 %v1523, %v1492
        %v1533 = vadd.f32 %v1524, %v1495
        %v1534 = vadd.f32 %v1525, %v1500
        %v1535 = vadd.f32 %v1526, %v1503
        %v1536 = vadd.f32 %v1527, %v1508
        %v1537 = vadd.f32 %v1528, %v1511
        %v1538 = vadd.f32 %v1529, %v1516
        %1539 = vst.msk [vmem:[%s181] sm:$0xff] %vm308, %v1530
        %1540 = vst.msk [vmem:[%s181 + $0x8] sm:$0xff] %vm308, %v1531
        %1541 = vst.msk [vmem:[%s181 + $0x10] sm:$0xff] %vm308, %v1532
        %1542 = vst.msk [vmem:[%s181 + $0x18] sm:$0xff] %vm308, %v1533
        %1543 = vst.msk [vmem:[%s181 + $0x20] sm:$0xff] %vm308, %v1534
        %1544 = vst.msk [vmem:[%s181 + $0x28] sm:$0xff] %vm308, %v1535
        %1545 = vst.msk [vmem:[%s181 + $0x30] sm:$0xff] %vm308, %v1536
        %1546 = vst.msk [vmem:[%s181 + $0x38] sm:$0xff] %vm308, %v1537
        %1547 = vst.msk [vmem:[%s181 + $0x40] sm:$0x3f] %vm317, %v1538
        %v1548 = vld [vmem:[%s176 + $0xa4] sm:$0xe]
        %v1549 = vld [vmem:[%s176 + $0xa8] sm:$0xf]
        %v1550 = vld [vmem:[%s176 + $0xac] sm:$0xf]
        %v1551 = vld [vmem:[%s176 + $0xb0] sm:$0xf]
        %v1552 = vld [vmem:[%s176 + $0xb4] sm:$0xf]
        %v1553 = vld [vmem:[%s176 + $0xb8] sm:$0xf]
        %v1554 = vld [vmem:[%s176 + $0xbc] sm:$0xf]
        %v1555 = vld [vmem:[%s176 + $0xc0] sm:$0xf]
        %v1556 = vld [vmem:[%s176 + $0xc4] sm:$0xf]
        %s1557 = scalar_lea.vmem %s1, 32
        %v1558 = vld [vmem:[%s1557] sm:$0xf]
        %v1568 = vunpack.c.l.b16 %v1548
        %v1569 = vunpack.c.l.b16 %v1549
        %v1570 = vunpack.c.l.b16 %v1550
        %v1571 = vunpack.c.l.b16 %v1551
        %v1572 = vunpack.c.l.b16 %v1552
        %v1573 = vunpack.c.l.b16 %v1553
        %v1574 = vunpack.c.l.b16 %v1554
        %v1575 = vunpack.c.l.b16 %v1555
        %v1576 = vunpack.c.l.b16 %v1556
        %v1577 = vpack.c.b16 %v1569, %v1568
        %v1578 = vpack.c.b16 %v1571, %v1570
        %v1579 = vpack.c.b16 %v1573, %v1572
        %v1580 = vpack.c.b16 %v1575, %v1574
        %v1581 = vpack.c.b16 %v1576, %v1576
        %v1582 = vrot.slane %v1577, 1
        %v1583 = vrot.slane %v1578, 1
        %v1584 = vsel %vm907, %v1582, %v1583
        %v1585 = vrot.slane %v1579, 1
        %v1586 = vsel %vm907, %v1583, %v1585
        %v1587 = vrot.slane %v1580, 1
        %v1588 = vsel %vm907, %v1585, %v1587
        %v1589 = vrot.slane %v1581, 1
        %v1590 = vsel %vm907, %v1587, %v1589
        %v1592 = vsel %vm216, %v1584, 0
        %v1595 = vsel %vm216, %v1586, 0
        %v1598 = vsel %vm216, %v1588, 0
        %v1601 = vsel %vm216, %v1590, 0
        %v1604 = vsel %vm216, %v1589, 0
        %v1607 = vsel %vm232, %v1558, 0
        %1609 = vmatprep.subr.bf16.mxu0 0
        %1610 = vmatpush1.bf16.msra.mxu0 0
        %1611 = vmatprep.subr.bf16.mxu0 0
        %1612 = vmatpush1.bf16.msra.mxu0 0
        %1613 = vmatprep.subr.bf16.mxu0 0
        %1614 = vmatpush1.bf16.msra.mxu0 0
        %1615 = vmatprep.subr.bf16.mxu0 0
        %1616 = vmatpush1.bf16.msra.mxu0 0
        %1617 = vmatprep.subr.bf16.mxu0 0
        %1618 = vmatpush1.bf16.msra.mxu0 0
        %1619 = vmatprep.subr.bf16.mxu0 0
        %1620 = vmatpush1.bf16.msra.mxu0 0
        %1621 = vmatprep.subr.bf16.mxu0 0
        %1622 = vmatpush1.bf16.msra.mxu0 0
        %1623 = vmatprep.subr.bf16.mxu0 0
        %1624 = vmatpush1.bf16.msra.mxu0 %v1607
        %1625 = vmatprep.subr.bf16.mxu0 0
        %1626 = vmatpush2.bf16.msra.mxu0 0
        %1627 = vmatprep.subr.bf16.mxu0 0
        %1628 = vmatpush2.bf16.msra.mxu0 0
        %1629 = vmatprep.subr.bf16.mxu0 0
        %1630 = vmatpush2.bf16.msra.mxu0 0
        %1631 = vmatprep.subr.bf16.mxu0 0
        %1632 = vmatpush2.bf16.msra.mxu0 0
        %1633 = vmatprep.subr.bf16.mxu0 0
        %1634 = vmatpush2.bf16.msra.mxu0 0
        %1635 = vmatprep.subr.bf16.mxu0 0
        %1636 = vmatpush2.bf16.msra.mxu0 0
        %1637 = vmatprep.subr.bf16.mxu0 0
        %1638 = vmatpush2.bf16.msra.mxu0 0
        %1639 = vmatprep.subr.bf16.mxu0 0
        %1640 = vmatpush2.bf16.msra.mxu0 0
        %1641 = vmatprep.mubr.bf16.mxu0 0
        %1642 = vmatmul.mubr.bf16.gmra.mxu0 %v1592
        %v1643 = vpop.f32.mrf.mxu0
        %v1644 = vadd.f32 0.0, %v1643
        %v1645 = vpop.f32.mrf.mxu0
        %v1646 = vpop.f32.mrf.mxu0
        %v1647 = vadd.f32 0.0, %v1646
        %v1648 = vpop.f32.mrf.mxu0
        %1649 = vmatprep.mubr.bf16.mxu0 0
        %1650 = vmatmul.mubr.bf16.gmra.mxu0 %v1595
        %v1651 = vpop.f32.mrf.mxu0
        %v1652 = vadd.f32 0.0, %v1651
        %v1653 = vpop.f32.mrf.mxu0
        %v1654 = vpop.f32.mrf.mxu0
        %v1655 = vadd.f32 0.0, %v1654
        %v1656 = vpop.f32.mrf.mxu0
        %1657 = vmatprep.mubr.bf16.mxu0 0
        %1658 = vmatmul.mubr.bf16.gmra.mxu0 %v1598
        %v1659 = vpop.f32.mrf.mxu0
        %v1660 = vadd.f32 0.0, %v1659
        %v1661 = vpop.f32.mrf.mxu0
        %v1662 = vpop.f32.mrf.mxu0
        %v1663 = vadd.f32 0.0, %v1662
        %v1664 = vpop.f32.mrf.mxu0
        %1665 = vmatprep.mubr.bf16.mxu0 0
        %1666 = vmatmul.mubr.bf16.gmra.mxu0 %v1601
        %v1667 = vpop.f32.mrf.mxu0
        %v1668 = vadd.f32 0.0, %v1667
        %v1669 = vpop.f32.mrf.mxu0
        %v1670 = vpop.f32.mrf.mxu0
        %v1671 = vadd.f32 0.0, %v1670
        %v1672 = vpop.f32.mrf.mxu0
        %1673 = vmatprep.mubr.bf16.mxu0 0
        %1674 = vmatmul.mubr.bf16.gmra.mxu0 %v1604
        %v1675 = vpop.f32.mrf.mxu0
        %v1676 = vadd.f32 0.0, %v1675
        %v1677 = vpop.f32.mrf.mxu0
        %v1678 = vpop.f32.mrf.mxu0
        %v1679 = vpop.f32.mrf.mxu0
        %1680 = vdwg.mxu0
        %v1681 = vld [vmem:[%s181] sm:$0xff]
        %v1682 = vld [vmem:[%s181 + $0x8] sm:$0xff]
        %v1683 = vld [vmem:[%s181 + $0x10] sm:$0xff]
        %v1684 = vld [vmem:[%s181 + $0x18] sm:$0xff]
        %v1685 = vld [vmem:[%s181 + $0x20] sm:$0xff]
        %v1686 = vld [vmem:[%s181 + $0x28] sm:$0xff]
        %v1687 = vld [vmem:[%s181 + $0x30] sm:$0xff]
        %v1688 = vld [vmem:[%s181 + $0x38] sm:$0xff]
        %v1689 = vld [vmem:[%s181 + $0x40] sm:$0x3f]
        %v1690 = vadd.f32 %v1681, %v1644
        %v1691 = vadd.f32 %v1682, %v1647
        %v1692 = vadd.f32 %v1683, %v1652
        %v1693 = vadd.f32 %v1684, %v1655
        %v1694 = vadd.f32 %v1685, %v1660
        %v1695 = vadd.f32 %v1686, %v1663
        %v1696 = vadd.f32 %v1687, %v1668
        %v1697 = vadd.f32 %v1688, %v1671
        %v1698 = vadd.f32 %v1689, %v1676
        %1699 = vst.msk [vmem:[%s181] sm:$0xff] %vm308, %v1690
        %1700 = vst.msk [vmem:[%s181 + $0x8] sm:$0xff] %vm308, %v1691
        %1701 = vst.msk [vmem:[%s181 + $0x10] sm:$0xff] %vm308, %v1692
        %1702 = vst.msk [vmem:[%s181 + $0x18] sm:$0xff] %vm308, %v1693
        %1703 = vst.msk [vmem:[%s181 + $0x20] sm:$0xff] %vm308, %v1694
        %1704 = vst.msk [vmem:[%s181 + $0x28] sm:$0xff] %vm308, %v1695
        %1705 = vst.msk [vmem:[%s181 + $0x30] sm:$0xff] %vm308, %v1696
        %1706 = vst.msk [vmem:[%s181 + $0x38] sm:$0xff] %vm308, %v1697
        %1707 = vst.msk [vmem:[%s181 + $0x40] sm:$0x3f] %vm317, %v1698
        %v1708 = vld [vmem:[%s176 + $0x6c] sm:$0xc]
        %v1709 = vld [vmem:[%s176 + $0x70] sm:$0xf]
        %v1710 = vld [vmem:[%s176 + $0x74] sm:$0xf]
        %v1711 = vld [vmem:[%s176 + $0x78] sm:$0xf]
        %v1712 = vld [vmem:[%s176 + $0x7c] sm:$0xf]
        %v1713 = vld [vmem:[%s176 + $0x80] sm:$0xf]
        %v1714 = vld [vmem:[%s176 + $0x84] sm:$0xf]
        %v1715 = vld [vmem:[%s176 + $0x88] sm:$0xf]
        %v1716 = vld [vmem:[%s176 + $0x8c] sm:$0xf]
        %v1717 = vld [vmem:[%s176 + $0x90] sm:$0x3]
        %s1718 = scalar_lea.vmem %s1, 36
        %v1719 = vld [vmem:[%s1718] sm:$0xf]
        %v1730 = vunpack.c.l.b16 %v1708
        %v1731 = vunpack.c.l.b16 %v1709
        %v1732 = vunpack.c.l.b16 %v1710
        %v1733 = vunpack.c.l.b16 %v1711
        %v1734 = vunpack.c.l.b16 %v1712
        %v1735 = vunpack.c.l.b16 %v1713
        %v1736 = vunpack.c.l.b16 %v1714
        %v1737 = vunpack.c.l.b16 %v1715
        %v1738 = vunpack.c.l.b16 %v1716
        %v1739 = vunpack.c.l.b16 %v1717
        %v1740 = vpack.c.b16 %v1731, %v1730
        %v1741 = vpack.c.b16 %v1733, %v1732
        %v1742 = vpack.c.b16 %v1735, %v1734
        %v1743 = vpack.c.b16 %v1737, %v1736
        %v1744 = vpack.c.b16 %v1739, %v1738
        %vm1745 = vsmask.f32 5376
        %v1747 = vshrl.u32 %v1740, 16
        %v1749 = vrot.slane %v1747, 2
        %v1750 = vshll.u32 %v1740, 16
        %v1752 = vrot.slane %v1750, 3
        %v1753 = vor.u32 %v1749, %v1752
        %v1755 = vshrl.u32 %v1741, 16
        %v1757 = vrot.slane %v1755, 2
        %v1758 = vshll.u32 %v1741, 16
        %v1760 = vrot.slane %v1758, 3
        %v1761 = vor.u32 %v1757, %v1760
        %v1762 = vsel %vm1745, %v1753, %v1761
        %v1764 = vshrl.u32 %v1742, 16
        %v1766 = vrot.slane %v1764, 2
        %v1767 = vshll.u32 %v1742, 16
        %v1769 = vrot.slane %v1767, 3
        %v1770 = vor.u32 %v1766, %v1769
        %v1771 = vsel %vm1745, %v1761, %v1770
        %v1773 = vshrl.u32 %v1743, 16
        %v1775 = vrot.slane %v1773, 2
        %v1776 = vshll.u32 %v1743, 16
        %v1778 = vrot.slane %v1776, 3
        %v1779 = vor.u32 %v1775, %v1778
        %v1780 = vsel %vm1745, %v1770, %v1779
        %v1782 = vshrl.u32 %v1744, 16
        %v1784 = vrot.slane %v1782, 2
        %v1785 = vshll.u32 %v1744, 16
        %v1787 = vrot.slane %v1785, 3
        %v1788 = vor.u32 %v1784, %v1787
        %v1789 = vsel %vm1745, %v1779, %v1788
        %v1791 = vsel %vm216, %v1762, 0
        %v1794 = vsel %vm216, %v1771, 0
        %v1797 = vsel %vm216, %v1780, 0
        %v1800 = vsel %vm216, %v1789, 0
        %v1803 = vsel %vm216, %v1788, 0
        %v1806 = vsel %vm232, %v1719, 0
        %1808 = vmatprep.subr.bf16.mxu0 0
        %1809 = vmatpush1.bf16.msra.mxu0 0
        %1810 = vmatprep.subr.bf16.mxu0 0
        %1811 = vmatpush1.bf16.msra.mxu0 0
        %1812 = vmatprep.subr.bf16.mxu0 0
        %1813 = vmatpush1.bf16.msra.mxu0 0
        %1814 = vmatprep.subr.bf16.mxu0 0
        %1815 = vmatpush1.bf16.msra.mxu0 0
        %1816 = vmatprep.subr.bf16.mxu0 0
        %1817 = vmatpush1.bf16.msra.mxu0 0
        %1818 = vmatprep.subr.bf16.mxu0 0
        %1819 = vmatpush1.bf16.msra.mxu0 0
        %1820 = vmatprep.subr.bf16.mxu0 0
        %1821 = vmatpush1.bf16.msra.mxu0 0
        %1822 = vmatprep.subr.bf16.mxu0 0
        %1823 = vmatpush1.bf16.msra.mxu0 %v1806
        %1824 = vmatprep.subr.bf16.mxu0 0
        %1825 = vmatpush2.bf16.msra.mxu0 0
        %1826 = vmatprep.subr.bf16.mxu0 0
        %1827 = vmatpush2.bf16.msra.mxu0 0
        %1828 = vmatprep.subr.bf16.mxu0 0
        %1829 = vmatpush2.bf16.msra.mxu0 0
        %1830 = vmatprep.subr.bf16.mxu0 0
        %1831 = vmatpush2.bf16.msra.mxu0 0
        %1832 = vmatprep.subr.bf16.mxu0 0
        %1833 = vmatpush2.bf16.msra.mxu0 0
        %1834 = vmatprep.subr.bf16.mxu0 0
        %1835 = vmatpush2.bf16.msra.mxu0 0
        %1836 = vmatprep.subr.bf16.mxu0 0
        %1837 = vmatpush2.bf16.msra.mxu0 0
        %1838 = vmatprep.subr.bf16.mxu0 0
        %1839 = vmatpush2.bf16.msra.mxu0 0
        %1840 = vmatprep.mubr.bf16.mxu0 0
        %1841 = vmatmul.mubr.bf16.gmra.mxu0 %v1791
        %v1842 = vpop.f32.mrf.mxu0
        %v1843 = vadd.f32 0.0, %v1842
        %v1844 = vpop.f32.mrf.mxu0
        %v1845 = vpop.f32.mrf.mxu0
        %v1846 = vadd.f32 0.0, %v1845
        %v1847 = vpop.f32.mrf.mxu0
        %1848 = vmatprep.mubr.bf16.mxu0 0
        %1849 = vmatmul.mubr.bf16.gmra.mxu0 %v1794
        %v1850 = vpop.f32.mrf.mxu0
        %v1851 = vadd.f32 0.0, %v1850
        %v1852 = vpop.f32.mrf.mxu0
        %v1853 = vpop.f32.mrf.mxu0
        %v1854 = vadd.f32 0.0, %v1853
        %v1855 = vpop.f32.mrf.mxu0
        %1856 = vmatprep.mubr.bf16.mxu0 0
        %1857 = vmatmul.mubr.bf16.gmra.mxu0 %v1797
        %v1858 = vpop.f32.mrf.mxu0
        %v1859 = vadd.f32 0.0, %v1858
        %v1860 = vpop.f32.mrf.mxu0
        %v1861 = vpop.f32.mrf.mxu0
        %v1862 = vadd.f32 0.0, %v1861
        %v1863 = vpop.f32.mrf.mxu0
        %1864 = vmatprep.mubr.bf16.mxu0 0
        %1865 = vmatmul.mubr.bf16.gmra.mxu0 %v1800
        %v1866 = vpop.f32.mrf.mxu0
        %v1867 = vadd.f32 0.0, %v1866
        %v1868 = vpop.f32.mrf.mxu0
        %v1869 = vpop.f32.mrf.mxu0
        %v1870 = vadd.f32 0.0, %v1869
        %v1871 = vpop.f32.mrf.mxu0
        %1872 = vmatprep.mubr.bf16.mxu0 0
        %1873 = vmatmul.mubr.bf16.gmra.mxu0 %v1803
        %v1874 = vpop.f32.mrf.mxu0
        %v1875 = vadd.f32 0.0, %v1874
        %v1876 = vpop.f32.mrf.mxu0
        %v1877 = vpop.f32.mrf.mxu0
        %v1878 = vpop.f32.mrf.mxu0
        %1879 = vdwg.mxu0
        %v1880 = vld [vmem:[%s181] sm:$0xff]
        %v1881 = vld [vmem:[%s181 + $0x8] sm:$0xff]
        %v1882 = vld [vmem:[%s181 + $0x10] sm:$0xff]
        %v1883 = vld [vmem:[%s181 + $0x18] sm:$0xff]
        %v1884 = vld [vmem:[%s181 + $0x20] sm:$0xff]
        %v1885 = vld [vmem:[%s181 + $0x28] sm:$0xff]
        %v1886 = vld [vmem:[%s181 + $0x30] sm:$0xff]
        %v1887 = vld [vmem:[%s181 + $0x38] sm:$0xff]
        %v1888 = vld [vmem:[%s181 + $0x40] sm:$0x3f]
        %v1889 = vadd.f32 %v1880, %v1843
        %v1890 = vadd.f32 %v1881, %v1846
        %v1891 = vadd.f32 %v1882, %v1851
        %v1892 = vadd.f32 %v1883, %v1854
        %v1893 = vadd.f32 %v1884, %v1859
        %v1894 = vadd.f32 %v1885, %v1862
        %v1895 = vadd.f32 %v1886, %v1867
        %v1896 = vadd.f32 %v1887, %v1870
        %v1897 = vadd.f32 %v1888, %v1875
        %1898 = vst.msk [vmem:[%s181] sm:$0xff] %vm308, %v1889
        %1899 = vst.msk [vmem:[%s181 + $0x8] sm:$0xff] %vm308, %v1890
        %1900 = vst.msk [vmem:[%s181 + $0x10] sm:$0xff] %vm308, %v1891
        %1901 = vst.msk [vmem:[%s181 + $0x18] sm:$0xff] %vm308, %v1892
        %1902 = vst.msk [vmem:[%s181 + $0x20] sm:$0xff] %vm308, %v1893
        %1903 = vst.msk [vmem:[%s181 + $0x28] sm:$0xff] %vm308, %v1894
        %1904 = vst.msk [vmem:[%s181 + $0x30] sm:$0xff] %vm308, %v1895
        %1905 = vst.msk [vmem:[%s181 + $0x38] sm:$0xff] %vm308, %v1896
        %1906 = vst.msk [vmem:[%s181 + $0x40] sm:$0x3f] %vm317, %v1897
        %v1907 = vld [vmem:[%s176 + $0xa4] sm:$0xe]
        %v1908 = vld [vmem:[%s176 + $0xa8] sm:$0xf]
        %v1909 = vld [vmem:[%s176 + $0xac] sm:$0xf]
        %v1910 = vld [vmem:[%s176 + $0xb0] sm:$0xf]
        %v1911 = vld [vmem:[%s176 + $0xb4] sm:$0xf]
        %v1912 = vld [vmem:[%s176 + $0xb8] sm:$0xf]
        %v1913 = vld [vmem:[%s176 + $0xbc] sm:$0xf]
        %v1914 = vld [vmem:[%s176 + $0xc0] sm:$0xf]
        %v1915 = vld [vmem:[%s176 + $0xc4] sm:$0xf]
        %v1916 = vld [vmem:[%s176 + $0xc8] sm:$0x1]
        %s1917 = scalar_lea.vmem %s1, 40
        %v1918 = vld [vmem:[%s1917] sm:$0xf]
        %v1929 = vunpack.c.l.b16 %v1907
        %v1930 = vunpack.c.l.b16 %v1908
        %v1931 = vunpack.c.l.b16 %v1909
        %v1932 = vunpack.c.l.b16 %v1910
        %v1933 = vunpack.c.l.b16 %v1911
        %v1934 = vunpack.c.l.b16 %v1912
        %v1935 = vunpack.c.l.b16 %v1913
        %v1936 = vunpack.c.l.b16 %v1914
        %v1937 = vunpack.c.l.b16 %v1915
        %v1938 = vunpack.c.l.b16 %v1916
        %v1939 = vpack.c.b16 %v1930, %v1929
        %v1940 = vpack.c.b16 %v1932, %v1931
        %v1941 = vpack.c.b16 %v1934, %v1933
        %v1942 = vpack.c.b16 %v1936, %v1935
        %v1943 = vpack.c.b16 %v1938, %v1937
        %v1945 = vshrl.u32 %v1939, 16
        %v1947 = vrot.slane %v1945, 1
        %v1948 = vshll.u32 %v1939, 16
        %v1950 = vrot.slane %v1948, 2
        %v1951 = vor.u32 %v1947, %v1950
        %v1953 = vshrl.u32 %v1940, 16
        %v1955 = vrot.slane %v1953, 1
        %v1956 = vshll.u32 %v1940, 16
        %v1958 = vrot.slane %v1956, 2
        %v1959 = vor.u32 %v1955, %v1958
        %v1960 = vsel %vm1222, %v1951, %v1959
        %v1962 = vshrl.u32 %v1941, 16
        %v1964 = vrot.slane %v1962, 1
        %v1965 = vshll.u32 %v1941, 16
        %v1967 = vrot.slane %v1965, 2
        %v1968 = vor.u32 %v1964, %v1967
        %v1969 = vsel %vm1222, %v1959, %v1968
        %v1971 = vshrl.u32 %v1942, 16
        %v1973 = vrot.slane %v1971, 1
        %v1974 = vshll.u32 %v1942, 16
        %v1976 = vrot.slane %v1974, 2
        %v1977 = vor.u32 %v1973, %v1976
        %v1978 = vsel %vm1222, %v1968, %v1977
        %v1980 = vshrl.u32 %v1943, 16
        %v1982 = vrot.slane %v1980, 1
        %v1983 = vshll.u32 %v1943, 16
        %v1985 = vrot.slane %v1983, 2
        %v1986 = vor.u32 %v1982, %v1985
        %v1987 = vsel %vm1222, %v1977, %v1986
        %v1989 = vsel %vm216, %v1960, 0
        %v1992 = vsel %vm216, %v1969, 0
        %v1995 = vsel %vm216, %v1978, 0
        %v1998 = vsel %vm216, %v1987, 0
        %v2001 = vsel %vm216, %v1986, 0
        %v2004 = vsel %vm232, %v1918, 0
        %2006 = vmatprep.subr.bf16.mxu0 0
        %2007 = vmatpush1.bf16.msra.mxu0 0
        %2008 = vmatprep.subr.bf16.mxu0 0
        %2009 = vmatpush1.bf16.msra.mxu0 0
        %2010 = vmatprep.subr.bf16.mxu0 0
        %2011 = vmatpush1.bf16.msra.mxu0 0
        %2012 = vmatprep.subr.bf16.mxu0 0
        %2013 = vmatpush1.bf16.msra.mxu0 0
        %2014 = vmatprep.subr.bf16.mxu0 0
        %2015 = vmatpush1.bf16.msra.mxu0 0
        %2016 = vmatprep.subr.bf16.mxu0 0
        %2017 = vmatpush1.bf16.msra.mxu0 0
        %2018 = vmatprep.subr.bf16.mxu0 0
        %2019 = vmatpush1.bf16.msra.mxu0 0
        %2020 = vmatprep.subr.bf16.mxu0 0
        %2021 = vmatpush1.bf16.msra.mxu0 %v2004
        %2022 = vmatprep.subr.bf16.mxu0 0
        %2023 = vmatpush2.bf16.msra.mxu0 0
        %2024 = vmatprep.subr.bf16.mxu0 0
        %2025 = vmatpush2.bf16.msra.mxu0 0
        %2026 = vmatprep.subr.bf16.mxu0 0
        %2027 = vmatpush2.bf16.msra.mxu0 0
        %2028 = vmatprep.subr.bf16.mxu0 0
        %2029 = vmatpush2.bf16.msra.mxu0 0
        %2030 = vmatprep.subr.bf16.mxu0 0
        %2031 = vmatpush2.bf16.msra.mxu0 0
        %2032 = vmatprep.subr.bf16.mxu0 0
        %2033 = vmatpush2.bf16.msra.mxu0 0
        %2034 = vmatprep.subr.bf16.mxu0 0
        %2035 = vmatpush2.bf16.msra.mxu0 0
        %2036 = vmatprep.subr.bf16.mxu0 0
        %2037 = vmatpush2.bf16.msra.mxu0 0
        %2038 = vmatprep.mubr.bf16.mxu0 0
        %2039 = vmatmul.mubr.bf16.gmra.mxu0 %v1989
        %v2040 = vpop.f32.mrf.mxu0
        %v2041 = vadd.f32 0.0, %v2040
        %v2042 = vpop.f32.mrf.mxu0
        %v2043 = vpop.f32.mrf.mxu0
        %v2044 = vadd.f32 0.0, %v2043
        %v2045 = vpop.f32.mrf.mxu0
        %2046 = vmatprep.mubr.bf16.mxu0 0
        %2047 = vmatmul.mubr.bf16.gmra.mxu0 %v1992
        %v2048 = vpop.f32.mrf.mxu0
        %v2049 = vadd.f32 0.0, %v2048
        %v2050 = vpop.f32.mrf.mxu0
        %v2051 = vpop.f32.mrf.mxu0
        %v2052 = vadd.f32 0.0, %v2051
        %v2053 = vpop.f32.mrf.mxu0
        %2054 = vmatprep.mubr.bf16.mxu0 0
        %2055 = vmatmul.mubr.bf16.gmra.mxu0 %v1995
        %v2056 = vpop.f32.mrf.mxu0
        %v2057 = vadd.f32 0.0, %v2056
        %v2058 = vpop.f32.mrf.mxu0
        %v2059 = vpop.f32.mrf.mxu0
        %v2060 = vadd.f32 0.0, %v2059
        %v2061 = vpop.f32.mrf.mxu0
        %2062 = vmatprep.mubr.bf16.mxu0 0
        %2063 = vmatmul.mubr.bf16.gmra.mxu0 %v1998
        %v2064 = vpop.f32.mrf.mxu0
        %v2065 = vadd.f32 0.0, %v2064
        %v2066 = vpop.f32.mrf.mxu0
        %v2067 = vpop.f32.mrf.mxu0
        %v2068 = vadd.f32 0.0, %v2067
        %v2069 = vpop.f32.mrf.mxu0
        %2070 = vmatprep.mubr.bf16.mxu0 0
        %2071 = vmatmul.mubr.bf16.gmra.mxu0 %v2001
        %v2072 = vpop.f32.mrf.mxu0
        %v2073 = vadd.f32 0.0, %v2072
        %v2074 = vpop.f32.mrf.mxu0
        %v2075 = vpop.f32.mrf.mxu0
        %v2076 = vpop.f32.mrf.mxu0
        %2077 = vdwg.mxu0
        %v2078 = vld [vmem:[%s181] sm:$0xff]
        %v2079 = vld [vmem:[%s181 + $0x8] sm:$0xff]
        %v2080 = vld [vmem:[%s181 + $0x10] sm:$0xff]
        %v2081 = vld [vmem:[%s181 + $0x18] sm:$0xff]
        %v2082 = vld [vmem:[%s181 + $0x20] sm:$0xff]
        %v2083 = vld [vmem:[%s181 + $0x28] sm:$0xff]
        %v2084 = vld [vmem:[%s181 + $0x30] sm:$0xff]
        %v2085 = vld [vmem:[%s181 + $0x38] sm:$0xff]
        %v2086 = vld [vmem:[%s181 + $0x40] sm:$0x3f]
        %v2087 = vadd.f32 %v2078, %v2041
        %v2088 = vadd.f32 %v2079, %v2044
        %v2089 = vadd.f32 %v2080, %v2049
        %v2090 = vadd.f32 %v2081, %v2052
        %v2091 = vadd.f32 %v2082, %v2057
        %v2092 = vadd.f32 %v2083, %v2060
        %v2093 = vadd.f32 %v2084, %v2065
        %v2094 = vadd.f32 %v2085, %v2068
        %v2095 = vadd.f32 %v2086, %v2073
        %2096 = vst.msk [vmem:[%s181] sm:$0xff] %vm308, %v2087
        %2097 = vst.msk [vmem:[%s181 + $0x8] sm:$0xff] %vm308, %v2088
        %2098 = vst.msk [vmem:[%s181 + $0x10] sm:$0xff] %vm308, %v2089
        %2099 = vst.msk [vmem:[%s181 + $0x18] sm:$0xff] %vm308, %v2090
        %2100 = vst.msk [vmem:[%s181 + $0x20] sm:$0xff] %vm308, %v2091
        %2101 = vst.msk [vmem:[%s181 + $0x28] sm:$0xff] %vm308, %v2092
        %2102 = vst.msk [vmem:[%s181 + $0x30] sm:$0xff] %vm308, %v2093
        %2103 = vst.msk [vmem:[%s181 + $0x38] sm:$0xff] %vm308, %v2094
        %2104 = vst.msk [vmem:[%s181 + $0x40] sm:$0x3f] %vm317, %v2095
        %v2105 = vld [vmem:[%s176 + $0x6c] sm:$0x8]
        %v2106 = vld [vmem:[%s176 + $0x70] sm:$0xf]
        %v2107 = vld [vmem:[%s176 + $0x74] sm:$0xf]
        %v2108 = vld [vmem:[%s176 + $0x78] sm:$0xf]
        %v2109 = vld [vmem:[%s176 + $0x7c] sm:$0xf]
        %v2110 = vld [vmem:[%s176 + $0x80] sm:$0xf]
        %v2111 = vld [vmem:[%s176 + $0x84] sm:$0xf]
        %v2112 = vld [vmem:[%s176 + $0x88] sm:$0xf]
        %v2113 = vld [vmem:[%s176 + $0x8c] sm:$0xf]
        %v2114 = vld [vmem:[%s176 + $0x90] sm:$0x3]
        %s2115 = scalar_lea.vmem %s1, 44
        %v2116 = vld [vmem:[%s2115] sm:$0xf]
        %v2127 = vunpack.c.l.b16 %v2105
        %v2128 = vunpack.c.l.b16 %v2106
        %v2129 = vunpack.c.l.b16 %v2107
        %v2130 = vunpack.c.l.b16 %v2108
        %v2131 = vunpack.c.l.b16 %v2109
        %v2132 = vunpack.c.l.b16 %v2110
        %v2133 = vunpack.c.l.b16 %v2111
        %v2134 = vunpack.c.l.b16 %v2112
        %v2135 = vunpack.c.l.b16 %v2113
        %v2136 = vunpack.c.l.b16 %v2114
        %v2137 = vpack.c.b16 %v2128, %v2127
        %v2138 = vpack.c.b16 %v2130, %v2129
        %v2139 = vpack.c.b16 %v2132, %v2131
        %v2140 = vpack.c.b16 %v2134, %v2133
        %v2141 = vpack.c.b16 %v2136, %v2135
        %v2142 = vrot.slane %v2137, 3
        %v2143 = vrot.slane %v2138, 3
        %v2144 = vsel %vm356, %v2142, %v2143
        %v2145 = vrot.slane %v2139, 3
        %v2146 = vsel %vm356, %v2143, %v2145
        %v2147 = vrot.slane %v2140, 3
        %v2148 = vsel %vm356, %v2145, %v2147
        %v2149 = vrot.slane %v2141, 3
        %v2150 = vsel %vm356, %v2147, %v2149
        %v2152 = vsel %vm216, %v2144, 0
        %v2155 = vsel %vm216, %v2146, 0
        %v2158 = vsel %vm216, %v2148, 0
        %v2161 = vsel %vm216, %v2150, 0
        %v2164 = vsel %vm216, %v2149, 0
        %v2167 = vsel %vm232, %v2116, 0
        %2169 = vmatprep.subr.bf16.mxu0 0
        %2170 = vmatpush1.bf16.msra.mxu0 0
        %2171 = vmatprep.subr.bf16.mxu0 0
        %2172 = vmatpush1.bf16.msra.mxu0 0
        %2173 = vmatprep.subr.bf16.mxu0 0
        %2174 = vmatpush1.bf16.msra.mxu0 0
        %2175 = vmatprep.subr.bf16.mxu0 0
        %2176 = vmatpush1.bf16.msra.mxu0 0
        %2177 = vmatprep.subr.bf16.mxu0 0
        %2178 = vmatpush1.bf16.msra.mxu0 0
        %2179 = vmatprep.subr.bf16.mxu0 0
        %2180 = vmatpush1.bf16.msra.mxu0 0
        %2181 = vmatprep.subr.bf16.mxu0 0
        %2182 = vmatpush1.bf16.msra.mxu0 0
        %2183 = vmatprep.subr.bf16.mxu0 0
        %2184 = vmatpush1.bf16.msra.mxu0 %v2167
        %2185 = vmatprep.subr.bf16.mxu0 0
        %2186 = vmatpush2.bf16.msra.mxu0 0
        %2187 = vmatprep.subr.bf16.mxu0 0
        %2188 = vmatpush2.bf16.msra.mxu0 0
        %2189 = vmatprep.subr.bf16.mxu0 0
        %2190 = vmatpush2.bf16.msra.mxu0 0
        %2191 = vmatprep.subr.bf16.mxu0 0
        %2192 = vmatpush2.bf16.msra.mxu0 0
        %2193 = vmatprep.subr.bf16.mxu0 0
        %2194 = vmatpush2.bf16.msra.mxu0 0
        %2195 = vmatprep.subr.bf16.mxu0 0
        %2196 = vmatpush2.bf16.msra.mxu0 0
        %2197 = vmatprep.subr.bf16.mxu0 0
        %2198 = vmatpush2.bf16.msra.mxu0 0
        %2199 = vmatprep.subr.bf16.mxu0 0
        %2200 = vmatpush2.bf16.msra.mxu0 0
        %2201 = vmatprep.mubr.bf16.mxu0 0
        %2202 = vmatmul.mubr.bf16.gmra.mxu0 %v2152
        %v2203 = vpop.f32.mrf.mxu0
        %v2204 = vadd.f32 0.0, %v2203
        %v2205 = vpop.f32.mrf.mxu0
        %v2206 = vpop.f32.mrf.mxu0
        %v2207 = vadd.f32 0.0, %v2206
        %v2208 = vpop.f32.mrf.mxu0
        %2209 = vmatprep.mubr.bf16.mxu0 0
        %2210 = vmatmul.mubr.bf16.gmra.mxu0 %v2155
        %v2211 = vpop.f32.mrf.mxu0
        %v2212 = vadd.f32 0.0, %v2211
        %v2213 = vpop.f32.mrf.mxu0
        %v2214 = vpop.f32.mrf.mxu0
        %v2215 = vadd.f32 0.0, %v2214
        %v2216 = vpop.f32.mrf.mxu0
        %2217 = vmatprep.mubr.bf16.mxu0 0
        %2218 = vmatmul.mubr.bf16.gmra.mxu0 %v2158
        %v2219 = vpop.f32.mrf.mxu0
        %v2220 = vadd.f32 0.0, %v2219
        %v2221 = vpop.f32.mrf.mxu0
        %v2222 = vpop.f32.mrf.mxu0
        %v2223 = vadd.f32 0.0, %v2222
        %v2224 = vpop.f32.mrf.mxu0
        %2225 = vmatprep.mubr.bf16.mxu0 0
        %2226 = vmatmul.mubr.bf16.gmra.mxu0 %v2161
        %v2227 = vpop.f32.mrf.mxu0
        %v2228 = vadd.f32 0.0, %v2227
        %v2229 = vpop.f32.mrf.mxu0
        %v2230 = vpop.f32.mrf.mxu0
        %v2231 = vadd.f32 0.0, %v2230
        %v2232 = vpop.f32.mrf.mxu0
        %2233 = vmatprep.mubr.bf16.mxu0 0
        %2234 = vmatmul.mubr.bf16.gmra.mxu0 %v2164
        %v2235 = vpop.f32.mrf.mxu0
        %v2236 = vadd.f32 0.0, %v2235
        %v2237 = vpop.f32.mrf.mxu0
        %v2238 = vpop.f32.mrf.mxu0
        %v2239 = vpop.f32.mrf.mxu0
        %2240 = vdwg.mxu0
        %v2241 = vld [vmem:[%s181] sm:$0xff]
        %v2242 = vld [vmem:[%s181 + $0x8] sm:$0xff]
        %v2243 = vld [vmem:[%s181 + $0x10] sm:$0xff]
        %v2244 = vld [vmem:[%s181 + $0x18] sm:$0xff]
        %v2245 = vld [vmem:[%s181 + $0x20] sm:$0xff]
        %v2246 = vld [vmem:[%s181 + $0x28] sm:$0xff]
        %v2247 = vld [vmem:[%s181 + $0x30] sm:$0xff]
        %v2248 = vld [vmem:[%s181 + $0x38] sm:$0xff]
        %v2249 = vld [vmem:[%s181 + $0x40] sm:$0x3f]
        %v2250 = vadd.f32 %v2241, %v2204
        %v2251 = vadd.f32 %v2242, %v2207
        %v2252 = vadd.f32 %v2243, %v2212
        %v2253 = vadd.f32 %v2244, %v2215
        %v2254 = vadd.f32 %v2245, %v2220
        %v2255 = vadd.f32 %v2246, %v2223
        %v2256 = vadd.f32 %v2247, %v2228
        %v2257 = vadd.f32 %v2248, %v2231
        %v2258 = vadd.f32 %v2249, %v2236
        %2259 = vst.msk [vmem:[%s181] sm:$0xff] %vm308, %v2250
        %2260 = vst.msk [vmem:[%s181 + $0x8] sm:$0xff] %vm308, %v2251
        %2261 = vst.msk [vmem:[%s181 + $0x10] sm:$0xff] %vm308, %v2252
        %2262 = vst.msk [vmem:[%s181 + $0x18] sm:$0xff] %vm308, %v2253
        %2263 = vst.msk [vmem:[%s181 + $0x20] sm:$0xff] %vm308, %v2254
        %2264 = vst.msk [vmem:[%s181 + $0x28] sm:$0xff] %vm308, %v2255
        %2265 = vst.msk [vmem:[%s181 + $0x30] sm:$0xff] %vm308, %v2256
        %2266 = vst.msk [vmem:[%s181 + $0x38] sm:$0xff] %vm308, %v2257
        %2267 = vst.msk [vmem:[%s181 + $0x40] sm:$0x3f] %vm317, %v2258
        %v2268 = vld [vmem:[%s176 + $0xa4] sm:$0xc]
        %v2269 = vld [vmem:[%s176 + $0xa8] sm:$0xf]
        %v2270 = vld [vmem:[%s176 + $0xac] sm:$0xf]
        %v2271 = vld [vmem:[%s176 + $0xb0] sm:$0xf]
        %v2272 = vld [vmem:[%s176 + $0xb4] sm:$0xf]
        %v2273 = vld [vmem:[%s176 + $0xb8] sm:$0xf]
        %v2274 = vld [vmem:[%s176 + $0xbc] sm:$0xf]
        %v2275 = vld [vmem:[%s176 + $0xc0] sm:$0xf]
        %v2276 = vld [vmem:[%s176 + $0xc4] sm:$0xf]
        %v2277 = vld [vmem:[%s176 + $0xc8] sm:$0x1]
        %s2278 = scalar_lea.vmem %s1, 48
        %v2279 = vld [vmem:[%s2278] sm:$0xf]
        %v2290 = vunpack.c.l.b16 %v2268
        %v2291 = vunpack.c.l.b16 %v2269
        %v2292 = vunpack.c.l.b16 %v2270
        %v2293 = vunpack.c.l.b16 %v2271
        %v2294 = vunpack.c.l.b16 %v2272
        %v2295 = vunpack.c.l.b16 %v2273
        %v2296 = vunpack.c.l.b16 %v2274
        %v2297 = vunpack.c.l.b16 %v2275
        %v2298 = vunpack.c.l.b16 %v2276
        %v2299 = vunpack.c.l.b16 %v2277
        %v2300 = vpack.c.b16 %v2291, %v2290
        %v2301 = vpack.c.b16 %v2293, %v2292
        %v2302 = vpack.c.b16 %v2295, %v2294
        %v2303 = vpack.c.b16 %v2297, %v2296
        %v2304 = vpack.c.b16 %v2299, %v2298
        %v2305 = vrot.slane %v2300, 2
        %v2306 = vrot.slane %v2301, 2
        %v2307 = vsel %vm1421, %v2305, %v2306
        %v2308 = vrot.slane %v2302, 2
        %v2309 = vsel %vm1421, %v2306, %v2308
        %v2310 = vrot.slane %v2303, 2
        %v2311 = vsel %vm1421, %v2308, %v2310
        %v2312 = vrot.slane %v2304, 2
        %v2313 = vsel %vm1421, %v2310, %v2312
        %v2315 = vsel %vm216, %v2307, 0
        %v2318 = vsel %vm216, %v2309, 0
        %v2321 = vsel %vm216, %v2311, 0
        %v2324 = vsel %vm216, %v2313, 0
        %v2327 = vsel %vm216, %v2312, 0
        %v2330 = vsel %vm232, %v2279, 0
        %2332 = vmatprep.subr.bf16.mxu0 0
        %2333 = vmatpush1.bf16.msra.mxu0 0
        %2334 = vmatprep.subr.bf16.mxu0 0
        %2335 = vmatpush1.bf16.msra.mxu0 0
        %2336 = vmatprep.subr.bf16.mxu0 0
        %2337 = vmatpush1.bf16.msra.mxu0 0
        %2338 = vmatprep.subr.bf16.mxu0 0
        %2339 = vmatpush1.bf16.msra.mxu0 0
        %2340 = vmatprep.subr.bf16.mxu0 0
        %2341 = vmatpush1.bf16.msra.mxu0 0
        %2342 = vmatprep.subr.bf16.mxu0 0
        %2343 = vmatpush1.bf16.msra.mxu0 0
        %2344 = vmatprep.subr.bf16.mxu0 0
        %2345 = vmatpush1.bf16.msra.mxu0 0
        %2346 = vmatprep.subr.bf16.mxu0 0
        %2347 = vmatpush1.bf16.msra.mxu0 %v2330
        %2348 = vmatprep.subr.bf16.mxu0 0
        %2349 = vmatpush2.bf16.msra.mxu0 0
        %2350 = vmatprep.subr.bf16.mxu0 0
        %2351 = vmatpush2.bf16.msra.mxu0 0
        %2352 = vmatprep.subr.bf16.mxu0 0
        %2353 = vmatpush2.bf16.msra.mxu0 0
        %2354 = vmatprep.subr.bf16.mxu0 0
        %2355 = vmatpush2.bf16.msra.mxu0 0
        %2356 = vmatprep.subr.bf16.mxu0 0
        %2357 = vmatpush2.bf16.msra.mxu0 0
        %2358 = vmatprep.subr.bf16.mxu0 0
        %2359 = vmatpush2.bf16.msra.mxu0 0
        %2360 = vmatprep.subr.bf16.mxu0 0
        %2361 = vmatpush2.bf16.msra.mxu0 0
        %2362 = vmatprep.subr.bf16.mxu0 0
        %2363 = vmatpush2.bf16.msra.mxu0 0
        %2364 = vmatprep.mubr.bf16.mxu0 0
        %2365 = vmatmul.mubr.bf16.gmra.mxu0 %v2315
        %v2366 = vpop.f32.mrf.mxu0
        %v2367 = vadd.f32 0.0, %v2366
        %v2368 = vpop.f32.mrf.mxu0
        %v2369 = vpop.f32.mrf.mxu0
        %v2370 = vadd.f32 0.0, %v2369
        %v2371 = vpop.f32.mrf.mxu0
        %2372 = vmatprep.mubr.bf16.mxu0 0
        %2373 = vmatmul.mubr.bf16.gmra.mxu0 %v2318
        %v2374 = vpop.f32.mrf.mxu0
        %v2375 = vadd.f32 0.0, %v2374
        %v2376 = vpop.f32.mrf.mxu0
        %v2377 = vpop.f32.mrf.mxu0
        %v2378 = vadd.f32 0.0, %v2377
        %v2379 = vpop.f32.mrf.mxu0
        %2380 = vmatprep.mubr.bf16.mxu0 0
        %2381 = vmatmul.mubr.bf16.gmra.mxu0 %v2321
        %v2382 = vpop.f32.mrf.mxu0
        %v2383 = vadd.f32 0.0, %v2382
        %v2384 = vpop.f32.mrf.mxu0
        %v2385 = vpop.f32.mrf.mxu0
        %v2386 = vadd.f32 0.0, %v2385
        %v2387 = vpop.f32.mrf.mxu0
        %2388 = vmatprep.mubr.bf16.mxu0 0
        %2389 = vmatmul.mubr.bf16.gmra.mxu0 %v2324
        %v2390 = vpop.f32.mrf.mxu0
        %v2391 = vadd.f32 0.0, %v2390
        %v2392 = vpop.f32.mrf.mxu0
        %v2393 = vpop.f32.mrf.mxu0
        %v2394 = vadd.f32 0.0, %v2393
        %v2395 = vpop.f32.mrf.mxu0
        %2396 = vmatprep.mubr.bf16.mxu0 0
        %2397 = vmatmul.mubr.bf16.gmra.mxu0 %v2327
        %v2398 = vpop.f32.mrf.mxu0
        %v2399 = vadd.f32 0.0, %v2398
        %v2400 = vpop.f32.mrf.mxu0
        %v2401 = vpop.f32.mrf.mxu0
        %v2402 = vpop.f32.mrf.mxu0
        %2403 = vdwg.mxu0
        %v2404 = vld [vmem:[%s181] sm:$0xff]
        %v2405 = vld [vmem:[%s181 + $0x8] sm:$0xff]
        %v2406 = vld [vmem:[%s181 + $0x10] sm:$0xff]
        %v2407 = vld [vmem:[%s181 + $0x18] sm:$0xff]
        %v2408 = vld [vmem:[%s181 + $0x20] sm:$0xff]
        %v2409 = vld [vmem:[%s181 + $0x28] sm:$0xff]
        %v2410 = vld [vmem:[%s181 + $0x30] sm:$0xff]
        %v2411 = vld [vmem:[%s181 + $0x38] sm:$0xff]
        %v2412 = vld [vmem:[%s181 + $0x40] sm:$0x3f]
        %v2413 = vadd.f32 %v2404, %v2367
        %v2414 = vadd.f32 %v2405, %v2370
        %v2415 = vadd.f32 %v2406, %v2375
        %v2416 = vadd.f32 %v2407, %v2378
        %v2417 = vadd.f32 %v2408, %v2383
        %v2418 = vadd.f32 %v2409, %v2386
        %v2419 = vadd.f32 %v2410, %v2391
        %v2420 = vadd.f32 %v2411, %v2394
        %v2421 = vadd.f32 %v2412, %v2399
        %2422 = vst.msk [vmem:[%s181] sm:$0xff] %vm308, %v2413
        %2423 = vst.msk [vmem:[%s181 + $0x8] sm:$0xff] %vm308, %v2414
        %2424 = vst.msk [vmem:[%s181 + $0x10] sm:$0xff] %vm308, %v2415
        %2425 = vst.msk [vmem:[%s181 + $0x18] sm:$0xff] %vm308, %v2416
        %2426 = vst.msk [vmem:[%s181 + $0x20] sm:$0xff] %vm308, %v2417
        %2427 = vst.msk [vmem:[%s181 + $0x28] sm:$0xff] %vm308, %v2418
        %2428 = vst.msk [vmem:[%s181 + $0x30] sm:$0xff] %vm308, %v2419
        %2429 = vst.msk [vmem:[%s181 + $0x38] sm:$0xff] %vm308, %v2420
        %2430 = vst.msk [vmem:[%s181 + $0x40] sm:$0x3f] %vm317, %v2421
        %v2431 = vld [vmem:[%s176 + $0x6c] sm:$0x8]
        %v2432 = vld [vmem:[%s176 + $0x70] sm:$0xf]
        %v2433 = vld [vmem:[%s176 + $0x74] sm:$0xf]
        %v2434 = vld [vmem:[%s176 + $0x78] sm:$0xf]
        %v2435 = vld [vmem:[%s176 + $0x7c] sm:$0xf]
        %v2436 = vld [vmem:[%s176 + $0x80] sm:$0xf]
        %v2437 = vld [vmem:[%s176 + $0x84] sm:$0xf]
        %v2438 = vld [vmem:[%s176 + $0x88] sm:$0xf]
        %v2439 = vld [vmem:[%s176 + $0x8c] sm:$0xf]
        %v2440 = vld [vmem:[%s176 + $0x90] sm:$0x7]
        %s2441 = scalar_lea.vmem %s1, 52
        %v2442 = vld [vmem:[%s2441] sm:$0xf]
        %v2453 = vunpack.c.l.b16 %v2431
        %v2454 = vunpack.c.l.b16 %v2432
        %v2455 = vunpack.c.l.b16 %v2433
        %v2456 = vunpack.c.l.b16 %v2434
        %v2457 = vunpack.c.l.b16 %v2435
        %v2458 = vunpack.c.l.b16 %v2436
        %v2459 = vunpack.c.l.b16 %v2437
        %v2460 = vunpack.c.l.b16 %v2438
        %v2461 = vunpack.c.l.b16 %v2439
        %v2462 = vunpack.c.l.b16 %v2440
        %v2463 = vpack.c.b16 %v2454, %v2453
        %v2464 = vpack.c.b16 %v2456, %v2455
        %v2465 = vpack.c.b16 %v2458, %v2457
        %v2466 = vpack.c.b16 %v2460, %v2459
        %v2467 = vpack.c.b16 %v2462, %v2461
        %v2469 = vshrl.u32 %v2463, 16
        %v2471 = vrot.slane %v2469, 3
        %v2472 = vshll.u32 %v2463, 16
        %v2474 = vrot.slane %v2472, 4
        %v2475 = vor.u32 %v2471, %v2474
        %v2477 = vshrl.u32 %v2464, 16
        %v2479 = vrot.slane %v2477, 3
        %v2480 = vshll.u32 %v2464, 16
        %v2482 = vrot.slane %v2480, 4
        %v2483 = vor.u32 %v2479, %v2482
        %v2484 = vsel %vm711, %v2475, %v2483
        %v2486 = vshrl.u32 %v2465, 16
        %v2488 = vrot.slane %v2486, 3
        %v2489 = vshll.u32 %v2465, 16
        %v2491 = vrot.slane %v2489, 4
        %v2492 = vor.u32 %v2488, %v2491
        %v2493 = vsel %vm711, %v2483, %v2492
        %v2495 = vshrl.u32 %v2466, 16
        %v2497 = vrot.slane %v2495, 3
        %v2498 = vshll.u32 %v2466, 16
        %v2500 = vrot.slane %v2498, 4
        %v2501 = vor.u32 %v2497, %v2500
        %v2502 = vsel %vm711, %v2492, %v2501
        %v2504 = vshrl.u32 %v2467, 16
        %v2506 = vrot.slane %v2504, 3
        %v2507 = vshll.u32 %v2467, 16
        %v2509 = vrot.slane %v2507, 4
        %v2510 = vor.u32 %v2506, %v2509
        %v2511 = vsel %vm711, %v2501, %v2510
        %v2513 = vsel %vm216, %v2484, 0
        %v2516 = vsel %vm216, %v2493, 0
        %v2519 = vsel %vm216, %v2502, 0
        %v2522 = vsel %vm216, %v2511, 0
        %v2525 = vsel %vm216, %v2510, 0
        %v2528 = vsel %vm232, %v2442, 0
        %2530 = vmatprep.subr.bf16.mxu0 0
        %2531 = vmatpush1.bf16.msra.mxu0 0
        %2532 = vmatprep.subr.bf16.mxu0 0
        %2533 = vmatpush1.bf16.msra.mxu0 0
        %2534 = vmatprep.subr.bf16.mxu0 0
        %2535 = vmatpush1.bf16.msra.mxu0 0
        %2536 = vmatprep.subr.bf16.mxu0 0
        %2537 = vmatpush1.bf16.msra.mxu0 0
        %2538 = vmatprep.subr.bf16.mxu0 0
        %2539 = vmatpush1.bf16.msra.mxu0 0
        %2540 = vmatprep.subr.bf16.mxu0 0
        %2541 = vmatpush1.bf16.msra.mxu0 0
        %2542 = vmatprep.subr.bf16.mxu0 0
        %2543 = vmatpush1.bf16.msra.mxu0 0
        %2544 = vmatprep.subr.bf16.mxu0 0
        %2545 = vmatpush1.bf16.msra.mxu0 %v2528
        %2546 = vmatprep.subr.bf16.mxu0 0
        %2547 = vmatpush2.bf16.msra.mxu0 0
        %2548 = vmatprep.subr.bf16.mxu0 0
        %2549 = vmatpush2.bf16.msra.mxu0 0
        %2550 = vmatprep.subr.bf16.mxu0 0
        %2551 = vmatpush2.bf16.msra.mxu0 0
        %2552 = vmatprep.subr.bf16.mxu0 0
        %2553 = vmatpush2.bf16.msra.mxu0 0
        %2554 = vmatprep.subr.bf16.mxu0 0
        %2555 = vmatpush2.bf16.msra.mxu0 0
        %2556 = vmatprep.subr.bf16.mxu0 0
        %2557 = vmatpush2.bf16.msra.mxu0 0
        %2558 = vmatprep.subr.bf16.mxu0 0
        %2559 = vmatpush2.bf16.msra.mxu0 0
        %2560 = vmatprep.subr.bf16.mxu0 0
        %2561 = vmatpush2.bf16.msra.mxu0 0
        %2562 = vmatprep.mubr.bf16.mxu0 0
        %2563 = vmatmul.mubr.bf16.gmra.mxu0 %v2513
        %v2564 = vpop.f32.mrf.mxu0
        %v2565 = vadd.f32 0.0, %v2564
        %v2566 = vpop.f32.mrf.mxu0
        %v2567 = vpop.f32.mrf.mxu0
        %v2568 = vadd.f32 0.0, %v2567
        %v2569 = vpop.f32.mrf.mxu0
        %2570 = vmatprep.mubr.bf16.mxu0 0
        %2571 = vmatmul.mubr.bf16.gmra.mxu0 %v2516
        %v2572 = vpop.f32.mrf.mxu0
        %v2573 = vadd.f32 0.0, %v2572
        %v2574 = vpop.f32.mrf.mxu0
        %v2575 = vpop.f32.mrf.mxu0
        %v2576 = vadd.f32 0.0, %v2575
        %v2577 = vpop.f32.mrf.mxu0
        %2578 = vmatprep.mubr.bf16.mxu0 0
        %2579 = vmatmul.mubr.bf16.gmra.mxu0 %v2519
        %v2580 = vpop.f32.mrf.mxu0
        %v2581 = vadd.f32 0.0, %v2580
        %v2582 = vpop.f32.mrf.mxu0
        %v2583 = vpop.f32.mrf.mxu0
        %v2584 = vadd.f32 0.0, %v2583
        %v2585 = vpop.f32.mrf.mxu0
        %2586 = vmatprep.mubr.bf16.mxu0 0
        %2587 = vmatmul.mubr.bf16.gmra.mxu0 %v2522
        %v2588 = vpop.f32.mrf.mxu0
        %v2589 = vadd.f32 0.0, %v2588
        %v2590 = vpop.f32.mrf.mxu0
        %v2591 = vpop.f32.mrf.mxu0
        %v2592 = vadd.f32 0.0, %v2591
        %v2593 = vpop.f32.mrf.mxu0
        %2594 = vmatprep.mubr.bf16.mxu0 0
        %2595 = vmatmul.mubr.bf16.gmra.mxu0 %v2525
        %v2596 = vpop.f32.mrf.mxu0
        %v2597 = vadd.f32 0.0, %v2596
        %v2598 = vpop.f32.mrf.mxu0
        %v2599 = vpop.f32.mrf.mxu0
        %v2600 = vpop.f32.mrf.mxu0
        %2601 = vdwg.mxu0
        %v2602 = vld [vmem:[%s181] sm:$0xff]
        %v2603 = vld [vmem:[%s181 + $0x8] sm:$0xff]
        %v2604 = vld [vmem:[%s181 + $0x10] sm:$0xff]
        %v2605 = vld [vmem:[%s181 + $0x18] sm:$0xff]
        %v2606 = vld [vmem:[%s181 + $0x20] sm:$0xff]
        %v2607 = vld [vmem:[%s181 + $0x28] sm:$0xff]
        %v2608 = vld [vmem:[%s181 + $0x30] sm:$0xff]
        %v2609 = vld [vmem:[%s181 + $0x38] sm:$0xff]
        %v2610 = vld [vmem:[%s181 + $0x40] sm:$0x3f]
        %v2611 = vadd.f32 %v2602, %v2565
        %v2612 = vadd.f32 %v2603, %v2568
        %v2613 = vadd.f32 %v2604, %v2573
        %v2614 = vadd.f32 %v2605, %v2576
        %v2615 = vadd.f32 %v2606, %v2581
        %v2616 = vadd.f32 %v2607, %v2584
        %v2617 = vadd.f32 %v2608, %v2589
        %v2618 = vadd.f32 %v2609, %v2592
        %v2619 = vadd.f32 %v2610, %v2597
        %2620 = vst.msk [vmem:[%s181] sm:$0xff] %vm308, %v2611
        %2621 = vst.msk [vmem:[%s181 + $0x8] sm:$0xff] %vm308, %v2612
        %2622 = vst.msk [vmem:[%s181 + $0x10] sm:$0xff] %vm308, %v2613
        %2623 = vst.msk [vmem:[%s181 + $0x18] sm:$0xff] %vm308, %v2614
        %2624 = vst.msk [vmem:[%s181 + $0x20] sm:$0xff] %vm308, %v2615
        %2625 = vst.msk [vmem:[%s181 + $0x28] sm:$0xff] %vm308, %v2616
        %2626 = vst.msk [vmem:[%s181 + $0x30] sm:$0xff] %vm308, %v2617
        %2627 = vst.msk [vmem:[%s181 + $0x38] sm:$0xff] %vm308, %v2618
        %2628 = vst.msk [vmem:[%s181 + $0x40] sm:$0x3f] %vm317, %v2619
        %v2629 = vld [vmem:[%s176 + $0x4] sm:$0xe]
        %v2630 = vld [vmem:[%s176 + $0x8] sm:$0xf]
        %v2631 = vld [vmem:[%s176 + $0xc] sm:$0xf]
        %v2632 = vld [vmem:[%s176 + $0x10] sm:$0xf]
        %v2633 = vld [vmem:[%s176 + $0x14] sm:$0xf]
        %v2634 = vld [vmem:[%s176 + $0x18] sm:$0xf]
        %v2635 = vld [vmem:[%s176 + $0x1c] sm:$0xf]
        %v2636 = vld [vmem:[%s176 + $0x20] sm:$0xf]
        %v2637 = vld [vmem:[%s176 + $0x24] sm:$0xf]
        %s2638 = scalar_lea.vmem %s1, 56
        %v2639 = vld [vmem:[%s2638] sm:$0xf]
        %v2649 = vunpack.c.l.b16 %v2629
        %v2650 = vunpack.c.l.b16 %v2630
        %v2651 = vunpack.c.l.b16 %v2631
        %v2652 = vunpack.c.l.b16 %v2632
        %v2653 = vunpack.c.l.b16 %v2633
        %v2654 = vunpack.c.l.b16 %v2634
        %v2655 = vunpack.c.l.b16 %v2635
        %v2656 = vunpack.c.l.b16 %v2636
        %v2657 = vunpack.c.l.b16 %v2637
        %v2658 = vpack.c.b16 %v2650, %v2649
        %v2659 = vpack.c.b16 %v2652, %v2651
        %v2660 = vpack.c.b16 %v2654, %v2653
        %v2661 = vpack.c.b16 %v2656, %v2655
        %v2662 = vpack.c.b16 %v2657, %v2657
        %v2663 = vrot.slane %v2658, 1
        %v2664 = vrot.slane %v2659, 1
        %v2665 = vsel %vm907, %v2663, %v2664
        %v2666 = vrot.slane %v2660, 1
        %v2667 = vsel %vm907, %v2664, %v2666
        %v2668 = vrot.slane %v2661, 1
        %v2669 = vsel %vm907, %v2666, %v2668
        %v2670 = vrot.slane %v2662, 1
        %v2671 = vsel %vm907, %v2668, %v2670
        %v2673 = vsel %vm216, %v2665, 0
        %v2676 = vsel %vm216, %v2667, 0
        %v2679 = vsel %vm216, %v2669, 0
        %v2682 = vsel %vm216, %v2671, 0
        %v2685 = vsel %vm216, %v2670, 0
        %v2688 = vsel %vm232, %v2639, 0
        %2690 = vmatprep.subr.bf16.mxu0 0
        %2691 = vmatpush1.bf16.msra.mxu0 0
        %2692 = vmatprep.subr.bf16.mxu0 0
        %2693 = vmatpush1.bf16.msra.mxu0 0
        %2694 = vmatprep.subr.bf16.mxu0 0
        %2695 = vmatpush1.bf16.msra.mxu0 0
        %2696 = vmatprep.subr.bf16.mxu0 0
        %2697 = vmatpush1.bf16.msra.mxu0 0
        %2698 = vmatprep.subr.bf16.mxu0 0
        %2699 = vmatpush1.bf16.msra.mxu0 0
        %2700 = vmatprep.subr.bf16.mxu0 0
        %2701 = vmatpush1.bf16.msra.mxu0 0
        %2702 = vmatprep.subr.bf16.mxu0 0
        %2703 = vmatpush1.bf16.msra.mxu0 0
        %2704 = vmatprep.subr.bf16.mxu0 0
        %2705 = vmatpush1.bf16.msra.mxu0 %v2688
        %2706 = vmatprep.subr.bf16.mxu0 0
        %2707 = vmatpush2.bf16.msra.mxu0 0
        %2708 = vmatprep.subr.bf16.mxu0 0
        %2709 = vmatpush2.bf16.msra.mxu0 0
        %2710 = vmatprep.subr.bf16.mxu0 0
        %2711 = vmatpush2.bf16.msra.mxu0 0
        %2712 = vmatprep.subr.bf16.mxu0 0
        %2713 = vmatpush2.bf16.msra.mxu0 0
        %2714 = vmatprep.subr.bf16.mxu0 0
        %2715 = vmatpush2.bf16.msra.mxu0 0
        %2716 = vmatprep.subr.bf16.mxu0 0
        %2717 = vmatpush2.bf16.msra.mxu0 0
        %2718 = vmatprep.subr.bf16.mxu0 0
        %2719 = vmatpush2.bf16.msra.mxu0 0
        %2720 = vmatprep.subr.bf16.mxu0 0
        %2721 = vmatpush2.bf16.msra.mxu0 0
        %2722 = vmatprep.mubr.bf16.mxu0 0
        %2723 = vmatmul.mubr.bf16.gmra.mxu0 %v2673
        %v2724 = vpop.f32.mrf.mxu0
        %v2725 = vadd.f32 0.0, %v2724
        %v2726 = vpop.f32.mrf.mxu0
        %v2727 = vpop.f32.mrf.mxu0
        %v2728 = vadd.f32 0.0, %v2727
        %v2729 = vpop.f32.mrf.mxu0
        %2730 = vmatprep.mubr.bf16.mxu0 0
        %2731 = vmatmul.mubr.bf16.gmra.mxu0 %v2676
        %v2732 = vpop.f32.mrf.mxu0
        %v2733 = vadd.f32 0.0, %v2732
        %v2734 = vpop.f32.mrf.mxu0
        %v2735 = vpop.f32.mrf.mxu0
        %v2736 = vadd.f32 0.0, %v2735
        %v2737 = vpop.f32.mrf.mxu0
        %2738 = vmatprep.mubr.bf16.mxu0 0
        %2739 = vmatmul.mubr.bf16.gmra.mxu0 %v2679
        %v2740 = vpop.f32.mrf.mxu0
        %v2741 = vadd.f32 0.0, %v2740
        %v2742 = vpop.f32.mrf.mxu0
        %v2743 = vpop.f32.mrf.mxu0
        %v2744 = vadd.f32 0.0, %v2743
        %v2745 = vpop.f32.mrf.mxu0
        %2746 = vmatprep.mubr.bf16.mxu0 0
        %2747 = vmatmul.mubr.bf16.gmra.mxu0 %v2682
        %v2748 = vpop.f32.mrf.mxu0
        %v2749 = vadd.f32 0.0, %v2748
        %v2750 = vpop.f32.mrf.mxu0
        %v2751 = vpop.f32.mrf.mxu0
        %v2752 = vadd.f32 0.0, %v2751
        %v2753 = vpop.f32.mrf.mxu0
        %2754 = vmatprep.mubr.bf16.mxu0 0
        %2755 = vmatmul.mubr.bf16.gmra.mxu0 %v2685
        %v2756 = vpop.f32.mrf.mxu0
        %v2757 = vadd.f32 0.0, %v2756
        %v2758 = vpop.f32.mrf.mxu0
        %v2759 = vpop.f32.mrf.mxu0
        %v2760 = vpop.f32.mrf.mxu0
        %2761 = vdwg.mxu0
        %v2762 = vld [vmem:[%s181] sm:$0xff]
        %v2763 = vld [vmem:[%s181 + $0x8] sm:$0xff]
        %v2764 = vld [vmem:[%s181 + $0x10] sm:$0xff]
        %v2765 = vld [vmem:[%s181 + $0x18] sm:$0xff]
        %v2766 = vld [vmem:[%s181 + $0x20] sm:$0xff]
        %v2767 = vld [vmem:[%s181 + $0x28] sm:$0xff]
        %v2768 = vld [vmem:[%s181 + $0x30] sm:$0xff]
        %v2769 = vld [vmem:[%s181 + $0x38] sm:$0xff]
        %v2770 = vld [vmem:[%s181 + $0x40] sm:$0x3f]
        %v2771 = vadd.f32 %v2762, %v2725
        %v2772 = vadd.f32 %v2763, %v2728
        %v2773 = vadd.f32 %v2764, %v2733
        %v2774 = vadd.f32 %v2765, %v2736
        %v2775 = vadd.f32 %v2766, %v2741
        %v2776 = vadd.f32 %v2767, %v2744
        %v2777 = vadd.f32 %v2768, %v2749
        %v2778 = vadd.f32 %v2769, %v2752
        %v2779 = vadd.f32 %v2770, %v2757
        %2780 = vst.msk [vmem:[%s181] sm:$0xff] %vm308, %v2771
        %2781 = vst.msk [vmem:[%s181 + $0x8] sm:$0xff] %vm308, %v2772
        %2782 = vst.msk [vmem:[%s181 + $0x10] sm:$0xff] %vm308, %v2773
        %2783 = vst.msk [vmem:[%s181 + $0x18] sm:$0xff] %vm308, %v2774
        %2784 = vst.msk [vmem:[%s181 + $0x20] sm:$0xff] %vm308, %v2775
        %2785 = vst.msk [vmem:[%s181 + $0x28] sm:$0xff] %vm308, %v2776
        %2786 = vst.msk [vmem:[%s181 + $0x30] sm:$0xff] %vm308, %v2777
        %2787 = vst.msk [vmem:[%s181 + $0x38] sm:$0xff] %vm308, %v2778
        %2788 = vst.msk [vmem:[%s181 + $0x40] sm:$0x3f] %vm317, %v2779
        %v2789 = vld [vmem:[%s176 + $0x3c] sm:$0xf]
        %v2790 = vld [vmem:[%s176 + $0x40] sm:$0xf]
        %v2791 = vld [vmem:[%s176 + $0x44] sm:$0xf]
        %v2792 = vld [vmem:[%s176 + $0x48] sm:$0xf]
        %v2793 = vld [vmem:[%s176 + $0x4c] sm:$0xf]
        %v2794 = vld [vmem:[%s176 + $0x50] sm:$0xf]
        %v2795 = vld [vmem:[%s176 + $0x54] sm:$0xf]
        %v2796 = vld [vmem:[%s176 + $0x58] sm:$0xf]
        %v2797 = vld [vmem:[%s176 + $0x5c] sm:$0x7]
        %s2798 = scalar_lea.vmem %s1, 60
        %v2799 = vld [vmem:[%s2798] sm:$0xf]
        %v2809 = vunpack.c.l.b16 %v2789
        %v2810 = vunpack.c.l.b16 %v2790
        %v2811 = vunpack.c.l.b16 %v2791
        %v2812 = vunpack.c.l.b16 %v2792
        %v2813 = vunpack.c.l.b16 %v2793
        %v2814 = vunpack.c.l.b16 %v2794
        %v2815 = vunpack.c.l.b16 %v2795
        %v2816 = vunpack.c.l.b16 %v2796
        %v2817 = vunpack.c.l.b16 %v2797
        %v2818 = vpack.c.b16 %v2810, %v2809
        %v2819 = vpack.c.b16 %v2812, %v2811
        %v2820 = vpack.c.b16 %v2814, %v2813
        %v2821 = vpack.c.b16 %v2816, %v2815
        %v2822 = vpack.c.b16 %v2817, %v2817
        %v2824 = vsel %vm216, %v2818, 0
        %v2827 = vsel %vm216, %v2819, 0
        %v2830 = vsel %vm216, %v2820, 0
        %v2833 = vsel %vm216, %v2821, 0
        %v2836 = vsel %vm216, %v2822, 0
        %v2839 = vsel %vm232, %v2799, 0
        %2841 = vmatprep.subr.bf16.mxu0 0
        %2842 = vmatpush1.bf16.msra.mxu0 0
        %2843 = vmatprep.subr.bf16.mxu0 0
        %2844 = vmatpush1.bf16.msra.mxu0 0
        %2845 = vmatprep.subr.bf16.mxu0 0
        %2846 = vmatpush1.bf16.msra.mxu0 0
        %2847 = vmatprep.subr.bf16.mxu0 0
        %2848 = vmatpush1.bf16.msra.mxu0 0
        %2849 = vmatprep.subr.bf16.mxu0 0
        %2850 = vmatpush1.bf16.msra.mxu0 0
        %2851 = vmatprep.subr.bf16.mxu0 0
        %2852 = vmatpush1.bf16.msra.mxu0 0
        %2853 = vmatprep.subr.bf16.mxu0 0
        %2854 = vmatpush1.bf16.msra.mxu0 0
        %2855 = vmatprep.subr.bf16.mxu0 0
        %2856 = vmatpush1.bf16.msra.mxu0 %v2839
        %2857 = vmatprep.subr.bf16.mxu0 0
        %2858 = vmatpush2.bf16.msra.mxu0 0
        %2859 = vmatprep.subr.bf16.mxu0 0
        %2860 = vmatpush2.bf16.msra.mxu0 0
        %2861 = vmatprep.subr.bf16.mxu0 0
        %2862 = vmatpush2.bf16.msra.mxu0 0
        %2863 = vmatprep.subr.bf16.mxu0 0
        %2864 = vmatpush2.bf16.msra.mxu0 0
        %2865 = vmatprep.subr.bf16.mxu0 0
        %2866 = vmatpush2.bf16.msra.mxu0 0
        %2867 = vmatprep.subr.bf16.mxu0 0
        %2868 = vmatpush2.bf16.msra.mxu0 0
        %2869 = vmatprep.subr.bf16.mxu0 0
        %2870 = vmatpush2.bf16.msra.mxu0 0
        %2871 = vmatprep.subr.bf16.mxu0 0
        %2872 = vmatpush2.bf16.msra.mxu0 0
        %2873 = vmatprep.mubr.bf16.mxu0 0
        %2874 = vmatmul.mubr.bf16.gmra.mxu0 %v2824
        %v2875 = vpop.f32.mrf.mxu0
        %v2876 = vadd.f32 0.0, %v2875
        %v2877 = vpop.f32.mrf.mxu0
        %v2878 = vpop.f32.mrf.mxu0
        %v2879 = vadd.f32 0.0, %v2878
        %v2880 = vpop.f32.mrf.mxu0
        %2881 = vmatprep.mubr.bf16.mxu0 0
        %2882 = vmatmul.mubr.bf16.gmra.mxu0 %v2827
        %v2883 = vpop.f32.mrf.mxu0
        %v2884 = vadd.f32 0.0, %v2883
        %v2885 = vpop.f32.mrf.mxu0
        %v2886 = vpop.f32.mrf.mxu0
        %v2887 = vadd.f32 0.0, %v2886
        %v2888 = vpop.f32.mrf.mxu0
        %2889 = vmatprep.mubr.bf16.mxu0 0
        %2890 = vmatmul.mubr.bf16.gmra.mxu0 %v2830
        %v2891 = vpop.f32.mrf.mxu0
        %v2892 = vadd.f32 0.0, %v2891
        %v2893 = vpop.f32.mrf.mxu0
        %v2894 = vpop.f32.mrf.mxu0
        %v2895 = vadd.f32 0.0, %v2894
        %v2896 = vpop.f32.mrf.mxu0
        %2897 = vmatprep.mubr.bf16.mxu0 0
        %2898 = vmatmul.mubr.bf16.gmra.mxu0 %v2833
        %v2899 = vpop.f32.mrf.mxu0
        %v2900 = vadd.f32 0.0, %v2899
        %v2901 = vpop.f32.mrf.mxu0
        %v2902 = vpop.f32.mrf.mxu0
        %v2903 = vadd.f32 0.0, %v2902
        %v2904 = vpop.f32.mrf.mxu0
        %2905 = vmatprep.mubr.bf16.mxu0 0
        %2906 = vmatmul.mubr.bf16.gmra.mxu0 %v2836
        %v2907 = vpop.f32.mrf.mxu0
        %v2908 = vadd.f32 0.0, %v2907
        %v2909 = vpop.f32.mrf.mxu0
        %v2910 = vpop.f32.mrf.mxu0
        %v2911 = vpop.f32.mrf.mxu0
        %2912 = vdwg.mxu0
        %v2913 = vld [vmem:[%s181] sm:$0xff]
        %v2914 = vld [vmem:[%s181 + $0x8] sm:$0xff]
        %v2915 = vld [vmem:[%s181 + $0x10] sm:$0xff]
        %v2916 = vld [vmem:[%s181 + $0x18] sm:$0xff]
        %v2917 = vld [vmem:[%s181 + $0x20] sm:$0xff]
        %v2918 = vld [vmem:[%s181 + $0x28] sm:$0xff]
        %v2919 = vld [vmem:[%s181 + $0x30] sm:$0xff]
        %v2920 = vld [vmem:[%s181 + $0x38] sm:$0xff]
        %v2921 = vld [vmem:[%s181 + $0x40] sm:$0x3f]
        %v2922 = vadd.f32 %v2913, %v2876
        %v2923 = vadd.f32 %v2914, %v2879
        %v2924 = vadd.f32 %v2915, %v2884
        %v2925 = vadd.f32 %v2916, %v2887
        %v2926 = vadd.f32 %v2917, %v2892
        %v2927 = vadd.f32 %v2918, %v2895
        %v2928 = vadd.f32 %v2919, %v2900
        %v2929 = vadd.f32 %v2920, %v2903
        %v2930 = vadd.f32 %v2921, %v2908
        %2931 = vst.msk [vmem:[%s181] sm:$0xff] %vm308, %v2922
        %2932 = vst.msk [vmem:[%s181 + $0x8] sm:$0xff] %vm308, %v2923
        %2933 = vst.msk [vmem:[%s181 + $0x10] sm:$0xff] %vm308, %v2924
        %2934 = vst.msk [vmem:[%s181 + $0x18] sm:$0xff] %vm308, %v2925
        %2935 = vst.msk [vmem:[%s181 + $0x20] sm:$0xff] %vm308, %v2926
        %2936 = vst.msk [vmem:[%s181 + $0x28] sm:$0xff] %vm308, %v2927
        %2937 = vst.msk [vmem:[%s181 + $0x30] sm:$0xff] %vm308, %v2928
        %2938 = vst.msk [vmem:[%s181 + $0x38] sm:$0xff] %vm308, %v2929
        %2939 = vst.msk [vmem:[%s181 + $0x40] sm:$0x3f] %vm317, %v2930
        %v2940 = vld [vmem:[%s176 + $0x4] sm:$0xe]
        %v2941 = vld [vmem:[%s176 + $0x8] sm:$0xf]
        %v2942 = vld [vmem:[%s176 + $0xc] sm:$0xf]
        %v2943 = vld [vmem:[%s176 + $0x10] sm:$0xf]
        %v2944 = vld [vmem:[%s176 + $0x14] sm:$0xf]
        %v2945 = vld [vmem:[%s176 + $0x18] sm:$0xf]
        %v2946 = vld [vmem:[%s176 + $0x1c] sm:$0xf]
        %v2947 = vld [vmem:[%s176 + $0x20] sm:$0xf]
        %v2948 = vld [vmem:[%s176 + $0x24] sm:$0xf]
        %v2949 = vld [vmem:[%s176 + $0x28] sm:$0x1]
        %s2950 = scalar_lea.vmem %s1, 64
        %v2951 = vld [vmem:[%s2950] sm:$0xf]
        %v2962 = vunpack.c.l.b16 %v2940
        %v2963 = vunpack.c.l.b16 %v2941
        %v2964 = vunpack.c.l.b16 %v2942
        %v2965 = vunpack.c.l.b16 %v2943
        %v2966 = vunpack.c.l.b16 %v2944
        %v2967 = vunpack.c.l.b16 %v2945
        %v2968 = vunpack.c.l.b16 %v2946
        %v2969 = vunpack.c.l.b16 %v2947
        %v2970 = vunpack.c.l.b16 %v2948
        %v2971 = vunpack.c.l.b16 %v2949
        %v2972 = vpack.c.b16 %v2963, %v2962
        %v2973 = vpack.c.b16 %v2965, %v2964
        %v2974 = vpack.c.b16 %v2967, %v2966
        %v2975 = vpack.c.b16 %v2969, %v2968
        %v2976 = vpack.c.b16 %v2971, %v2970
        %v2978 = vshrl.u32 %v2972, 16
        %v2980 = vrot.slane %v2978, 1
        %v2981 = vshll.u32 %v2972, 16
        %v2983 = vrot.slane %v2981, 2
        %v2984 = vor.u32 %v2980, %v2983
        %v2986 = vshrl.u32 %v2973, 16
        %v2988 = vrot.slane %v2986, 1
        %v2989 = vshll.u32 %v2973, 16
        %v2991 = vrot.slane %v2989, 2
        %v2992 = vor.u32 %v2988, %v2991
        %v2993 = vsel %vm1222, %v2984, %v2992
        %v2995 = vshrl.u32 %v2974, 16
        %v2997 = vrot.slane %v2995, 1
        %v2998 = vshll.u32 %v2974, 16
        %v3000 = vrot.slane %v2998, 2
        %v3001 = vor.u32 %v2997, %v3000
        %v3002 = vsel %vm1222, %v2992, %v3001
        %v3004 = vshrl.u32 %v2975, 16
        %v3006 = vrot.slane %v3004, 1
        %v3007 = vshll.u32 %v2975, 16
        %v3009 = vrot.slane %v3007, 2
        %v3010 = vor.u32 %v3006, %v3009
        %v3011 = vsel %vm1222, %v3001, %v3010
        %v3013 = vshrl.u32 %v2976, 16
        %v3015 = vrot.slane %v3013, 1
        %v3016 = vshll.u32 %v2976, 16
        %v3018 = vrot.slane %v3016, 2
        %v3019 = vor.u32 %v3015, %v3018
        %v3020 = vsel %vm1222, %v3010, %v3019
        %v3022 = vsel %vm216, %v2993, 0
        %v3025 = vsel %vm216, %v3002, 0
        %v3028 = vsel %vm216, %v3011, 0
        %v3031 = vsel %vm216, %v3020, 0
        %v3034 = vsel %vm216, %v3019, 0
        %v3037 = vsel %vm232, %v2951, 0
        %3039 = vmatprep.subr.bf16.mxu0 0
        %3040 = vmatpush1.bf16.msra.mxu0 0
        %3041 = vmatprep.subr.bf16.mxu0 0
        %3042 = vmatpush1.bf16.msra.mxu0 0
        %3043 = vmatprep.subr.bf16.mxu0 0
        %3044 = vmatpush1.bf16.msra.mxu0 0
        %3045 = vmatprep.subr.bf16.mxu0 0
        %3046 = vmatpush1.bf16.msra.mxu0 0
        %3047 = vmatprep.subr.bf16.mxu0 0
        %3048 = vmatpush1.bf16.msra.mxu0 0
        %3049 = vmatprep.subr.bf16.mxu0 0
        %3050 = vmatpush1.bf16.msra.mxu0 0
        %3051 = vmatprep.subr.bf16.mxu0 0
        %3052 = vmatpush1.bf16.msra.mxu0 0
        %3053 = vmatprep.subr.bf16.mxu0 0
        %3054 = vmatpush1.bf16.msra.mxu0 %v3037
        %3055 = vmatprep.subr.bf16.mxu0 0
        %3056 = vmatpush2.bf16.msra.mxu0 0
        %3057 = vmatprep.subr.bf16.mxu0 0
        %3058 = vmatpush2.bf16.msra.mxu0 0
        %3059 = vmatprep.subr.bf16.mxu0 0
        %3060 = vmatpush2.bf16.msra.mxu0 0
        %3061 = vmatprep.subr.bf16.mxu0 0
        %3062 = vmatpush2.bf16.msra.mxu0 0
        %3063 = vmatprep.subr.bf16.mxu0 0
        %3064 = vmatpush2.bf16.msra.mxu0 0
        %3065 = vmatprep.subr.bf16.mxu0 0
        %3066 = vmatpush2.bf16.msra.mxu0 0
        %3067 = vmatprep.subr.bf16.mxu0 0
        %3068 = vmatpush2.bf16.msra.mxu0 0
        %3069 = vmatprep.subr.bf16.mxu0 0
        %3070 = vmatpush2.bf16.msra.mxu0 0
        %3071 = vmatprep.mubr.bf16.mxu0 0
        %3072 = vmatmul.mubr.bf16.gmra.mxu0 %v3022
        %v3073 = vpop.f32.mrf.mxu0
        %v3074 = vadd.f32 0.0, %v3073
        %v3075 = vpop.f32.mrf.mxu0
        %v3076 = vpop.f32.mrf.mxu0
        %v3077 = vadd.f32 0.0, %v3076
        %v3078 = vpop.f32.mrf.mxu0
        %3079 = vmatprep.mubr.bf16.mxu0 0
        %3080 = vmatmul.mubr.bf16.gmra.mxu0 %v3025
        %v3081 = vpop.f32.mrf.mxu0
        %v3082 = vadd.f32 0.0, %v3081
        %v3083 = vpop.f32.mrf.mxu0
        %v3084 = vpop.f32.mrf.mxu0
        %v3085 = vadd.f32 0.0, %v3084
        %v3086 = vpop.f32.mrf.mxu0
        %3087 = vmatprep.mubr.bf16.mxu0 0
        %3088 = vmatmul.mubr.bf16.gmra.mxu0 %v3028
        %v3089 = vpop.f32.mrf.mxu0
        %v3090 = vadd.f32 0.0, %v3089
        %v3091 = vpop.f32.mrf.mxu0
        %v3092 = vpop.f32.mrf.mxu0
        %v3093 = vadd.f32 0.0, %v3092
        %v3094 = vpop.f32.mrf.mxu0
        %3095 = vmatprep.mubr.bf16.mxu0 0
        %3096 = vmatmul.mubr.bf16.gmra.mxu0 %v3031
        %v3097 = vpop.f32.mrf.mxu0
        %v3098 = vadd.f32 0.0, %v3097
        %v3099 = vpop.f32.mrf.mxu0
        %v3100 = vpop.f32.mrf.mxu0
        %v3101 = vadd.f32 0.0, %v3100
        %v3102 = vpop.f32.mrf.mxu0
        %3103 = vmatprep.mubr.bf16.mxu0 0
        %3104 = vmatmul.mubr.bf16.gmra.mxu0 %v3034
        %v3105 = vpop.f32.mrf.mxu0
        %v3106 = vadd.f32 0.0, %v3105
        %v3107 = vpop.f32.mrf.mxu0
        %v3108 = vpop.f32.mrf.mxu0
        %v3109 = vpop.f32.mrf.mxu0
        %3110 = vdwg.mxu0
        %v3111 = vld [vmem:[%s181] sm:$0xff]
        %v3112 = vld [vmem:[%s181 + $0x8] sm:$0xff]
        %v3113 = vld [vmem:[%s181 + $0x10] sm:$0xff]
        %v3114 = vld [vmem:[%s181 + $0x18] sm:$0xff]
        %v3115 = vld [vmem:[%s181 + $0x20] sm:$0xff]
        %v3116 = vld [vmem:[%s181 + $0x28] sm:$0xff]
        %v3117 = vld [vmem:[%s181 + $0x30] sm:$0xff]
        %v3118 = vld [vmem:[%s181 + $0x38] sm:$0xff]
        %v3119 = vld [vmem:[%s181 + $0x40] sm:$0x3f]
        %v3120 = vadd.f32 %v3111, %v3074
        %v3121 = vadd.f32 %v3112, %v3077
        %v3122 = vadd.f32 %v3113, %v3082
        %v3123 = vadd.f32 %v3114, %v3085
        %v3124 = vadd.f32 %v3115, %v3090
        %v3125 = vadd.f32 %v3116, %v3093
        %v3126 = vadd.f32 %v3117, %v3098
        %v3127 = vadd.f32 %v3118, %v3101
        %v3128 = vadd.f32 %v3119, %v3106
        %3129 = vst.msk [vmem:[%s181] sm:$0xff] %vm308, %v3120
        %3130 = vst.msk [vmem:[%s181 + $0x8] sm:$0xff] %vm308, %v3121
        %3131 = vst.msk [vmem:[%s181 + $0x10] sm:$0xff] %vm308, %v3122
        %3132 = vst.msk [vmem:[%s181 + $0x18] sm:$0xff] %vm308, %v3123
        %3133 = vst.msk [vmem:[%s181 + $0x20] sm:$0xff] %vm308, %v3124
        %3134 = vst.msk [vmem:[%s181 + $0x28] sm:$0xff] %vm308, %v3125
        %3135 = vst.msk [vmem:[%s181 + $0x30] sm:$0xff] %vm308, %v3126
        %3136 = vst.msk [vmem:[%s181 + $0x38] sm:$0xff] %vm308, %v3127
        %3137 = vst.msk [vmem:[%s181 + $0x40] sm:$0x3f] %vm317, %v3128
        %v3138 = vld [vmem:[%s176 + $0x3c] sm:$0xf]
        %v3139 = vld [vmem:[%s176 + $0x40] sm:$0xf]
        %v3140 = vld [vmem:[%s176 + $0x44] sm:$0xf]
        %v3141 = vld [vmem:[%s176 + $0x48] sm:$0xf]
        %v3142 = vld [vmem:[%s176 + $0x4c] sm:$0xf]
        %v3143 = vld [vmem:[%s176 + $0x50] sm:$0xf]
        %v3144 = vld [vmem:[%s176 + $0x54] sm:$0xf]
        %v3145 = vld [vmem:[%s176 + $0x58] sm:$0xf]
        %v3146 = vld [vmem:[%s176 + $0x5c] sm:$0xf]
        %s3147 = scalar_lea.vmem %s1, 68
        %v3148 = vld [vmem:[%s3147] sm:$0xf]
        %v3158 = vunpack.c.l.b16 %v3138
        %v3159 = vunpack.c.l.b16 %v3139
        %v3160 = vunpack.c.l.b16 %v3140
        %v3161 = vunpack.c.l.b16 %v3141
        %v3162 = vunpack.c.l.b16 %v3142
        %v3163 = vunpack.c.l.b16 %v3143
        %v3164 = vunpack.c.l.b16 %v3144
        %v3165 = vunpack.c.l.b16 %v3145
        %v3166 = vunpack.c.l.b16 %v3146
        %v3167 = vpack.c.b16 %v3159, %v3158
        %v3168 = vpack.c.b16 %v3161, %v3160
        %v3169 = vpack.c.b16 %v3163, %v3162
        %v3170 = vpack.c.b16 %v3165, %v3164
        %v3171 = vpack.c.b16 %v3166, %v3166
        %v3173 = vshrl.u32 %v3167, 16
        %v3175 = vshll.u32 %v3167, 16
        %v3177 = vrot.slane %v3175, 1
        %v3178 = vor.u32 %v3173, %v3177
        %v3180 = vshll.u32 %v3168, 16
        %v3182 = vrot.slane %v3180, 1
        %v3183 = vsel %vm517, %v3178, %v3182
        %v3184 = vshrl.u32 %v3168, 16
        %v3186 = vor.u32 %v3184, %v3182
        %v3188 = vshll.u32 %v3169, 16
        %v3190 = vrot.slane %v3188, 1
        %v3191 = vsel %vm517, %v3186, %v3190
        %v3192 = vshrl.u32 %v3169, 16
        %v3194 = vor.u32 %v3192, %v3190
        %v3196 = vshll.u32 %v3170, 16
        %v3198 = vrot.slane %v3196, 1
        %v3199 = vsel %vm517, %v3194, %v3198
        %v3200 = vshrl.u32 %v3170, 16
        %v3202 = vor.u32 %v3200, %v3198
        %v3204 = vshll.u32 %v3171, 16
        %v3206 = vrot.slane %v3204, 1
        %v3207 = vsel %vm517, %v3202, %v3206
        %v3208 = vshrl.u32 %v3171, 16
        %v3210 = vor.u32 %v3208, %v3206
        %v3212 = vsel %vm216, %v3183, 0
        %v3215 = vsel %vm216, %v3191, 0
        %v3218 = vsel %vm216, %v3199, 0
        %v3221 = vsel %vm216, %v3207, 0
        %v3224 = vsel %vm216, %v3210, 0
        %v3227 = vsel %vm232, %v3148, 0
        %3229 = vmatprep.subr.bf16.mxu0 0
        %3230 = vmatpush1.bf16.msra.mxu0 0
        %3231 = vmatprep.subr.bf16.mxu0 0
        %3232 = vmatpush1.bf16.msra.mxu0 0
        %3233 = vmatprep.subr.bf16.mxu0 0
        %3234 = vmatpush1.bf16.msra.mxu0 0
        %3235 = vmatprep.subr.bf16.mxu0 0
        %3236 = vmatpush1.bf16.msra.mxu0 0
        %3237 = vmatprep.subr.bf16.mxu0 0
        %3238 = vmatpush1.bf16.msra.mxu0 0
        %3239 = vmatprep.subr.bf16.mxu0 0
        %3240 = vmatpush1.bf16.msra.mxu0 0
        %3241 = vmatprep.subr.bf16.mxu0 0
        %3242 = vmatpush1.bf16.msra.mxu0 0
        %3243 = vmatprep.subr.bf16.mxu0 0
        %3244 = vmatpush1.bf16.msra.mxu0 %v3227
        %3245 = vmatprep.subr.bf16.mxu0 0
        %3246 = vmatpush2.bf16.msra.mxu0 0
        %3247 = vmatprep.subr.bf16.mxu0 0
        %3248 = vmatpush2.bf16.msra.mxu0 0
        %3249 = vmatprep.subr.bf16.mxu0 0
        %3250 = vmatpush2.bf16.msra.mxu0 0
        %3251 = vmatprep.subr.bf16.mxu0 0
        %3252 = vmatpush2.bf16.msra.mxu0 0
        %3253 = vmatprep.subr.bf16.mxu0 0
        %3254 = vmatpush2.bf16.msra.mxu0 0
        %3255 = vmatprep.subr.bf16.mxu0 0
        %3256 = vmatpush2.bf16.msra.mxu0 0
        %3257 = vmatprep.subr.bf16.mxu0 0
        %3258 = vmatpush2.bf16.msra.mxu0 0
        %3259 = vmatprep.subr.bf16.mxu0 0
        %3260 = vmatpush2.bf16.msra.mxu0 0
        %3261 = vmatprep.mubr.bf16.mxu0 0
        %3262 = vmatmul.mubr.bf16.gmra.mxu0 %v3212
        %v3263 = vpop.f32.mrf.mxu0
        %v3264 = vadd.f32 0.0, %v3263
        %v3265 = vpop.f32.mrf.mxu0
        %v3266 = vpop.f32.mrf.mxu0
        %v3267 = vadd.f32 0.0, %v3266
        %v3268 = vpop.f32.mrf.mxu0
        %3269 = vmatprep.mubr.bf16.mxu0 0
        %3270 = vmatmul.mubr.bf16.gmra.mxu0 %v3215
        %v3271 = vpop.f32.mrf.mxu0
        %v3272 = vadd.f32 0.0, %v3271
        %v3273 = vpop.f32.mrf.mxu0
        %v3274 = vpop.f32.mrf.mxu0
        %v3275 = vadd.f32 0.0, %v3274
        %v3276 = vpop.f32.mrf.mxu0
        %3277 = vmatprep.mubr.bf16.mxu0 0
        %3278 = vmatmul.mubr.bf16.gmra.mxu0 %v3218
        %v3279 = vpop.f32.mrf.mxu0
        %v3280 = vadd.f32 0.0, %v3279
        %v3281 = vpop.f32.mrf.mxu0
        %v3282 = vpop.f32.mrf.mxu0
        %v3283 = vadd.f32 0.0, %v3282
        %v3284 = vpop.f32.mrf.mxu0
        %3285 = vmatprep.mubr.bf16.mxu0 0
        %3286 = vmatmul.mubr.bf16.gmra.mxu0 %v3221
        %v3287 = vpop.f32.mrf.mxu0
        %v3288 = vadd.f32 0.0, %v3287
        %v3289 = vpop.f32.mrf.mxu0
        %v3290 = vpop.f32.mrf.mxu0
        %v3291 = vadd.f32 0.0, %v3290
        %v3292 = vpop.f32.mrf.mxu0
        %3293 = vmatprep.mubr.bf16.mxu0 0
        %3294 = vmatmul.mubr.bf16.gmra.mxu0 %v3224
        %v3295 = vpop.f32.mrf.mxu0
        %v3296 = vadd.f32 0.0, %v3295
        %v3297 = vpop.f32.mrf.mxu0
        %v3298 = vpop.f32.mrf.mxu0
        %v3299 = vpop.f32.mrf.mxu0
        %3300 = vdwg.mxu0
        %v3301 = vld [vmem:[%s181] sm:$0xff]
        %v3302 = vld [vmem:[%s181 + $0x8] sm:$0xff]
        %v3303 = vld [vmem:[%s181 + $0x10] sm:$0xff]
        %v3304 = vld [vmem:[%s181 + $0x18] sm:$0xff]
        %v3305 = vld [vmem:[%s181 + $0x20] sm:$0xff]
        %v3306 = vld [vmem:[%s181 + $0x28] sm:$0xff]
        %v3307 = vld [vmem:[%s181 + $0x30] sm:$0xff]
        %v3308 = vld [vmem:[%s181 + $0x38] sm:$0xff]
        %v3309 = vld [vmem:[%s181 + $0x40] sm:$0x3f]
        %v3310 = vadd.f32 %v3301, %v3264
        %v3311 = vadd.f32 %v3302, %v3267
        %v3312 = vadd.f32 %v3303, %v3272
        %v3313 = vadd.f32 %v3304, %v3275
        %v3314 = vadd.f32 %v3305, %v3280
        %v3315 = vadd.f32 %v3306, %v3283
        %v3316 = vadd.f32 %v3307, %v3288
        %v3317 = vadd.f32 %v3308, %v3291
        %v3318 = vadd.f32 %v3309, %v3296
        %3319 = vst.msk [vmem:[%s181] sm:$0xff] %vm308, %v3310
        %3320 = vst.msk [vmem:[%s181 + $0x8] sm:$0xff] %vm308, %v3311
        %3321 = vst.msk [vmem:[%s181 + $0x10] sm:$0xff] %vm308, %v3312
        %3322 = vst.msk [vmem:[%s181 + $0x18] sm:$0xff] %vm308, %v3313
        %3323 = vst.msk [vmem:[%s181 + $0x20] sm:$0xff] %vm308, %v3314
        %3324 = vst.msk [vmem:[%s181 + $0x28] sm:$0xff] %vm308, %v3315
        %3325 = vst.msk [vmem:[%s181 + $0x30] sm:$0xff] %vm308, %v3316
        %3326 = vst.msk [vmem:[%s181 + $0x38] sm:$0xff] %vm308, %v3317
        %3327 = vst.msk [vmem:[%s181 + $0x40] sm:$0x3f] %vm317, %v3318
        %v3328 = vld [vmem:[%s176 + $0x4] sm:$0xc]
        %v3329 = vld [vmem:[%s176 + $0x8] sm:$0xf]
        %v3330 = vld [vmem:[%s176 + $0xc] sm:$0xf]
        %v3331 = vld [vmem:[%s176 + $0x10] sm:$0xf]
        %v3332 = vld [vmem:[%s176 + $0x14] sm:$0xf]
        %v3333 = vld [vmem:[%s176 + $0x18] sm:$0xf]
        %v3334 = vld [vmem:[%s176 + $0x1c] sm:$0xf]
        %v3335 = vld [vmem:[%s176 + $0x20] sm:$0xf]
        %v3336 = vld [vmem:[%s176 + $0x24] sm:$0xf]
        %v3337 = vld [vmem:[%s176 + $0x28] sm:$0x1]
        %s3338 = scalar_lea.vmem %s1, 72
        %v3339 = vld [vmem:[%s3338] sm:$0xf]
        %v3350 = vunpack.c.l.b16 %v3328
        %v3351 = vunpack.c.l.b16 %v3329
        %v3352 = vunpack.c.l.b16 %v3330
        %v3353 = vunpack.c.l.b16 %v3331
        %v3354 = vunpack.c.l.b16 %v3332
        %v3355 = vunpack.c.l.b16 %v3333
        %v3356 = vunpack.c.l.b16 %v3334
        %v3357 = vunpack.c.l.b16 %v3335
        %v3358 = vunpack.c.l.b16 %v3336
        %v3359 = vunpack.c.l.b16 %v3337
        %v3360 = vpack.c.b16 %v3351, %v3350
        %v3361 = vpack.c.b16 %v3353, %v3352
        %v3362 = vpack.c.b16 %v3355, %v3354
        %v3363 = vpack.c.b16 %v3357, %v3356
        %v3364 = vpack.c.b16 %v3359, %v3358
        %v3365 = vrot.slane %v3360, 2
        %v3366 = vrot.slane %v3361, 2
        %v3367 = vsel %vm1421, %v3365, %v3366
        %v3368 = vrot.slane %v3362, 2
        %v3369 = vsel %vm1421, %v3366, %v3368
        %v3370 = vrot.slane %v3363, 2
        %v3371 = vsel %vm1421, %v3368, %v3370
        %v3372 = vrot.slane %v3364, 2
        %v3373 = vsel %vm1421, %v3370, %v3372
        %v3375 = vsel %vm216, %v3367, 0
        %v3378 = vsel %vm216, %v3369, 0
        %v3381 = vsel %vm216, %v3371, 0
        %v3384 = vsel %vm216, %v3373, 0
        %v3387 = vsel %vm216, %v3372, 0
        %v3390 = vsel %vm232, %v3339, 0
        %3392 = vmatprep.subr.bf16.mxu0 0
        %3393 = vmatpush1.bf16.msra.mxu0 0
        %3394 = vmatprep.subr.bf16.mxu0 0
        %3395 = vmatpush1.bf16.msra.mxu0 0
        %3396 = vmatprep.subr.bf16.mxu0 0
        %3397 = vmatpush1.bf16.msra.mxu0 0
        %3398 = vmatprep.subr.bf16.mxu0 0
        %3399 = vmatpush1.bf16.msra.mxu0 0
        %3400 = vmatprep.subr.bf16.mxu0 0
        %3401 = vmatpush1.bf16.msra.mxu0 0
        %3402 = vmatprep.subr.bf16.mxu0 0
        %3403 = vmatpush1.bf16.msra.mxu0 0
        %3404 = vmatprep.subr.bf16.mxu0 0
        %3405 = vmatpush1.bf16.msra.mxu0 0
        %3406 = vmatprep.subr.bf16.mxu0 0
        %3407 = vmatpush1.bf16.msra.mxu0 %v3390
        %3408 = vmatprep.subr.bf16.mxu0 0
        %3409 = vmatpush2.bf16.msra.mxu0 0
        %3410 = vmatprep.subr.bf16.mxu0 0
        %3411 = vmatpush2.bf16.msra.mxu0 0
        %3412 = vmatprep.subr.bf16.mxu0 0
        %3413 = vmatpush2.bf16.msra.mxu0 0
        %3414 = vmatprep.subr.bf16.mxu0 0
        %3415 = vmatpush2.bf16.msra.mxu0 0
        %3416 = vmatprep.subr.bf16.mxu0 0
        %3417 = vmatpush2.bf16.msra.mxu0 0
        %3418 = vmatprep.subr.bf16.mxu0 0
        %3419 = vmatpush2.bf16.msra.mxu0 0
        %3420 = vmatprep.subr.bf16.mxu0 0
        %3421 = vmatpush2.bf16.msra.mxu0 0
        %3422 = vmatprep.subr.bf16.mxu0 0
        %3423 = vmatpush2.bf16.msra.mxu0 0
        %3424 = vmatprep.mubr.bf16.mxu0 0
        %3425 = vmatmul.mubr.bf16.gmra.mxu0 %v3375
        %v3426 = vpop.f32.mrf.mxu0
        %v3427 = vadd.f32 0.0, %v3426
        %v3428 = vpop.f32.mrf.mxu0
        %v3429 = vpop.f32.mrf.mxu0
        %v3430 = vadd.f32 0.0, %v3429
        %v3431 = vpop.f32.mrf.mxu0
        %3432 = vmatprep.mubr.bf16.mxu0 0
        %3433 = vmatmul.mubr.bf16.gmra.mxu0 %v3378
        %v3434 = vpop.f32.mrf.mxu0
        %v3435 = vadd.f32 0.0, %v3434
        %v3436 = vpop.f32.mrf.mxu0
        %v3437 = vpop.f32.mrf.mxu0
        %v3438 = vadd.f32 0.0, %v3437
        %v3439 = vpop.f32.mrf.mxu0
        %3440 = vmatprep.mubr.bf16.mxu0 0
        %3441 = vmatmul.mubr.bf16.gmra.mxu0 %v3381
        %v3442 = vpop.f32.mrf.mxu0
        %v3443 = vadd.f32 0.0, %v3442
        %v3444 = vpop.f32.mrf.mxu0
        %v3445 = vpop.f32.mrf.mxu0
        %v3446 = vadd.f32 0.0, %v3445
        %v3447 = vpop.f32.mrf.mxu0
        %3448 = vmatprep.mubr.bf16.mxu0 0
        %3449 = vmatmul.mubr.bf16.gmra.mxu0 %v3384
        %v3450 = vpop.f32.mrf.mxu0
        %v3451 = vadd.f32 0.0, %v3450
        %v3452 = vpop.f32.mrf.mxu0
        %v3453 = vpop.f32.mrf.mxu0
        %v3454 = vadd.f32 0.0, %v3453
        %v3455 = vpop.f32.mrf.mxu0
        %3456 = vmatprep.mubr.bf16.mxu0 0
        %3457 = vmatmul.mubr.bf16.gmra.mxu0 %v3387
        %v3458 = vpop.f32.mrf.mxu0
        %v3459 = vadd.f32 0.0, %v3458
        %v3460 = vpop.f32.mrf.mxu0
        %v3461 = vpop.f32.mrf.mxu0
        %v3462 = vpop.f32.mrf.mxu0
        %3463 = vdwg.mxu0
        %v3464 = vld [vmem:[%s181] sm:$0xff]
        %v3465 = vld [vmem:[%s181 + $0x8] sm:$0xff]
        %v3466 = vld [vmem:[%s181 + $0x10] sm:$0xff]
        %v3467 = vld [vmem:[%s181 + $0x18] sm:$0xff]
        %v3468 = vld [vmem:[%s181 + $0x20] sm:$0xff]
        %v3469 = vld [vmem:[%s181 + $0x28] sm:$0xff]
        %v3470 = vld [vmem:[%s181 + $0x30] sm:$0xff]
        %v3471 = vld [vmem:[%s181 + $0x38] sm:$0xff]
        %v3472 = vld [vmem:[%s181 + $0x40] sm:$0x3f]
        %v3473 = vadd.f32 %v3464, %v3427
        %v3474 = vadd.f32 %v3465, %v3430
        %v3475 = vadd.f32 %v3466, %v3435
        %v3476 = vadd.f32 %v3467, %v3438
        %v3477 = vadd.f32 %v3468, %v3443
        %v3478 = vadd.f32 %v3469, %v3446
        %v3479 = vadd.f32 %v3470, %v3451
        %v3480 = vadd.f32 %v3471, %v3454
        %v3481 = vadd.f32 %v3472, %v3459
        %3482 = vst.msk [vmem:[%s181] sm:$0xff] %vm308, %v3473
        %3483 = vst.msk [vmem:[%s181 + $0x8] sm:$0xff] %vm308, %v3474
        %3484 = vst.msk [vmem:[%s181 + $0x10] sm:$0xff] %vm308, %v3475
        %3485 = vst.msk [vmem:[%s181 + $0x18] sm:$0xff] %vm308, %v3476
        %3486 = vst.msk [vmem:[%s181 + $0x20] sm:$0xff] %vm308, %v3477
        %3487 = vst.msk [vmem:[%s181 + $0x28] sm:$0xff] %vm308, %v3478
        %3488 = vst.msk [vmem:[%s181 + $0x30] sm:$0xff] %vm308, %v3479
        %3489 = vst.msk [vmem:[%s181 + $0x38] sm:$0xff] %vm308, %v3480
        %3490 = vst.msk [vmem:[%s181 + $0x40] sm:$0x3f] %vm317, %v3481
        %v3491 = vld [vmem:[%s176 + $0x3c] sm:$0xe]
        %v3492 = vld [vmem:[%s176 + $0x40] sm:$0xf]
        %v3493 = vld [vmem:[%s176 + $0x44] sm:$0xf]
        %v3494 = vld [vmem:[%s176 + $0x48] sm:$0xf]
        %v3495 = vld [vmem:[%s176 + $0x4c] sm:$0xf]
        %v3496 = vld [vmem:[%s176 + $0x50] sm:$0xf]
        %v3497 = vld [vmem:[%s176 + $0x54] sm:$0xf]
        %v3498 = vld [vmem:[%s176 + $0x58] sm:$0xf]
        %v3499 = vld [vmem:[%s176 + $0x5c] sm:$0xf]
        %s3500 = scalar_lea.vmem %s1, 76
        %v3501 = vld [vmem:[%s3500] sm:$0xf]
        %v3511 = vunpack.c.l.b16 %v3491
        %v3512 = vunpack.c.l.b16 %v3492
        %v3513 = vunpack.c.l.b16 %v3493
        %v3514 = vunpack.c.l.b16 %v3494
        %v3515 = vunpack.c.l.b16 %v3495
        %v3516 = vunpack.c.l.b16 %v3496
        %v3517 = vunpack.c.l.b16 %v3497
        %v3518 = vunpack.c.l.b16 %v3498
        %v3519 = vunpack.c.l.b16 %v3499
        %v3520 = vpack.c.b16 %v3512, %v3511
        %v3521 = vpack.c.b16 %v3514, %v3513
        %v3522 = vpack.c.b16 %v3516, %v3515
        %v3523 = vpack.c.b16 %v3518, %v3517
        %v3524 = vpack.c.b16 %v3519, %v3519
        %v3525 = vrot.slane %v3520, 1
        %v3526 = vrot.slane %v3521, 1
        %v3527 = vsel %vm907, %v3525, %v3526
        %v3528 = vrot.slane %v3522, 1
        %v3529 = vsel %vm907, %v3526, %v3528
        %v3530 = vrot.slane %v3523, 1
        %v3531 = vsel %vm907, %v3528, %v3530
        %v3532 = vrot.slane %v3524, 1
        %v3533 = vsel %vm907, %v3530, %v3532
        %v3535 = vsel %vm216, %v3527, 0
        %v3538 = vsel %vm216, %v3529, 0
        %v3541 = vsel %vm216, %v3531, 0
        %v3544 = vsel %vm216, %v3533, 0
        %v3547 = vsel %vm216, %v3532, 0
        %v3550 = vsel %vm232, %v3501, 0
        %3552 = vmatprep.subr.bf16.mxu0 0
        %3553 = vmatpush1.bf16.msra.mxu0 0
        %3554 = vmatprep.subr.bf16.mxu0 0
        %3555 = vmatpush1.bf16.msra.mxu0 0
        %3556 = vmatprep.subr.bf16.mxu0 0
        %3557 = vmatpush1.bf16.msra.mxu0 0
        %3558 = vmatprep.subr.bf16.mxu0 0
        %3559 = vmatpush1.bf16.msra.mxu0 0
        %3560 = vmatprep.subr.bf16.mxu0 0
        %3561 = vmatpush1.bf16.msra.mxu0 0
        %3562 = vmatprep.subr.bf16.mxu0 0
        %3563 = vmatpush1.bf16.msra.mxu0 0
        %3564 = vmatprep.subr.bf16.mxu0 0
        %3565 = vmatpush1.bf16.msra.mxu0 0
        %3566 = vmatprep.subr.bf16.mxu0 0
        %3567 = vmatpush1.bf16.msra.mxu0 %v3550
        %3568 = vmatprep.subr.bf16.mxu0 0
        %3569 = vmatpush2.bf16.msra.mxu0 0
        %3570 = vmatprep.subr.bf16.mxu0 0
        %3571 = vmatpush2.bf16.msra.mxu0 0
        %3572 = vmatprep.subr.bf16.mxu0 0
        %3573 = vmatpush2.bf16.msra.mxu0 0
        %3574 = vmatprep.subr.bf16.mxu0 0
        %3575 = vmatpush2.bf16.msra.mxu0 0
        %3576 = vmatprep.subr.bf16.mxu0 0
        %3577 = vmatpush2.bf16.msra.mxu0 0
        %3578 = vmatprep.subr.bf16.mxu0 0
        %3579 = vmatpush2.bf16.msra.mxu0 0
        %3580 = vmatprep.subr.bf16.mxu0 0
        %3581 = vmatpush2.bf16.msra.mxu0 0
        %3582 = vmatprep.subr.bf16.mxu0 0
        %3583 = vmatpush2.bf16.msra.mxu0 0
        %3584 = vmatprep.mubr.bf16.mxu0 0
        %3585 = vmatmul.mubr.bf16.gmra.mxu0 %v3535
        %v3586 = vpop.f32.mrf.mxu0
        %v3587 = vadd.f32 0.0, %v3586
        %v3588 = vpop.f32.mrf.mxu0
        %v3589 = vpop.f32.mrf.mxu0
        %v3590 = vadd.f32 0.0, %v3589
        %v3591 = vpop.f32.mrf.mxu0
        %3592 = vmatprep.mubr.bf16.mxu0 0
        %3593 = vmatmul.mubr.bf16.gmra.mxu0 %v3538
        %v3594 = vpop.f32.mrf.mxu0
        %v3595 = vadd.f32 0.0, %v3594
        %v3596 = vpop.f32.mrf.mxu0
        %v3597 = vpop.f32.mrf.mxu0
        %v3598 = vadd.f32 0.0, %v3597
        %v3599 = vpop.f32.mrf.mxu0
        %3600 = vmatprep.mubr.bf16.mxu0 0
        %3601 = vmatmul.mubr.bf16.gmra.mxu0 %v3541
        %v3602 = vpop.f32.mrf.mxu0
        %v3603 = vadd.f32 0.0, %v3602
        %v3604 = vpop.f32.mrf.mxu0
        %v3605 = vpop.f32.mrf.mxu0
        %v3606 = vadd.f32 0.0, %v3605
        %v3607 = vpop.f32.mrf.mxu0
        %3608 = vmatprep.mubr.bf16.mxu0 0
        %3609 = vmatmul.mubr.bf16.gmra.mxu0 %v3544
        %v3610 = vpop.f32.mrf.mxu0
        %v3611 = vadd.f32 0.0, %v3610
        %v3612 = vpop.f32.mrf.mxu0
        %v3613 = vpop.f32.mrf.mxu0
        %v3614 = vadd.f32 0.0, %v3613
        %v3615 = vpop.f32.mrf.mxu0
        %3616 = vmatprep.mubr.bf16.mxu0 0
        %3617 = vmatmul.mubr.bf16.gmra.mxu0 %v3547
        %v3618 = vpop.f32.mrf.mxu0
        %v3619 = vadd.f32 0.0, %v3618
        %v3620 = vpop.f32.mrf.mxu0
        %v3621 = vpop.f32.mrf.mxu0
        %v3622 = vpop.f32.mrf.mxu0
        %3623 = vdwg.mxu0
        %v3624 = vld [vmem:[%s181] sm:$0xff]
        %v3625 = vld [vmem:[%s181 + $0x8] sm:$0xff]
        %v3626 = vld [vmem:[%s181 + $0x10] sm:$0xff]
        %v3627 = vld [vmem:[%s181 + $0x18] sm:$0xff]
        %v3628 = vld [vmem:[%s181 + $0x20] sm:$0xff]
        %v3629 = vld [vmem:[%s181 + $0x28] sm:$0xff]
        %v3630 = vld [vmem:[%s181 + $0x30] sm:$0xff]
        %v3631 = vld [vmem:[%s181 + $0x38] sm:$0xff]
        %v3632 = vld [vmem:[%s181 + $0x40] sm:$0x3f]
        %v3633 = vadd.f32 %v3624, %v3587
        %v3634 = vadd.f32 %v3625, %v3590
        %v3635 = vadd.f32 %v3626, %v3595
        %v3636 = vadd.f32 %v3627, %v3598
        %v3637 = vadd.f32 %v3628, %v3603
        %v3638 = vadd.f32 %v3629, %v3606
        %v3639 = vadd.f32 %v3630, %v3611
        %v3640 = vadd.f32 %v3631, %v3614
        %v3641 = vadd.f32 %v3632, %v3619
        %3642 = vst.msk [vmem:[%s181] sm:$0xff] %vm308, %v3633
        %3643 = vst.msk [vmem:[%s181 + $0x8] sm:$0xff] %vm308, %v3634
        %3644 = vst.msk [vmem:[%s181 + $0x10] sm:$0xff] %vm308, %v3635
        %3645 = vst.msk [vmem:[%s181 + $0x18] sm:$0xff] %vm308, %v3636
        %3646 = vst.msk [vmem:[%s181 + $0x20] sm:$0xff] %vm308, %v3637
        %3647 = vst.msk [vmem:[%s181 + $0x28] sm:$0xff] %vm308, %v3638
        %3648 = vst.msk [vmem:[%s181 + $0x30] sm:$0xff] %vm308, %v3639
        %3649 = vst.msk [vmem:[%s181 + $0x38] sm:$0xff] %vm308, %v3640
        %3650 = vst.msk [vmem:[%s181 + $0x40] sm:$0x3f] %vm317, %v3641
        %v3651 = vld [vmem:[%s176 + $0x4] sm:$0xc]
        %v3652 = vld [vmem:[%s176 + $0x8] sm:$0xf]
        %v3653 = vld [vmem:[%s176 + $0xc] sm:$0xf]
        %v3654 = vld [vmem:[%s176 + $0x10] sm:$0xf]
        %v3655 = vld [vmem:[%s176 + $0x14] sm:$0xf]
        %v3656 = vld [vmem:[%s176 + $0x18] sm:$0xf]
        %v3657 = vld [vmem:[%s176 + $0x1c] sm:$0xf]
        %v3658 = vld [vmem:[%s176 + $0x20] sm:$0xf]
        %v3659 = vld [vmem:[%s176 + $0x24] sm:$0xf]
        %v3660 = vld [vmem:[%s176 + $0x28] sm:$0x3]
        %s3661 = scalar_lea.vmem %s1, 80
        %v3662 = vld [vmem:[%s3661] sm:$0xf]
        %v3673 = vunpack.c.l.b16 %v3651
        %v3674 = vunpack.c.l.b16 %v3652
        %v3675 = vunpack.c.l.b16 %v3653
        %v3676 = vunpack.c.l.b16 %v3654
        %v3677 = vunpack.c.l.b16 %v3655
        %v3678 = vunpack.c.l.b16 %v3656
        %v3679 = vunpack.c.l.b16 %v3657
        %v3680 = vunpack.c.l.b16 %v3658
        %v3681 = vunpack.c.l.b16 %v3659
        %v3682 = vunpack.c.l.b16 %v3660
        %v3683 = vpack.c.b16 %v3674, %v3673
        %v3684 = vpack.c.b16 %v3676, %v3675
        %v3685 = vpack.c.b16 %v3678, %v3677
        %v3686 = vpack.c.b16 %v3680, %v3679
        %v3687 = vpack.c.b16 %v3682, %v3681
        %v3689 = vshrl.u32 %v3683, 16
        %v3691 = vrot.slane %v3689, 2
        %v3692 = vshll.u32 %v3683, 16
        %v3694 = vrot.slane %v3692, 3
        %v3695 = vor.u32 %v3691, %v3694
        %v3697 = vshrl.u32 %v3684, 16
        %v3699 = vrot.slane %v3697, 2
        %v3700 = vshll.u32 %v3684, 16
        %v3702 = vrot.slane %v3700, 3
        %v3703 = vor.u32 %v3699, %v3702
        %v3704 = vsel %vm1745, %v3695, %v3703
        %v3706 = vshrl.u32 %v3685, 16
        %v3708 = vrot.slane %v3706, 2
        %v3709 = vshll.u32 %v3685, 16
        %v3711 = vrot.slane %v3709, 3
        %v3712 = vor.u32 %v3708, %v3711
        %v3713 = vsel %vm1745, %v3703, %v3712
        %v3715 = vshrl.u32 %v3686, 16
        %v3717 = vrot.slane %v3715, 2
        %v3718 = vshll.u32 %v3686, 16
        %v3720 = vrot.slane %v3718, 3
        %v3721 = vor.u32 %v3717, %v3720
        %v3722 = vsel %vm1745, %v3712, %v3721
        %v3724 = vshrl.u32 %v3687, 16
        %v3726 = vrot.slane %v3724, 2
        %v3727 = vshll.u32 %v3687, 16
        %v3729 = vrot.slane %v3727, 3
        %v3730 = vor.u32 %v3726, %v3729
        %v3731 = vsel %vm1745, %v3721, %v3730
        %v3733 = vsel %vm216, %v3704, 0
        %v3736 = vsel %vm216, %v3713, 0
        %v3739 = vsel %vm216, %v3722, 0
        %v3742 = vsel %vm216, %v3731, 0
        %v3745 = vsel %vm216, %v3730, 0
        %v3748 = vsel %vm232, %v3662, 0
        %3750 = vmatprep.subr.bf16.mxu0 0
        %3751 = vmatpush1.bf16.msra.mxu0 0
        %3752 = vmatprep.subr.bf16.mxu0 0
        %3753 = vmatpush1.bf16.msra.mxu0 0
        %3754 = vmatprep.subr.bf16.mxu0 0
        %3755 = vmatpush1.bf16.msra.mxu0 0
        %3756 = vmatprep.subr.bf16.mxu0 0
        %3757 = vmatpush1.bf16.msra.mxu0 0
        %3758 = vmatprep.subr.bf16.mxu0 0
        %3759 = vmatpush1.bf16.msra.mxu0 0
        %3760 = vmatprep.subr.bf16.mxu0 0
        %3761 = vmatpush1.bf16.msra.mxu0 0
        %3762 = vmatprep.subr.bf16.mxu0 0
        %3763 = vmatpush1.bf16.msra.mxu0 0
        %3764 = vmatprep.subr.bf16.mxu0 0
        %3765 = vmatpush1.bf16.msra.mxu0 %v3748
        %3766 = vmatprep.subr.bf16.mxu0 0
        %3767 = vmatpush2.bf16.msra.mxu0 0
        %3768 = vmatprep.subr.bf16.mxu0 0
        %3769 = vmatpush2.bf16.msra.mxu0 0
        %3770 = vmatprep.subr.bf16.mxu0 0
        %3771 = vmatpush2.bf16.msra.mxu0 0
        %3772 = vmatprep.subr.bf16.mxu0 0
        %3773 = vmatpush2.bf16.msra.mxu0 0
        %3774 = vmatprep.subr.bf16.mxu0 0
        %3775 = vmatpush2.bf16.msra.mxu0 0
        %3776 = vmatprep.subr.bf16.mxu0 0
        %3777 = vmatpush2.bf16.msra.mxu0 0
        %3778 = vmatprep.subr.bf16.mxu0 0
        %3779 = vmatpush2.bf16.msra.mxu0 0
        %3780 = vmatprep.subr.bf16.mxu0 0
        %3781 = vmatpush2.bf16.msra.mxu0 0
        %3782 = vmatprep.mubr.bf16.mxu0 0
        %3783 = vmatmul.mubr.bf16.gmra.mxu0 %v3733
        %v3784 = vpop.f32.mrf.mxu0
        %v3785 = vadd.f32 0.0, %v3784
        %v3786 = vpop.f32.mrf.mxu0
        %v3787 = vpop.f32.mrf.mxu0
        %v3788 = vadd.f32 0.0, %v3787
        %v3789 = vpop.f32.mrf.mxu0
        %3790 = vmatprep.mubr.bf16.mxu0 0
        %3791 = vmatmul.mubr.bf16.gmra.mxu0 %v3736
        %v3792 = vpop.f32.mrf.mxu0
        %v3793 = vadd.f32 0.0, %v3792
        %v3794 = vpop.f32.mrf.mxu0
        %v3795 = vpop.f32.mrf.mxu0
        %v3796 = vadd.f32 0.0, %v3795
        %v3797 = vpop.f32.mrf.mxu0
        %3798 = vmatprep.mubr.bf16.mxu0 0
        %3799 = vmatmul.mubr.bf16.gmra.mxu0 %v3739
        %v3800 = vpop.f32.mrf.mxu0
        %v3801 = vadd.f32 0.0, %v3800
        %v3802 = vpop.f32.mrf.mxu0
        %v3803 = vpop.f32.mrf.mxu0
        %v3804 = vadd.f32 0.0, %v3803
        %v3805 = vpop.f32.mrf.mxu0
        %3806 = vmatprep.mubr.bf16.mxu0 0
        %3807 = vmatmul.mubr.bf16.gmra.mxu0 %v3742
        %v3808 = vpop.f32.mrf.mxu0
        %v3809 = vadd.f32 0.0, %v3808
        %v3810 = vpop.f32.mrf.mxu0
        %v3811 = vpop.f32.mrf.mxu0
        %v3812 = vadd.f32 0.0, %v3811
        %v3813 = vpop.f32.mrf.mxu0
        %3814 = vmatprep.mubr.bf16.mxu0 0
        %3815 = vmatmul.mubr.bf16.gmra.mxu0 %v3745
        %v3816 = vpop.f32.mrf.mxu0
        %v3817 = vadd.f32 0.0, %v3816
        %v3818 = vpop.f32.mrf.mxu0
        %v3819 = vpop.f32.mrf.mxu0
        %v3820 = vpop.f32.mrf.mxu0
        %3821 = vdwg.mxu0
        %v3822 = vld [vmem:[%s181] sm:$0xff]
        %v3823 = vld [vmem:[%s181 + $0x8] sm:$0xff]
        %v3824 = vld [vmem:[%s181 + $0x10] sm:$0xff]
        %v3825 = vld [vmem:[%s181 + $0x18] sm:$0xff]
        %v3826 = vld [vmem:[%s181 + $0x20] sm:$0xff]
        %v3827 = vld [vmem:[%s181 + $0x28] sm:$0xff]
        %v3828 = vld [vmem:[%s181 + $0x30] sm:$0xff]
        %v3829 = vld [vmem:[%s181 + $0x38] sm:$0xff]
        %v3830 = vld [vmem:[%s181 + $0x40] sm:$0x3f]
        %v3831 = vadd.f32 %v3822, %v3785
        %v3832 = vadd.f32 %v3823, %v3788
        %v3833 = vadd.f32 %v3824, %v3793
        %v3834 = vadd.f32 %v3825, %v3796
        %v3835 = vadd.f32 %v3826, %v3801
        %v3836 = vadd.f32 %v3827, %v3804
        %v3837 = vadd.f32 %v3828, %v3809
        %v3838 = vadd.f32 %v3829, %v3812
        %v3839 = vadd.f32 %v3830, %v3817
        %3840 = vst.msk [vmem:[%s181] sm:$0xff] %vm308, %v3831
        %3841 = vst.msk [vmem:[%s181 + $0x8] sm:$0xff] %vm308, %v3832
        %3842 = vst.msk [vmem:[%s181 + $0x10] sm:$0xff] %vm308, %v3833
        %3843 = vst.msk [vmem:[%s181 + $0x18] sm:$0xff] %vm308, %v3834
        %3844 = vst.msk [vmem:[%s181 + $0x20] sm:$0xff] %vm308, %v3835
        %3845 = vst.msk [vmem:[%s181 + $0x28] sm:$0xff] %vm308, %v3836
        %3846 = vst.msk [vmem:[%s181 + $0x30] sm:$0xff] %vm308, %v3837
        %3847 = vst.msk [vmem:[%s181 + $0x38] sm:$0xff] %vm308, %v3838
        %3848 = vst.msk [vmem:[%s181 + $0x40] sm:$0x3f] %vm317, %v3839
        %v3849 = vld [vmem:[%s176 + $0x70] sm:$0x8]
        %v3850 = vld [vmem:[%s176 + $0x74] sm:$0xf]
        %v3851 = vld [vmem:[%s176 + $0x78] sm:$0xf]
        %v3852 = vld [vmem:[%s176 + $0x7c] sm:$0xf]
        %v3853 = vld [vmem:[%s176 + $0x80] sm:$0xf]
        %v3854 = vld [vmem:[%s176 + $0x84] sm:$0xf]
        %v3855 = vld [vmem:[%s176 + $0x88] sm:$0xf]
        %v3856 = vld [vmem:[%s176 + $0x8c] sm:$0xf]
        %v3857 = vld [vmem:[%s176 + $0x90] sm:$0xf]
        %v3858 = vld [vmem:[%s176 + $0x94] sm:$0x3]
        %s3859 = scalar_lea.vmem %s1, 84
        %v3860 = vld [vmem:[%s3859] sm:$0xf]
        %v3871 = vunpack.c.l.b16 %v3849
        %v3872 = vunpack.c.l.b16 %v3850
        %v3873 = vunpack.c.l.b16 %v3851
        %v3874 = vunpack.c.l.b16 %v3852
        %v3875 = vunpack.c.l.b16 %v3853
        %v3876 = vunpack.c.l.b16 %v3854
        %v3877 = vunpack.c.l.b16 %v3855
        %v3878 = vunpack.c.l.b16 %v3856
        %v3879 = vunpack.c.l.b16 %v3857
        %v3880 = vunpack.c.l.b16 %v3858
        %v3881 = vpack.c.b16 %v3872, %v3871
        %v3882 = vpack.c.b16 %v3874, %v3873
        %v3883 = vpack.c.b16 %v3876, %v3875
        %v3884 = vpack.c.b16 %v3878, %v3877
        %v3885 = vpack.c.b16 %v3880, %v3879
        %v3886 = vrot.slane %v3881, 3
        %v3887 = vrot.slane %v3882, 3
        %v3888 = vsel %vm356, %v3886, %v3887
        %v3889 = vrot.slane %v3883, 3
        %v3890 = vsel %vm356, %v3887, %v3889
        %v3891 = vrot.slane %v3884, 3
        %v3892 = vsel %vm356, %v3889, %v3891
        %v3893 = vrot.slane %v3885, 3
        %v3894 = vsel %vm356, %v3891, %v3893
        %v3896 = vsel %vm216, %v3888, 0
        %v3899 = vsel %vm216, %v3890, 0
        %v3902 = vsel %vm216, %v3892, 0
        %v3905 = vsel %vm216, %v3894, 0
        %v3908 = vsel %vm216, %v3893, 0
        %v3911 = vsel %vm232, %v3860, 0
        %3913 = vmatprep.subr.bf16.mxu0 0
        %3914 = vmatpush1.bf16.msra.mxu0 0
        %3915 = vmatprep.subr.bf16.mxu0 0
        %3916 = vmatpush1.bf16.msra.mxu0 0
        %3917 = vmatprep.subr.bf16.mxu0 0
        %3918 = vmatpush1.bf16.msra.mxu0 0
        %3919 = vmatprep.subr.bf16.mxu0 0
        %3920 = vmatpush1.bf16.msra.mxu0 0
        %3921 = vmatprep.subr.bf16.mxu0 0
        %3922 = vmatpush1.bf16.msra.mxu0 0
        %3923 = vmatprep.subr.bf16.mxu0 0
        %3924 = vmatpush1.bf16.msra.mxu0 0
        %3925 = vmatprep.subr.bf16.mxu0 0
        %3926 = vmatpush1.bf16.msra.mxu0 0
        %3927 = vmatprep.subr.bf16.mxu0 0
        %3928 = vmatpush1.bf16.msra.mxu0 %v3911
        %3929 = vmatprep.subr.bf16.mxu0 0
        %3930 = vmatpush2.bf16.msra.mxu0 0
        %3931 = vmatprep.subr.bf16.mxu0 0
        %3932 = vmatpush2.bf16.msra.mxu0 0
        %3933 = vmatprep.subr.bf16.mxu0 0
        %3934 = vmatpush2.bf16.msra.mxu0 0
        %3935 = vmatprep.subr.bf16.mxu0 0
        %3936 = vmatpush2.bf16.msra.mxu0 0
        %3937 = vmatprep.subr.bf16.mxu0 0
        %3938 = vmatpush2.bf16.msra.mxu0 0
        %3939 = vmatprep.subr.bf16.mxu0 0
        %3940 = vmatpush2.bf16.msra.mxu0 0
        %3941 = vmatprep.subr.bf16.mxu0 0
        %3942 = vmatpush2.bf16.msra.mxu0 0
        %3943 = vmatprep.subr.bf16.mxu0 0
        %3944 = vmatpush2.bf16.msra.mxu0 0
        %3945 = vmatprep.mubr.bf16.mxu0 0
        %3946 = vmatmul.mubr.bf16.gmra.mxu0 %v3896
        %v3947 = vpop.f32.mrf.mxu0
        %v3948 = vadd.f32 0.0, %v3947
        %v3949 = vpop.f32.mrf.mxu0
        %v3950 = vpop.f32.mrf.mxu0
        %v3951 = vadd.f32 0.0, %v3950
        %v3952 = vpop.f32.mrf.mxu0
        %3953 = vmatprep.mubr.bf16.mxu0 0
        %3954 = vmatmul.mubr.bf16.gmra.mxu0 %v3899
        %v3955 = vpop.f32.mrf.mxu0
        %v3956 = vadd.f32 0.0, %v3955
        %v3957 = vpop.f32.mrf.mxu0
        %v3958 = vpop.f32.mrf.mxu0
        %v3959 = vadd.f32 0.0, %v3958
        %v3960 = vpop.f32.mrf.mxu0
        %3961 = vmatprep.mubr.bf16.mxu0 0
        %3962 = vmatmul.mubr.bf16.gmra.mxu0 %v3902
        %v3963 = vpop.f32.mrf.mxu0
        %v3964 = vadd.f32 0.0, %v3963
        %v3965 = vpop.f32.mrf.mxu0
        %v3966 = vpop.f32.mrf.mxu0
        %v3967 = vadd.f32 0.0, %v3966
        %v3968 = vpop.f32.mrf.mxu0
        %3969 = vmatprep.mubr.bf16.mxu0 0
        %3970 = vmatmul.mubr.bf16.gmra.mxu0 %v3905
        %v3971 = vpop.f32.mrf.mxu0
        %v3972 = vadd.f32 0.0, %v3971
        %v3973 = vpop.f32.mrf.mxu0
        %v3974 = vpop.f32.mrf.mxu0
        %v3975 = vadd.f32 0.0, %v3974
        %v3976 = vpop.f32.mrf.mxu0
        %3977 = vmatprep.mubr.bf16.mxu0 0
        %3978 = vmatmul.mubr.bf16.gmra.mxu0 %v3908
        %v3979 = vpop.f32.mrf.mxu0
        %v3980 = vadd.f32 0.0, %v3979
        %v3981 = vpop.f32.mrf.mxu0
        %v3982 = vpop.f32.mrf.mxu0
        %v3983 = vpop.f32.mrf.mxu0
        %3984 = vdwg.mxu0
        %v3985 = vld [vmem:[%s181] sm:$0xff]
        %v3986 = vld [vmem:[%s181 + $0x8] sm:$0xff]
        %v3987 = vld [vmem:[%s181 + $0x10] sm:$0xff]
        %v3988 = vld [vmem:[%s181 + $0x18] sm:$0xff]
        %v3989 = vld [vmem:[%s181 + $0x20] sm:$0xff]
        %v3990 = vld [vmem:[%s181 + $0x28] sm:$0xff]
        %v3991 = vld [vmem:[%s181 + $0x30] sm:$0xff]
        %v3992 = vld [vmem:[%s181 + $0x38] sm:$0xff]
        %v3993 = vld [vmem:[%s181 + $0x40] sm:$0x3f]
        %v3994 = vadd.f32 %v3985, %v3948
        %v3995 = vadd.f32 %v3986, %v3951
        %v3996 = vadd.f32 %v3987, %v3956
        %v3997 = vadd.f32 %v3988, %v3959
        %v3998 = vadd.f32 %v3989, %v3964
        %v3999 = vadd.f32 %v3990, %v3967
        %v4000 = vadd.f32 %v3991, %v3972
        %v4001 = vadd.f32 %v3992, %v3975
        %v4002 = vadd.f32 %v3993, %v3980
        %4003 = vst.msk [vmem:[%s181] sm:$0xff] %vm308, %v3994
        %4004 = vst.msk [vmem:[%s181 + $0x8] sm:$0xff] %vm308, %v3995
        %4005 = vst.msk [vmem:[%s181 + $0x10] sm:$0xff] %vm308, %v3996
        %4006 = vst.msk [vmem:[%s181 + $0x18] sm:$0xff] %vm308, %v3997
        %4007 = vst.msk [vmem:[%s181 + $0x20] sm:$0xff] %vm308, %v3998
        %4008 = vst.msk [vmem:[%s181 + $0x28] sm:$0xff] %vm308, %v3999
        %4009 = vst.msk [vmem:[%s181 + $0x30] sm:$0xff] %vm308, %v4000
        %4010 = vst.msk [vmem:[%s181 + $0x38] sm:$0xff] %vm308, %v4001
        %4011 = vst.msk [vmem:[%s181 + $0x40] sm:$0x3f] %vm317, %v4002
        %v4012 = vld [vmem:[%s176 + $0xa8] sm:$0xc]
        %v4013 = vld [vmem:[%s176 + $0xac] sm:$0xf]
        %v4014 = vld [vmem:[%s176 + $0xb0] sm:$0xf]
        %v4015 = vld [vmem:[%s176 + $0xb4] sm:$0xf]
        %v4016 = vld [vmem:[%s176 + $0xb8] sm:$0xf]
        %v4017 = vld [vmem:[%s176 + $0xbc] sm:$0xf]
        %v4018 = vld [vmem:[%s176 + $0xc0] sm:$0xf]
        %v4019 = vld [vmem:[%s176 + $0xc4] sm:$0xf]
        %v4020 = vld [vmem:[%s176 + $0xc8] sm:$0xf]
        %v4021 = vld [vmem:[%s176 + $0xcc] sm:$0x1]
        %s4022 = scalar_lea.vmem %s1, 88
        %v4023 = vld [vmem:[%s4022] sm:$0xf]
        %v4034 = vunpack.c.l.b16 %v4012
        %v4035 = vunpack.c.l.b16 %v4013
        %v4036 = vunpack.c.l.b16 %v4014
        %v4037 = vunpack.c.l.b16 %v4015
        %v4038 = vunpack.c.l.b16 %v4016
        %v4039 = vunpack.c.l.b16 %v4017
        %v4040 = vunpack.c.l.b16 %v4018
        %v4041 = vunpack.c.l.b16 %v4019
        %v4042 = vunpack.c.l.b16 %v4020
        %v4043 = vunpack.c.l.b16 %v4021
        %v4044 = vpack.c.b16 %v4035, %v4034
        %v4045 = vpack.c.b16 %v4037, %v4036
        %v4046 = vpack.c.b16 %v4039, %v4038
        %v4047 = vpack.c.b16 %v4041, %v4040
        %v4048 = vpack.c.b16 %v4043, %v4042
        %v4049 = vrot.slane %v4044, 2
        %v4050 = vrot.slane %v4045, 2
        %v4051 = vsel %vm1421, %v4049, %v4050
        %v4052 = vrot.slane %v4046, 2
        %v4053 = vsel %vm1421, %v4050, %v4052
        %v4054 = vrot.slane %v4047, 2
        %v4055 = vsel %vm1421, %v4052, %v4054
        %v4056 = vrot.slane %v4048, 2
        %v4057 = vsel %vm1421, %v4054, %v4056
        %v4059 = vsel %vm216, %v4051, 0
        %v4062 = vsel %vm216, %v4053, 0
        %v4065 = vsel %vm216, %v4055, 0
        %v4068 = vsel %vm216, %v4057, 0
        %v4071 = vsel %vm216, %v4056, 0
        %v4074 = vsel %vm232, %v4023, 0
        %4076 = vmatprep.subr.bf16.mxu0 0
        %4077 = vmatpush1.bf16.msra.mxu0 0
        %4078 = vmatprep.subr.bf16.mxu0 0
        %4079 = vmatpush1.bf16.msra.mxu0 0
        %4080 = vmatprep.subr.bf16.mxu0 0
        %4081 = vmatpush1.bf16.msra.mxu0 0
        %4082 = vmatprep.subr.bf16.mxu0 0
        %4083 = vmatpush1.bf16.msra.mxu0 0
        %4084 = vmatprep.subr.bf16.mxu0 0
        %4085 = vmatpush1.bf16.msra.mxu0 0
        %4086 = vmatprep.subr.bf16.mxu0 0
        %4087 = vmatpush1.bf16.msra.mxu0 0
        %4088 = vmatprep.subr.bf16.mxu0 0
        %4089 = vmatpush1.bf16.msra.mxu0 0
        %4090 = vmatprep.subr.bf16.mxu0 0
        %4091 = vmatpush1.bf16.msra.mxu0 %v4074
        %4092 = vmatprep.subr.bf16.mxu0 0
        %4093 = vmatpush2.bf16.msra.mxu0 0
        %4094 = vmatprep.subr.bf16.mxu0 0
        %4095 = vmatpush2.bf16.msra.mxu0 0
        %4096 = vmatprep.subr.bf16.mxu0 0
        %4097 = vmatpush2.bf16.msra.mxu0 0
        %4098 = vmatprep.subr.bf16.mxu0 0
        %4099 = vmatpush2.bf16.msra.mxu0 0
        %4100 = vmatprep.subr.bf16.mxu0 0
        %4101 = vmatpush2.bf16.msra.mxu0 0
        %4102 = vmatprep.subr.bf16.mxu0 0
        %4103 = vmatpush2.bf16.msra.mxu0 0
        %4104 = vmatprep.subr.bf16.mxu0 0
        %4105 = vmatpush2.bf16.msra.mxu0 0
        %4106 = vmatprep.subr.bf16.mxu0 0
        %4107 = vmatpush2.bf16.msra.mxu0 0
        %4108 = vmatprep.mubr.bf16.mxu0 0
        %4109 = vmatmul.mubr.bf16.gmra.mxu0 %v4059
        %v4110 = vpop.f32.mrf.mxu0
        %v4111 = vadd.f32 0.0, %v4110
        %v4112 = vpop.f32.mrf.mxu0
        %v4113 = vpop.f32.mrf.mxu0
        %v4114 = vadd.f32 0.0, %v4113
        %v4115 = vpop.f32.mrf.mxu0
        %4116 = vmatprep.mubr.bf16.mxu0 0
        %4117 = vmatmul.mubr.bf16.gmra.mxu0 %v4062
        %v4118 = vpop.f32.mrf.mxu0
        %v4119 = vadd.f32 0.0, %v4118
        %v4120 = vpop.f32.mrf.mxu0
        %v4121 = vpop.f32.mrf.mxu0
        %v4122 = vadd.f32 0.0, %v4121
        %v4123 = vpop.f32.mrf.mxu0
        %4124 = vmatprep.mubr.bf16.mxu0 0
        %4125 = vmatmul.mubr.bf16.gmra.mxu0 %v4065
        %v4126 = vpop.f32.mrf.mxu0
        %v4127 = vadd.f32 0.0, %v4126
        %v4128 = vpop.f32.mrf.mxu0
        %v4129 = vpop.f32.mrf.mxu0
        %v4130 = vadd.f32 0.0, %v4129
        %v4131 = vpop.f32.mrf.mxu0
        %4132 = vmatprep.mubr.bf16.mxu0 0
        %4133 = vmatmul.mubr.bf16.gmra.mxu0 %v4068
        %v4134 = vpop.f32.mrf.mxu0
        %v4135 = vadd.f32 0.0, %v4134
        %v4136 = vpop.f32.mrf.mxu0
        %v4137 = vpop.f32.mrf.mxu0
        %v4138 = vadd.f32 0.0, %v4137
        %v4139 = vpop.f32.mrf.mxu0
        %4140 = vmatprep.mubr.bf16.mxu0 0
        %4141 = vmatmul.mubr.bf16.gmra.mxu0 %v4071
        %v4142 = vpop.f32.mrf.mxu0
        %v4143 = vadd.f32 0.0, %v4142
        %v4144 = vpop.f32.mrf.mxu0
        %v4145 = vpop.f32.mrf.mxu0
        %v4146 = vpop.f32.mrf.mxu0
        %4147 = vdwg.mxu0
        %v4148 = vld [vmem:[%s181] sm:$0xff]
        %v4149 = vld [vmem:[%s181 + $0x8] sm:$0xff]
        %v4150 = vld [vmem:[%s181 + $0x10] sm:$0xff]
        %v4151 = vld [vmem:[%s181 + $0x18] sm:$0xff]
        %v4152 = vld [vmem:[%s181 + $0x20] sm:$0xff]
        %v4153 = vld [vmem:[%s181 + $0x28] sm:$0xff]
        %v4154 = vld [vmem:[%s181 + $0x30] sm:$0xff]
        %v4155 = vld [vmem:[%s181 + $0x38] sm:$0xff]
        %v4156 = vld [vmem:[%s181 + $0x40] sm:$0x3f]
        %v4157 = vadd.f32 %v4148, %v4111
        %v4158 = vadd.f32 %v4149, %v4114
        %v4159 = vadd.f32 %v4150, %v4119
        %v4160 = vadd.f32 %v4151, %v4122
        %v4161 = vadd.f32 %v4152, %v4127
        %v4162 = vadd.f32 %v4153, %v4130
        %v4163 = vadd.f32 %v4154, %v4135
        %v4164 = vadd.f32 %v4155, %v4138
        %v4165 = vadd.f32 %v4156, %v4143
        %4166 = vst.msk [vmem:[%s181] sm:$0xff] %vm308, %v4157
        %4167 = vst.msk [vmem:[%s181 + $0x8] sm:$0xff] %vm308, %v4158
        %4168 = vst.msk [vmem:[%s181 + $0x10] sm:$0xff] %vm308, %v4159
        %4169 = vst.msk [vmem:[%s181 + $0x18] sm:$0xff] %vm308, %v4160
        %4170 = vst.msk [vmem:[%s181 + $0x20] sm:$0xff] %vm308, %v4161
        %4171 = vst.msk [vmem:[%s181 + $0x28] sm:$0xff] %vm308, %v4162
        %4172 = vst.msk [vmem:[%s181 + $0x30] sm:$0xff] %vm308, %v4163
        %4173 = vst.msk [vmem:[%s181 + $0x38] sm:$0xff] %vm308, %v4164
        %4174 = vst.msk [vmem:[%s181 + $0x40] sm:$0x3f] %vm317, %v4165
        %v4175 = vld [vmem:[%s176 + $0x70] sm:$0x8]
        %v4176 = vld [vmem:[%s176 + $0x74] sm:$0xf]
        %v4177 = vld [vmem:[%s176 + $0x78] sm:$0xf]
        %v4178 = vld [vmem:[%s176 + $0x7c] sm:$0xf]
        %v4179 = vld [vmem:[%s176 + $0x80] sm:$0xf]
        %v4180 = vld [vmem:[%s176 + $0x84] sm:$0xf]
        %v4181 = vld [vmem:[%s176 + $0x88] sm:$0xf]
        %v4182 = vld [vmem:[%s176 + $0x8c] sm:$0xf]
        %v4183 = vld [vmem:[%s176 + $0x90] sm:$0xf]
        %v4184 = vld [vmem:[%s176 + $0x94] sm:$0x7]
        %s4185 = scalar_lea.vmem %s1, 92
        %v4186 = vld [vmem:[%s4185] sm:$0xf]
        %v4197 = vunpack.c.l.b16 %v4175
        %v4198 = vunpack.c.l.b16 %v4176
        %v4199 = vunpack.c.l.b16 %v4177
        %v4200 = vunpack.c.l.b16 %v4178
        %v4201 = vunpack.c.l.b16 %v4179
        %v4202 = vunpack.c.l.b16 %v4180
        %v4203 = vunpack.c.l.b16 %v4181
        %v4204 = vunpack.c.l.b16 %v4182
        %v4205 = vunpack.c.l.b16 %v4183
        %v4206 = vunpack.c.l.b16 %v4184
        %v4207 = vpack.c.b16 %v4198, %v4197
        %v4208 = vpack.c.b16 %v4200, %v4199
        %v4209 = vpack.c.b16 %v4202, %v4201
        %v4210 = vpack.c.b16 %v4204, %v4203
        %v4211 = vpack.c.b16 %v4206, %v4205
        %v4213 = vshrl.u32 %v4207, 16
        %v4215 = vrot.slane %v4213, 3
        %v4216 = vshll.u32 %v4207, 16
        %v4218 = vrot.slane %v4216, 4
        %v4219 = vor.u32 %v4215, %v4218
        %v4221 = vshrl.u32 %v4208, 16
        %v4223 = vrot.slane %v4221, 3
        %v4224 = vshll.u32 %v4208, 16
        %v4226 = vrot.slane %v4224, 4
        %v4227 = vor.u32 %v4223, %v4226
        %v4228 = vsel %vm711, %v4219, %v4227
        %v4230 = vshrl.u32 %v4209, 16
        %v4232 = vrot.slane %v4230, 3
        %v4233 = vshll.u32 %v4209, 16
        %v4235 = vrot.slane %v4233, 4
        %v4236 = vor.u32 %v4232, %v4235
        %v4237 = vsel %vm711, %v4227, %v4236
        %v4239 = vshrl.u32 %v4210, 16
        %v4241 = vrot.slane %v4239, 3
        %v4242 = vshll.u32 %v4210, 16
        %v4244 = vrot.slane %v4242, 4
        %v4245 = vor.u32 %v4241, %v4244
        %v4246 = vsel %vm711, %v4236, %v4245
        %v4248 = vshrl.u32 %v4211, 16
        %v4250 = vrot.slane %v4248, 3
        %v4251 = vshll.u32 %v4211, 16
        %v4253 = vrot.slane %v4251, 4
        %v4254 = vor.u32 %v4250, %v4253
        %v4255 = vsel %vm711, %v4245, %v4254
        %v4257 = vsel %vm216, %v4228, 0
        %v4260 = vsel %vm216, %v4237, 0
        %v4263 = vsel %vm216, %v4246, 0
        %v4266 = vsel %vm216, %v4255, 0
        %v4269 = vsel %vm216, %v4254, 0
        %v4272 = vsel %vm232, %v4186, 0
        %4274 = vmatprep.subr.bf16.mxu0 0
        %4275 = vmatpush1.bf16.msra.mxu0 0
        %4276 = vmatprep.subr.bf16.mxu0 0
        %4277 = vmatpush1.bf16.msra.mxu0 0
        %4278 = vmatprep.subr.bf16.mxu0 0
        %4279 = vmatpush1.bf16.msra.mxu0 0
        %4280 = vmatprep.subr.bf16.mxu0 0
        %4281 = vmatpush1.bf16.msra.mxu0 0
        %4282 = vmatprep.subr.bf16.mxu0 0
        %4283 = vmatpush1.bf16.msra.mxu0 0
        %4284 = vmatprep.subr.bf16.mxu0 0
        %4285 = vmatpush1.bf16.msra.mxu0 0
        %4286 = vmatprep.subr.bf16.mxu0 0
        %4287 = vmatpush1.bf16.msra.mxu0 0
        %4288 = vmatprep.subr.bf16.mxu0 0
        %4289 = vmatpush1.bf16.msra.mxu0 %v4272
        %4290 = vmatprep.subr.bf16.mxu0 0
        %4291 = vmatpush2.bf16.msra.mxu0 0
        %4292 = vmatprep.subr.bf16.mxu0 0
        %4293 = vmatpush2.bf16.msra.mxu0 0
        %4294 = vmatprep.subr.bf16.mxu0 0
        %4295 = vmatpush2.bf16.msra.mxu0 0
        %4296 = vmatprep.subr.bf16.mxu0 0
        %4297 = vmatpush2.bf16.msra.mxu0 0
        %4298 = vmatprep.subr.bf16.mxu0 0
        %4299 = vmatpush2.bf16.msra.mxu0 0
        %4300 = vmatprep.subr.bf16.mxu0 0
        %4301 = vmatpush2.bf16.msra.mxu0 0
        %4302 = vmatprep.subr.bf16.mxu0 0
        %4303 = vmatpush2.bf16.msra.mxu0 0
        %4304 = vmatprep.subr.bf16.mxu0 0
        %4305 = vmatpush2.bf16.msra.mxu0 0
        %4306 = vmatprep.mubr.bf16.mxu0 0
        %4307 = vmatmul.mubr.bf16.gmra.mxu0 %v4257
        %v4308 = vpop.f32.mrf.mxu0
        %v4309 = vadd.f32 0.0, %v4308
        %v4310 = vpop.f32.mrf.mxu0
        %v4311 = vpop.f32.mrf.mxu0
        %v4312 = vadd.f32 0.0, %v4311
        %v4313 = vpop.f32.mrf.mxu0
        %4314 = vmatprep.mubr.bf16.mxu0 0
        %4315 = vmatmul.mubr.bf16.gmra.mxu0 %v4260
        %v4316 = vpop.f32.mrf.mxu0
        %v4317 = vadd.f32 0.0, %v4316
        %v4318 = vpop.f32.mrf.mxu0
        %v4319 = vpop.f32.mrf.mxu0
        %v4320 = vadd.f32 0.0, %v4319
        %v4321 = vpop.f32.mrf.mxu0
        %4322 = vmatprep.mubr.bf16.mxu0 0
        %4323 = vmatmul.mubr.bf16.gmra.mxu0 %v4263
        %v4324 = vpop.f32.mrf.mxu0
        %v4325 = vadd.f32 0.0, %v4324
        %v4326 = vpop.f32.mrf.mxu0
        %v4327 = vpop.f32.mrf.mxu0
        %v4328 = vadd.f32 0.0, %v4327
        %v4329 = vpop.f32.mrf.mxu0
        %4330 = vmatprep.mubr.bf16.mxu0 0
        %4331 = vmatmul.mubr.bf16.gmra.mxu0 %v4266
        %v4332 = vpop.f32.mrf.mxu0
        %v4333 = vadd.f32 0.0, %v4332
        %v4334 = vpop.f32.mrf.mxu0
        %v4335 = vpop.f32.mrf.mxu0
        %v4336 = vadd.f32 0.0, %v4335
        %v4337 = vpop.f32.mrf.mxu0
        %4338 = vmatprep.mubr.bf16.mxu0 0
        %4339 = vmatmul.mubr.bf16.gmra.mxu0 %v4269
        %v4340 = vpop.f32.mrf.mxu0
        %v4341 = vadd.f32 0.0, %v4340
        %v4342 = vpop.f32.mrf.mxu0
        %v4343 = vpop.f32.mrf.mxu0
        %v4344 = vpop.f32.mrf.mxu0
        %4345 = vdwg.mxu0
        %v4346 = vld [vmem:[%s181] sm:$0xff]
        %v4347 = vld [vmem:[%s181 + $0x8] sm:$0xff]
        %v4348 = vld [vmem:[%s181 + $0x10] sm:$0xff]
        %v4349 = vld [vmem:[%s181 + $0x18] sm:$0xff]
        %v4350 = vld [vmem:[%s181 + $0x20] sm:$0xff]
        %v4351 = vld [vmem:[%s181 + $0x28] sm:$0xff]
        %v4352 = vld [vmem:[%s181 + $0x30] sm:$0xff]
        %v4353 = vld [vmem:[%s181 + $0x38] sm:$0xff]
        %v4354 = vld [vmem:[%s181 + $0x40] sm:$0x3f]
        %v4355 = vadd.f32 %v4346, %v4309
        %v4356 = vadd.f32 %v4347, %v4312
        %v4357 = vadd.f32 %v4348, %v4317
        %v4358 = vadd.f32 %v4349, %v4320
        %v4359 = vadd.f32 %v4350, %v4325
        %v4360 = vadd.f32 %v4351, %v4328
        %v4361 = vadd.f32 %v4352, %v4333
        %v4362 = vadd.f32 %v4353, %v4336
        %v4363 = vadd.f32 %v4354, %v4341
        %4364 = vst.msk [vmem:[%s181] sm:$0xff] %vm308, %v4355
        %4365 = vst.msk [vmem:[%s181 + $0x8] sm:$0xff] %vm308, %v4356
        %4366 = vst.msk [vmem:[%s181 + $0x10] sm:$0xff] %vm308, %v4357
        %4367 = vst.msk [vmem:[%s181 + $0x18] sm:$0xff] %vm308, %v4358
        %4368 = vst.msk [vmem:[%s181 + $0x20] sm:$0xff] %vm308, %v4359
        %4369 = vst.msk [vmem:[%s181 + $0x28] sm:$0xff] %vm308, %v4360
        %4370 = vst.msk [vmem:[%s181 + $0x30] sm:$0xff] %vm308, %v4361
        %4371 = vst.msk [vmem:[%s181 + $0x38] sm:$0xff] %vm308, %v4362
        %4372 = vst.msk [vmem:[%s181 + $0x40] sm:$0x3f] %vm317, %v4363
        %v4373 = vld [vmem:[%s176 + $0xa8] sm:$0xc]
        %v4374 = vld [vmem:[%s176 + $0xac] sm:$0xf]
        %v4375 = vld [vmem:[%s176 + $0xb0] sm:$0xf]
        %v4376 = vld [vmem:[%s176 + $0xb4] sm:$0xf]
        %v4377 = vld [vmem:[%s176 + $0xb8] sm:$0xf]
        %v4378 = vld [vmem:[%s176 + $0xbc] sm:$0xf]
        %v4379 = vld [vmem:[%s176 + $0xc0] sm:$0xf]
        %v4380 = vld [vmem:[%s176 + $0xc4] sm:$0xf]
        %v4381 = vld [vmem:[%s176 + $0xc8] sm:$0xf]
        %v4382 = vld [vmem:[%s176 + $0xcc] sm:$0x3]
        %s4383 = scalar_lea.vmem %s1, 96
        %v4384 = vld [vmem:[%s4383] sm:$0xf]
        %v4395 = vunpack.c.l.b16 %v4373
        %v4396 = vunpack.c.l.b16 %v4374
        %v4397 = vunpack.c.l.b16 %v4375
        %v4398 = vunpack.c.l.b16 %v4376
        %v4399 = vunpack.c.l.b16 %v4377
        %v4400 = vunpack.c.l.b16 %v4378
        %v4401 = vunpack.c.l.b16 %v4379
        %v4402 = vunpack.c.l.b16 %v4380
        %v4403 = vunpack.c.l.b16 %v4381
        %v4404 = vunpack.c.l.b16 %v4382
        %v4405 = vpack.c.b16 %v4396, %v4395
        %v4406 = vpack.c.b16 %v4398, %v4397
        %v4407 = vpack.c.b16 %v4400, %v4399
        %v4408 = vpack.c.b16 %v4402, %v4401
        %v4409 = vpack.c.b16 %v4404, %v4403
        %v4411 = vshrl.u32 %v4405, 16
        %v4413 = vrot.slane %v4411, 2
        %v4414 = vshll.u32 %v4405, 16
        %v4416 = vrot.slane %v4414, 3
        %v4417 = vor.u32 %v4413, %v4416
        %v4419 = vshrl.u32 %v4406, 16
        %v4421 = vrot.slane %v4419, 2
        %v4422 = vshll.u32 %v4406, 16
        %v4424 = vrot.slane %v4422, 3
        %v4425 = vor.u32 %v4421, %v4424
        %v4426 = vsel %vm1745, %v4417, %v4425
        %v4428 = vshrl.u32 %v4407, 16
        %v4430 = vrot.slane %v4428, 2
        %v4431 = vshll.u32 %v4407, 16
        %v4433 = vrot.slane %v4431, 3
        %v4434 = vor.u32 %v4430, %v4433
        %v4435 = vsel %vm1745, %v4425, %v4434
        %v4437 = vshrl.u32 %v4408, 16
        %v4439 = vrot.slane %v4437, 2
        %v4440 = vshll.u32 %v4408, 16
        %v4442 = vrot.slane %v4440, 3
        %v4443 = vor.u32 %v4439, %v4442
        %v4444 = vsel %vm1745, %v4434, %v4443
        %v4446 = vshrl.u32 %v4409, 16
        %v4448 = vrot.slane %v4446, 2
        %v4449 = vshll.u32 %v4409, 16
        %v4451 = vrot.slane %v4449, 3
        %v4452 = vor.u32 %v4448, %v4451
        %v4453 = vsel %vm1745, %v4443, %v4452
        %v4455 = vsel %vm216, %v4426, 0
        %v4458 = vsel %vm216, %v4435, 0
        %v4461 = vsel %vm216, %v4444, 0
        %v4464 = vsel %vm216, %v4453, 0
        %v4467 = vsel %vm216, %v4452, 0
        %v4470 = vsel %vm232, %v4384, 0
        %4472 = vmatprep.subr.bf16.mxu0 0
        %4473 = vmatpush1.bf16.msra.mxu0 0
        %4474 = vmatprep.subr.bf16.mxu0 0
        %4475 = vmatpush1.bf16.msra.mxu0 0
        %4476 = vmatprep.subr.bf16.mxu0 0
        %4477 = vmatpush1.bf16.msra.mxu0 0
        %4478 = vmatprep.subr.bf16.mxu0 0
        %4479 = vmatpush1.bf16.msra.mxu0 0
        %4480 = vmatprep.subr.bf16.mxu0 0
        %4481 = vmatpush1.bf16.msra.mxu0 0
        %4482 = vmatprep.subr.bf16.mxu0 0
        %4483 = vmatpush1.bf16.msra.mxu0 0
        %4484 = vmatprep.subr.bf16.mxu0 0
        %4485 = vmatpush1.bf16.msra.mxu0 0
        %4486 = vmatprep.subr.bf16.mxu0 0
        %4487 = vmatpush1.bf16.msra.mxu0 %v4470
        %4488 = vmatprep.subr.bf16.mxu0 0
        %4489 = vmatpush2.bf16.msra.mxu0 0
        %4490 = vmatprep.subr.bf16.mxu0 0
        %4491 = vmatpush2.bf16.msra.mxu0 0
        %4492 = vmatprep.subr.bf16.mxu0 0
        %4493 = vmatpush2.bf16.msra.mxu0 0
        %4494 = vmatprep.subr.bf16.mxu0 0
        %4495 = vmatpush2.bf16.msra.mxu0 0
        %4496 = vmatprep.subr.bf16.mxu0 0
        %4497 = vmatpush2.bf16.msra.mxu0 0
        %4498 = vmatprep.subr.bf16.mxu0 0
        %4499 = vmatpush2.bf16.msra.mxu0 0
        %4500 = vmatprep.subr.bf16.mxu0 0
        %4501 = vmatpush2.bf16.msra.mxu0 0
        %4502 = vmatprep.subr.bf16.mxu0 0
        %4503 = vmatpush2.bf16.msra.mxu0 0
        %4504 = vmatprep.mubr.bf16.mxu0 0
        %4505 = vmatmul.mubr.bf16.gmra.mxu0 %v4455
        %v4506 = vpop.f32.mrf.mxu0
        %v4507 = vadd.f32 0.0, %v4506
        %v4508 = vpop.f32.mrf.mxu0
        %v4509 = vpop.f32.mrf.mxu0
        %v4510 = vadd.f32 0.0, %v4509
        %v4511 = vpop.f32.mrf.mxu0
        %4512 = vmatprep.mubr.bf16.mxu0 0
        %4513 = vmatmul.mubr.bf16.gmra.mxu0 %v4458
        %v4514 = vpop.f32.mrf.mxu0
        %v4515 = vadd.f32 0.0, %v4514
        %v4516 = vpop.f32.mrf.mxu0
        %v4517 = vpop.f32.mrf.mxu0
        %v4518 = vadd.f32 0.0, %v4517
        %v4519 = vpop.f32.mrf.mxu0
        %4520 = vmatprep.mubr.bf16.mxu0 0
        %4521 = vmatmul.mubr.bf16.gmra.mxu0 %v4461
        %v4522 = vpop.f32.mrf.mxu0
        %v4523 = vadd.f32 0.0, %v4522
        %v4524 = vpop.f32.mrf.mxu0
        %v4525 = vpop.f32.mrf.mxu0
        %v4526 = vadd.f32 0.0, %v4525
        %v4527 = vpop.f32.mrf.mxu0
        %4528 = vmatprep.mubr.bf16.mxu0 0
        %4529 = vmatmul.mubr.bf16.gmra.mxu0 %v4464
        %v4530 = vpop.f32.mrf.mxu0
        %v4531 = vadd.f32 0.0, %v4530
        %v4532 = vpop.f32.mrf.mxu0
        %v4533 = vpop.f32.mrf.mxu0
        %v4534 = vadd.f32 0.0, %v4533
        %v4535 = vpop.f32.mrf.mxu0
        %4536 = vmatprep.mubr.bf16.mxu0 0
        %4537 = vmatmul.mubr.bf16.gmra.mxu0 %v4467
        %v4538 = vpop.f32.mrf.mxu0
        %v4539 = vadd.f32 0.0, %v4538
        %v4540 = vpop.f32.mrf.mxu0
        %v4541 = vpop.f32.mrf.mxu0
        %v4542 = vpop.f32.mrf.mxu0
        %4543 = vdwg.mxu0
        %v4544 = vld [vmem:[%s181] sm:$0xff]
        %v4545 = vld [vmem:[%s181 + $0x8] sm:$0xff]
        %v4546 = vld [vmem:[%s181 + $0x10] sm:$0xff]
        %v4547 = vld [vmem:[%s181 + $0x18] sm:$0xff]
        %v4548 = vld [vmem:[%s181 + $0x20] sm:$0xff]
        %v4549 = vld [vmem:[%s181 + $0x28] sm:$0xff]
        %v4550 = vld [vmem:[%s181 + $0x30] sm:$0xff]
        %v4551 = vld [vmem:[%s181 + $0x38] sm:$0xff]
        %v4552 = vld [vmem:[%s181 + $0x40] sm:$0x3f]
        %v4553 = vadd.f32 %v4544, %v4507
        %v4554 = vadd.f32 %v4545, %v4510
        %v4555 = vadd.f32 %v4546, %v4515
        %v4556 = vadd.f32 %v4547, %v4518
        %v4557 = vadd.f32 %v4548, %v4523
        %v4558 = vadd.f32 %v4549, %v4526
        %v4559 = vadd.f32 %v4550, %v4531
        %v4560 = vadd.f32 %v4551, %v4534
        %v4561 = vadd.f32 %v4552, %v4539
        %4562 = vst.msk [vmem:[%s181] sm:$0xff] %vm308, %v4553
        %4563 = vst.msk [vmem:[%s181 + $0x8] sm:$0xff] %vm308, %v4554
        %4564 = vst.msk [vmem:[%s181 + $0x10] sm:$0xff] %vm308, %v4555
        %4565 = vst.msk [vmem:[%s181 + $0x18] sm:$0xff] %vm308, %v4556
        %4566 = vst.msk [vmem:[%s181 + $0x20] sm:$0xff] %vm308, %v4557
        %4567 = vst.msk [vmem:[%s181 + $0x28] sm:$0xff] %vm308, %v4558
        %4568 = vst.msk [vmem:[%s181 + $0x30] sm:$0xff] %vm308, %v4559
        %4569 = vst.msk [vmem:[%s181 + $0x38] sm:$0xff] %vm308, %v4560
        %4570 = vst.msk [vmem:[%s181 + $0x40] sm:$0x3f] %vm317, %v4561
        %v4571 = vld [vmem:[%s176 + $0x74] sm:$0xf]
        %v4572 = vld [vmem:[%s176 + $0x78] sm:$0xf]
        %v4573 = vld [vmem:[%s176 + $0x7c] sm:$0xf]
        %v4574 = vld [vmem:[%s176 + $0x80] sm:$0xf]
        %v4575 = vld [vmem:[%s176 + $0x84] sm:$0xf]
        %v4576 = vld [vmem:[%s176 + $0x88] sm:$0xf]
        %v4577 = vld [vmem:[%s176 + $0x8c] sm:$0xf]
        %v4578 = vld [vmem:[%s176 + $0x90] sm:$0xf]
        %v4579 = vld [vmem:[%s176 + $0x94] sm:$0x7]
        %s4580 = scalar_lea.vmem %s1, 100
        %v4581 = vld [vmem:[%s4580] sm:$0xf]
        %v4591 = vunpack.c.l.b16 %v4571
        %v4592 = vunpack.c.l.b16 %v4572
        %v4593 = vunpack.c.l.b16 %v4573
        %v4594 = vunpack.c.l.b16 %v4574
        %v4595 = vunpack.c.l.b16 %v4575
        %v4596 = vunpack.c.l.b16 %v4576
        %v4597 = vunpack.c.l.b16 %v4577
        %v4598 = vunpack.c.l.b16 %v4578
        %v4599 = vunpack.c.l.b16 %v4579
        %v4600 = vpack.c.b16 %v4592, %v4591
        %v4601 = vpack.c.b16 %v4594, %v4593
        %v4602 = vpack.c.b16 %v4596, %v4595
        %v4603 = vpack.c.b16 %v4598, %v4597
        %v4604 = vpack.c.b16 %v4599, %v4599
        %v4606 = vsel %vm216, %v4600, 0
        %v4609 = vsel %vm216, %v4601, 0
        %v4612 = vsel %vm216, %v4602, 0
        %v4615 = vsel %vm216, %v4603, 0
        %v4618 = vsel %vm216, %v4604, 0
        %v4621 = vsel %vm232, %v4581, 0
        %4623 = vmatprep.subr.bf16.mxu0 0
        %4624 = vmatpush1.bf16.msra.mxu0 0
        %4625 = vmatprep.subr.bf16.mxu0 0
        %4626 = vmatpush1.bf16.msra.mxu0 0
        %4627 = vmatprep.subr.bf16.mxu0 0
        %4628 = vmatpush1.bf16.msra.mxu0 0
        %4629 = vmatprep.subr.bf16.mxu0 0
        %4630 = vmatpush1.bf16.msra.mxu0 0
        %4631 = vmatprep.subr.bf16.mxu0 0
        %4632 = vmatpush1.bf16.msra.mxu0 0
        %4633 = vmatprep.subr.bf16.mxu0 0
        %4634 = vmatpush1.bf16.msra.mxu0 0
        %4635 = vmatprep.subr.bf16.mxu0 0
        %4636 = vmatpush1.bf16.msra.mxu0 0
        %4637 = vmatprep.subr.bf16.mxu0 0
        %4638 = vmatpush1.bf16.msra.mxu0 %v4621
        %4639 = vmatprep.subr.bf16.mxu0 0
        %4640 = vmatpush2.bf16.msra.mxu0 0
        %4641 = vmatprep.subr.bf16.mxu0 0
        %4642 = vmatpush2.bf16.msra.mxu0 0
        %4643 = vmatprep.subr.bf16.mxu0 0
        %4644 = vmatpush2.bf16.msra.mxu0 0
        %4645 = vmatprep.subr.bf16.mxu0 0
        %4646 = vmatpush2.bf16.msra.mxu0 0
        %4647 = vmatprep.subr.bf16.mxu0 0
        %4648 = vmatpush2.bf16.msra.mxu0 0
        %4649 = vmatprep.subr.bf16.mxu0 0
        %4650 = vmatpush2.bf16.msra.mxu0 0
        %4651 = vmatprep.subr.bf16.mxu0 0
        %4652 = vmatpush2.bf16.msra.mxu0 0
        %4653 = vmatprep.subr.bf16.mxu0 0
        %4654 = vmatpush2.bf16.msra.mxu0 0
        %4655 = vmatprep.mubr.bf16.mxu0 0
        %4656 = vmatmul.mubr.bf16.gmra.mxu0 %v4606
        %v4657 = vpop.f32.mrf.mxu0
        %v4658 = vadd.f32 0.0, %v4657
        %v4659 = vpop.f32.mrf.mxu0
        %v4660 = vpop.f32.mrf.mxu0
        %v4661 = vadd.f32 0.0, %v4660
        %v4662 = vpop.f32.mrf.mxu0
        %4663 = vmatprep.mubr.bf16.mxu0 0
        %4664 = vmatmul.mubr.bf16.gmra.mxu0 %v4609
        %v4665 = vpop.f32.mrf.mxu0
        %v4666 = vadd.f32 0.0, %v4665
        %v4667 = vpop.f32.mrf.mxu0
        %v4668 = vpop.f32.mrf.mxu0
        %v4669 = vadd.f32 0.0, %v4668
        %v4670 = vpop.f32.mrf.mxu0
        %4671 = vmatprep.mubr.bf16.mxu0 0
        %4672 = vmatmul.mubr.bf16.gmra.mxu0 %v4612
        %v4673 = vpop.f32.mrf.mxu0
        %v4674 = vadd.f32 0.0, %v4673
        %v4675 = vpop.f32.mrf.mxu0
        %v4676 = vpop.f32.mrf.mxu0
        %v4677 = vadd.f32 0.0, %v4676
        %v4678 = vpop.f32.mrf.mxu0
        %4679 = vmatprep.mubr.bf16.mxu0 0
        %4680 = vmatmul.mubr.bf16.gmra.mxu0 %v4615
        %v4681 = vpop.f32.mrf.mxu0
        %v4682 = vadd.f32 0.0, %v4681
        %v4683 = vpop.f32.mrf.mxu0
        %v4684 = vpop.f32.mrf.mxu0
        %v4685 = vadd.f32 0.0, %v4684
        %v4686 = vpop.f32.mrf.mxu0
        %4687 = vmatprep.mubr.bf16.mxu0 0
        %4688 = vmatmul.mubr.bf16.gmra.mxu0 %v4618
        %v4689 = vpop.f32.mrf.mxu0
        %v4690 = vadd.f32 0.0, %v4689
        %v4691 = vpop.f32.mrf.mxu0
        %v4692 = vpop.f32.mrf.mxu0
        %v4693 = vpop.f32.mrf.mxu0
        %4694 = vdwg.mxu0
        %v4695 = vld [vmem:[%s181] sm:$0xff]
        %v4696 = vld [vmem:[%s181 + $0x8] sm:$0xff]
        %v4697 = vld [vmem:[%s181 + $0x10] sm:$0xff]
        %v4698 = vld [vmem:[%s181 + $0x18] sm:$0xff]
        %v4699 = vld [vmem:[%s181 + $0x20] sm:$0xff]
        %v4700 = vld [vmem:[%s181 + $0x28] sm:$0xff]
        %v4701 = vld [vmem:[%s181 + $0x30] sm:$0xff]
        %v4702 = vld [vmem:[%s181 + $0x38] sm:$0xff]
        %v4703 = vld [vmem:[%s181 + $0x40] sm:$0x3f]
        %v4704 = vadd.f32 %v4695, %v4658
        %v4705 = vadd.f32 %v4696, %v4661
        %v4706 = vadd.f32 %v4697, %v4666
        %v4707 = vadd.f32 %v4698, %v4669
        %v4708 = vadd.f32 %v4699, %v4674
        %v4709 = vadd.f32 %v4700, %v4677
        %v4710 = vadd.f32 %v4701, %v4682
        %v4711 = vadd.f32 %v4702, %v4685
        %v4712 = vadd.f32 %v4703, %v4690
        %4713 = vst.msk [vmem:[%s181] sm:$0xff] %vm308, %v4704
        %4714 = vst.msk [vmem:[%s181 + $0x8] sm:$0xff] %vm308, %v4705
        %4715 = vst.msk [vmem:[%s181 + $0x10] sm:$0xff] %vm308, %v4706
        %4716 = vst.msk [vmem:[%s181 + $0x18] sm:$0xff] %vm308, %v4707
        %4717 = vst.msk [vmem:[%s181 + $0x20] sm:$0xff] %vm308, %v4708
        %4718 = vst.msk [vmem:[%s181 + $0x28] sm:$0xff] %vm308, %v4709
        %4719 = vst.msk [vmem:[%s181 + $0x30] sm:$0xff] %vm308, %v4710
        %4720 = vst.msk [vmem:[%s181 + $0x38] sm:$0xff] %vm308, %v4711
        %4721 = vst.msk [vmem:[%s181 + $0x40] sm:$0x3f] %vm317, %v4712
        %v4722 = vld [vmem:[%s176 + $0xa8] sm:$0x8]
        %v4723 = vld [vmem:[%s176 + $0xac] sm:$0xf]
        %v4724 = vld [vmem:[%s176 + $0xb0] sm:$0xf]
        %v4725 = vld [vmem:[%s176 + $0xb4] sm:$0xf]
        %v4726 = vld [vmem:[%s176 + $0xb8] sm:$0xf]
        %v4727 = vld [vmem:[%s176 + $0xbc] sm:$0xf]
        %v4728 = vld [vmem:[%s176 + $0xc0] sm:$0xf]
        %v4729 = vld [vmem:[%s176 + $0xc4] sm:$0xf]
        %v4730 = vld [vmem:[%s176 + $0xc8] sm:$0xf]
        %v4731 = vld [vmem:[%s176 + $0xcc] sm:$0x3]
        %s4732 = scalar_lea.vmem %s1, 104
        %v4733 = vld [vmem:[%s4732] sm:$0xf]
        %v4744 = vunpack.c.l.b16 %v4722
        %v4745 = vunpack.c.l.b16 %v4723
        %v4746 = vunpack.c.l.b16 %v4724
        %v4747 = vunpack.c.l.b16 %v4725
        %v4748 = vunpack.c.l.b16 %v4726
        %v4749 = vunpack.c.l.b16 %v4727
        %v4750 = vunpack.c.l.b16 %v4728
        %v4751 = vunpack.c.l.b16 %v4729
        %v4752 = vunpack.c.l.b16 %v4730
        %v4753 = vunpack.c.l.b16 %v4731
        %v4754 = vpack.c.b16 %v4745, %v4744
        %v4755 = vpack.c.b16 %v4747, %v4746
        %v4756 = vpack.c.b16 %v4749, %v4748
        %v4757 = vpack.c.b16 %v4751, %v4750
        %v4758 = vpack.c.b16 %v4753, %v4752
        %v4759 = vrot.slane %v4754, 3
        %v4760 = vrot.slane %v4755, 3
        %v4761 = vsel %vm356, %v4759, %v4760
        %v4762 = vrot.slane %v4756, 3
        %v4763 = vsel %vm356, %v4760, %v4762
        %v4764 = vrot.slane %v4757, 3
        %v4765 = vsel %vm356, %v4762, %v4764
        %v4766 = vrot.slane %v4758, 3
        %v4767 = vsel %vm356, %v4764, %v4766
        %v4769 = vsel %vm216, %v4761, 0
        %v4772 = vsel %vm216, %v4763, 0
        %v4775 = vsel %vm216, %v4765, 0
        %v4778 = vsel %vm216, %v4767, 0
        %v4781 = vsel %vm216, %v4766, 0
        %v4784 = vsel %vm232, %v4733, 0
        %4786 = vmatprep.subr.bf16.mxu0 0
        %4787 = vmatpush1.bf16.msra.mxu0 0
        %4788 = vmatprep.subr.bf16.mxu0 0
        %4789 = vmatpush1.bf16.msra.mxu0 0
        %4790 = vmatprep.subr.bf16.mxu0 0
        %4791 = vmatpush1.bf16.msra.mxu0 0
        %4792 = vmatprep.subr.bf16.mxu0 0
        %4793 = vmatpush1.bf16.msra.mxu0 0
        %4794 = vmatprep.subr.bf16.mxu0 0
        %4795 = vmatpush1.bf16.msra.mxu0 0
        %4796 = vmatprep.subr.bf16.mxu0 0
        %4797 = vmatpush1.bf16.msra.mxu0 0
        %4798 = vmatprep.subr.bf16.mxu0 0
        %4799 = vmatpush1.bf16.msra.mxu0 0
        %4800 = vmatprep.subr.bf16.mxu0 0
        %4801 = vmatpush1.bf16.msra.mxu0 %v4784
        %4802 = vmatprep.subr.bf16.mxu0 0
        %4803 = vmatpush2.bf16.msra.mxu0 0
        %4804 = vmatprep.subr.bf16.mxu0 0
        %4805 = vmatpush2.bf16.msra.mxu0 0
        %4806 = vmatprep.subr.bf16.mxu0 0
        %4807 = vmatpush2.bf16.msra.mxu0 0
        %4808 = vmatprep.subr.bf16.mxu0 0
        %4809 = vmatpush2.bf16.msra.mxu0 0
        %4810 = vmatprep.subr.bf16.mxu0 0
        %4811 = vmatpush2.bf16.msra.mxu0 0
        %4812 = vmatprep.subr.bf16.mxu0 0
        %4813 = vmatpush2.bf16.msra.mxu0 0
        %4814 = vmatprep.subr.bf16.mxu0 0
        %4815 = vmatpush2.bf16.msra.mxu0 0
        %4816 = vmatprep.subr.bf16.mxu0 0
        %4817 = vmatpush2.bf16.msra.mxu0 0
        %4818 = vmatprep.mubr.bf16.mxu0 0
        %4819 = vmatmul.mubr.bf16.gmra.mxu0 %v4769
        %v4820 = vpop.f32.mrf.mxu0
        %v4821 = vadd.f32 0.0, %v4820
        %v4822 = vpop.f32.mrf.mxu0
        %v4823 = vpop.f32.mrf.mxu0
        %v4824 = vadd.f32 0.0, %v4823
        %v4825 = vpop.f32.mrf.mxu0
        %4826 = vmatprep.mubr.bf16.mxu0 0
        %4827 = vmatmul.mubr.bf16.gmra.mxu0 %v4772
        %v4828 = vpop.f32.mrf.mxu0
        %v4829 = vadd.f32 0.0, %v4828
        %v4830 = vpop.f32.mrf.mxu0
        %v4831 = vpop.f32.mrf.mxu0
        %v4832 = vadd.f32 0.0, %v4831
        %v4833 = vpop.f32.mrf.mxu0
        %4834 = vmatprep.mubr.bf16.mxu0 0
        %4835 = vmatmul.mubr.bf16.gmra.mxu0 %v4775
        %v4836 = vpop.f32.mrf.mxu0
        %v4837 = vadd.f32 0.0, %v4836
        %v4838 = vpop.f32.mrf.mxu0
        %v4839 = vpop.f32.mrf.mxu0
        %v4840 = vadd.f32 0.0, %v4839
        %v4841 = vpop.f32.mrf.mxu0
        %4842 = vmatprep.mubr.bf16.mxu0 0
        %4843 = vmatmul.mubr.bf16.gmra.mxu0 %v4778
        %v4844 = vpop.f32.mrf.mxu0
        %v4845 = vadd.f32 0.0, %v4844
        %v4846 = vpop.f32.mrf.mxu0
        %v4847 = vpop.f32.mrf.mxu0
        %v4848 = vadd.f32 0.0, %v4847
        %v4849 = vpop.f32.mrf.mxu0
        %4850 = vmatprep.mubr.bf16.mxu0 0
        %4851 = vmatmul.mubr.bf16.gmra.mxu0 %v4781
        %v4852 = vpop.f32.mrf.mxu0
        %v4853 = vadd.f32 0.0, %v4852
        %v4854 = vpop.f32.mrf.mxu0
        %v4855 = vpop.f32.mrf.mxu0
        %v4856 = vpop.f32.mrf.mxu0
        %4857 = vdwg.mxu0
        %v4858 = vld [vmem:[%s181] sm:$0xff]
        %v4859 = vld [vmem:[%s181 + $0x8] sm:$0xff]
        %v4860 = vld [vmem:[%s181 + $0x10] sm:$0xff]
        %v4861 = vld [vmem:[%s181 + $0x18] sm:$0xff]
        %v4862 = vld [vmem:[%s181 + $0x20] sm:$0xff]
        %v4863 = vld [vmem:[%s181 + $0x28] sm:$0xff]
        %v4864 = vld [vmem:[%s181 + $0x30] sm:$0xff]
        %v4865 = vld [vmem:[%s181 + $0x38] sm:$0xff]
        %v4866 = vld [vmem:[%s181 + $0x40] sm:$0x3f]
        %v4867 = vadd.f32 %v4858, %v4821
        %v4868 = vadd.f32 %v4859, %v4824
        %v4869 = vadd.f32 %v4860, %v4829
        %v4870 = vadd.f32 %v4861, %v4832
        %v4871 = vadd.f32 %v4862, %v4837
        %v4872 = vadd.f32 %v4863, %v4840
        %v4873 = vadd.f32 %v4864, %v4845
        %v4874 = vadd.f32 %v4865, %v4848
        %v4875 = vadd.f32 %v4866, %v4853
        %4876 = vst.msk [vmem:[%s181] sm:$0xff] %vm308, %v4867
        %4877 = vst.msk [vmem:[%s181 + $0x8] sm:$0xff] %vm308, %v4868
        %4878 = vst.msk [vmem:[%s181 + $0x10] sm:$0xff] %vm308, %v4869
        %4879 = vst.msk [vmem:[%s181 + $0x18] sm:$0xff] %vm308, %v4870
        %4880 = vst.msk [vmem:[%s181 + $0x20] sm:$0xff] %vm308, %v4871
        %4881 = vst.msk [vmem:[%s181 + $0x28] sm:$0xff] %vm308, %v4872
        %4882 = vst.msk [vmem:[%s181 + $0x30] sm:$0xff] %vm308, %v4873
        %4883 = vst.msk [vmem:[%s181 + $0x38] sm:$0xff] %vm308, %v4874
        %4884 = vst.msk [vmem:[%s181 + $0x40] sm:$0x3f] %vm317, %v4875
        %v4885 = vld [vmem:[%s176 + $0x74] sm:$0xf]
        %v4886 = vld [vmem:[%s176 + $0x78] sm:$0xf]
        %v4887 = vld [vmem:[%s176 + $0x7c] sm:$0xf]
        %v4888 = vld [vmem:[%s176 + $0x80] sm:$0xf]
        %v4889 = vld [vmem:[%s176 + $0x84] sm:$0xf]
        %v4890 = vld [vmem:[%s176 + $0x88] sm:$0xf]
        %v4891 = vld [vmem:[%s176 + $0x8c] sm:$0xf]
        %v4892 = vld [vmem:[%s176 + $0x90] sm:$0xf]
        %v4893 = vld [vmem:[%s176 + $0x94] sm:$0xf]
        %s4894 = scalar_lea.vmem %s1, 108
        %v4895 = vld [vmem:[%s4894] sm:$0xf]
        %v4905 = vunpack.c.l.b16 %v4885
        %v4906 = vunpack.c.l.b16 %v4886
        %v4907 = vunpack.c.l.b16 %v4887
        %v4908 = vunpack.c.l.b16 %v4888
        %v4909 = vunpack.c.l.b16 %v4889
        %v4910 = vunpack.c.l.b16 %v4890
        %v4911 = vunpack.c.l.b16 %v4891
        %v4912 = vunpack.c.l.b16 %v4892
        %v4913 = vunpack.c.l.b16 %v4893
        %v4914 = vpack.c.b16 %v4906, %v4905
        %v4915 = vpack.c.b16 %v4908, %v4907
        %v4916 = vpack.c.b16 %v4910, %v4909
        %v4917 = vpack.c.b16 %v4912, %v4911
        %v4918 = vpack.c.b16 %v4913, %v4913
        %v4920 = vshrl.u32 %v4914, 16
        %v4922 = vshll.u32 %v4914, 16
        %v4924 = vrot.slane %v4922, 1
        %v4925 = vor.u32 %v4920, %v4924
        %v4927 = vshll.u32 %v4915, 16
        %v4929 = vrot.slane %v4927, 1
        %v4930 = vsel %vm517, %v4925, %v4929
        %v4931 = vshrl.u32 %v4915, 16
        %v4933 = vor.u32 %v4931, %v4929
        %v4935 = vshll.u32 %v4916, 16
        %v4937 = vrot.slane %v4935, 1
        %v4938 = vsel %vm517, %v4933, %v4937
        %v4939 = vshrl.u32 %v4916, 16
        %v4941 = vor.u32 %v4939, %v4937
        %v4943 = vshll.u32 %v4917, 16
        %v4945 = vrot.slane %v4943, 1
        %v4946 = vsel %vm517, %v4941, %v4945
        %v4947 = vshrl.u32 %v4917, 16
        %v4949 = vor.u32 %v4947, %v4945
        %v4951 = vshll.u32 %v4918, 16
        %v4953 = vrot.slane %v4951, 1
        %v4954 = vsel %vm517, %v4949, %v4953
        %v4955 = vshrl.u32 %v4918, 16
        %v4957 = vor.u32 %v4955, %v4953
        %v4959 = vsel %vm216, %v4930, 0
        %v4962 = vsel %vm216, %v4938, 0
        %v4965 = vsel %vm216, %v4946, 0
        %v4968 = vsel %vm216, %v4954, 0
        %v4971 = vsel %vm216, %v4957, 0
        %v4974 = vsel %vm232, %v4895, 0
        %4976 = vmatprep.subr.bf16.mxu0 0
        %4977 = vmatpush1.bf16.msra.mxu0 0
        %4978 = vmatprep.subr.bf16.mxu0 0
        %4979 = vmatpush1.bf16.msra.mxu0 0
        %4980 = vmatprep.subr.bf16.mxu0 0
        %4981 = vmatpush1.bf16.msra.mxu0 0
        %4982 = vmatprep.subr.bf16.mxu0 0
        %4983 = vmatpush1.bf16.msra.mxu0 0
        %4984 = vmatprep.subr.bf16.mxu0 0
        %4985 = vmatpush1.bf16.msra.mxu0 0
        %4986 = vmatprep.subr.bf16.mxu0 0
        %4987 = vmatpush1.bf16.msra.mxu0 0
        %4988 = vmatprep.subr.bf16.mxu0 0
        %4989 = vmatpush1.bf16.msra.mxu0 0
        %4990 = vmatprep.subr.bf16.mxu0 0
        %4991 = vmatpush1.bf16.msra.mxu0 %v4974
        %4992 = vmatprep.subr.bf16.mxu0 0
        %4993 = vmatpush2.bf16.msra.mxu0 0
        %4994 = vmatprep.subr.bf16.mxu0 0
        %4995 = vmatpush2.bf16.msra.mxu0 0
        %4996 = vmatprep.subr.bf16.mxu0 0
        %4997 = vmatpush2.bf16.msra.mxu0 0
        %4998 = vmatprep.subr.bf16.mxu0 0
        %4999 = vmatpush2.bf16.msra.mxu0 0
        %5000 = vmatprep.subr.bf16.mxu0 0
        %5001 = vmatpush2.bf16.msra.mxu0 0
        %5002 = vmatprep.subr.bf16.mxu0 0
        %5003 = vmatpush2.bf16.msra.mxu0 0
        %5004 = vmatprep.subr.bf16.mxu0 0
        %5005 = vmatpush2.bf16.msra.mxu0 0
        %5006 = vmatprep.subr.bf16.mxu0 0
        %5007 = vmatpush2.bf16.msra.mxu0 0
        %5008 = vmatprep.mubr.bf16.mxu0 0
        %5009 = vmatmul.mubr.bf16.gmra.mxu0 %v4959
        %v5010 = vpop.f32.mrf.mxu0
        %v5011 = vadd.f32 0.0, %v5010
        %v5012 = vpop.f32.mrf.mxu0
        %v5013 = vpop.f32.mrf.mxu0
        %v5014 = vadd.f32 0.0, %v5013
        %v5015 = vpop.f32.mrf.mxu0
        %5016 = vmatprep.mubr.bf16.mxu0 0
        %5017 = vmatmul.mubr.bf16.gmra.mxu0 %v4962
        %v5018 = vpop.f32.mrf.mxu0
        %v5019 = vadd.f32 0.0, %v5018
        %v5020 = vpop.f32.mrf.mxu0
        %v5021 = vpop.f32.mrf.mxu0
        %v5022 = vadd.f32 0.0, %v5021
        %v5023 = vpop.f32.mrf.mxu0
        %5024 = vmatprep.mubr.bf16.mxu0 0
        %5025 = vmatmul.mubr.bf16.gmra.mxu0 %v4965
        %v5026 = vpop.f32.mrf.mxu0
        %v5027 = vadd.f32 0.0, %v5026
        %v5028 = vpop.f32.mrf.mxu0
        %v5029 = vpop.f32.mrf.mxu0
        %v5030 = vadd.f32 0.0, %v5029
        %v5031 = vpop.f32.mrf.mxu0
        %5032 = vmatprep.mubr.bf16.mxu0 0
        %5033 = vmatmul.mubr.bf16.gmra.mxu0 %v4968
        %v5034 = vpop.f32.mrf.mxu0
        %v5035 = vadd.f32 0.0, %v5034
        %v5036 = vpop.f32.mrf.mxu0
        %v5037 = vpop.f32.mrf.mxu0
        %v5038 = vadd.f32 0.0, %v5037
        %v5039 = vpop.f32.mrf.mxu0
        %5040 = vmatprep.mubr.bf16.mxu0 0
        %5041 = vmatmul.mubr.bf16.gmra.mxu0 %v4971
        %v5042 = vpop.f32.mrf.mxu0
        %v5043 = vadd.f32 0.0, %v5042
        %v5044 = vpop.f32.mrf.mxu0
        %v5045 = vpop.f32.mrf.mxu0
        %v5046 = vpop.f32.mrf.mxu0
        %5047 = vdwg.mxu0
        %v5048 = vld [vmem:[%s181] sm:$0xff]
        %v5049 = vld [vmem:[%s181 + $0x8] sm:$0xff]
        %v5050 = vld [vmem:[%s181 + $0x10] sm:$0xff]
        %v5051 = vld [vmem:[%s181 + $0x18] sm:$0xff]
        %v5052 = vld [vmem:[%s181 + $0x20] sm:$0xff]
        %v5053 = vld [vmem:[%s181 + $0x28] sm:$0xff]
        %v5054 = vld [vmem:[%s181 + $0x30] sm:$0xff]
        %v5055 = vld [vmem:[%s181 + $0x38] sm:$0xff]
        %v5056 = vld [vmem:[%s181 + $0x40] sm:$0x3f]
        %v5057 = vadd.f32 %v5048, %v5011
        %v5058 = vadd.f32 %v5049, %v5014
        %v5059 = vadd.f32 %v5050, %v5019
        %v5060 = vadd.f32 %v5051, %v5022
        %v5061 = vadd.f32 %v5052, %v5027
        %v5062 = vadd.f32 %v5053, %v5030
        %v5063 = vadd.f32 %v5054, %v5035
        %v5064 = vadd.f32 %v5055, %v5038
        %v5065 = vadd.f32 %v5056, %v5043
        %5066 = vst.msk [vmem:[%s181] sm:$0xff] %vm308, %v5057
        %5067 = vst.msk [vmem:[%s181 + $0x8] sm:$0xff] %vm308, %v5058
        %5068 = vst.msk [vmem:[%s181 + $0x10] sm:$0xff] %vm308, %v5059
        %5069 = vst.msk [vmem:[%s181 + $0x18] sm:$0xff] %vm308, %v5060
        %5070 = vst.msk [vmem:[%s181 + $0x20] sm:$0xff] %vm308, %v5061
        %5071 = vst.msk [vmem:[%s181 + $0x28] sm:$0xff] %vm308, %v5062
        %5072 = vst.msk [vmem:[%s181 + $0x30] sm:$0xff] %vm308, %v5063
        %5073 = vst.msk [vmem:[%s181 + $0x38] sm:$0xff] %vm308, %v5064
        %5074 = vst.msk [vmem:[%s181 + $0x40] sm:$0x3f] %vm317, %v5065
        %v5075 = vld [vmem:[%s176 + $0x8] sm:$0xc]
        %v5076 = vld [vmem:[%s176 + $0xc] sm:$0xf]
        %v5077 = vld [vmem:[%s176 + $0x10] sm:$0xf]
        %v5078 = vld [vmem:[%s176 + $0x14] sm:$0xf]
        %v5079 = vld [vmem:[%s176 + $0x18] sm:$0xf]
        %v5080 = vld [vmem:[%s176 + $0x1c] sm:$0xf]
        %v5081 = vld [vmem:[%s176 + $0x20] sm:$0xf]
        %v5082 = vld [vmem:[%s176 + $0x24] sm:$0xf]
        %v5083 = vld [vmem:[%s176 + $0x28] sm:$0xf]
        %v5084 = vld [vmem:[%s176 + $0x2c] sm:$0x1]
        %s5085 = scalar_lea.vmem %s1, 112
        %v5086 = vld [vmem:[%s5085] sm:$0xf]
        %v5097 = vunpack.c.l.b16 %v5075
        %v5098 = vunpack.c.l.b16 %v5076
        %v5099 = vunpack.c.l.b16 %v5077
        %v5100 = vunpack.c.l.b16 %v5078
        %v5101 = vunpack.c.l.b16 %v5079
        %v5102 = vunpack.c.l.b16 %v5080
        %v5103 = vunpack.c.l.b16 %v5081
        %v5104 = vunpack.c.l.b16 %v5082
        %v5105 = vunpack.c.l.b16 %v5083
        %v5106 = vunpack.c.l.b16 %v5084
        %v5107 = vpack.c.b16 %v5098, %v5097
        %v5108 = vpack.c.b16 %v5100, %v5099
        %v5109 = vpack.c.b16 %v5102, %v5101
        %v5110 = vpack.c.b16 %v5104, %v5103
        %v5111 = vpack.c.b16 %v5106, %v5105
        %v5112 = vrot.slane %v5107, 2
        %v5113 = vrot.slane %v5108, 2
        %v5114 = vsel %vm1421, %v5112, %v5113
        %v5115 = vrot.slane %v5109, 2
        %v5116 = vsel %vm1421, %v5113, %v5115
        %v5117 = vrot.slane %v5110, 2
        %v5118 = vsel %vm1421, %v5115, %v5117
        %v5119 = vrot.slane %v5111, 2
        %v5120 = vsel %vm1421, %v5117, %v5119
        %v5122 = vsel %vm216, %v5114, 0
        %v5125 = vsel %vm216, %v5116, 0
        %v5128 = vsel %vm216, %v5118, 0
        %v5131 = vsel %vm216, %v5120, 0
        %v5134 = vsel %vm216, %v5119, 0
        %v5137 = vsel %vm232, %v5086, 0
        %5139 = vmatprep.subr.bf16.mxu0 0
        %5140 = vmatpush1.bf16.msra.mxu0 0
        %5141 = vmatprep.subr.bf16.mxu0 0
        %5142 = vmatpush1.bf16.msra.mxu0 0
        %5143 = vmatprep.subr.bf16.mxu0 0
        %5144 = vmatpush1.bf16.msra.mxu0 0
        %5145 = vmatprep.subr.bf16.mxu0 0
        %5146 = vmatpush1.bf16.msra.mxu0 0
        %5147 = vmatprep.subr.bf16.mxu0 0
        %5148 = vmatpush1.bf16.msra.mxu0 0
        %5149 = vmatprep.subr.bf16.mxu0 0
        %5150 = vmatpush1.bf16.msra.mxu0 0
        %5151 = vmatprep.subr.bf16.mxu0 0
        %5152 = vmatpush1.bf16.msra.mxu0 0
        %5153 = vmatprep.subr.bf16.mxu0 0
        %5154 = vmatpush1.bf16.msra.mxu0 %v5137
        %5155 = vmatprep.subr.bf16.mxu0 0
        %5156 = vmatpush2.bf16.msra.mxu0 0
        %5157 = vmatprep.subr.bf16.mxu0 0
        %5158 = vmatpush2.bf16.msra.mxu0 0
        %5159 = vmatprep.subr.bf16.mxu0 0
        %5160 = vmatpush2.bf16.msra.mxu0 0
        %5161 = vmatprep.subr.bf16.mxu0 0
        %5162 = vmatpush2.bf16.msra.mxu0 0
        %5163 = vmatprep.subr.bf16.mxu0 0
        %5164 = vmatpush2.bf16.msra.mxu0 0
        %5165 = vmatprep.subr.bf16.mxu0 0
        %5166 = vmatpush2.bf16.msra.mxu0 0
        %5167 = vmatprep.subr.bf16.mxu0 0
        %5168 = vmatpush2.bf16.msra.mxu0 0
        %5169 = vmatprep.subr.bf16.mxu0 0
        %5170 = vmatpush2.bf16.msra.mxu0 0
        %5171 = vmatprep.mubr.bf16.mxu0 0
        %5172 = vmatmul.mubr.bf16.gmra.mxu0 %v5122
        %v5173 = vpop.f32.mrf.mxu0
        %v5174 = vadd.f32 0.0, %v5173
        %v5175 = vpop.f32.mrf.mxu0
        %v5176 = vpop.f32.mrf.mxu0
        %v5177 = vadd.f32 0.0, %v5176
        %v5178 = vpop.f32.mrf.mxu0
        %5179 = vmatprep.mubr.bf16.mxu0 0
        %5180 = vmatmul.mubr.bf16.gmra.mxu0 %v5125
        %v5181 = vpop.f32.mrf.mxu0
        %v5182 = vadd.f32 0.0, %v5181
        %v5183 = vpop.f32.mrf.mxu0
        %v5184 = vpop.f32.mrf.mxu0
        %v5185 = vadd.f32 0.0, %v5184
        %v5186 = vpop.f32.mrf.mxu0
        %5187 = vmatprep.mubr.bf16.mxu0 0
        %5188 = vmatmul.mubr.bf16.gmra.mxu0 %v5128
        %v5189 = vpop.f32.mrf.mxu0
        %v5190 = vadd.f32 0.0, %v5189
        %v5191 = vpop.f32.mrf.mxu0
        %v5192 = vpop.f32.mrf.mxu0
        %v5193 = vadd.f32 0.0, %v5192
        %v5194 = vpop.f32.mrf.mxu0
        %5195 = vmatprep.mubr.bf16.mxu0 0
        %5196 = vmatmul.mubr.bf16.gmra.mxu0 %v5131
        %v5197 = vpop.f32.mrf.mxu0
        %v5198 = vadd.f32 0.0, %v5197
        %v5199 = vpop.f32.mrf.mxu0
        %v5200 = vpop.f32.mrf.mxu0
        %v5201 = vadd.f32 0.0, %v5200
        %v5202 = vpop.f32.mrf.mxu0
        %5203 = vmatprep.mubr.bf16.mxu0 0
        %5204 = vmatmul.mubr.bf16.gmra.mxu0 %v5134
        %v5205 = vpop.f32.mrf.mxu0
        %v5206 = vadd.f32 0.0, %v5205
        %v5207 = vpop.f32.mrf.mxu0
        %v5208 = vpop.f32.mrf.mxu0
        %v5209 = vpop.f32.mrf.mxu0
        %5210 = vdwg.mxu0
        %v5211 = vld [vmem:[%s181] sm:$0xff]
        %v5212 = vld [vmem:[%s181 + $0x8] sm:$0xff]
        %v5213 = vld [vmem:[%s181 + $0x10] sm:$0xff]
        %v5214 = vld [vmem:[%s181 + $0x18] sm:$0xff]
        %v5215 = vld [vmem:[%s181 + $0x20] sm:$0xff]
        %v5216 = vld [vmem:[%s181 + $0x28] sm:$0xff]
        %v5217 = vld [vmem:[%s181 + $0x30] sm:$0xff]
        %v5218 = vld [vmem:[%s181 + $0x38] sm:$0xff]
        %v5219 = vld [vmem:[%s181 + $0x40] sm:$0x3f]
        %v5220 = vadd.f32 %v5211, %v5174
        %v5221 = vadd.f32 %v5212, %v5177
        %v5222 = vadd.f32 %v5213, %v5182
        %v5223 = vadd.f32 %v5214, %v5185
        %v5224 = vadd.f32 %v5215, %v5190
        %v5225 = vadd.f32 %v5216, %v5193
        %v5226 = vadd.f32 %v5217, %v5198
        %v5227 = vadd.f32 %v5218, %v5201
        %v5228 = vadd.f32 %v5219, %v5206
        %5229 = vst.msk [vmem:[%s181] sm:$0xff] %vm308, %v5220
        %5230 = vst.msk [vmem:[%s181 + $0x8] sm:$0xff] %vm308, %v5221
        %5231 = vst.msk [vmem:[%s181 + $0x10] sm:$0xff] %vm308, %v5222
        %5232 = vst.msk [vmem:[%s181 + $0x18] sm:$0xff] %vm308, %v5223
        %5233 = vst.msk [vmem:[%s181 + $0x20] sm:$0xff] %vm308, %v5224
        %5234 = vst.msk [vmem:[%s181 + $0x28] sm:$0xff] %vm308, %v5225
        %5235 = vst.msk [vmem:[%s181 + $0x30] sm:$0xff] %vm308, %v5226
        %5236 = vst.msk [vmem:[%s181 + $0x38] sm:$0xff] %vm308, %v5227
        %5237 = vst.msk [vmem:[%s181 + $0x40] sm:$0x3f] %vm317, %v5228
        %v5238 = vld [vmem:[%s176 + $0x40] sm:$0xe]
        %v5239 = vld [vmem:[%s176 + $0x44] sm:$0xf]
        %v5240 = vld [vmem:[%s176 + $0x48] sm:$0xf]
        %v5241 = vld [vmem:[%s176 + $0x4c] sm:$0xf]
        %v5242 = vld [vmem:[%s176 + $0x50] sm:$0xf]
        %v5243 = vld [vmem:[%s176 + $0x54] sm:$0xf]
        %v5244 = vld [vmem:[%s176 + $0x58] sm:$0xf]
        %v5245 = vld [vmem:[%s176 + $0x5c] sm:$0xf]
        %v5246 = vld [vmem:[%s176 + $0x60] sm:$0xf]
        %s5247 = scalar_lea.vmem %s1, 116
        %v5248 = vld [vmem:[%s5247] sm:$0xf]
        %v5258 = vunpack.c.l.b16 %v5238
        %v5259 = vunpack.c.l.b16 %v5239
        %v5260 = vunpack.c.l.b16 %v5240
        %v5261 = vunpack.c.l.b16 %v5241
        %v5262 = vunpack.c.l.b16 %v5242
        %v5263 = vunpack.c.l.b16 %v5243
        %v5264 = vunpack.c.l.b16 %v5244
        %v5265 = vunpack.c.l.b16 %v5245
        %v5266 = vunpack.c.l.b16 %v5246
        %v5267 = vpack.c.b16 %v5259, %v5258
        %v5268 = vpack.c.b16 %v5261, %v5260
        %v5269 = vpack.c.b16 %v5263, %v5262
        %v5270 = vpack.c.b16 %v5265, %v5264
        %v5271 = vpack.c.b16 %v5266, %v5266
        %v5272 = vrot.slane %v5267, 1
        %v5273 = vrot.slane %v5268, 1
        %v5274 = vsel %vm907, %v5272, %v5273
        %v5275 = vrot.slane %v5269, 1
        %v5276 = vsel %vm907, %v5273, %v5275
        %v5277 = vrot.slane %v5270, 1
        %v5278 = vsel %vm907, %v5275, %v5277
        %v5279 = vrot.slane %v5271, 1
        %v5280 = vsel %vm907, %v5277, %v5279
        %v5282 = vsel %vm216, %v5274, 0
        %v5285 = vsel %vm216, %v5276, 0
        %v5288 = vsel %vm216, %v5278, 0
        %v5291 = vsel %vm216, %v5280, 0
        %v5294 = vsel %vm216, %v5279, 0
        %v5297 = vsel %vm232, %v5248, 0
        %5299 = vmatprep.subr.bf16.mxu0 0
        %5300 = vmatpush1.bf16.msra.mxu0 0
        %5301 = vmatprep.subr.bf16.mxu0 0
        %5302 = vmatpush1.bf16.msra.mxu0 0
        %5303 = vmatprep.subr.bf16.mxu0 0
        %5304 = vmatpush1.bf16.msra.mxu0 0
        %5305 = vmatprep.subr.bf16.mxu0 0
        %5306 = vmatpush1.bf16.msra.mxu0 0
        %5307 = vmatprep.subr.bf16.mxu0 0
        %5308 = vmatpush1.bf16.msra.mxu0 0
        %5309 = vmatprep.subr.bf16.mxu0 0
        %5310 = vmatpush1.bf16.msra.mxu0 0
        %5311 = vmatprep.subr.bf16.mxu0 0
        %5312 = vmatpush1.bf16.msra.mxu0 0
        %5313 = vmatprep.subr.bf16.mxu0 0
        %5314 = vmatpush1.bf16.msra.mxu0 %v5297
        %5315 = vmatprep.subr.bf16.mxu0 0
        %5316 = vmatpush2.bf16.msra.mxu0 0
        %5317 = vmatprep.subr.bf16.mxu0 0
        %5318 = vmatpush2.bf16.msra.mxu0 0
        %5319 = vmatprep.subr.bf16.mxu0 0
        %5320 = vmatpush2.bf16.msra.mxu0 0
        %5321 = vmatprep.subr.bf16.mxu0 0
        %5322 = vmatpush2.bf16.msra.mxu0 0
        %5323 = vmatprep.subr.bf16.mxu0 0
        %5324 = vmatpush2.bf16.msra.mxu0 0
        %5325 = vmatprep.subr.bf16.mxu0 0
        %5326 = vmatpush2.bf16.msra.mxu0 0
        %5327 = vmatprep.subr.bf16.mxu0 0
        %5328 = vmatpush2.bf16.msra.mxu0 0
        %5329 = vmatprep.subr.bf16.mxu0 0
        %5330 = vmatpush2.bf16.msra.mxu0 0
        %5331 = vmatprep.mubr.bf16.mxu0 0
        %5332 = vmatmul.mubr.bf16.gmra.mxu0 %v5282
        %v5333 = vpop.f32.mrf.mxu0
        %v5334 = vadd.f32 0.0, %v5333
        %v5335 = vpop.f32.mrf.mxu0
        %v5336 = vpop.f32.mrf.mxu0
        %v5337 = vadd.f32 0.0, %v5336
        %v5338 = vpop.f32.mrf.mxu0
        %5339 = vmatprep.mubr.bf16.mxu0 0
        %5340 = vmatmul.mubr.bf16.gmra.mxu0 %v5285
        %v5341 = vpop.f32.mrf.mxu0
        %v5342 = vadd.f32 0.0, %v5341
        %v5343 = vpop.f32.mrf.mxu0
        %v5344 = vpop.f32.mrf.mxu0
        %v5345 = vadd.f32 0.0, %v5344
        %v5346 = vpop.f32.mrf.mxu0
        %5347 = vmatprep.mubr.bf16.mxu0 0
        %5348 = vmatmul.mubr.bf16.gmra.mxu0 %v5288
        %v5349 = vpop.f32.mrf.mxu0
        %v5350 = vadd.f32 0.0, %v5349
        %v5351 = vpop.f32.mrf.mxu0
        %v5352 = vpop.f32.mrf.mxu0
        %v5353 = vadd.f32 0.0, %v5352
        %v5354 = vpop.f32.mrf.mxu0
        %5355 = vmatprep.mubr.bf16.mxu0 0
        %5356 = vmatmul.mubr.bf16.gmra.mxu0 %v5291
        %v5357 = vpop.f32.mrf.mxu0
        %v5358 = vadd.f32 0.0, %v5357
        %v5359 = vpop.f32.mrf.mxu0
        %v5360 = vpop.f32.mrf.mxu0
        %v5361 = vadd.f32 0.0, %v5360
        %v5362 = vpop.f32.mrf.mxu0
        %5363 = vmatprep.mubr.bf16.mxu0 0
        %5364 = vmatmul.mubr.bf16.gmra.mxu0 %v5294
        %v5365 = vpop.f32.mrf.mxu0
        %v5366 = vadd.f32 0.0, %v5365
        %v5367 = vpop.f32.mrf.mxu0
        %v5368 = vpop.f32.mrf.mxu0
        %v5369 = vpop.f32.mrf.mxu0
        %5370 = vdwg.mxu0
        %v5371 = vld [vmem:[%s181] sm:$0xff]
        %v5372 = vld [vmem:[%s181 + $0x8] sm:$0xff]
        %v5373 = vld [vmem:[%s181 + $0x10] sm:$0xff]
        %v5374 = vld [vmem:[%s181 + $0x18] sm:$0xff]
        %v5375 = vld [vmem:[%s181 + $0x20] sm:$0xff]
        %v5376 = vld [vmem:[%s181 + $0x28] sm:$0xff]
        %v5377 = vld [vmem:[%s181 + $0x30] sm:$0xff]
        %v5378 = vld [vmem:[%s181 + $0x38] sm:$0xff]
        %v5379 = vld [vmem:[%s181 + $0x40] sm:$0x3f]
        %v5380 = vadd.f32 %v5371, %v5334
        %v5381 = vadd.f32 %v5372, %v5337
        %v5382 = vadd.f32 %v5373, %v5342
        %v5383 = vadd.f32 %v5374, %v5345
        %v5384 = vadd.f32 %v5375, %v5350
        %v5385 = vadd.f32 %v5376, %v5353
        %v5386 = vadd.f32 %v5377, %v5358
        %v5387 = vadd.f32 %v5378, %v5361
        %v5388 = vadd.f32 %v5379, %v5366
        %5389 = vst.msk [vmem:[%s181] sm:$0xff] %vm308, %v5380
        %5390 = vst.msk [vmem:[%s181 + $0x8] sm:$0xff] %vm308, %v5381
        %5391 = vst.msk [vmem:[%s181 + $0x10] sm:$0xff] %vm308, %v5382
        %5392 = vst.msk [vmem:[%s181 + $0x18] sm:$0xff] %vm308, %v5383
        %5393 = vst.msk [vmem:[%s181 + $0x20] sm:$0xff] %vm308, %v5384
        %5394 = vst.msk [vmem:[%s181 + $0x28] sm:$0xff] %vm308, %v5385
        %5395 = vst.msk [vmem:[%s181 + $0x30] sm:$0xff] %vm308, %v5386
        %5396 = vst.msk [vmem:[%s181 + $0x38] sm:$0xff] %vm308, %v5387
        %5397 = vst.msk [vmem:[%s181 + $0x40] sm:$0x3f] %vm317, %v5388
        %v5398 = vld [vmem:[%s176 + $0x8] sm:$0xc]
        %v5399 = vld [vmem:[%s176 + $0xc] sm:$0xf]
        %v5400 = vld [vmem:[%s176 + $0x10] sm:$0xf]
        %v5401 = vld [vmem:[%s176 + $0x14] sm:$0xf]
        %v5402 = vld [vmem:[%s176 + $0x18] sm:$0xf]
        %v5403 = vld [vmem:[%s176 + $0x1c] sm:$0xf]
        %v5404 = vld [vmem:[%s176 + $0x20] sm:$0xf]
        %v5405 = vld [vmem:[%s176 + $0x24] sm:$0xf]
        %v5406 = vld [vmem:[%s176 + $0x28] sm:$0xf]
        %v5407 = vld [vmem:[%s176 + $0x2c] sm:$0x3]
        %s5408 = scalar_lea.vmem %s1, 120
        %v5409 = vld [vmem:[%s5408] sm:$0xf]
        %v5420 = vunpack.c.l.b16 %v5398
        %v5421 = vunpack.c.l.b16 %v5399
        %v5422 = vunpack.c.l.b16 %v5400
        %v5423 = vunpack.c.l.b16 %v5401
        %v5424 = vunpack.c.l.b16 %v5402
        %v5425 = vunpack.c.l.b16 %v5403
        %v5426 = vunpack.c.l.b16 %v5404
        %v5427 = vunpack.c.l.b16 %v5405
        %v5428 = vunpack.c.l.b16 %v5406
        %v5429 = vunpack.c.l.b16 %v5407
        %v5430 = vpack.c.b16 %v5421, %v5420
        %v5431 = vpack.c.b16 %v5423, %v5422
        %v5432 = vpack.c.b16 %v5425, %v5424
        %v5433 = vpack.c.b16 %v5427, %v5426
        %v5434 = vpack.c.b16 %v5429, %v5428
        %v5436 = vshrl.u32 %v5430, 16
        %v5438 = vrot.slane %v5436, 2
        %v5439 = vshll.u32 %v5430, 16
        %v5441 = vrot.slane %v5439, 3
        %v5442 = vor.u32 %v5438, %v5441
        %v5444 = vshrl.u32 %v5431, 16
        %v5446 = vrot.slane %v5444, 2
        %v5447 = vshll.u32 %v5431, 16
        %v5449 = vrot.slane %v5447, 3
        %v5450 = vor.u32 %v5446, %v5449
        %v5451 = vsel %vm1745, %v5442, %v5450
        %v5453 = vshrl.u32 %v5432, 16
        %v5455 = vrot.slane %v5453, 2
        %v5456 = vshll.u32 %v5432, 16
        %v5458 = vrot.slane %v5456, 3
        %v5459 = vor.u32 %v5455, %v5458
        %v5460 = vsel %vm1745, %v5450, %v5459
        %v5462 = vshrl.u32 %v5433, 16
        %v5464 = vrot.slane %v5462, 2
        %v5465 = vshll.u32 %v5433, 16
        %v5467 = vrot.slane %v5465, 3
        %v5468 = vor.u32 %v5464, %v5467
        %v5469 = vsel %vm1745, %v5459, %v5468
        %v5471 = vshrl.u32 %v5434, 16
        %v5473 = vrot.slane %v5471, 2
        %v5474 = vshll.u32 %v5434, 16
        %v5476 = vrot.slane %v5474, 3
        %v5477 = vor.u32 %v5473, %v5476
        %v5478 = vsel %vm1745, %v5468, %v5477
        %v5480 = vsel %vm216, %v5451, 0
        %v5483 = vsel %vm216, %v5460, 0
        %v5486 = vsel %vm216, %v5469, 0
        %v5489 = vsel %vm216, %v5478, 0
        %v5492 = vsel %vm216, %v5477, 0
        %v5495 = vsel %vm232, %v5409, 0
        %5497 = vmatprep.subr.bf16.mxu0 0
        %5498 = vmatpush1.bf16.msra.mxu0 0
        %5499 = vmatprep.subr.bf16.mxu0 0
        %5500 = vmatpush1.bf16.msra.mxu0 0
        %5501 = vmatprep.subr.bf16.mxu0 0
        %5502 = vmatpush1.bf16.msra.mxu0 0
        %5503 = vmatprep.subr.bf16.mxu0 0
        %5504 = vmatpush1.bf16.msra.mxu0 0
        %5505 = vmatprep.subr.bf16.mxu0 0
        %5506 = vmatpush1.bf16.msra.mxu0 0
        %5507 = vmatprep.subr.bf16.mxu0 0
        %5508 = vmatpush1.bf16.msra.mxu0 0
        %5509 = vmatprep.subr.bf16.mxu0 0
        %5510 = vmatpush1.bf16.msra.mxu0 0
        %5511 = vmatprep.subr.bf16.mxu0 0
        %5512 = vmatpush1.bf16.msra.mxu0 %v5495
        %5513 = vmatprep.subr.bf16.mxu0 0
        %5514 = vmatpush2.bf16.msra.mxu0 0
        %5515 = vmatprep.subr.bf16.mxu0 0
        %5516 = vmatpush2.bf16.msra.mxu0 0
        %5517 = vmatprep.subr.bf16.mxu0 0
        %5518 = vmatpush2.bf16.msra.mxu0 0
        %5519 = vmatprep.subr.bf16.mxu0 0
        %5520 = vmatpush2.bf16.msra.mxu0 0
        %5521 = vmatprep.subr.bf16.mxu0 0
        %5522 = vmatpush2.bf16.msra.mxu0 0
        %5523 = vmatprep.subr.bf16.mxu0 0
        %5524 = vmatpush2.bf16.msra.mxu0 0
        %5525 = vmatprep.subr.bf16.mxu0 0
        %5526 = vmatpush2.bf16.msra.mxu0 0
        %5527 = vmatprep.subr.bf16.mxu0 0
        %5528 = vmatpush2.bf16.msra.mxu0 0
        %5529 = vmatprep.mubr.bf16.mxu0 0
        %5530 = vmatmul.mubr.bf16.gmra.mxu0 %v5480
        %v5531 = vpop.f32.mrf.mxu0
        %v5532 = vadd.f32 0.0, %v5531
        %v5533 = vpop.f32.mrf.mxu0
        %v5534 = vpop.f32.mrf.mxu0
        %v5535 = vadd.f32 0.0, %v5534
        %v5536 = vpop.f32.mrf.mxu0
        %5537 = vmatprep.mubr.bf16.mxu0 0
        %5538 = vmatmul.mubr.bf16.gmra.mxu0 %v5483
        %v5539 = vpop.f32.mrf.mxu0
        %v5540 = vadd.f32 0.0, %v5539
        %v5541 = vpop.f32.mrf.mxu0
        %v5542 = vpop.f32.mrf.mxu0
        %v5543 = vadd.f32 0.0, %v5542
        %v5544 = vpop.f32.mrf.mxu0
        %5545 = vmatprep.mubr.bf16.mxu0 0
        %5546 = vmatmul.mubr.bf16.gmra.mxu0 %v5486
        %v5547 = vpop.f32.mrf.mxu0
        %v5548 = vadd.f32 0.0, %v5547
        %v5549 = vpop.f32.mrf.mxu0
        %v5550 = vpop.f32.mrf.mxu0
        %v5551 = vadd.f32 0.0, %v5550
        %v5552 = vpop.f32.mrf.mxu0
        %5553 = vmatprep.mubr.bf16.mxu0 0
        %5554 = vmatmul.mubr.bf16.gmra.mxu0 %v5489
        %v5555 = vpop.f32.mrf.mxu0
        %v5556 = vadd.f32 0.0, %v5555
        %v5557 = vpop.f32.mrf.mxu0
        %v5558 = vpop.f32.mrf.mxu0
        %v5559 = vadd.f32 0.0, %v5558
        %v5560 = vpop.f32.mrf.mxu0
        %5561 = vmatprep.mubr.bf16.mxu0 0
        %5562 = vmatmul.mubr.bf16.gmra.mxu0 %v5492
        %v5563 = vpop.f32.mrf.mxu0
        %v5564 = vadd.f32 0.0, %v5563
        %v5565 = vpop.f32.mrf.mxu0
        %v5566 = vpop.f32.mrf.mxu0
        %v5567 = vpop.f32.mrf.mxu0
        %5568 = vdwg.mxu0
        %v5569 = vld [vmem:[%s181] sm:$0xff]
        %v5570 = vld [vmem:[%s181 + $0x8] sm:$0xff]
        %v5571 = vld [vmem:[%s181 + $0x10] sm:$0xff]
        %v5572 = vld [vmem:[%s181 + $0x18] sm:$0xff]
        %v5573 = vld [vmem:[%s181 + $0x20] sm:$0xff]
        %v5574 = vld [vmem:[%s181 + $0x28] sm:$0xff]
        %v5575 = vld [vmem:[%s181 + $0x30] sm:$0xff]
        %v5576 = vld [vmem:[%s181 + $0x38] sm:$0xff]
        %v5577 = vld [vmem:[%s181 + $0x40] sm:$0x3f]
        %v5578 = vadd.f32 %v5569, %v5532
        %v5579 = vadd.f32 %v5570, %v5535
        %v5580 = vadd.f32 %v5571, %v5540
        %v5581 = vadd.f32 %v5572, %v5543
        %v5582 = vadd.f32 %v5573, %v5548
        %v5583 = vadd.f32 %v5574, %v5551
        %v5584 = vadd.f32 %v5575, %v5556
        %v5585 = vadd.f32 %v5576, %v5559
        %v5586 = vadd.f32 %v5577, %v5564
        %5587 = vst.msk [vmem:[%s181] sm:$0xff] %vm308, %v5578
        %5588 = vst.msk [vmem:[%s181 + $0x8] sm:$0xff] %vm308, %v5579
        %5589 = vst.msk [vmem:[%s181 + $0x10] sm:$0xff] %vm308, %v5580
        %5590 = vst.msk [vmem:[%s181 + $0x18] sm:$0xff] %vm308, %v5581
        %5591 = vst.msk [vmem:[%s181 + $0x20] sm:$0xff] %vm308, %v5582
        %5592 = vst.msk [vmem:[%s181 + $0x28] sm:$0xff] %vm308, %v5583
        %5593 = vst.msk [vmem:[%s181 + $0x30] sm:$0xff] %vm308, %v5584
        %5594 = vst.msk [vmem:[%s181 + $0x38] sm:$0xff] %vm308, %v5585
        %5595 = vst.msk [vmem:[%s181 + $0x40] sm:$0x3f] %vm317, %v5586
        %v5596 = vld [vmem:[%s176 + $0x40] sm:$0xe]
        %v5597 = vld [vmem:[%s176 + $0x44] sm:$0xf]
        %v5598 = vld [vmem:[%s176 + $0x48] sm:$0xf]
        %v5599 = vld [vmem:[%s176 + $0x4c] sm:$0xf]
        %v5600 = vld [vmem:[%s176 + $0x50] sm:$0xf]
        %v5601 = vld [vmem:[%s176 + $0x54] sm:$0xf]
        %v5602 = vld [vmem:[%s176 + $0x58] sm:$0xf]
        %v5603 = vld [vmem:[%s176 + $0x5c] sm:$0xf]
        %v5604 = vld [vmem:[%s176 + $0x60] sm:$0xf]
        %v5605 = vld [vmem:[%s176 + $0x64] sm:$0x1]
        %s5606 = scalar_lea.vmem %s1, 124
        %v5607 = vld [vmem:[%s5606] sm:$0xf]
        %v5618 = vunpack.c.l.b16 %v5596
        %v5619 = vunpack.c.l.b16 %v5597
        %v5620 = vunpack.c.l.b16 %v5598
        %v5621 = vunpack.c.l.b16 %v5599
        %v5622 = vunpack.c.l.b16 %v5600
        %v5623 = vunpack.c.l.b16 %v5601
        %v5624 = vunpack.c.l.b16 %v5602
        %v5625 = vunpack.c.l.b16 %v5603
        %v5626 = vunpack.c.l.b16 %v5604
        %v5627 = vunpack.c.l.b16 %v5605
        %v5628 = vpack.c.b16 %v5619, %v5618
        %v5629 = vpack.c.b16 %v5621, %v5620
        %v5630 = vpack.c.b16 %v5623, %v5622
        %v5631 = vpack.c.b16 %v5625, %v5624
        %v5632 = vpack.c.b16 %v5627, %v5626
        %v5634 = vshrl.u32 %v5628, 16
        %v5636 = vrot.slane %v5634, 1
        %v5637 = vshll.u32 %v5628, 16
        %v5639 = vrot.slane %v5637, 2
        %v5640 = vor.u32 %v5636, %v5639
        %v5642 = vshrl.u32 %v5629, 16
        %v5644 = vrot.slane %v5642, 1
        %v5645 = vshll.u32 %v5629, 16
        %v5647 = vrot.slane %v5645, 2
        %v5648 = vor.u32 %v5644, %v5647
        %v5649 = vsel %vm1222, %v5640, %v5648
        %v5651 = vshrl.u32 %v5630, 16
        %v5653 = vrot.slane %v5651, 1
        %v5654 = vshll.u32 %v5630, 16
        %v5656 = vrot.slane %v5654, 2
        %v5657 = vor.u32 %v5653, %v5656
        %v5658 = vsel %vm1222, %v5648, %v5657
        %v5660 = vshrl.u32 %v5631, 16
        %v5662 = vrot.slane %v5660, 1
        %v5663 = vshll.u32 %v5631, 16
        %v5665 = vrot.slane %v5663, 2
        %v5666 = vor.u32 %v5662, %v5665
        %v5667 = vsel %vm1222, %v5657, %v5666
        %v5669 = vshrl.u32 %v5632, 16
        %v5671 = vrot.slane %v5669, 1
        %v5672 = vshll.u32 %v5632, 16
        %v5674 = vrot.slane %v5672, 2
        %v5675 = vor.u32 %v5671, %v5674
        %v5676 = vsel %vm1222, %v5666, %v5675
        %v5678 = vsel %vm216, %v5649, 0
        %v5681 = vsel %vm216, %v5658, 0
        %v5684 = vsel %vm216, %v5667, 0
        %v5687 = vsel %vm216, %v5676, 0
        %v5690 = vsel %vm216, %v5675, 0
        %v5693 = vsel %vm232, %v5607, 0
        %5695 = vmatprep.subr.bf16.mxu0 0
        %5696 = vmatpush1.bf16.msra.mxu0 0
        %5697 = vmatprep.subr.bf16.mxu0 0
        %5698 = vmatpush1.bf16.msra.mxu0 0
        %5699 = vmatprep.subr.bf16.mxu0 0
        %5700 = vmatpush1.bf16.msra.mxu0 0
        %5701 = vmatprep.subr.bf16.mxu0 0
        %5702 = vmatpush1.bf16.msra.mxu0 0
        %5703 = vmatprep.subr.bf16.mxu0 0
        %5704 = vmatpush1.bf16.msra.mxu0 0
        %5705 = vmatprep.subr.bf16.mxu0 0
        %5706 = vmatpush1.bf16.msra.mxu0 0
        %5707 = vmatprep.subr.bf16.mxu0 0
        %5708 = vmatpush1.bf16.msra.mxu0 0
        %5709 = vmatprep.subr.bf16.mxu0 0
        %5710 = vmatpush1.bf16.msra.mxu0 %v5693
        %5711 = vmatprep.subr.bf16.mxu0 0
        %5712 = vmatpush2.bf16.msra.mxu0 0
        %5713 = vmatprep.subr.bf16.mxu0 0
        %5714 = vmatpush2.bf16.msra.mxu0 0
        %5715 = vmatprep.subr.bf16.mxu0 0
        %5716 = vmatpush2.bf16.msra.mxu0 0
        %5717 = vmatprep.subr.bf16.mxu0 0
        %5718 = vmatpush2.bf16.msra.mxu0 0
        %5719 = vmatprep.subr.bf16.mxu0 0
        %5720 = vmatpush2.bf16.msra.mxu0 0
        %5721 = vmatprep.subr.bf16.mxu0 0
        %5722 = vmatpush2.bf16.msra.mxu0 0
        %5723 = vmatprep.subr.bf16.mxu0 0
        %5724 = vmatpush2.bf16.msra.mxu0 0
        %5725 = vmatprep.subr.bf16.mxu0 0
        %5726 = vmatpush2.bf16.msra.mxu0 0
        %5727 = vmatprep.mubr.bf16.mxu0 0
        %5728 = vmatmul.mubr.bf16.gmra.mxu0 %v5678
        %v5729 = vpop.f32.mrf.mxu0
        %v5730 = vadd.f32 0.0, %v5729
        %v5731 = vpop.f32.mrf.mxu0
        %v5732 = vpop.f32.mrf.mxu0
        %v5733 = vadd.f32 0.0, %v5732
        %v5734 = vpop.f32.mrf.mxu0
        %5735 = vmatprep.mubr.bf16.mxu0 0
        %5736 = vmatmul.mubr.bf16.gmra.mxu0 %v5681
        %v5737 = vpop.f32.mrf.mxu0
        %v5738 = vadd.f32 0.0, %v5737
        %v5739 = vpop.f32.mrf.mxu0
        %v5740 = vpop.f32.mrf.mxu0
        %v5741 = vadd.f32 0.0, %v5740
        %v5742 = vpop.f32.mrf.mxu0
        %5743 = vmatprep.mubr.bf16.mxu0 0
        %5744 = vmatmul.mubr.bf16.gmra.mxu0 %v5684
        %v5745 = vpop.f32.mrf.mxu0
        %v5746 = vadd.f32 0.0, %v5745
        %v5747 = vpop.f32.mrf.mxu0
        %v5748 = vpop.f32.mrf.mxu0
        %v5749 = vadd.f32 0.0, %v5748
        %v5750 = vpop.f32.mrf.mxu0
        %5751 = vmatprep.mubr.bf16.mxu0 0
        %5752 = vmatmul.mubr.bf16.gmra.mxu0 %v5687
        %v5753 = vpop.f32.mrf.mxu0
        %v5754 = vadd.f32 0.0, %v5753
        %v5755 = vpop.f32.mrf.mxu0
        %v5756 = vpop.f32.mrf.mxu0
        %v5757 = vadd.f32 0.0, %v5756
        %v5758 = vpop.f32.mrf.mxu0
        %5759 = vmatprep.mubr.bf16.mxu0 0
        %5760 = vmatmul.mubr.bf16.gmra.mxu0 %v5690
        %v5761 = vpop.f32.mrf.mxu0
        %v5762 = vadd.f32 0.0, %v5761
        %v5763 = vpop.f32.mrf.mxu0
        %v5764 = vpop.f32.mrf.mxu0
        %v5765 = vpop.f32.mrf.mxu0
        %5766 = vdwg.mxu0
        %v5767 = vld [vmem:[%s181] sm:$0xff]
        %v5768 = vld [vmem:[%s181 + $0x8] sm:$0xff]
        %v5769 = vld [vmem:[%s181 + $0x10] sm:$0xff]
        %v5770 = vld [vmem:[%s181 + $0x18] sm:$0xff]
        %v5771 = vld [vmem:[%s181 + $0x20] sm:$0xff]
        %v5772 = vld [vmem:[%s181 + $0x28] sm:$0xff]
        %v5773 = vld [vmem:[%s181 + $0x30] sm:$0xff]
        %v5774 = vld [vmem:[%s181 + $0x38] sm:$0xff]
        %v5775 = vld [vmem:[%s181 + $0x40] sm:$0x3f]
        %v5776 = vadd.f32 %v5767, %v5730
        %v5777 = vadd.f32 %v5768, %v5733
        %v5778 = vadd.f32 %v5769, %v5738
        %v5779 = vadd.f32 %v5770, %v5741
        %v5780 = vadd.f32 %v5771, %v5746
        %v5781 = vadd.f32 %v5772, %v5749
        %v5782 = vadd.f32 %v5773, %v5754
        %v5783 = vadd.f32 %v5774, %v5757
        %v5784 = vadd.f32 %v5775, %v5762
        %5785 = vst.msk [vmem:[%s181] sm:$0xff] %vm308, %v5776
        %5786 = vst.msk [vmem:[%s181 + $0x8] sm:$0xff] %vm308, %v5777
        %5787 = vst.msk [vmem:[%s181 + $0x10] sm:$0xff] %vm308, %v5778
        %5788 = vst.msk [vmem:[%s181 + $0x18] sm:$0xff] %vm308, %v5779
        %5789 = vst.msk [vmem:[%s181 + $0x20] sm:$0xff] %vm308, %v5780
        %5790 = vst.msk [vmem:[%s181 + $0x28] sm:$0xff] %vm308, %v5781
        %5791 = vst.msk [vmem:[%s181 + $0x30] sm:$0xff] %vm308, %v5782
        %5792 = vst.msk [vmem:[%s181 + $0x38] sm:$0xff] %vm308, %v5783
        %5793 = vst.msk [vmem:[%s181 + $0x40] sm:$0x3f] %vm317, %v5784
        %v5794 = vld [vmem:[%s176 + $0x8] sm:$0x8]
        %v5795 = vld [vmem:[%s176 + $0xc] sm:$0xf]
        %v5796 = vld [vmem:[%s176 + $0x10] sm:$0xf]
        %v5797 = vld [vmem:[%s176 + $0x14] sm:$0xf]
        %v5798 = vld [vmem:[%s176 + $0x18] sm:$0xf]
        %v5799 = vld [vmem:[%s176 + $0x1c] sm:$0xf]
        %v5800 = vld [vmem:[%s176 + $0x20] sm:$0xf]
        %v5801 = vld [vmem:[%s176 + $0x24] sm:$0xf]
        %v5802 = vld [vmem:[%s176 + $0x28] sm:$0xf]
        %v5803 = vld [vmem:[%s176 + $0x2c] sm:$0x3]
        %s5804 = scalar_lea.vmem %s1, 128
        %v5805 = vld [vmem:[%s5804] sm:$0xf]
        %v5816 = vunpack.c.l.b16 %v5794
        %v5817 = vunpack.c.l.b16 %v5795
        %v5818 = vunpack.c.l.b16 %v5796
        %v5819 = vunpack.c.l.b16 %v5797
        %v5820 = vunpack.c.l.b16 %v5798
        %v5821 = vunpack.c.l.b16 %v5799
        %v5822 = vunpack.c.l.b16 %v5800
        %v5823 = vunpack.c.l.b16 %v5801
        %v5824 = vunpack.c.l.b16 %v5802
        %v5825 = vunpack.c.l.b16 %v5803
        %v5826 = vpack.c.b16 %v5817, %v5816
        %v5827 = vpack.c.b16 %v5819, %v5818
        %v5828 = vpack.c.b16 %v5821, %v5820
        %v5829 = vpack.c.b16 %v5823, %v5822
        %v5830 = vpack.c.b16 %v5825, %v5824
        %v5831 = vrot.slane %v5826, 3
        %v5832 = vrot.slane %v5827, 3
        %v5833 = vsel %vm356, %v5831, %v5832
        %v5834 = vrot.slane %v5828, 3
        %v5835 = vsel %vm356, %v5832, %v5834
        %v5836 = vrot.slane %v5829, 3
        %v5837 = vsel %vm356, %v5834, %v5836
        %v5838 = vrot.slane %v5830, 3
        %v5839 = vsel %vm356, %v5836, %v5838
        %v5841 = vsel %vm216, %v5833, 0
        %v5844 = vsel %vm216, %v5835, 0
        %v5847 = vsel %vm216, %v5837, 0
        %v5850 = vsel %vm216, %v5839, 0
        %v5853 = vsel %vm216, %v5838, 0
        %v5856 = vsel %vm232, %v5805, 0
        %5858 = vmatprep.subr.bf16.mxu0 0
        %5859 = vmatpush1.bf16.msra.mxu0 0
        %5860 = vmatprep.subr.bf16.mxu0 0
        %5861 = vmatpush1.bf16.msra.mxu0 0
        %5862 = vmatprep.subr.bf16.mxu0 0
        %5863 = vmatpush1.bf16.msra.mxu0 0
        %5864 = vmatprep.subr.bf16.mxu0 0
        %5865 = vmatpush1.bf16.msra.mxu0 0
        %5866 = vmatprep.subr.bf16.mxu0 0
        %5867 = vmatpush1.bf16.msra.mxu0 0
        %5868 = vmatprep.subr.bf16.mxu0 0
        %5869 = vmatpush1.bf16.msra.mxu0 0
        %5870 = vmatprep.subr.bf16.mxu0 0
        %5871 = vmatpush1.bf16.msra.mxu0 0
        %5872 = vmatprep.subr.bf16.mxu0 0
        %5873 = vmatpush1.bf16.msra.mxu0 %v5856
        %5874 = vmatprep.subr.bf16.mxu0 0
        %5875 = vmatpush2.bf16.msra.mxu0 0
        %5876 = vmatprep.subr.bf16.mxu0 0
        %5877 = vmatpush2.bf16.msra.mxu0 0
        %5878 = vmatprep.subr.bf16.mxu0 0
        %5879 = vmatpush2.bf16.msra.mxu0 0
        %5880 = vmatprep.subr.bf16.mxu0 0
        %5881 = vmatpush2.bf16.msra.mxu0 0
        %5882 = vmatprep.subr.bf16.mxu0 0
        %5883 = vmatpush2.bf16.msra.mxu0 0
        %5884 = vmatprep.subr.bf16.mxu0 0
        %5885 = vmatpush2.bf16.msra.mxu0 0
        %5886 = vmatprep.subr.bf16.mxu0 0
        %5887 = vmatpush2.bf16.msra.mxu0 0
        %5888 = vmatprep.subr.bf16.mxu0 0
        %5889 = vmatpush2.bf16.msra.mxu0 0
        %5890 = vmatprep.mubr.bf16.mxu0 0
        %5891 = vmatmul.mubr.bf16.gmra.mxu0 %v5841
        %v5892 = vpop.f32.mrf.mxu0
        %v5893 = vadd.f32 0.0, %v5892
        %v5894 = vpop.f32.mrf.mxu0
        %v5895 = vpop.f32.mrf.mxu0
        %v5896 = vadd.f32 0.0, %v5895
        %v5897 = vpop.f32.mrf.mxu0
        %5898 = vmatprep.mubr.bf16.mxu0 0
        %5899 = vmatmul.mubr.bf16.gmra.mxu0 %v5844
        %v5900 = vpop.f32.mrf.mxu0
        %v5901 = vadd.f32 0.0, %v5900
        %v5902 = vpop.f32.mrf.mxu0
        %v5903 = vpop.f32.mrf.mxu0
        %v5904 = vadd.f32 0.0, %v5903
        %v5905 = vpop.f32.mrf.mxu0
        %5906 = vmatprep.mubr.bf16.mxu0 0
        %5907 = vmatmul.mubr.bf16.gmra.mxu0 %v5847
        %v5908 = vpop.f32.mrf.mxu0
        %v5909 = vadd.f32 0.0, %v5908
        %v5910 = vpop.f32.mrf.mxu0
        %v5911 = vpop.f32.mrf.mxu0
        %v5912 = vadd.f32 0.0, %v5911
        %v5913 = vpop.f32.mrf.mxu0
        %5914 = vmatprep.mubr.bf16.mxu0 0
        %5915 = vmatmul.mubr.bf16.gmra.mxu0 %v5850
        %v5916 = vpop.f32.mrf.mxu0
        %v5917 = vadd.f32 0.0, %v5916
        %v5918 = vpop.f32.mrf.mxu0
        %v5919 = vpop.f32.mrf.mxu0
        %v5920 = vadd.f32 0.0, %v5919
        %v5921 = vpop.f32.mrf.mxu0
        %5922 = vmatprep.mubr.bf16.mxu0 0
        %5923 = vmatmul.mubr.bf16.gmra.mxu0 %v5853
        %v5924 = vpop.f32.mrf.mxu0
        %v5925 = vadd.f32 0.0, %v5924
        %v5926 = vpop.f32.mrf.mxu0
        %v5927 = vpop.f32.mrf.mxu0
        %v5928 = vpop.f32.mrf.mxu0
        %5929 = vdwg.mxu0
        %v5930 = vld [vmem:[%s181] sm:$0xff]
        %v5931 = vld [vmem:[%s181 + $0x8] sm:$0xff]
        %v5932 = vld [vmem:[%s181 + $0x10] sm:$0xff]
        %v5933 = vld [vmem:[%s181 + $0x18] sm:$0xff]
        %v5934 = vld [vmem:[%s181 + $0x20] sm:$0xff]
        %v5935 = vld [vmem:[%s181 + $0x28] sm:$0xff]
        %v5936 = vld [vmem:[%s181 + $0x30] sm:$0xff]
        %v5937 = vld [vmem:[%s181 + $0x38] sm:$0xff]
        %v5938 = vld [vmem:[%s181 + $0x40] sm:$0x3f]
        %v5939 = vadd.f32 %v5930, %v5893
        %v5940 = vadd.f32 %v5931, %v5896
        %v5941 = vadd.f32 %v5932, %v5901
        %v5942 = vadd.f32 %v5933, %v5904
        %v5943 = vadd.f32 %v5934, %v5909
        %v5944 = vadd.f32 %v5935, %v5912
        %v5945 = vadd.f32 %v5936, %v5917
        %v5946 = vadd.f32 %v5937, %v5920
        %v5947 = vadd.f32 %v5938, %v5925
        %5948 = vst.msk [vmem:[%s181] sm:$0xff] %vm308, %v5939
        %5949 = vst.msk [vmem:[%s181 + $0x8] sm:$0xff] %vm308, %v5940
        %5950 = vst.msk [vmem:[%s181 + $0x10] sm:$0xff] %vm308, %v5941
        %5951 = vst.msk [vmem:[%s181 + $0x18] sm:$0xff] %vm308, %v5942
        %5952 = vst.msk [vmem:[%s181 + $0x20] sm:$0xff] %vm308, %v5943
        %5953 = vst.msk [vmem:[%s181 + $0x28] sm:$0xff] %vm308, %v5944
        %5954 = vst.msk [vmem:[%s181 + $0x30] sm:$0xff] %vm308, %v5945
        %5955 = vst.msk [vmem:[%s181 + $0x38] sm:$0xff] %vm308, %v5946
        %5956 = vst.msk [vmem:[%s181 + $0x40] sm:$0x3f] %vm317, %v5947
        %v5957 = vld [vmem:[%s176 + $0x40] sm:$0xc]
        %v5958 = vld [vmem:[%s176 + $0x44] sm:$0xf]
        %v5959 = vld [vmem:[%s176 + $0x48] sm:$0xf]
        %v5960 = vld [vmem:[%s176 + $0x4c] sm:$0xf]
        %v5961 = vld [vmem:[%s176 + $0x50] sm:$0xf]
        %v5962 = vld [vmem:[%s176 + $0x54] sm:$0xf]
        %v5963 = vld [vmem:[%s176 + $0x58] sm:$0xf]
        %v5964 = vld [vmem:[%s176 + $0x5c] sm:$0xf]
        %v5965 = vld [vmem:[%s176 + $0x60] sm:$0xf]
        %v5966 = vld [vmem:[%s176 + $0x64] sm:$0x1]
        %s5967 = scalar_lea.vmem %s1, 132
        %v5968 = vld [vmem:[%s5967] sm:$0xf]
        %v5979 = vunpack.c.l.b16 %v5957
        %v5980 = vunpack.c.l.b16 %v5958
        %v5981 = vunpack.c.l.b16 %v5959
        %v5982 = vunpack.c.l.b16 %v5960
        %v5983 = vunpack.c.l.b16 %v5961
        %v5984 = vunpack.c.l.b16 %v5962
        %v5985 = vunpack.c.l.b16 %v5963
        %v5986 = vunpack.c.l.b16 %v5964
        %v5987 = vunpack.c.l.b16 %v5965
        %v5988 = vunpack.c.l.b16 %v5966
        %v5989 = vpack.c.b16 %v5980, %v5979
        %v5990 = vpack.c.b16 %v5982, %v5981
        %v5991 = vpack.c.b16 %v5984, %v5983
        %v5992 = vpack.c.b16 %v5986, %v5985
        %v5993 = vpack.c.b16 %v5988, %v5987
        %v5994 = vrot.slane %v5989, 2
        %v5995 = vrot.slane %v5990, 2
        %v5996 = vsel %vm1421, %v5994, %v5995
        %v5997 = vrot.slane %v5991, 2
        %v5998 = vsel %vm1421, %v5995, %v5997
        %v5999 = vrot.slane %v5992, 2
        %v6000 = vsel %vm1421, %v5997, %v5999
        %v6001 = vrot.slane %v5993, 2
        %v6002 = vsel %vm1421, %v5999, %v6001
        %v6004 = vsel %vm216, %v5996, 0
        %v6007 = vsel %vm216, %v5998, 0
        %v6010 = vsel %vm216, %v6000, 0
        %v6013 = vsel %vm216, %v6002, 0
        %v6016 = vsel %vm216, %v6001, 0
        %v6019 = vsel %vm232, %v5968, 0
        %6021 = vmatprep.subr.bf16.mxu0 0
        %6022 = vmatpush1.bf16.msra.mxu0 0
        %6023 = vmatprep.subr.bf16.mxu0 0
        %6024 = vmatpush1.bf16.msra.mxu0 0
        %6025 = vmatprep.subr.bf16.mxu0 0
        %6026 = vmatpush1.bf16.msra.mxu0 0
        %6027 = vmatprep.subr.bf16.mxu0 0
        %6028 = vmatpush1.bf16.msra.mxu0 0
        %6029 = vmatprep.subr.bf16.mxu0 0
        %6030 = vmatpush1.bf16.msra.mxu0 0
        %6031 = vmatprep.subr.bf16.mxu0 0
        %6032 = vmatpush1.bf16.msra.mxu0 0
        %6033 = vmatprep.subr.bf16.mxu0 0
        %6034 = vmatpush1.bf16.msra.mxu0 0
        %6035 = vmatprep.subr.bf16.mxu0 0
        %6036 = vmatpush1.bf16.msra.mxu0 %v6019
        %6037 = vmatprep.subr.bf16.mxu0 0
        %6038 = vmatpush2.bf16.msra.mxu0 0
        %6039 = vmatprep.subr.bf16.mxu0 0
        %6040 = vmatpush2.bf16.msra.mxu0 0
        %6041 = vmatprep.subr.bf16.mxu0 0
        %6042 = vmatpush2.bf16.msra.mxu0 0
        %6043 = vmatprep.subr.bf16.mxu0 0
        %6044 = vmatpush2.bf16.msra.mxu0 0
        %6045 = vmatprep.subr.bf16.mxu0 0
        %6046 = vmatpush2.bf16.msra.mxu0 0
        %6047 = vmatprep.subr.bf16.mxu0 0
        %6048 = vmatpush2.bf16.msra.mxu0 0
        %6049 = vmatprep.subr.bf16.mxu0 0
        %6050 = vmatpush2.bf16.msra.mxu0 0
        %6051 = vmatprep.subr.bf16.mxu0 0
        %6052 = vmatpush2.bf16.msra.mxu0 0
        %6053 = vmatprep.mubr.bf16.mxu0 0
        %6054 = vmatmul.mubr.bf16.gmra.mxu0 %v6004
        %v6055 = vpop.f32.mrf.mxu0
        %v6056 = vadd.f32 0.0, %v6055
        %v6057 = vpop.f32.mrf.mxu0
        %v6058 = vpop.f32.mrf.mxu0
        %v6059 = vadd.f32 0.0, %v6058
        %v6060 = vpop.f32.mrf.mxu0
        %6061 = vmatprep.mubr.bf16.mxu0 0
        %6062 = vmatmul.mubr.bf16.gmra.mxu0 %v6007
        %v6063 = vpop.f32.mrf.mxu0
        %v6064 = vadd.f32 0.0, %v6063
        %v6065 = vpop.f32.mrf.mxu0
        %v6066 = vpop.f32.mrf.mxu0
        %v6067 = vadd.f32 0.0, %v6066
        %v6068 = vpop.f32.mrf.mxu0
        %6069 = vmatprep.mubr.bf16.mxu0 0
        %6070 = vmatmul.mubr.bf16.gmra.mxu0 %v6010
        %v6071 = vpop.f32.mrf.mxu0
        %v6072 = vadd.f32 0.0, %v6071
        %v6073 = vpop.f32.mrf.mxu0
        %v6074 = vpop.f32.mrf.mxu0
        %v6075 = vadd.f32 0.0, %v6074
        %v6076 = vpop.f32.mrf.mxu0
        %6077 = vmatprep.mubr.bf16.mxu0 0
        %6078 = vmatmul.mubr.bf16.gmra.mxu0 %v6013
        %v6079 = vpop.f32.mrf.mxu0
        %v6080 = vadd.f32 0.0, %v6079
        %v6081 = vpop.f32.mrf.mxu0
        %v6082 = vpop.f32.mrf.mxu0
        %v6083 = vadd.f32 0.0, %v6082
        %v6084 = vpop.f32.mrf.mxu0
        %6085 = vmatprep.mubr.bf16.mxu0 0
        %6086 = vmatmul.mubr.bf16.gmra.mxu0 %v6016
        %v6087 = vpop.f32.mrf.mxu0
        %v6088 = vadd.f32 0.0, %v6087
        %v6089 = vpop.f32.mrf.mxu0
        %v6090 = vpop.f32.mrf.mxu0
        %v6091 = vpop.f32.mrf.mxu0
        %6092 = vdwg.mxu0
        %v6093 = vld [vmem:[%s181] sm:$0xff]
        %v6094 = vld [vmem:[%s181 + $0x8] sm:$0xff]
        %v6095 = vld [vmem:[%s181 + $0x10] sm:$0xff]
        %v6096 = vld [vmem:[%s181 + $0x18] sm:$0xff]
        %v6097 = vld [vmem:[%s181 + $0x20] sm:$0xff]
        %v6098 = vld [vmem:[%s181 + $0x28] sm:$0xff]
        %v6099 = vld [vmem:[%s181 + $0x30] sm:$0xff]
        %v6100 = vld [vmem:[%s181 + $0x38] sm:$0xff]
        %v6101 = vld [vmem:[%s181 + $0x40] sm:$0x3f]
        %v6102 = vadd.f32 %v6093, %v6056
        %v6103 = vadd.f32 %v6094, %v6059
        %v6104 = vadd.f32 %v6095, %v6064
        %v6105 = vadd.f32 %v6096, %v6067
        %v6106 = vadd.f32 %v6097, %v6072
        %v6107 = vadd.f32 %v6098, %v6075
        %v6108 = vadd.f32 %v6099, %v6080
        %v6109 = vadd.f32 %v6100, %v6083
        %v6110 = vadd.f32 %v6101, %v6088
        %6111 = vst.msk [vmem:[%s181] sm:$0xff] %vm308, %v6102
        %6112 = vst.msk [vmem:[%s181 + $0x8] sm:$0xff] %vm308, %v6103
        %6113 = vst.msk [vmem:[%s181 + $0x10] sm:$0xff] %vm308, %v6104
        %6114 = vst.msk [vmem:[%s181 + $0x18] sm:$0xff] %vm308, %v6105
        %6115 = vst.msk [vmem:[%s181 + $0x20] sm:$0xff] %vm308, %v6106
        %6116 = vst.msk [vmem:[%s181 + $0x28] sm:$0xff] %vm308, %v6107
        %6117 = vst.msk [vmem:[%s181 + $0x30] sm:$0xff] %vm308, %v6108
        %6118 = vst.msk [vmem:[%s181 + $0x38] sm:$0xff] %vm308, %v6109
        %6119 = vst.msk [vmem:[%s181 + $0x40] sm:$0x3f] %vm317, %v6110
        %v6120 = vld [vmem:[%s176 + $0x8] sm:$0x8]
        %v6121 = vld [vmem:[%s176 + $0xc] sm:$0xf]
        %v6122 = vld [vmem:[%s176 + $0x10] sm:$0xf]
        %v6123 = vld [vmem:[%s176 + $0x14] sm:$0xf]
        %v6124 = vld [vmem:[%s176 + $0x18] sm:$0xf]
        %v6125 = vld [vmem:[%s176 + $0x1c] sm:$0xf]
        %v6126 = vld [vmem:[%s176 + $0x20] sm:$0xf]
        %v6127 = vld [vmem:[%s176 + $0x24] sm:$0xf]
        %v6128 = vld [vmem:[%s176 + $0x28] sm:$0xf]
        %v6129 = vld [vmem:[%s176 + $0x2c] sm:$0x7]
        %s6130 = scalar_lea.vmem %s1, 136
        %v6131 = vld [vmem:[%s6130] sm:$0xf]
        %v6142 = vunpack.c.l.b16 %v6120
        %v6143 = vunpack.c.l.b16 %v6121
        %v6144 = vunpack.c.l.b16 %v6122
        %v6145 = vunpack.c.l.b16 %v6123
        %v6146 = vunpack.c.l.b16 %v6124
        %v6147 = vunpack.c.l.b16 %v6125
        %v6148 = vunpack.c.l.b16 %v6126
        %v6149 = vunpack.c.l.b16 %v6127
        %v6150 = vunpack.c.l.b16 %v6128
        %v6151 = vunpack.c.l.b16 %v6129
        %v6152 = vpack.c.b16 %v6143, %v6142
        %v6153 = vpack.c.b16 %v6145, %v6144
        %v6154 = vpack.c.b16 %v6147, %v6146
        %v6155 = vpack.c.b16 %v6149, %v6148
        %v6156 = vpack.c.b16 %v6151, %v6150
        %v6158 = vshrl.u32 %v6152, 16
        %v6160 = vrot.slane %v6158, 3
        %v6161 = vshll.u32 %v6152, 16
        %v6163 = vrot.slane %v6161, 4
        %v6164 = vor.u32 %v6160, %v6163
        %v6166 = vshrl.u32 %v6153, 16
        %v6168 = vrot.slane %v6166, 3
        %v6169 = vshll.u32 %v6153, 16
        %v6171 = vrot.slane %v6169, 4
        %v6172 = vor.u32 %v6168, %v6171
        %v6173 = vsel %vm711, %v6164, %v6172
        %v6175 = vshrl.u32 %v6154, 16
        %v6177 = vrot.slane %v6175, 3
        %v6178 = vshll.u32 %v6154, 16
        %v6180 = vrot.slane %v6178, 4
        %v6181 = vor.u32 %v6177, %v6180
        %v6182 = vsel %vm711, %v6172, %v6181
        %v6184 = vshrl.u32 %v6155, 16
        %v6186 = vrot.slane %v6184, 3
        %v6187 = vshll.u32 %v6155, 16
        %v6189 = vrot.slane %v6187, 4
        %v6190 = vor.u32 %v6186, %v6189
        %v6191 = vsel %vm711, %v6181, %v6190
        %v6193 = vshrl.u32 %v6156, 16
        %v6195 = vrot.slane %v6193, 3
        %v6196 = vshll.u32 %v6156, 16
        %v6198 = vrot.slane %v6196, 4
        %v6199 = vor.u32 %v6195, %v6198
        %v6200 = vsel %vm711, %v6190, %v6199
        %v6202 = vsel %vm216, %v6173, 0
        %v6205 = vsel %vm216, %v6182, 0
        %v6208 = vsel %vm216, %v6191, 0
        %v6211 = vsel %vm216, %v6200, 0
        %v6214 = vsel %vm216, %v6199, 0
        %v6217 = vsel %vm232, %v6131, 0
        %6219 = vmatprep.subr.bf16.mxu0 0
        %6220 = vmatpush1.bf16.msra.mxu0 0
        %6221 = vmatprep.subr.bf16.mxu0 0
        %6222 = vmatpush1.bf16.msra.mxu0 0
        %6223 = vmatprep.subr.bf16.mxu0 0
        %6224 = vmatpush1.bf16.msra.mxu0 0
        %6225 = vmatprep.subr.bf16.mxu0 0
        %6226 = vmatpush1.bf16.msra.mxu0 0
        %6227 = vmatprep.subr.bf16.mxu0 0
        %6228 = vmatpush1.bf16.msra.mxu0 0
        %6229 = vmatprep.subr.bf16.mxu0 0
        %6230 = vmatpush1.bf16.msra.mxu0 0
        %6231 = vmatprep.subr.bf16.mxu0 0
        %6232 = vmatpush1.bf16.msra.mxu0 0
        %6233 = vmatprep.subr.bf16.mxu0 0
        %6234 = vmatpush1.bf16.msra.mxu0 %v6217
        %6235 = vmatprep.subr.bf16.mxu0 0
        %6236 = vmatpush2.bf16.msra.mxu0 0
        %6237 = vmatprep.subr.bf16.mxu0 0
        %6238 = vmatpush2.bf16.msra.mxu0 0
        %6239 = vmatprep.subr.bf16.mxu0 0
        %6240 = vmatpush2.bf16.msra.mxu0 0
        %6241 = vmatprep.subr.bf16.mxu0 0
        %6242 = vmatpush2.bf16.msra.mxu0 0
        %6243 = vmatprep.subr.bf16.mxu0 0
        %6244 = vmatpush2.bf16.msra.mxu0 0
        %6245 = vmatprep.subr.bf16.mxu0 0
        %6246 = vmatpush2.bf16.msra.mxu0 0
        %6247 = vmatprep.subr.bf16.mxu0 0
        %6248 = vmatpush2.bf16.msra.mxu0 0
        %6249 = vmatprep.subr.bf16.mxu0 0
        %6250 = vmatpush2.bf16.msra.mxu0 0
        %6251 = vmatprep.mubr.bf16.mxu0 0
        %6252 = vmatmul.mubr.bf16.gmra.mxu0 %v6202
        %v6253 = vpop.f32.mrf.mxu0
        %v6254 = vadd.f32 0.0, %v6253
        %v6255 = vpop.f32.mrf.mxu0
        %v6256 = vpop.f32.mrf.mxu0
        %v6257 = vadd.f32 0.0, %v6256
        %v6258 = vpop.f32.mrf.mxu0
        %6259 = vmatprep.mubr.bf16.mxu0 0
        %6260 = vmatmul.mubr.bf16.gmra.mxu0 %v6205
        %v6261 = vpop.f32.mrf.mxu0
        %v6262 = vadd.f32 0.0, %v6261
        %v6263 = vpop.f32.mrf.mxu0
        %v6264 = vpop.f32.mrf.mxu0
        %v6265 = vadd.f32 0.0, %v6264
        %v6266 = vpop.f32.mrf.mxu0
        %6267 = vmatprep.mubr.bf16.mxu0 0
        %6268 = vmatmul.mubr.bf16.gmra.mxu0 %v6208
        %v6269 = vpop.f32.mrf.mxu0
        %v6270 = vadd.f32 0.0, %v6269
        %v6271 = vpop.f32.mrf.mxu0
        %v6272 = vpop.f32.mrf.mxu0
        %v6273 = vadd.f32 0.0, %v6272
        %v6274 = vpop.f32.mrf.mxu0
        %6275 = vmatprep.mubr.bf16.mxu0 0
        %6276 = vmatmul.mubr.bf16.gmra.mxu0 %v6211
        %v6277 = vpop.f32.mrf.mxu0
        %v6278 = vadd.f32 0.0, %v6277
        %v6279 = vpop.f32.mrf.mxu0
        %v6280 = vpop.f32.mrf.mxu0
        %v6281 = vadd.f32 0.0, %v6280
        %v6282 = vpop.f32.mrf.mxu0
        %6283 = vmatprep.mubr.bf16.mxu0 0
        %6284 = vmatmul.mubr.bf16.gmra.mxu0 %v6214
        %v6285 = vpop.f32.mrf.mxu0
        %v6286 = vadd.f32 0.0, %v6285
        %v6287 = vpop.f32.mrf.mxu0
        %v6288 = vpop.f32.mrf.mxu0
        %v6289 = vpop.f32.mrf.mxu0
        %6290 = vdwg.mxu0
        %v6291 = vld [vmem:[%s181] sm:$0xff]
        %v6292 = vld [vmem:[%s181 + $0x8] sm:$0xff]
        %v6293 = vld [vmem:[%s181 + $0x10] sm:$0xff]
        %v6294 = vld [vmem:[%s181 + $0x18] sm:$0xff]
        %v6295 = vld [vmem:[%s181 + $0x20] sm:$0xff]
        %v6296 = vld [vmem:[%s181 + $0x28] sm:$0xff]
        %v6297 = vld [vmem:[%s181 + $0x30] sm:$0xff]
        %v6298 = vld [vmem:[%s181 + $0x38] sm:$0xff]
        %v6299 = vld [vmem:[%s181 + $0x40] sm:$0x3f]
        %v6300 = vadd.f32 %v6291, %v6254
        %v6301 = vadd.f32 %v6292, %v6257
        %v6302 = vadd.f32 %v6293, %v6262
        %v6303 = vadd.f32 %v6294, %v6265
        %v6304 = vadd.f32 %v6295, %v6270
        %v6305 = vadd.f32 %v6296, %v6273
        %v6306 = vadd.f32 %v6297, %v6278
        %v6307 = vadd.f32 %v6298, %v6281
        %v6308 = vadd.f32 %v6299, %v6286
        %6309 = vst.msk [vmem:[%s181] sm:$0xff] %vm308, %v6300
        %6310 = vst.msk [vmem:[%s181 + $0x8] sm:$0xff] %vm308, %v6301
        %6311 = vst.msk [vmem:[%s181 + $0x10] sm:$0xff] %vm308, %v6302
        %6312 = vst.msk [vmem:[%s181 + $0x18] sm:$0xff] %vm308, %v6303
        %6313 = vst.msk [vmem:[%s181 + $0x20] sm:$0xff] %vm308, %v6304
        %6314 = vst.msk [vmem:[%s181 + $0x28] sm:$0xff] %vm308, %v6305
        %6315 = vst.msk [vmem:[%s181 + $0x30] sm:$0xff] %vm308, %v6306
        %6316 = vst.msk [vmem:[%s181 + $0x38] sm:$0xff] %vm308, %v6307
        %6317 = vst.msk [vmem:[%s181 + $0x40] sm:$0x3f] %vm317, %v6308
        %v6318 = vld [vmem:[%s176 + $0x78] sm:$0xf]
        %v6319 = vld [vmem:[%s176 + $0x7c] sm:$0xf]
        %v6320 = vld [vmem:[%s176 + $0x80] sm:$0xf]
        %v6321 = vld [vmem:[%s176 + $0x84] sm:$0xf]
        %v6322 = vld [vmem:[%s176 + $0x88] sm:$0xf]
        %v6323 = vld [vmem:[%s176 + $0x8c] sm:$0xf]
        %v6324 = vld [vmem:[%s176 + $0x90] sm:$0xf]
        %v6325 = vld [vmem:[%s176 + $0x94] sm:$0xf]
        %v6326 = vld [vmem:[%s176 + $0x98] sm:$0x7]
        %s6327 = scalar_lea.vmem %s1, 140
        %v6328 = vld [vmem:[%s6327] sm:$0xf]
        %v6338 = vunpack.c.l.b16 %v6318
        %v6339 = vunpack.c.l.b16 %v6319
        %v6340 = vunpack.c.l.b16 %v6320
        %v6341 = vunpack.c.l.b16 %v6321
        %v6342 = vunpack.c.l.b16 %v6322
        %v6343 = vunpack.c.l.b16 %v6323
        %v6344 = vunpack.c.l.b16 %v6324
        %v6345 = vunpack.c.l.b16 %v6325
        %v6346 = vunpack.c.l.b16 %v6326
        %v6347 = vpack.c.b16 %v6339, %v6338
        %v6348 = vpack.c.b16 %v6341, %v6340
        %v6349 = vpack.c.b16 %v6343, %v6342
        %v6350 = vpack.c.b16 %v6345, %v6344
        %v6351 = vpack.c.b16 %v6346, %v6346
        %v6353 = vsel %vm216, %v6347, 0
        %v6356 = vsel %vm216, %v6348, 0
        %v6359 = vsel %vm216, %v6349, 0
        %v6362 = vsel %vm216, %v6350, 0
        %v6365 = vsel %vm216, %v6351, 0
        %v6368 = vsel %vm232, %v6328, 0
        %6370 = vmatprep.subr.bf16.mxu0 0
        %6371 = vmatpush1.bf16.msra.mxu0 0
        %6372 = vmatprep.subr.bf16.mxu0 0
        %6373 = vmatpush1.bf16.msra.mxu0 0
        %6374 = vmatprep.subr.bf16.mxu0 0
        %6375 = vmatpush1.bf16.msra.mxu0 0
        %6376 = vmatprep.subr.bf16.mxu0 0
        %6377 = vmatpush1.bf16.msra.mxu0 0
        %6378 = vmatprep.subr.bf16.mxu0 0
        %6379 = vmatpush1.bf16.msra.mxu0 0
        %6380 = vmatprep.subr.bf16.mxu0 0
        %6381 = vmatpush1.bf16.msra.mxu0 0
        %6382 = vmatprep.subr.bf16.mxu0 0
        %6383 = vmatpush1.bf16.msra.mxu0 0
        %6384 = vmatprep.subr.bf16.mxu0 0
        %6385 = vmatpush1.bf16.msra.mxu0 %v6368
        %6386 = vmatprep.subr.bf16.mxu0 0
        %6387 = vmatpush2.bf16.msra.mxu0 0
        %6388 = vmatprep.subr.bf16.mxu0 0
        %6389 = vmatpush2.bf16.msra.mxu0 0
        %6390 = vmatprep.subr.bf16.mxu0 0
        %6391 = vmatpush2.bf16.msra.mxu0 0
        %6392 = vmatprep.subr.bf16.mxu0 0
        %6393 = vmatpush2.bf16.msra.mxu0 0
        %6394 = vmatprep.subr.bf16.mxu0 0
        %6395 = vmatpush2.bf16.msra.mxu0 0
        %6396 = vmatprep.subr.bf16.mxu0 0
        %6397 = vmatpush2.bf16.msra.mxu0 0
        %6398 = vmatprep.subr.bf16.mxu0 0
        %6399 = vmatpush2.bf16.msra.mxu0 0
        %6400 = vmatprep.subr.bf16.mxu0 0
        %6401 = vmatpush2.bf16.msra.mxu0 0
        %6402 = vmatprep.mubr.bf16.mxu0 0
        %6403 = vmatmul.mubr.bf16.gmra.mxu0 %v6353
        %v6404 = vpop.f32.mrf.mxu0
        %v6405 = vadd.f32 0.0, %v6404
        %v6406 = vpop.f32.mrf.mxu0
        %v6407 = vpop.f32.mrf.mxu0
        %v6408 = vadd.f32 0.0, %v6407
        %v6409 = vpop.f32.mrf.mxu0
        %6410 = vmatprep.mubr.bf16.mxu0 0
        %6411 = vmatmul.mubr.bf16.gmra.mxu0 %v6356
        %v6412 = vpop.f32.mrf.mxu0
        %v6413 = vadd.f32 0.0, %v6412
        %v6414 = vpop.f32.mrf.mxu0
        %v6415 = vpop.f32.mrf.mxu0
        %v6416 = vadd.f32 0.0, %v6415
        %v6417 = vpop.f32.mrf.mxu0
        %6418 = vmatprep.mubr.bf16.mxu0 0
        %6419 = vmatmul.mubr.bf16.gmra.mxu0 %v6359
        %v6420 = vpop.f32.mrf.mxu0
        %v6421 = vadd.f32 0.0, %v6420
        %v6422 = vpop.f32.mrf.mxu0
        %v6423 = vpop.f32.mrf.mxu0
        %v6424 = vadd.f32 0.0, %v6423
        %v6425 = vpop.f32.mrf.mxu0
        %6426 = vmatprep.mubr.bf16.mxu0 0
        %6427 = vmatmul.mubr.bf16.gmra.mxu0 %v6362
        %v6428 = vpop.f32.mrf.mxu0
        %v6429 = vadd.f32 0.0, %v6428
        %v6430 = vpop.f32.mrf.mxu0
        %v6431 = vpop.f32.mrf.mxu0
        %v6432 = vadd.f32 0.0, %v6431
        %v6433 = vpop.f32.mrf.mxu0
        %6434 = vmatprep.mubr.bf16.mxu0 0
        %6435 = vmatmul.mubr.bf16.gmra.mxu0 %v6365
        %v6436 = vpop.f32.mrf.mxu0
        %v6437 = vadd.f32 0.0, %v6436
        %v6438 = vpop.f32.mrf.mxu0
        %v6439 = vpop.f32.mrf.mxu0
        %v6440 = vpop.f32.mrf.mxu0
        %6441 = vdwg.mxu0
        %v6442 = vld [vmem:[%s181] sm:$0xff]
        %v6443 = vld [vmem:[%s181 + $0x8] sm:$0xff]
        %v6444 = vld [vmem:[%s181 + $0x10] sm:$0xff]
        %v6445 = vld [vmem:[%s181 + $0x18] sm:$0xff]
        %v6446 = vld [vmem:[%s181 + $0x20] sm:$0xff]
        %v6447 = vld [vmem:[%s181 + $0x28] sm:$0xff]
        %v6448 = vld [vmem:[%s181 + $0x30] sm:$0xff]
        %v6449 = vld [vmem:[%s181 + $0x38] sm:$0xff]
        %v6450 = vld [vmem:[%s181 + $0x40] sm:$0x3f]
        %v6451 = vadd.f32 %v6442, %v6405
        %v6452 = vadd.f32 %v6443, %v6408
        %v6453 = vadd.f32 %v6444, %v6413
        %v6454 = vadd.f32 %v6445, %v6416
        %v6455 = vadd.f32 %v6446, %v6421
        %v6456 = vadd.f32 %v6447, %v6424
        %v6457 = vadd.f32 %v6448, %v6429
        %v6458 = vadd.f32 %v6449, %v6432
        %v6459 = vadd.f32 %v6450, %v6437
        %6460 = vst.msk [vmem:[%s181] sm:$0xff] %vm308, %v6451
        %6461 = vst.msk [vmem:[%s181 + $0x8] sm:$0xff] %vm308, %v6452
        %6462 = vst.msk [vmem:[%s181 + $0x10] sm:$0xff] %vm308, %v6453
        %6463 = vst.msk [vmem:[%s181 + $0x18] sm:$0xff] %vm308, %v6454
        %6464 = vst.msk [vmem:[%s181 + $0x20] sm:$0xff] %vm308, %v6455
        %6465 = vst.msk [vmem:[%s181 + $0x28] sm:$0xff] %vm308, %v6456
        %6466 = vst.msk [vmem:[%s181 + $0x30] sm:$0xff] %vm308, %v6457
        %6467 = vst.msk [vmem:[%s181 + $0x38] sm:$0xff] %vm308, %v6458
        %6468 = vst.msk [vmem:[%s181 + $0x40] sm:$0x3f] %vm317, %v6459
        %v6469 = vld [vmem:[%s176 + $0xac] sm:$0x8]
        %v6470 = vld [vmem:[%s176 + $0xb0] sm:$0xf]
        %v6471 = vld [vmem:[%s176 + $0xb4] sm:$0xf]
        %v6472 = vld [vmem:[%s176 + $0xb8] sm:$0xf]
        %v6473 = vld [vmem:[%s176 + $0xbc] sm:$0xf]
        %v6474 = vld [vmem:[%s176 + $0xc0] sm:$0xf]
        %v6475 = vld [vmem:[%s176 + $0xc4] sm:$0xf]
        %v6476 = vld [vmem:[%s176 + $0xc8] sm:$0xf]
        %v6477 = vld [vmem:[%s176 + $0xcc] sm:$0xf]
        %v6478 = vld [vmem:[%s176 + $0xd0] sm:$0x3]
        %s6479 = scalar_lea.vmem %s1, 144
        %v6480 = vld [vmem:[%s6479] sm:$0xf]
        %v6491 = vunpack.c.l.b16 %v6469
        %v6492 = vunpack.c.l.b16 %v6470
        %v6493 = vunpack.c.l.b16 %v6471
        %v6494 = vunpack.c.l.b16 %v6472
        %v6495 = vunpack.c.l.b16 %v6473
        %v6496 = vunpack.c.l.b16 %v6474
        %v6497 = vunpack.c.l.b16 %v6475
        %v6498 = vunpack.c.l.b16 %v6476
        %v6499 = vunpack.c.l.b16 %v6477
        %v6500 = vunpack.c.l.b16 %v6478
        %v6501 = vpack.c.b16 %v6492, %v6491
        %v6502 = vpack.c.b16 %v6494, %v6493
        %v6503 = vpack.c.b16 %v6496, %v6495
        %v6504 = vpack.c.b16 %v6498, %v6497
        %v6505 = vpack.c.b16 %v6500, %v6499
        %v6506 = vrot.slane %v6501, 3
        %v6507 = vrot.slane %v6502, 3
        %v6508 = vsel %vm356, %v6506, %v6507
        %v6509 = vrot.slane %v6503, 3
        %v6510 = vsel %vm356, %v6507, %v6509
        %v6511 = vrot.slane %v6504, 3
        %v6512 = vsel %vm356, %v6509, %v6511
        %v6513 = vrot.slane %v6505, 3
        %v6514 = vsel %vm356, %v6511, %v6513
        %v6516 = vsel %vm216, %v6508, 0
        %v6519 = vsel %vm216, %v6510, 0
        %v6522 = vsel %vm216, %v6512, 0
        %v6525 = vsel %vm216, %v6514, 0
        %v6528 = vsel %vm216, %v6513, 0
        %v6531 = vsel %vm232, %v6480, 0
        %6533 = vmatprep.subr.bf16.mxu0 0
        %6534 = vmatpush1.bf16.msra.mxu0 0
        %6535 = vmatprep.subr.bf16.mxu0 0
        %6536 = vmatpush1.bf16.msra.mxu0 0
        %6537 = vmatprep.subr.bf16.mxu0 0
        %6538 = vmatpush1.bf16.msra.mxu0 0
        %6539 = vmatprep.subr.bf16.mxu0 0
        %6540 = vmatpush1.bf16.msra.mxu0 0
        %6541 = vmatprep.subr.bf16.mxu0 0
        %6542 = vmatpush1.bf16.msra.mxu0 0
        %6543 = vmatprep.subr.bf16.mxu0 0
        %6544 = vmatpush1.bf16.msra.mxu0 0
        %6545 = vmatprep.subr.bf16.mxu0 0
        %6546 = vmatpush1.bf16.msra.mxu0 0
        %6547 = vmatprep.subr.bf16.mxu0 0
        %6548 = vmatpush1.bf16.msra.mxu0 %v6531
        %6549 = vmatprep.subr.bf16.mxu0 0
        %6550 = vmatpush2.bf16.msra.mxu0 0
        %6551 = vmatprep.subr.bf16.mxu0 0
        %6552 = vmatpush2.bf16.msra.mxu0 0
        %6553 = vmatprep.subr.bf16.mxu0 0
        %6554 = vmatpush2.bf16.msra.mxu0 0
        %6555 = vmatprep.subr.bf16.mxu0 0
        %6556 = vmatpush2.bf16.msra.mxu0 0
        %6557 = vmatprep.subr.bf16.mxu0 0
        %6558 = vmatpush2.bf16.msra.mxu0 0
        %6559 = vmatprep.subr.bf16.mxu0 0
        %6560 = vmatpush2.bf16.msra.mxu0 0
        %6561 = vmatprep.subr.bf16.mxu0 0
        %6562 = vmatpush2.bf16.msra.mxu0 0
        %6563 = vmatprep.subr.bf16.mxu0 0
        %6564 = vmatpush2.bf16.msra.mxu0 0
        %6565 = vmatprep.mubr.bf16.mxu0 0
        %6566 = vmatmul.mubr.bf16.gmra.mxu0 %v6516
        %v6567 = vpop.f32.mrf.mxu0
        %v6568 = vadd.f32 0.0, %v6567
        %v6569 = vpop.f32.mrf.mxu0
        %v6570 = vpop.f32.mrf.mxu0
        %v6571 = vadd.f32 0.0, %v6570
        %v6572 = vpop.f32.mrf.mxu0
        %6573 = vmatprep.mubr.bf16.mxu0 0
        %6574 = vmatmul.mubr.bf16.gmra.mxu0 %v6519
        %v6575 = vpop.f32.mrf.mxu0
        %v6576 = vadd.f32 0.0, %v6575
        %v6577 = vpop.f32.mrf.mxu0
        %v6578 = vpop.f32.mrf.mxu0
        %v6579 = vadd.f32 0.0, %v6578
        %v6580 = vpop.f32.mrf.mxu0
        %6581 = vmatprep.mubr.bf16.mxu0 0
        %6582 = vmatmul.mubr.bf16.gmra.mxu0 %v6522
        %v6583 = vpop.f32.mrf.mxu0
        %v6584 = vadd.f32 0.0, %v6583
        %v6585 = vpop.f32.mrf.mxu0
        %v6586 = vpop.f32.mrf.mxu0
        %v6587 = vadd.f32 0.0, %v6586
        %v6588 = vpop.f32.mrf.mxu0
        %6589 = vmatprep.mubr.bf16.mxu0 0
        %6590 = vmatmul.mubr.bf16.gmra.mxu0 %v6525
        %v6591 = vpop.f32.mrf.mxu0
        %v6592 = vadd.f32 0.0, %v6591
        %v6593 = vpop.f32.mrf.mxu0
        %v6594 = vpop.f32.mrf.mxu0
        %v6595 = vadd.f32 0.0, %v6594
        %v6596 = vpop.f32.mrf.mxu0
        %6597 = vmatprep.mubr.bf16.mxu0 0
        %6598 = vmatmul.mubr.bf16.gmra.mxu0 %v6528
        %v6599 = vpop.f32.mrf.mxu0
        %v6600 = vadd.f32 0.0, %v6599
        %v6601 = vpop.f32.mrf.mxu0
        %v6602 = vpop.f32.mrf.mxu0
        %v6603 = vpop.f32.mrf.mxu0
        %6604 = vdwg.mxu0
        %v6605 = vld [vmem:[%s181] sm:$0xff]
        %v6606 = vld [vmem:[%s181 + $0x8] sm:$0xff]
        %v6607 = vld [vmem:[%s181 + $0x10] sm:$0xff]
        %v6608 = vld [vmem:[%s181 + $0x18] sm:$0xff]
        %v6609 = vld [vmem:[%s181 + $0x20] sm:$0xff]
        %v6610 = vld [vmem:[%s181 + $0x28] sm:$0xff]
        %v6611 = vld [vmem:[%s181 + $0x30] sm:$0xff]
        %v6612 = vld [vmem:[%s181 + $0x38] sm:$0xff]
        %v6613 = vld [vmem:[%s181 + $0x40] sm:$0x3f]
        %v6614 = vadd.f32 %v6605, %v6568
        %v6615 = vadd.f32 %v6606, %v6571
        %v6616 = vadd.f32 %v6607, %v6576
        %v6617 = vadd.f32 %v6608, %v6579
        %v6618 = vadd.f32 %v6609, %v6584
        %v6619 = vadd.f32 %v6610, %v6587
        %v6620 = vadd.f32 %v6611, %v6592
        %v6621 = vadd.f32 %v6612, %v6595
        %v6622 = vadd.f32 %v6613, %v6600
        %6623 = vst.msk [vmem:[%s181] sm:$0xff] %vm308, %v6614
        %6624 = vst.msk [vmem:[%s181 + $0x8] sm:$0xff] %vm308, %v6615
        %6625 = vst.msk [vmem:[%s181 + $0x10] sm:$0xff] %vm308, %v6616
        %6626 = vst.msk [vmem:[%s181 + $0x18] sm:$0xff] %vm308, %v6617
        %6627 = vst.msk [vmem:[%s181 + $0x20] sm:$0xff] %vm308, %v6618
        %6628 = vst.msk [vmem:[%s181 + $0x28] sm:$0xff] %vm308, %v6619
        %6629 = vst.msk [vmem:[%s181 + $0x30] sm:$0xff] %vm308, %v6620
        %6630 = vst.msk [vmem:[%s181 + $0x38] sm:$0xff] %vm308, %v6621
        %6631 = vst.msk [vmem:[%s181 + $0x40] sm:$0x3f] %vm317, %v6622
        %v6632 = vld [vmem:[%s176 + $0x78] sm:$0xf]
        %v6633 = vld [vmem:[%s176 + $0x7c] sm:$0xf]
        %v6634 = vld [vmem:[%s176 + $0x80] sm:$0xf]
        %v6635 = vld [vmem:[%s176 + $0x84] sm:$0xf]
        %v6636 = vld [vmem:[%s176 + $0x88] sm:$0xf]
        %v6637 = vld [vmem:[%s176 + $0x8c] sm:$0xf]
        %v6638 = vld [vmem:[%s176 + $0x90] sm:$0xf]
        %v6639 = vld [vmem:[%s176 + $0x94] sm:$0xf]
        %v6640 = vld [vmem:[%s176 + $0x98] sm:$0xf]
        %s6641 = scalar_lea.vmem %s1, 148
        %v6642 = vld [vmem:[%s6641] sm:$0xf]
        %v6652 = vunpack.c.l.b16 %v6632
        %v6653 = vunpack.c.l.b16 %v6633
        %v6654 = vunpack.c.l.b16 %v6634
        %v6655 = vunpack.c.l.b16 %v6635
        %v6656 = vunpack.c.l.b16 %v6636
        %v6657 = vunpack.c.l.b16 %v6637
        %v6658 = vunpack.c.l.b16 %v6638
        %v6659 = vunpack.c.l.b16 %v6639
        %v6660 = vunpack.c.l.b16 %v6640
        %v6661 = vpack.c.b16 %v6653, %v6652
        %v6662 = vpack.c.b16 %v6655, %v6654
        %v6663 = vpack.c.b16 %v6657, %v6656
        %v6664 = vpack.c.b16 %v6659, %v6658
        %v6665 = vpack.c.b16 %v6660, %v6660
        %v6667 = vshrl.u32 %v6661, 16
        %v6669 = vshll.u32 %v6661, 16
        %v6671 = vrot.slane %v6669, 1
        %v6672 = vor.u32 %v6667, %v6671
        %v6674 = vshll.u32 %v6662, 16
        %v6676 = vrot.slane %v6674, 1
        %v6677 = vsel %vm517, %v6672, %v6676
        %v6678 = vshrl.u32 %v6662, 16
        %v6680 = vor.u32 %v6678, %v6676
        %v6682 = vshll.u32 %v6663, 16
        %v6684 = vrot.slane %v6682, 1
        %v6685 = vsel %vm517, %v6680, %v6684
        %v6686 = vshrl.u32 %v6663, 16
        %v6688 = vor.u32 %v6686, %v6684
        %v6690 = vshll.u32 %v6664, 16
        %v6692 = vrot.slane %v6690, 1
        %v6693 = vsel %vm517, %v6688, %v6692
        %v6694 = vshrl.u32 %v6664, 16
        %v6696 = vor.u32 %v6694, %v6692
        %v6698 = vshll.u32 %v6665, 16
        %v6700 = vrot.slane %v6698, 1
        %v6701 = vsel %vm517, %v6696, %v6700
        %v6702 = vshrl.u32 %v6665, 16
        %v6704 = vor.u32 %v6702, %v6700
        %v6706 = vsel %vm216, %v6677, 0
        %v6709 = vsel %vm216, %v6685, 0
        %v6712 = vsel %vm216, %v6693, 0
        %v6715 = vsel %vm216, %v6701, 0
        %v6718 = vsel %vm216, %v6704, 0
        %v6721 = vsel %vm232, %v6642, 0
        %6723 = vmatprep.subr.bf16.mxu0 0
        %6724 = vmatpush1.bf16.msra.mxu0 0
        %6725 = vmatprep.subr.bf16.mxu0 0
        %6726 = vmatpush1.bf16.msra.mxu0 0
        %6727 = vmatprep.subr.bf16.mxu0 0
        %6728 = vmatpush1.bf16.msra.mxu0 0
        %6729 = vmatprep.subr.bf16.mxu0 0
        %6730 = vmatpush1.bf16.msra.mxu0 0
        %6731 = vmatprep.subr.bf16.mxu0 0
        %6732 = vmatpush1.bf16.msra.mxu0 0
        %6733 = vmatprep.subr.bf16.mxu0 0
        %6734 = vmatpush1.bf16.msra.mxu0 0
        %6735 = vmatprep.subr.bf16.mxu0 0
        %6736 = vmatpush1.bf16.msra.mxu0 0
        %6737 = vmatprep.subr.bf16.mxu0 0
        %6738 = vmatpush1.bf16.msra.mxu0 %v6721
        %6739 = vmatprep.subr.bf16.mxu0 0
        %6740 = vmatpush2.bf16.msra.mxu0 0
        %6741 = vmatprep.subr.bf16.mxu0 0
        %6742 = vmatpush2.bf16.msra.mxu0 0
        %6743 = vmatprep.subr.bf16.mxu0 0
        %6744 = vmatpush2.bf16.msra.mxu0 0
        %6745 = vmatprep.subr.bf16.mxu0 0
        %6746 = vmatpush2.bf16.msra.mxu0 0
        %6747 = vmatprep.subr.bf16.mxu0 0
        %6748 = vmatpush2.bf16.msra.mxu0 0
        %6749 = vmatprep.subr.bf16.mxu0 0
        %6750 = vmatpush2.bf16.msra.mxu0 0
        %6751 = vmatprep.subr.bf16.mxu0 0
        %6752 = vmatpush2.bf16.msra.mxu0 0
        %6753 = vmatprep.subr.bf16.mxu0 0
        %6754 = vmatpush2.bf16.msra.mxu0 0
        %6755 = vmatprep.mubr.bf16.mxu0 0
        %6756 = vmatmul.mubr.bf16.gmra.mxu0 %v6706
        %v6757 = vpop.f32.mrf.mxu0
        %v6758 = vadd.f32 0.0, %v6757
        %v6759 = vpop.f32.mrf.mxu0
        %v6760 = vpop.f32.mrf.mxu0
        %v6761 = vadd.f32 0.0, %v6760
        %v6762 = vpop.f32.mrf.mxu0
        %6763 = vmatprep.mubr.bf16.mxu0 0
        %6764 = vmatmul.mubr.bf16.gmra.mxu0 %v6709
        %v6765 = vpop.f32.mrf.mxu0
        %v6766 = vadd.f32 0.0, %v6765
        %v6767 = vpop.f32.mrf.mxu0
        %v6768 = vpop.f32.mrf.mxu0
        %v6769 = vadd.f32 0.0, %v6768
        %v6770 = vpop.f32.mrf.mxu0
        %6771 = vmatprep.mubr.bf16.mxu0 0
        %6772 = vmatmul.mubr.bf16.gmra.mxu0 %v6712
        %v6773 = vpop.f32.mrf.mxu0
        %v6774 = vadd.f32 0.0, %v6773
        %v6775 = vpop.f32.mrf.mxu0
        %v6776 = vpop.f32.mrf.mxu0
        %v6777 = vadd.f32 0.0, %v6776
        %v6778 = vpop.f32.mrf.mxu0
        %6779 = vmatprep.mubr.bf16.mxu0 0
        %6780 = vmatmul.mubr.bf16.gmra.mxu0 %v6715
        %v6781 = vpop.f32.mrf.mxu0
        %v6782 = vadd.f32 0.0, %v6781
        %v6783 = vpop.f32.mrf.mxu0
        %v6784 = vpop.f32.mrf.mxu0
        %v6785 = vadd.f32 0.0, %v6784
        %v6786 = vpop.f32.mrf.mxu0
        %6787 = vmatprep.mubr.bf16.mxu0 0
        %6788 = vmatmul.mubr.bf16.gmra.mxu0 %v6718
        %v6789 = vpop.f32.mrf.mxu0
        %v6790 = vadd.f32 0.0, %v6789
        %v6791 = vpop.f32.mrf.mxu0
        %v6792 = vpop.f32.mrf.mxu0
        %v6793 = vpop.f32.mrf.mxu0
        %6794 = vdwg.mxu0
        %v6795 = vld [vmem:[%s181] sm:$0xff]
        %v6796 = vld [vmem:[%s181 + $0x8] sm:$0xff]
        %v6797 = vld [vmem:[%s181 + $0x10] sm:$0xff]
        %v6798 = vld [vmem:[%s181 + $0x18] sm:$0xff]
        %v6799 = vld [vmem:[%s181 + $0x20] sm:$0xff]
        %v6800 = vld [vmem:[%s181 + $0x28] sm:$0xff]
        %v6801 = vld [vmem:[%s181 + $0x30] sm:$0xff]
        %v6802 = vld [vmem:[%s181 + $0x38] sm:$0xff]
        %v6803 = vld [vmem:[%s181 + $0x40] sm:$0x3f]
        %v6804 = vadd.f32 %v6795, %v6758
        %v6805 = vadd.f32 %v6796, %v6761
        %v6806 = vadd.f32 %v6797, %v6766
        %v6807 = vadd.f32 %v6798, %v6769
        %v6808 = vadd.f32 %v6799, %v6774
        %v6809 = vadd.f32 %v6800, %v6777
        %v6810 = vadd.f32 %v6801, %v6782
        %v6811 = vadd.f32 %v6802, %v6785
        %v6812 = vadd.f32 %v6803, %v6790
        %6813 = vst.msk [vmem:[%s181] sm:$0xff] %vm308, %v6804
        %6814 = vst.msk [vmem:[%s181 + $0x8] sm:$0xff] %vm308, %v6805
        %6815 = vst.msk [vmem:[%s181 + $0x10] sm:$0xff] %vm308, %v6806
        %6816 = vst.msk [vmem:[%s181 + $0x18] sm:$0xff] %vm308, %v6807
        %6817 = vst.msk [vmem:[%s181 + $0x20] sm:$0xff] %vm308, %v6808
        %6818 = vst.msk [vmem:[%s181 + $0x28] sm:$0xff] %vm308, %v6809
        %6819 = vst.msk [vmem:[%s181 + $0x30] sm:$0xff] %vm308, %v6810
        %6820 = vst.msk [vmem:[%s181 + $0x38] sm:$0xff] %vm308, %v6811
        %6821 = vst.msk [vmem:[%s181 + $0x40] sm:$0x3f] %vm317, %v6812
        %v6822 = vld [vmem:[%s176 + $0xac] sm:$0x8]
        %v6823 = vld [vmem:[%s176 + $0xb0] sm:$0xf]
        %v6824 = vld [vmem:[%s176 + $0xb4] sm:$0xf]
        %v6825 = vld [vmem:[%s176 + $0xb8] sm:$0xf]
        %v6826 = vld [vmem:[%s176 + $0xbc] sm:$0xf]
        %v6827 = vld [vmem:[%s176 + $0xc0] sm:$0xf]
        %v6828 = vld [vmem:[%s176 + $0xc4] sm:$0xf]
        %v6829 = vld [vmem:[%s176 + $0xc8] sm:$0xf]
        %v6830 = vld [vmem:[%s176 + $0xcc] sm:$0xf]
        %v6831 = vld [vmem:[%s176 + $0xd0] sm:$0x7]
        %s6832 = scalar_lea.vmem %s1, 152
        %v6833 = vld [vmem:[%s6832] sm:$0xf]
        %v6844 = vunpack.c.l.b16 %v6822
        %v6845 = vunpack.c.l.b16 %v6823
        %v6846 = vunpack.c.l.b16 %v6824
        %v6847 = vunpack.c.l.b16 %v6825
        %v6848 = vunpack.c.l.b16 %v6826
        %v6849 = vunpack.c.l.b16 %v6827
        %v6850 = vunpack.c.l.b16 %v6828
        %v6851 = vunpack.c.l.b16 %v6829
        %v6852 = vunpack.c.l.b16 %v6830
        %v6853 = vunpack.c.l.b16 %v6831
        %v6854 = vpack.c.b16 %v6845, %v6844
        %v6855 = vpack.c.b16 %v6847, %v6846
        %v6856 = vpack.c.b16 %v6849, %v6848
        %v6857 = vpack.c.b16 %v6851, %v6850
        %v6858 = vpack.c.b16 %v6853, %v6852
        %v6860 = vshrl.u32 %v6854, 16
        %v6862 = vrot.slane %v6860, 3
        %v6863 = vshll.u32 %v6854, 16
        %v6865 = vrot.slane %v6863, 4
        %v6866 = vor.u32 %v6862, %v6865
        %v6868 = vshrl.u32 %v6855, 16
        %v6870 = vrot.slane %v6868, 3
        %v6871 = vshll.u32 %v6855, 16
        %v6873 = vrot.slane %v6871, 4
        %v6874 = vor.u32 %v6870, %v6873
        %v6875 = vsel %vm711, %v6866, %v6874
        %v6877 = vshrl.u32 %v6856, 16
        %v6879 = vrot.slane %v6877, 3
        %v6880 = vshll.u32 %v6856, 16
        %v6882 = vrot.slane %v6880, 4
        %v6883 = vor.u32 %v6879, %v6882
        %v6884 = vsel %vm711, %v6874, %v6883
        %v6886 = vshrl.u32 %v6857, 16
        %v6888 = vrot.slane %v6886, 3
        %v6889 = vshll.u32 %v6857, 16
        %v6891 = vrot.slane %v6889, 4
        %v6892 = vor.u32 %v6888, %v6891
        %v6893 = vsel %vm711, %v6883, %v6892
        %v6895 = vshrl.u32 %v6858, 16
        %v6897 = vrot.slane %v6895, 3
        %v6898 = vshll.u32 %v6858, 16
        %v6900 = vrot.slane %v6898, 4
        %v6901 = vor.u32 %v6897, %v6900
        %v6902 = vsel %vm711, %v6892, %v6901
        %v6904 = vsel %vm216, %v6875, 0
        %v6907 = vsel %vm216, %v6884, 0
        %v6910 = vsel %vm216, %v6893, 0
        %v6913 = vsel %vm216, %v6902, 0
        %v6916 = vsel %vm216, %v6901, 0
        %v6919 = vsel %vm232, %v6833, 0
        %6921 = vmatprep.subr.bf16.mxu0 0
        %6922 = vmatpush1.bf16.msra.mxu0 0
        %6923 = vmatprep.subr.bf16.mxu0 0
        %6924 = vmatpush1.bf16.msra.mxu0 0
        %6925 = vmatprep.subr.bf16.mxu0 0
        %6926 = vmatpush1.bf16.msra.mxu0 0
        %6927 = vmatprep.subr.bf16.mxu0 0
        %6928 = vmatpush1.bf16.msra.mxu0 0
        %6929 = vmatprep.subr.bf16.mxu0 0
        %6930 = vmatpush1.bf16.msra.mxu0 0
        %6931 = vmatprep.subr.bf16.mxu0 0
        %6932 = vmatpush1.bf16.msra.mxu0 0
        %6933 = vmatprep.subr.bf16.mxu0 0
        %6934 = vmatpush1.bf16.msra.mxu0 0
        %6935 = vmatprep.subr.bf16.mxu0 0
        %6936 = vmatpush1.bf16.msra.mxu0 %v6919
        %6937 = vmatprep.subr.bf16.mxu0 0
        %6938 = vmatpush2.bf16.msra.mxu0 0
        %6939 = vmatprep.subr.bf16.mxu0 0
        %6940 = vmatpush2.bf16.msra.mxu0 0
        %6941 = vmatprep.subr.bf16.mxu0 0
        %6942 = vmatpush2.bf16.msra.mxu0 0
        %6943 = vmatprep.subr.bf16.mxu0 0
        %6944 = vmatpush2.bf16.msra.mxu0 0
        %6945 = vmatprep.subr.bf16.mxu0 0
        %6946 = vmatpush2.bf16.msra.mxu0 0
        %6947 = vmatprep.subr.bf16.mxu0 0
        %6948 = vmatpush2.bf16.msra.mxu0 0
        %6949 = vmatprep.subr.bf16.mxu0 0
        %6950 = vmatpush2.bf16.msra.mxu0 0
        %6951 = vmatprep.subr.bf16.mxu0 0
        %6952 = vmatpush2.bf16.msra.mxu0 0
        %6953 = vmatprep.mubr.bf16.mxu0 0
        %6954 = vmatmul.mubr.bf16.gmra.mxu0 %v6904
        %v6955 = vpop.f32.mrf.mxu0
        %v6956 = vadd.f32 0.0, %v6955
        %v6957 = vpop.f32.mrf.mxu0
        %v6958 = vpop.f32.mrf.mxu0
        %v6959 = vadd.f32 0.0, %v6958
        %v6960 = vpop.f32.mrf.mxu0
        %6961 = vmatprep.mubr.bf16.mxu0 0
        %6962 = vmatmul.mubr.bf16.gmra.mxu0 %v6907
        %v6963 = vpop.f32.mrf.mxu0
        %v6964 = vadd.f32 0.0, %v6963
        %v6965 = vpop.f32.mrf.mxu0
        %v6966 = vpop.f32.mrf.mxu0
        %v6967 = vadd.f32 0.0, %v6966
        %v6968 = vpop.f32.mrf.mxu0
        %6969 = vmatprep.mubr.bf16.mxu0 0
        %6970 = vmatmul.mubr.bf16.gmra.mxu0 %v6910
        %v6971 = vpop.f32.mrf.mxu0
        %v6972 = vadd.f32 0.0, %v6971
        %v6973 = vpop.f32.mrf.mxu0
        %v6974 = vpop.f32.mrf.mxu0
        %v6975 = vadd.f32 0.0, %v6974
        %v6976 = vpop.f32.mrf.mxu0
        %6977 = vmatprep.mubr.bf16.mxu0 0
        %6978 = vmatmul.mubr.bf16.gmra.mxu0 %v6913
        %v6979 = vpop.f32.mrf.mxu0
        %v6980 = vadd.f32 0.0, %v6979
        %v6981 = vpop.f32.mrf.mxu0
        %v6982 = vpop.f32.mrf.mxu0
        %v6983 = vadd.f32 0.0, %v6982
        %v6984 = vpop.f32.mrf.mxu0
        %6985 = vmatprep.mubr.bf16.mxu0 0
        %6986 = vmatmul.mubr.bf16.gmra.mxu0 %v6916
        %v6987 = vpop.f32.mrf.mxu0
        %v6988 = vadd.f32 0.0, %v6987
        %v6989 = vpop.f32.mrf.mxu0
        %v6990 = vpop.f32.mrf.mxu0
        %v6991 = vpop.f32.mrf.mxu0
        %6992 = vdwg.mxu0
        %v6993 = vld [vmem:[%s181] sm:$0xff]
        %v6994 = vld [vmem:[%s181 + $0x8] sm:$0xff]
        %v6995 = vld [vmem:[%s181 + $0x10] sm:$0xff]
        %v6996 = vld [vmem:[%s181 + $0x18] sm:$0xff]
        %v6997 = vld [vmem:[%s181 + $0x20] sm:$0xff]
        %v6998 = vld [vmem:[%s181 + $0x28] sm:$0xff]
        %v6999 = vld [vmem:[%s181 + $0x30] sm:$0xff]
        %v7000 = vld [vmem:[%s181 + $0x38] sm:$0xff]
        %v7001 = vld [vmem:[%s181 + $0x40] sm:$0x3f]
        %v7002 = vadd.f32 %v6993, %v6956
        %v7003 = vadd.f32 %v6994, %v6959
        %v7004 = vadd.f32 %v6995, %v6964
        %v7005 = vadd.f32 %v6996, %v6967
        %v7006 = vadd.f32 %v6997, %v6972
        %v7007 = vadd.f32 %v6998, %v6975
        %v7008 = vadd.f32 %v6999, %v6980
        %v7009 = vadd.f32 %v7000, %v6983
        %v7010 = vadd.f32 %v7001, %v6988
        %7011 = vst.msk [vmem:[%s181] sm:$0xff] %vm308, %v7002
        %7012 = vst.msk [vmem:[%s181 + $0x8] sm:$0xff] %vm308, %v7003
        %7013 = vst.msk [vmem:[%s181 + $0x10] sm:$0xff] %vm308, %v7004
        %7014 = vst.msk [vmem:[%s181 + $0x18] sm:$0xff] %vm308, %v7005
        %7015 = vst.msk [vmem:[%s181 + $0x20] sm:$0xff] %vm308, %v7006
        %7016 = vst.msk [vmem:[%s181 + $0x28] sm:$0xff] %vm308, %v7007
        %7017 = vst.msk [vmem:[%s181 + $0x30] sm:$0xff] %vm308, %v7008
        %7018 = vst.msk [vmem:[%s181 + $0x38] sm:$0xff] %vm308, %v7009
        %7019 = vst.msk [vmem:[%s181 + $0x40] sm:$0x3f] %vm317, %v7010
        %v7020 = vld [vmem:[%s176 + $0x78] sm:$0xe]
        %v7021 = vld [vmem:[%s176 + $0x7c] sm:$0xf]
        %v7022 = vld [vmem:[%s176 + $0x80] sm:$0xf]
        %v7023 = vld [vmem:[%s176 + $0x84] sm:$0xf]
        %v7024 = vld [vmem:[%s176 + $0x88] sm:$0xf]
        %v7025 = vld [vmem:[%s176 + $0x8c] sm:$0xf]
        %v7026 = vld [vmem:[%s176 + $0x90] sm:$0xf]
        %v7027 = vld [vmem:[%s176 + $0x94] sm:$0xf]
        %v7028 = vld [vmem:[%s176 + $0x98] sm:$0xf]
        %s7029 = scalar_lea.vmem %s1, 156
        %v7030 = vld [vmem:[%s7029] sm:$0xf]
        %v7040 = vunpack.c.l.b16 %v7020
        %v7041 = vunpack.c.l.b16 %v7021
        %v7042 = vunpack.c.l.b16 %v7022
        %v7043 = vunpack.c.l.b16 %v7023
        %v7044 = vunpack.c.l.b16 %v7024
        %v7045 = vunpack.c.l.b16 %v7025
        %v7046 = vunpack.c.l.b16 %v7026
        %v7047 = vunpack.c.l.b16 %v7027
        %v7048 = vunpack.c.l.b16 %v7028
        %v7049 = vpack.c.b16 %v7041, %v7040
        %v7050 = vpack.c.b16 %v7043, %v7042
        %v7051 = vpack.c.b16 %v7045, %v7044
        %v7052 = vpack.c.b16 %v7047, %v7046
        %v7053 = vpack.c.b16 %v7048, %v7048
        %v7054 = vrot.slane %v7049, 1
        %v7055 = vrot.slane %v7050, 1
        %v7056 = vsel %vm907, %v7054, %v7055
        %v7057 = vrot.slane %v7051, 1
        %v7058 = vsel %vm907, %v7055, %v7057
        %v7059 = vrot.slane %v7052, 1
        %v7060 = vsel %vm907, %v7057, %v7059
        %v7061 = vrot.slane %v7053, 1
        %v7062 = vsel %vm907, %v7059, %v7061
        %v7064 = vsel %vm216, %v7056, 0
        %v7067 = vsel %vm216, %v7058, 0
        %v7070 = vsel %vm216, %v7060, 0
        %v7073 = vsel %vm216, %v7062, 0
        %v7076 = vsel %vm216, %v7061, 0
        %v7079 = vsel %vm232, %v7030, 0
        %7081 = vmatprep.subr.bf16.mxu0 0
        %7082 = vmatpush1.bf16.msra.mxu0 0
        %7083 = vmatprep.subr.bf16.mxu0 0
        %7084 = vmatpush1.bf16.msra.mxu0 0
        %7085 = vmatprep.subr.bf16.mxu0 0
        %7086 = vmatpush1.bf16.msra.mxu0 0
        %7087 = vmatprep.subr.bf16.mxu0 0
        %7088 = vmatpush1.bf16.msra.mxu0 0
        %7089 = vmatprep.subr.bf16.mxu0 0
        %7090 = vmatpush1.bf16.msra.mxu0 0
        %7091 = vmatprep.subr.bf16.mxu0 0
        %7092 = vmatpush1.bf16.msra.mxu0 0
        %7093 = vmatprep.subr.bf16.mxu0 0
        %7094 = vmatpush1.bf16.msra.mxu0 0
        %7095 = vmatprep.subr.bf16.mxu0 0
        %7096 = vmatpush1.bf16.msra.mxu0 %v7079
        %7097 = vmatprep.subr.bf16.mxu0 0
        %7098 = vmatpush2.bf16.msra.mxu0 0
        %7099 = vmatprep.subr.bf16.mxu0 0
        %7100 = vmatpush2.bf16.msra.mxu0 0
        %7101 = vmatprep.subr.bf16.mxu0 0
        %7102 = vmatpush2.bf16.msra.mxu0 0
        %7103 = vmatprep.subr.bf16.mxu0 0
        %7104 = vmatpush2.bf16.msra.mxu0 0
        %7105 = vmatprep.subr.bf16.mxu0 0
        %7106 = vmatpush2.bf16.msra.mxu0 0
        %7107 = vmatprep.subr.bf16.mxu0 0
        %7108 = vmatpush2.bf16.msra.mxu0 0
        %7109 = vmatprep.subr.bf16.mxu0 0
        %7110 = vmatpush2.bf16.msra.mxu0 0
        %7111 = vmatprep.subr.bf16.mxu0 0
        %7112 = vmatpush2.bf16.msra.mxu0 0
        %7113 = vmatprep.mubr.bf16.mxu0 0
        %7114 = vmatmul.mubr.bf16.gmra.mxu0 %v7064
        %v7115 = vpop.f32.mrf.mxu0
        %v7116 = vadd.f32 0.0, %v7115
        %v7117 = vpop.f32.mrf.mxu0
        %v7118 = vpop.f32.mrf.mxu0
        %v7119 = vadd.f32 0.0, %v7118
        %v7120 = vpop.f32.mrf.mxu0
        %7121 = vmatprep.mubr.bf16.mxu0 0
        %7122 = vmatmul.mubr.bf16.gmra.mxu0 %v7067
        %v7123 = vpop.f32.mrf.mxu0
        %v7124 = vadd.f32 0.0, %v7123
        %v7125 = vpop.f32.mrf.mxu0
        %v7126 = vpop.f32.mrf.mxu0
        %v7127 = vadd.f32 0.0, %v7126
        %v7128 = vpop.f32.mrf.mxu0
        %7129 = vmatprep.mubr.bf16.mxu0 0
        %7130 = vmatmul.mubr.bf16.gmra.mxu0 %v7070
        %v7131 = vpop.f32.mrf.mxu0
        %v7132 = vadd.f32 0.0, %v7131
        %v7133 = vpop.f32.mrf.mxu0
        %v7134 = vpop.f32.mrf.mxu0
        %v7135 = vadd.f32 0.0, %v7134
        %v7136 = vpop.f32.mrf.mxu0
        %7137 = vmatprep.mubr.bf16.mxu0 0
        %7138 = vmatmul.mubr.bf16.gmra.mxu0 %v7073
        %v7139 = vpop.f32.mrf.mxu0
        %v7140 = vadd.f32 0.0, %v7139
        %v7141 = vpop.f32.mrf.mxu0
        %v7142 = vpop.f32.mrf.mxu0
        %v7143 = vadd.f32 0.0, %v7142
        %v7144 = vpop.f32.mrf.mxu0
        %7145 = vmatprep.mubr.bf16.mxu0 0
        %7146 = vmatmul.mubr.bf16.gmra.mxu0 %v7076
        %v7147 = vpop.f32.mrf.mxu0
        %v7148 = vadd.f32 0.0, %v7147
        %v7149 = vpop.f32.mrf.mxu0
        %v7150 = vpop.f32.mrf.mxu0
        %v7151 = vpop.f32.mrf.mxu0
        %7152 = vdwg.mxu0
        %v7153 = vld [vmem:[%s181] sm:$0xff]
        %v7154 = vld [vmem:[%s181 + $0x8] sm:$0xff]
        %v7155 = vld [vmem:[%s181 + $0x10] sm:$0xff]
        %v7156 = vld [vmem:[%s181 + $0x18] sm:$0xff]
        %v7157 = vld [vmem:[%s181 + $0x20] sm:$0xff]
        %v7158 = vld [vmem:[%s181 + $0x28] sm:$0xff]
        %v7159 = vld [vmem:[%s181 + $0x30] sm:$0xff]
        %v7160 = vld [vmem:[%s181 + $0x38] sm:$0xff]
        %v7161 = vld [vmem:[%s181 + $0x40] sm:$0x3f]
        %v7162 = vadd.f32 %v7153, %v7116
        %v7163 = vadd.f32 %v7154, %v7119
        %v7164 = vadd.f32 %v7155, %v7124
        %v7165 = vadd.f32 %v7156, %v7127
        %v7166 = vadd.f32 %v7157, %v7132
        %v7167 = vadd.f32 %v7158, %v7135
        %v7168 = vadd.f32 %v7159, %v7140
        %v7169 = vadd.f32 %v7160, %v7143
        %v7170 = vadd.f32 %v7161, %v7148
        %7171 = vst.msk [vmem:[%s181] sm:$0xff] %vm308, %v7162
        %7172 = vst.msk [vmem:[%s181 + $0x8] sm:$0xff] %vm308, %v7163
        %7173 = vst.msk [vmem:[%s181 + $0x10] sm:$0xff] %vm308, %v7164
        %7174 = vst.msk [vmem:[%s181 + $0x18] sm:$0xff] %vm308, %v7165
        %7175 = vst.msk [vmem:[%s181 + $0x20] sm:$0xff] %vm308, %v7166
        %7176 = vst.msk [vmem:[%s181 + $0x28] sm:$0xff] %vm308, %v7167
        %7177 = vst.msk [vmem:[%s181 + $0x30] sm:$0xff] %vm308, %v7168
        %7178 = vst.msk [vmem:[%s181 + $0x38] sm:$0xff] %vm308, %v7169
        %7179 = vst.msk [vmem:[%s181 + $0x40] sm:$0x3f] %vm317, %v7170
        %v7180 = vld [vmem:[%s176 + $0xb0] sm:$0xf]
        %v7181 = vld [vmem:[%s176 + $0xb4] sm:$0xf]
        %v7182 = vld [vmem:[%s176 + $0xb8] sm:$0xf]
        %v7183 = vld [vmem:[%s176 + $0xbc] sm:$0xf]
        %v7184 = vld [vmem:[%s176 + $0xc0] sm:$0xf]
        %v7185 = vld [vmem:[%s176 + $0xc4] sm:$0xf]
        %v7186 = vld [vmem:[%s176 + $0xc8] sm:$0xf]
        %v7187 = vld [vmem:[%s176 + $0xcc] sm:$0xf]
        %v7188 = vld [vmem:[%s176 + $0xd0] sm:$0x7]
        %s7189 = scalar_lea.vmem %s1, 160
        %v7190 = vld [vmem:[%s7189] sm:$0xf]
        %v7200 = vunpack.c.l.b16 %v7180
        %v7201 = vunpack.c.l.b16 %v7181
        %v7202 = vunpack.c.l.b16 %v7182
        %v7203 = vunpack.c.l.b16 %v7183
        %v7204 = vunpack.c.l.b16 %v7184
        %v7205 = vunpack.c.l.b16 %v7185
        %v7206 = vunpack.c.l.b16 %v7186
        %v7207 = vunpack.c.l.b16 %v7187
        %v7208 = vunpack.c.l.b16 %v7188
        %v7209 = vpack.c.b16 %v7201, %v7200
        %v7210 = vpack.c.b16 %v7203, %v7202
        %v7211 = vpack.c.b16 %v7205, %v7204
        %v7212 = vpack.c.b16 %v7207, %v7206
        %v7213 = vpack.c.b16 %v7208, %v7208
        %v7215 = vsel %vm216, %v7209, 0
        %v7218 = vsel %vm216, %v7210, 0
        %v7221 = vsel %vm216, %v7211, 0
        %v7224 = vsel %vm216, %v7212, 0
        %v7227 = vsel %vm216, %v7213, 0
        %v7230 = vsel %vm232, %v7190, 0
        %7232 = vmatprep.subr.bf16.mxu0 0
        %7233 = vmatpush1.bf16.msra.mxu0 0
        %7234 = vmatprep.subr.bf16.mxu0 0
        %7235 = vmatpush1.bf16.msra.mxu0 0
        %7236 = vmatprep.subr.bf16.mxu0 0
        %7237 = vmatpush1.bf16.msra.mxu0 0
        %7238 = vmatprep.subr.bf16.mxu0 0
        %7239 = vmatpush1.bf16.msra.mxu0 0
        %7240 = vmatprep.subr.bf16.mxu0 0
        %7241 = vmatpush1.bf16.msra.mxu0 0
        %7242 = vmatprep.subr.bf16.mxu0 0
        %7243 = vmatpush1.bf16.msra.mxu0 0
        %7244 = vmatprep.subr.bf16.mxu0 0
        %7245 = vmatpush1.bf16.msra.mxu0 0
        %7246 = vmatprep.subr.bf16.mxu0 0
        %7247 = vmatpush1.bf16.msra.mxu0 %v7230
        %7248 = vmatprep.subr.bf16.mxu0 0
        %7249 = vmatpush2.bf16.msra.mxu0 0
        %7250 = vmatprep.subr.bf16.mxu0 0
        %7251 = vmatpush2.bf16.msra.mxu0 0
        %7252 = vmatprep.subr.bf16.mxu0 0
        %7253 = vmatpush2.bf16.msra.mxu0 0
        %7254 = vmatprep.subr.bf16.mxu0 0
        %7255 = vmatpush2.bf16.msra.mxu0 0
        %7256 = vmatprep.subr.bf16.mxu0 0
        %7257 = vmatpush2.bf16.msra.mxu0 0
        %7258 = vmatprep.subr.bf16.mxu0 0
        %7259 = vmatpush2.bf16.msra.mxu0 0
        %7260 = vmatprep.subr.bf16.mxu0 0
        %7261 = vmatpush2.bf16.msra.mxu0 0
        %7262 = vmatprep.subr.bf16.mxu0 0
        %7263 = vmatpush2.bf16.msra.mxu0 0
        %7264 = vmatprep.mubr.bf16.mxu0 0
        %7265 = vmatmul.mubr.bf16.gmra.mxu0 %v7215
        %v7266 = vpop.f32.mrf.mxu0
        %v7267 = vadd.f32 0.0, %v7266
        %v7268 = vpop.f32.mrf.mxu0
        %v7269 = vpop.f32.mrf.mxu0
        %v7270 = vadd.f32 0.0, %v7269
        %v7271 = vpop.f32.mrf.mxu0
        %7272 = vmatprep.mubr.bf16.mxu0 0
        %7273 = vmatmul.mubr.bf16.gmra.mxu0 %v7218
        %v7274 = vpop.f32.mrf.mxu0
        %v7275 = vadd.f32 0.0, %v7274
        %v7276 = vpop.f32.mrf.mxu0
        %v7277 = vpop.f32.mrf.mxu0
        %v7278 = vadd.f32 0.0, %v7277
        %v7279 = vpop.f32.mrf.mxu0
        %7280 = vmatprep.mubr.bf16.mxu0 0
        %7281 = vmatmul.mubr.bf16.gmra.mxu0 %v7221
        %v7282 = vpop.f32.mrf.mxu0
        %v7283 = vadd.f32 0.0, %v7282
        %v7284 = vpop.f32.mrf.mxu0
        %v7285 = vpop.f32.mrf.mxu0
        %v7286 = vadd.f32 0.0, %v7285
        %v7287 = vpop.f32.mrf.mxu0
        %7288 = vmatprep.mubr.bf16.mxu0 0
        %7289 = vmatmul.mubr.bf16.gmra.mxu0 %v7224
        %v7290 = vpop.f32.mrf.mxu0
        %v7291 = vadd.f32 0.0, %v7290
        %v7292 = vpop.f32.mrf.mxu0
        %v7293 = vpop.f32.mrf.mxu0
        %v7294 = vadd.f32 0.0, %v7293
        %v7295 = vpop.f32.mrf.mxu0
        %7296 = vmatprep.mubr.bf16.mxu0 0
        %7297 = vmatmul.mubr.bf16.gmra.mxu0 %v7227
        %v7298 = vpop.f32.mrf.mxu0
        %v7299 = vadd.f32 0.0, %v7298
        %v7300 = vpop.f32.mrf.mxu0
        %v7301 = vpop.f32.mrf.mxu0
        %v7302 = vpop.f32.mrf.mxu0
        %7303 = vdwg.mxu0
        %v7304 = vld [vmem:[%s181] sm:$0xff]
        %v7305 = vld [vmem:[%s181 + $0x8] sm:$0xff]
        %v7306 = vld [vmem:[%s181 + $0x10] sm:$0xff]
        %v7307 = vld [vmem:[%s181 + $0x18] sm:$0xff]
        %v7308 = vld [vmem:[%s181 + $0x20] sm:$0xff]
        %v7309 = vld [vmem:[%s181 + $0x28] sm:$0xff]
        %v7310 = vld [vmem:[%s181 + $0x30] sm:$0xff]
        %v7311 = vld [vmem:[%s181 + $0x38] sm:$0xff]
        %v7312 = vld [vmem:[%s181 + $0x40] sm:$0x3f]
        %v7313 = vadd.f32 %v7304, %v7267
        %v7314 = vadd.f32 %v7305, %v7270
        %v7315 = vadd.f32 %v7306, %v7275
        %v7316 = vadd.f32 %v7307, %v7278
        %v7317 = vadd.f32 %v7308, %v7283
        %v7318 = vadd.f32 %v7309, %v7286
        %v7319 = vadd.f32 %v7310, %v7291
        %v7320 = vadd.f32 %v7311, %v7294
        %v7321 = vadd.f32 %v7312, %v7299
        %7322 = vst.msk [vmem:[%s181] sm:$0xff] %vm308, %v7313
        %7323 = vst.msk [vmem:[%s181 + $0x8] sm:$0xff] %vm308, %v7314
        %7324 = vst.msk [vmem:[%s181 + $0x10] sm:$0xff] %vm308, %v7315
        %7325 = vst.msk [vmem:[%s181 + $0x18] sm:$0xff] %vm308, %v7316
        %7326 = vst.msk [vmem:[%s181 + $0x20] sm:$0xff] %vm308, %v7317
        %7327 = vst.msk [vmem:[%s181 + $0x28] sm:$0xff] %vm308, %v7318
        %7328 = vst.msk [vmem:[%s181 + $0x30] sm:$0xff] %vm308, %v7319
        %7329 = vst.msk [vmem:[%s181 + $0x38] sm:$0xff] %vm308, %v7320
        %7330 = vst.msk [vmem:[%s181 + $0x40] sm:$0x3f] %vm317, %v7321
        %v7331 = vld [vmem:[%s176 + $0x78] sm:$0xe]
        %v7332 = vld [vmem:[%s176 + $0x7c] sm:$0xf]
        %v7333 = vld [vmem:[%s176 + $0x80] sm:$0xf]
        %v7334 = vld [vmem:[%s176 + $0x84] sm:$0xf]
        %v7335 = vld [vmem:[%s176 + $0x88] sm:$0xf]
        %v7336 = vld [vmem:[%s176 + $0x8c] sm:$0xf]
        %v7337 = vld [vmem:[%s176 + $0x90] sm:$0xf]
        %v7338 = vld [vmem:[%s176 + $0x94] sm:$0xf]
        %v7339 = vld [vmem:[%s176 + $0x98] sm:$0xf]
        %v7340 = vld [vmem:[%s176 + $0x9c] sm:$0x1]
        %s7341 = scalar_lea.vmem %s1, 164
        %v7342 = vld [vmem:[%s7341] sm:$0xf]
        %v7353 = vunpack.c.l.b16 %v7331
        %v7354 = vunpack.c.l.b16 %v7332
        %v7355 = vunpack.c.l.b16 %v7333
        %v7356 = vunpack.c.l.b16 %v7334
        %v7357 = vunpack.c.l.b16 %v7335
        %v7358 = vunpack.c.l.b16 %v7336
        %v7359 = vunpack.c.l.b16 %v7337
        %v7360 = vunpack.c.l.b16 %v7338
        %v7361 = vunpack.c.l.b16 %v7339
        %v7362 = vunpack.c.l.b16 %v7340
        %v7363 = vpack.c.b16 %v7354, %v7353
        %v7364 = vpack.c.b16 %v7356, %v7355
        %v7365 = vpack.c.b16 %v7358, %v7357
        %v7366 = vpack.c.b16 %v7360, %v7359
        %v7367 = vpack.c.b16 %v7362, %v7361
        %v7369 = vshrl.u32 %v7363, 16
        %v7371 = vrot.slane %v7369, 1
        %v7372 = vshll.u32 %v7363, 16
        %v7374 = vrot.slane %v7372, 2
        %v7375 = vor.u32 %v7371, %v7374
        %v7377 = vshrl.u32 %v7364, 16
        %v7379 = vrot.slane %v7377, 1
        %v7380 = vshll.u32 %v7364, 16
        %v7382 = vrot.slane %v7380, 2
        %v7383 = vor.u32 %v7379, %v7382
        %v7384 = vsel %vm1222, %v7375, %v7383
        %v7386 = vshrl.u32 %v7365, 16
        %v7388 = vrot.slane %v7386, 1
        %v7389 = vshll.u32 %v7365, 16
        %v7391 = vrot.slane %v7389, 2
        %v7392 = vor.u32 %v7388, %v7391
        %v7393 = vsel %vm1222, %v7383, %v7392
        %v7395 = vshrl.u32 %v7366, 16
        %v7397 = vrot.slane %v7395, 1
        %v7398 = vshll.u32 %v7366, 16
        %v7400 = vrot.slane %v7398, 2
        %v7401 = vor.u32 %v7397, %v7400
        %v7402 = vsel %vm1222, %v7392, %v7401
        %v7404 = vshrl.u32 %v7367, 16
        %v7406 = vrot.slane %v7404, 1
        %v7407 = vshll.u32 %v7367, 16
        %v7409 = vrot.slane %v7407, 2
        %v7410 = vor.u32 %v7406, %v7409
        %v7411 = vsel %vm1222, %v7401, %v7410
        %v7413 = vsel %vm216, %v7384, 0
        %v7416 = vsel %vm216, %v7393, 0
        %v7419 = vsel %vm216, %v7402, 0
        %v7422 = vsel %vm216, %v7411, 0
        %v7425 = vsel %vm216, %v7410, 0
        %v7428 = vsel %vm232, %v7342, 0
        %7430 = vmatprep.subr.bf16.mxu0 0
        %7431 = vmatpush1.bf16.msra.mxu0 0
        %7432 = vmatprep.subr.bf16.mxu0 0
        %7433 = vmatpush1.bf16.msra.mxu0 0
        %7434 = vmatprep.subr.bf16.mxu0 0
        %7435 = vmatpush1.bf16.msra.mxu0 0
        %7436 = vmatprep.subr.bf16.mxu0 0
        %7437 = vmatpush1.bf16.msra.mxu0 0
        %7438 = vmatprep.subr.bf16.mxu0 0
        %7439 = vmatpush1.bf16.msra.mxu0 0
        %7440 = vmatprep.subr.bf16.mxu0 0
        %7441 = vmatpush1.bf16.msra.mxu0 0
        %7442 = vmatprep.subr.bf16.mxu0 0
        %7443 = vmatpush1.bf16.msra.mxu0 0
        %7444 = vmatprep.subr.bf16.mxu0 0
        %7445 = vmatpush1.bf16.msra.mxu0 %v7428
        %7446 = vmatprep.subr.bf16.mxu0 0
        %7447 = vmatpush2.bf16.msra.mxu0 0
        %7448 = vmatprep.subr.bf16.mxu0 0
        %7449 = vmatpush2.bf16.msra.mxu0 0
        %7450 = vmatprep.subr.bf16.mxu0 0
        %7451 = vmatpush2.bf16.msra.mxu0 0
        %7452 = vmatprep.subr.bf16.mxu0 0
        %7453 = vmatpush2.bf16.msra.mxu0 0
        %7454 = vmatprep.subr.bf16.mxu0 0
        %7455 = vmatpush2.bf16.msra.mxu0 0
        %7456 = vmatprep.subr.bf16.mxu0 0
        %7457 = vmatpush2.bf16.msra.mxu0 0
        %7458 = vmatprep.subr.bf16.mxu0 0
        %7459 = vmatpush2.bf16.msra.mxu0 0
        %7460 = vmatprep.subr.bf16.mxu0 0
        %7461 = vmatpush2.bf16.msra.mxu0 0
        %7462 = vmatprep.mubr.bf16.mxu0 0
        %7463 = vmatmul.mubr.bf16.gmra.mxu0 %v7413
        %v7464 = vpop.f32.mrf.mxu0
        %v7465 = vadd.f32 0.0, %v7464
        %v7466 = vpop.f32.mrf.mxu0
        %v7467 = vpop.f32.mrf.mxu0
        %v7468 = vadd.f32 0.0, %v7467
        %v7469 = vpop.f32.mrf.mxu0
        %7470 = vmatprep.mubr.bf16.mxu0 0
        %7471 = vmatmul.mubr.bf16.gmra.mxu0 %v7416
        %v7472 = vpop.f32.mrf.mxu0
        %v7473 = vadd.f32 0.0, %v7472
        %v7474 = vpop.f32.mrf.mxu0
        %v7475 = vpop.f32.mrf.mxu0
        %v7476 = vadd.f32 0.0, %v7475
        %v7477 = vpop.f32.mrf.mxu0
        %7478 = vmatprep.mubr.bf16.mxu0 0
        %7479 = vmatmul.mubr.bf16.gmra.mxu0 %v7419
        %v7480 = vpop.f32.mrf.mxu0
        %v7481 = vadd.f32 0.0, %v7480
        %v7482 = vpop.f32.mrf.mxu0
        %v7483 = vpop.f32.mrf.mxu0
        %v7484 = vadd.f32 0.0, %v7483
        %v7485 = vpop.f32.mrf.mxu0
        %7486 = vmatprep.mubr.bf16.mxu0 0
        %7487 = vmatmul.mubr.bf16.gmra.mxu0 %v7422
        %v7488 = vpop.f32.mrf.mxu0
        %v7489 = vadd.f32 0.0, %v7488
        %v7490 = vpop.f32.mrf.mxu0
        %v7491 = vpop.f32.mrf.mxu0
        %v7492 = vadd.f32 0.0, %v7491
        %v7493 = vpop.f32.mrf.mxu0
        %7494 = vmatprep.mubr.bf16.mxu0 0
        %7495 = vmatmul.mubr.bf16.gmra.mxu0 %v7425
        %v7496 = vpop.f32.mrf.mxu0
        %v7497 = vadd.f32 0.0, %v7496
        %v7498 = vpop.f32.mrf.mxu0
        %v7499 = vpop.f32.mrf.mxu0
        %v7500 = vpop.f32.mrf.mxu0
        %7501 = vdwg.mxu0
        %v7502 = vld [vmem:[%s181] sm:$0xff]
        %v7503 = vld [vmem:[%s181 + $0x8] sm:$0xff]
        %v7504 = vld [vmem:[%s181 + $0x10] sm:$0xff]
        %v7505 = vld [vmem:[%s181 + $0x18] sm:$0xff]
        %v7506 = vld [vmem:[%s181 + $0x20] sm:$0xff]
        %v7507 = vld [vmem:[%s181 + $0x28] sm:$0xff]
        %v7508 = vld [vmem:[%s181 + $0x30] sm:$0xff]
        %v7509 = vld [vmem:[%s181 + $0x38] sm:$0xff]
        %v7510 = vld [vmem:[%s181 + $0x40] sm:$0x3f]
        %v7511 = vadd.f32 %v7502, %v7465
        %v7512 = vadd.f32 %v7503, %v7468
        %v7513 = vadd.f32 %v7504, %v7473
        %v7514 = vadd.f32 %v7505, %v7476
        %v7515 = vadd.f32 %v7506, %v7481
        %v7516 = vadd.f32 %v7507, %v7484
        %v7517 = vadd.f32 %v7508, %v7489
        %v7518 = vadd.f32 %v7509, %v7492
        %v7519 = vadd.f32 %v7510, %v7497
        %7520 = vst.msk [vmem:[%s181] sm:$0xff] %vm308, %v7511
        %7521 = vst.msk [vmem:[%s181 + $0x8] sm:$0xff] %vm308, %v7512
        %7522 = vst.msk [vmem:[%s181 + $0x10] sm:$0xff] %vm308, %v7513
        %7523 = vst.msk [vmem:[%s181 + $0x18] sm:$0xff] %vm308, %v7514
        %7524 = vst.msk [vmem:[%s181 + $0x20] sm:$0xff] %vm308, %v7515
        %7525 = vst.msk [vmem:[%s181 + $0x28] sm:$0xff] %vm308, %v7516
        %7526 = vst.msk [vmem:[%s181 + $0x30] sm:$0xff] %vm308, %v7517
        %7527 = vst.msk [vmem:[%s181 + $0x38] sm:$0xff] %vm308, %v7518
        %7528 = vst.msk [vmem:[%s181 + $0x40] sm:$0x3f] %vm317, %v7519
        %v7529 = vld [vmem:[%s176 + $0xc] sm:$0x8]
        %v7530 = vld [vmem:[%s176 + $0x10] sm:$0xf]
        %v7531 = vld [vmem:[%s176 + $0x14] sm:$0xf]
        %v7532 = vld [vmem:[%s176 + $0x18] sm:$0xf]
        %v7533 = vld [vmem:[%s176 + $0x1c] sm:$0xf]
        %v7534 = vld [vmem:[%s176 + $0x20] sm:$0xf]
        %v7535 = vld [vmem:[%s176 + $0x24] sm:$0xf]
        %v7536 = vld [vmem:[%s176 + $0x28] sm:$0xf]
        %v7537 = vld [vmem:[%s176 + $0x2c] sm:$0xf]
        %v7538 = vld [vmem:[%s176 + $0x30] sm:$0x3]
        %s7539 = scalar_lea.vmem %s1, 168
        %v7540 = vld [vmem:[%s7539] sm:$0xf]
        %v7551 = vunpack.c.l.b16 %v7529
        %v7552 = vunpack.c.l.b16 %v7530
        %v7553 = vunpack.c.l.b16 %v7531
        %v7554 = vunpack.c.l.b16 %v7532
        %v7555 = vunpack.c.l.b16 %v7533
        %v7556 = vunpack.c.l.b16 %v7534
        %v7557 = vunpack.c.l.b16 %v7535
        %v7558 = vunpack.c.l.b16 %v7536
        %v7559 = vunpack.c.l.b16 %v7537
        %v7560 = vunpack.c.l.b16 %v7538
        %v7561 = vpack.c.b16 %v7552, %v7551
        %v7562 = vpack.c.b16 %v7554, %v7553
        %v7563 = vpack.c.b16 %v7556, %v7555
        %v7564 = vpack.c.b16 %v7558, %v7557
        %v7565 = vpack.c.b16 %v7560, %v7559
        %v7566 = vrot.slane %v7561, 3
        %v7567 = vrot.slane %v7562, 3
        %v7568 = vsel %vm356, %v7566, %v7567
        %v7569 = vrot.slane %v7563, 3
        %v7570 = vsel %vm356, %v7567, %v7569
        %v7571 = vrot.slane %v7564, 3
        %v7572 = vsel %vm356, %v7569, %v7571
        %v7573 = vrot.slane %v7565, 3
        %v7574 = vsel %vm356, %v7571, %v7573
        %v7576 = vsel %vm216, %v7568, 0
        %v7579 = vsel %vm216, %v7570, 0
        %v7582 = vsel %vm216, %v7572, 0
        %v7585 = vsel %vm216, %v7574, 0
        %v7588 = vsel %vm216, %v7573, 0
        %v7591 = vsel %vm232, %v7540, 0
        %7593 = vmatprep.subr.bf16.mxu0 0
        %7594 = vmatpush1.bf16.msra.mxu0 0
        %7595 = vmatprep.subr.bf16.mxu0 0
        %7596 = vmatpush1.bf16.msra.mxu0 0
        %7597 = vmatprep.subr.bf16.mxu0 0
        %7598 = vmatpush1.bf16.msra.mxu0 0
        %7599 = vmatprep.subr.bf16.mxu0 0
        %7600 = vmatpush1.bf16.msra.mxu0 0
        %7601 = vmatprep.subr.bf16.mxu0 0
        %7602 = vmatpush1.bf16.msra.mxu0 0
        %7603 = vmatprep.subr.bf16.mxu0 0
        %7604 = vmatpush1.bf16.msra.mxu0 0
        %7605 = vmatprep.subr.bf16.mxu0 0
        %7606 = vmatpush1.bf16.msra.mxu0 0
        %7607 = vmatprep.subr.bf16.mxu0 0
        %7608 = vmatpush1.bf16.msra.mxu0 %v7591
        %7609 = vmatprep.subr.bf16.mxu0 0
        %7610 = vmatpush2.bf16.msra.mxu0 0
        %7611 = vmatprep.subr.bf16.mxu0 0
        %7612 = vmatpush2.bf16.msra.mxu0 0
        %7613 = vmatprep.subr.bf16.mxu0 0
        %7614 = vmatpush2.bf16.msra.mxu0 0
        %7615 = vmatprep.subr.bf16.mxu0 0
        %7616 = vmatpush2.bf16.msra.mxu0 0
        %7617 = vmatprep.subr.bf16.mxu0 0
        %7618 = vmatpush2.bf16.msra.mxu0 0
        %7619 = vmatprep.subr.bf16.mxu0 0
        %7620 = vmatpush2.bf16.msra.mxu0 0
        %7621 = vmatprep.subr.bf16.mxu0 0
        %7622 = vmatpush2.bf16.msra.mxu0 0
        %7623 = vmatprep.subr.bf16.mxu0 0
        %7624 = vmatpush2.bf16.msra.mxu0 0
        %7625 = vmatprep.mubr.bf16.mxu0 0
        %7626 = vmatmul.mubr.bf16.gmra.mxu0 %v7576
        %v7627 = vpop.f32.mrf.mxu0
        %v7628 = vadd.f32 0.0, %v7627
        %v7629 = vpop.f32.mrf.mxu0
        %v7630 = vpop.f32.mrf.mxu0
        %v7631 = vadd.f32 0.0, %v7630
        %v7632 = vpop.f32.mrf.mxu0
        %7633 = vmatprep.mubr.bf16.mxu0 0
        %7634 = vmatmul.mubr.bf16.gmra.mxu0 %v7579
        %v7635 = vpop.f32.mrf.mxu0
        %v7636 = vadd.f32 0.0, %v7635
        %v7637 = vpop.f32.mrf.mxu0
        %v7638 = vpop.f32.mrf.mxu0
        %v7639 = vadd.f32 0.0, %v7638
        %v7640 = vpop.f32.mrf.mxu0
        %7641 = vmatprep.mubr.bf16.mxu0 0
        %7642 = vmatmul.mubr.bf16.gmra.mxu0 %v7582
        %v7643 = vpop.f32.mrf.mxu0
        %v7644 = vadd.f32 0.0, %v7643
        %v7645 = vpop.f32.mrf.mxu0
        %v7646 = vpop.f32.mrf.mxu0
        %v7647 = vadd.f32 0.0, %v7646
        %v7648 = vpop.f32.mrf.mxu0
        %7649 = vmatprep.mubr.bf16.mxu0 0
        %7650 = vmatmul.mubr.bf16.gmra.mxu0 %v7585
        %v7651 = vpop.f32.mrf.mxu0
        %v7652 = vadd.f32 0.0, %v7651
        %v7653 = vpop.f32.mrf.mxu0
        %v7654 = vpop.f32.mrf.mxu0
        %v7655 = vadd.f32 0.0, %v7654
        %v7656 = vpop.f32.mrf.mxu0
        %7657 = vmatprep.mubr.bf16.mxu0 0
        %7658 = vmatmul.mubr.bf16.gmra.mxu0 %v7588
        %v7659 = vpop.f32.mrf.mxu0
        %v7660 = vadd.f32 0.0, %v7659
        %v7661 = vpop.f32.mrf.mxu0
        %v7662 = vpop.f32.mrf.mxu0
        %v7663 = vpop.f32.mrf.mxu0
        %7664 = vdwg.mxu0
        %v7665 = vld [vmem:[%s181] sm:$0xff]
        %v7666 = vld [vmem:[%s181 + $0x8] sm:$0xff]
        %v7667 = vld [vmem:[%s181 + $0x10] sm:$0xff]
        %v7668 = vld [vmem:[%s181 + $0x18] sm:$0xff]
        %v7669 = vld [vmem:[%s181 + $0x20] sm:$0xff]
        %v7670 = vld [vmem:[%s181 + $0x28] sm:$0xff]
        %v7671 = vld [vmem:[%s181 + $0x30] sm:$0xff]
        %v7672 = vld [vmem:[%s181 + $0x38] sm:$0xff]
        %v7673 = vld [vmem:[%s181 + $0x40] sm:$0x3f]
        %v7674 = vadd.f32 %v7665, %v7628
        %v7675 = vadd.f32 %v7666, %v7631
        %v7676 = vadd.f32 %v7667, %v7636
        %v7677 = vadd.f32 %v7668, %v7639
        %v7678 = vadd.f32 %v7669, %v7644
        %v7679 = vadd.f32 %v7670, %v7647
        %v7680 = vadd.f32 %v7671, %v7652
        %v7681 = vadd.f32 %v7672, %v7655
        %v7682 = vadd.f32 %v7673, %v7660
        %7683 = vst.msk [vmem:[%s181] sm:$0xff] %vm308, %v7674
        %7684 = vst.msk [vmem:[%s181 + $0x8] sm:$0xff] %vm308, %v7675
        %7685 = vst.msk [vmem:[%s181 + $0x10] sm:$0xff] %vm308, %v7676
        %7686 = vst.msk [vmem:[%s181 + $0x18] sm:$0xff] %vm308, %v7677
        %7687 = vst.msk [vmem:[%s181 + $0x20] sm:$0xff] %vm308, %v7678
        %7688 = vst.msk [vmem:[%s181 + $0x28] sm:$0xff] %vm308, %v7679
        %7689 = vst.msk [vmem:[%s181 + $0x30] sm:$0xff] %vm308, %v7680
        %7690 = vst.msk [vmem:[%s181 + $0x38] sm:$0xff] %vm308, %v7681
        %7691 = vst.msk [vmem:[%s181 + $0x40] sm:$0x3f] %vm317, %v7682
        %v7692 = vld [vmem:[%s176 + $0x44] sm:$0xc]
        %v7693 = vld [vmem:[%s176 + $0x48] sm:$0xf]
        %v7694 = vld [vmem:[%s176 + $0x4c] sm:$0xf]
        %v7695 = vld [vmem:[%s176 + $0x50] sm:$0xf]
        %v7696 = vld [vmem:[%s176 + $0x54] sm:$0xf]
        %v7697 = vld [vmem:[%s176 + $0x58] sm:$0xf]
        %v7698 = vld [vmem:[%s176 + $0x5c] sm:$0xf]
        %v7699 = vld [vmem:[%s176 + $0x60] sm:$0xf]
        %v7700 = vld [vmem:[%s176 + $0x64] sm:$0xf]
        %v7701 = vld [vmem:[%s176 + $0x68] sm:$0x1]
        %s7702 = scalar_lea.vmem %s1, 172
        %v7703 = vld [vmem:[%s7702] sm:$0xf]
        %v7714 = vunpack.c.l.b16 %v7692
        %v7715 = vunpack.c.l.b16 %v7693
        %v7716 = vunpack.c.l.b16 %v7694
        %v7717 = vunpack.c.l.b16 %v7695
        %v7718 = vunpack.c.l.b16 %v7696
        %v7719 = vunpack.c.l.b16 %v7697
        %v7720 = vunpack.c.l.b16 %v7698
        %v7721 = vunpack.c.l.b16 %v7699
        %v7722 = vunpack.c.l.b16 %v7700
        %v7723 = vunpack.c.l.b16 %v7701
        %v7724 = vpack.c.b16 %v7715, %v7714
        %v7725 = vpack.c.b16 %v7717, %v7716
        %v7726 = vpack.c.b16 %v7719, %v7718
        %v7727 = vpack.c.b16 %v7721, %v7720
        %v7728 = vpack.c.b16 %v7723, %v7722
        %v7729 = vrot.slane %v7724, 2
        %v7730 = vrot.slane %v7725, 2
        %v7731 = vsel %vm1421, %v7729, %v7730
        %v7732 = vrot.slane %v7726, 2
        %v7733 = vsel %vm1421, %v7730, %v7732
        %v7734 = vrot.slane %v7727, 2
        %v7735 = vsel %vm1421, %v7732, %v7734
        %v7736 = vrot.slane %v7728, 2
        %v7737 = vsel %vm1421, %v7734, %v7736
        %v7739 = vsel %vm216, %v7731, 0
        %v7742 = vsel %vm216, %v7733, 0
        %v7745 = vsel %vm216, %v7735, 0
        %v7748 = vsel %vm216, %v7737, 0
        %v7751 = vsel %vm216, %v7736, 0
        %v7754 = vsel %vm232, %v7703, 0
        %7756 = vmatprep.subr.bf16.mxu0 0
        %7757 = vmatpush1.bf16.msra.mxu0 0
        %7758 = vmatprep.subr.bf16.mxu0 0
        %7759 = vmatpush1.bf16.msra.mxu0 0
        %7760 = vmatprep.subr.bf16.mxu0 0
        %7761 = vmatpush1.bf16.msra.mxu0 0
        %7762 = vmatprep.subr.bf16.mxu0 0
        %7763 = vmatpush1.bf16.msra.mxu0 0
        %7764 = vmatprep.subr.bf16.mxu0 0
        %7765 = vmatpush1.bf16.msra.mxu0 0
        %7766 = vmatprep.subr.bf16.mxu0 0
        %7767 = vmatpush1.bf16.msra.mxu0 0
        %7768 = vmatprep.subr.bf16.mxu0 0
        %7769 = vmatpush1.bf16.msra.mxu0 0
        %7770 = vmatprep.subr.bf16.mxu0 0
        %7771 = vmatpush1.bf16.msra.mxu0 %v7754
        %7772 = vmatprep.subr.bf16.mxu0 0
        %7773 = vmatpush2.bf16.msra.mxu0 0
        %7774 = vmatprep.subr.bf16.mxu0 0
        %7775 = vmatpush2.bf16.msra.mxu0 0
        %7776 = vmatprep.subr.bf16.mxu0 0
        %7777 = vmatpush2.bf16.msra.mxu0 0
        %7778 = vmatprep.subr.bf16.mxu0 0
        %7779 = vmatpush2.bf16.msra.mxu0 0
        %7780 = vmatprep.subr.bf16.mxu0 0
        %7781 = vmatpush2.bf16.msra.mxu0 0
        %7782 = vmatprep.subr.bf16.mxu0 0
        %7783 = vmatpush2.bf16.msra.mxu0 0
        %7784 = vmatprep.subr.bf16.mxu0 0
        %7785 = vmatpush2.bf16.msra.mxu0 0
        %7786 = vmatprep.subr.bf16.mxu0 0
        %7787 = vmatpush2.bf16.msra.mxu0 0
        %7788 = vmatprep.mubr.bf16.mxu0 0
        %7789 = vmatmul.mubr.bf16.gmra.mxu0 %v7739
        %v7790 = vpop.f32.mrf.mxu0
        %v7791 = vadd.f32 0.0, %v7790
        %v7792 = vpop.f32.mrf.mxu0
        %v7793 = vpop.f32.mrf.mxu0
        %v7794 = vadd.f32 0.0, %v7793
        %v7795 = vpop.f32.mrf.mxu0
        %7796 = vmatprep.mubr.bf16.mxu0 0
        %7797 = vmatmul.mubr.bf16.gmra.mxu0 %v7742
        %v7798 = vpop.f32.mrf.mxu0
        %v7799 = vadd.f32 0.0, %v7798
        %v7800 = vpop.f32.mrf.mxu0
        %v7801 = vpop.f32.mrf.mxu0
        %v7802 = vadd.f32 0.0, %v7801
        %v7803 = vpop.f32.mrf.mxu0
        %7804 = vmatprep.mubr.bf16.mxu0 0
        %7805 = vmatmul.mubr.bf16.gmra.mxu0 %v7745
        %v7806 = vpop.f32.mrf.mxu0
        %v7807 = vadd.f32 0.0, %v7806
        %v7808 = vpop.f32.mrf.mxu0
        %v7809 = vpop.f32.mrf.mxu0
        %v7810 = vadd.f32 0.0, %v7809
        %v7811 = vpop.f32.mrf.mxu0
        %7812 = vmatprep.mubr.bf16.mxu0 0
        %7813 = vmatmul.mubr.bf16.gmra.mxu0 %v7748
        %v7814 = vpop.f32.mrf.mxu0
        %v7815 = vadd.f32 0.0, %v7814
        %v7816 = vpop.f32.mrf.mxu0
        %v7817 = vpop.f32.mrf.mxu0
        %v7818 = vadd.f32 0.0, %v7817
        %v7819 = vpop.f32.mrf.mxu0
        %7820 = vmatprep.mubr.bf16.mxu0 0
        %7821 = vmatmul.mubr.bf16.gmra.mxu0 %v7751
        %v7822 = vpop.f32.mrf.mxu0
        %v7823 = vadd.f32 0.0, %v7822
        %v7824 = vpop.f32.mrf.mxu0
        %v7825 = vpop.f32.mrf.mxu0
        %v7826 = vpop.f32.mrf.mxu0
        %7827 = vdwg.mxu0
        %v7828 = vld [vmem:[%s181] sm:$0xff]
        %v7829 = vld [vmem:[%s181 + $0x8] sm:$0xff]
        %v7830 = vld [vmem:[%s181 + $0x10] sm:$0xff]
        %v7831 = vld [vmem:[%s181 + $0x18] sm:$0xff]
        %v7832 = vld [vmem:[%s181 + $0x20] sm:$0xff]
        %v7833 = vld [vmem:[%s181 + $0x28] sm:$0xff]
        %v7834 = vld [vmem:[%s181 + $0x30] sm:$0xff]
        %v7835 = vld [vmem:[%s181 + $0x38] sm:$0xff]
        %v7836 = vld [vmem:[%s181 + $0x40] sm:$0x3f]
        %v7837 = vadd.f32 %v7828, %v7791
        %v7838 = vadd.f32 %v7829, %v7794
        %v7839 = vadd.f32 %v7830, %v7799
        %v7840 = vadd.f32 %v7831, %v7802
        %v7841 = vadd.f32 %v7832, %v7807
        %v7842 = vadd.f32 %v7833, %v7810
        %v7843 = vadd.f32 %v7834, %v7815
        %v7844 = vadd.f32 %v7835, %v7818
        %v7845 = vadd.f32 %v7836, %v7823
        %7846 = vst.msk [vmem:[%s181] sm:$0xff] %vm308, %v7837
        %7847 = vst.msk [vmem:[%s181 + $0x8] sm:$0xff] %vm308, %v7838
        %7848 = vst.msk [vmem:[%s181 + $0x10] sm:$0xff] %vm308, %v7839
        %7849 = vst.msk [vmem:[%s181 + $0x18] sm:$0xff] %vm308, %v7840
        %7850 = vst.msk [vmem:[%s181 + $0x20] sm:$0xff] %vm308, %v7841
        %7851 = vst.msk [vmem:[%s181 + $0x28] sm:$0xff] %vm308, %v7842
        %7852 = vst.msk [vmem:[%s181 + $0x30] sm:$0xff] %vm308, %v7843
        %7853 = vst.msk [vmem:[%s181 + $0x38] sm:$0xff] %vm308, %v7844
        %7854 = vst.msk [vmem:[%s181 + $0x40] sm:$0x3f] %vm317, %v7845
        %v7855 = vld [vmem:[%s176 + $0xc] sm:$0x8]
        %v7856 = vld [vmem:[%s176 + $0x10] sm:$0xf]
        %v7857 = vld [vmem:[%s176 + $0x14] sm:$0xf]
        %v7858 = vld [vmem:[%s176 + $0x18] sm:$0xf]
        %v7859 = vld [vmem:[%s176 + $0x1c] sm:$0xf]
        %v7860 = vld [vmem:[%s176 + $0x20] sm:$0xf]
        %v7861 = vld [vmem:[%s176 + $0x24] sm:$0xf]
        %v7862 = vld [vmem:[%s176 + $0x28] sm:$0xf]
        %v7863 = vld [vmem:[%s176 + $0x2c] sm:$0xf]
        %v7864 = vld [vmem:[%s176 + $0x30] sm:$0x7]
        %s7865 = scalar_lea.vmem %s1, 176
        %v7866 = vld [vmem:[%s7865] sm:$0xf]
        %v7877 = vunpack.c.l.b16 %v7855
        %v7878 = vunpack.c.l.b16 %v7856
        %v7879 = vunpack.c.l.b16 %v7857
        %v7880 = vunpack.c.l.b16 %v7858
        %v7881 = vunpack.c.l.b16 %v7859
        %v7882 = vunpack.c.l.b16 %v7860
        %v7883 = vunpack.c.l.b16 %v7861
        %v7884 = vunpack.c.l.b16 %v7862
        %v7885 = vunpack.c.l.b16 %v7863
        %v7886 = vunpack.c.l.b16 %v7864
        %v7887 = vpack.c.b16 %v7878, %v7877
        %v7888 = vpack.c.b16 %v7880, %v7879
        %v7889 = vpack.c.b16 %v7882, %v7881
        %v7890 = vpack.c.b16 %v7884, %v7883
        %v7891 = vpack.c.b16 %v7886, %v7885
        %v7893 = vshrl.u32 %v7887, 16
        %v7895 = vrot.slane %v7893, 3
        %v7896 = vshll.u32 %v7887, 16
        %v7898 = vrot.slane %v7896, 4
        %v7899 = vor.u32 %v7895, %v7898
        %v7901 = vshrl.u32 %v7888, 16
        %v7903 = vrot.slane %v7901, 3
        %v7904 = vshll.u32 %v7888, 16
        %v7906 = vrot.slane %v7904, 4
        %v7907 = vor.u32 %v7903, %v7906
        %v7908 = vsel %vm711, %v7899, %v7907
        %v7910 = vshrl.u32 %v7889, 16
        %v7912 = vrot.slane %v7910, 3
        %v7913 = vshll.u32 %v7889, 16
        %v7915 = vrot.slane %v7913, 4
        %v7916 = vor.u32 %v7912, %v7915
        %v7917 = vsel %vm711, %v7907, %v7916
        %v7919 = vshrl.u32 %v7890, 16
        %v7921 = vrot.slane %v7919, 3
        %v7922 = vshll.u32 %v7890, 16
        %v7924 = vrot.slane %v7922, 4
        %v7925 = vor.u32 %v7921, %v7924
        %v7926 = vsel %vm711, %v7916, %v7925
        %v7928 = vshrl.u32 %v7891, 16
        %v7930 = vrot.slane %v7928, 3
        %v7931 = vshll.u32 %v7891, 16
        %v7933 = vrot.slane %v7931, 4
        %v7934 = vor.u32 %v7930, %v7933
        %v7935 = vsel %vm711, %v7925, %v7934
        %v7937 = vsel %vm216, %v7908, 0
        %v7940 = vsel %vm216, %v7917, 0
        %v7943 = vsel %vm216, %v7926, 0
        %v7946 = vsel %vm216, %v7935, 0
        %v7949 = vsel %vm216, %v7934, 0
        %v7952 = vsel %vm232, %v7866, 0
        %7954 = vmatprep.subr.bf16.mxu0 0
        %7955 = vmatpush1.bf16.msra.mxu0 0
        %7956 = vmatprep.subr.bf16.mxu0 0
        %7957 = vmatpush1.bf16.msra.mxu0 0
        %7958 = vmatprep.subr.bf16.mxu0 0
        %7959 = vmatpush1.bf16.msra.mxu0 0
        %7960 = vmatprep.subr.bf16.mxu0 0
        %7961 = vmatpush1.bf16.msra.mxu0 0
        %7962 = vmatprep.subr.bf16.mxu0 0
        %7963 = vmatpush1.bf16.msra.mxu0 0
        %7964 = vmatprep.subr.bf16.mxu0 0
        %7965 = vmatpush1.bf16.msra.mxu0 0
        %7966 = vmatprep.subr.bf16.mxu0 0
        %7967 = vmatpush1.bf16.msra.mxu0 0
        %7968 = vmatprep.subr.bf16.mxu0 0
        %7969 = vmatpush1.bf16.msra.mxu0 %v7952
        %7970 = vmatprep.subr.bf16.mxu0 0
        %7971 = vmatpush2.bf16.msra.mxu0 0
        %7972 = vmatprep.subr.bf16.mxu0 0
        %7973 = vmatpush2.bf16.msra.mxu0 0
        %7974 = vmatprep.subr.bf16.mxu0 0
        %7975 = vmatpush2.bf16.msra.mxu0 0
        %7976 = vmatprep.subr.bf16.mxu0 0
        %7977 = vmatpush2.bf16.msra.mxu0 0
        %7978 = vmatprep.subr.bf16.mxu0 0
        %7979 = vmatpush2.bf16.msra.mxu0 0
        %7980 = vmatprep.subr.bf16.mxu0 0
        %7981 = vmatpush2.bf16.msra.mxu0 0
        %7982 = vmatprep.subr.bf16.mxu0 0
        %7983 = vmatpush2.bf16.msra.mxu0 0
        %7984 = vmatprep.subr.bf16.mxu0 0
        %7985 = vmatpush2.bf16.msra.mxu0 0
        %7986 = vmatprep.mubr.bf16.mxu0 0
        %7987 = vmatmul.mubr.bf16.gmra.mxu0 %v7937
        %v7988 = vpop.f32.mrf.mxu0
        %v7989 = vadd.f32 0.0, %v7988
        %v7990 = vpop.f32.mrf.mxu0
        %v7991 = vpop.f32.mrf.mxu0
        %v7992 = vadd.f32 0.0, %v7991
        %v7993 = vpop.f32.mrf.mxu0
        %7994 = vmatprep.mubr.bf16.mxu0 0
        %7995 = vmatmul.mubr.bf16.gmra.mxu0 %v7940
        %v7996 = vpop.f32.mrf.mxu0
        %v7997 = vadd.f32 0.0, %v7996
        %v7998 = vpop.f32.mrf.mxu0
        %v7999 = vpop.f32.mrf.mxu0
        %v8000 = vadd.f32 0.0, %v7999
        %v8001 = vpop.f32.mrf.mxu0
        %8002 = vmatprep.mubr.bf16.mxu0 0
        %8003 = vmatmul.mubr.bf16.gmra.mxu0 %v7943
        %v8004 = vpop.f32.mrf.mxu0
        %v8005 = vadd.f32 0.0, %v8004
        %v8006 = vpop.f32.mrf.mxu0
        %v8007 = vpop.f32.mrf.mxu0
        %v8008 = vadd.f32 0.0, %v8007
        %v8009 = vpop.f32.mrf.mxu0
        %8010 = vmatprep.mubr.bf16.mxu0 0
        %8011 = vmatmul.mubr.bf16.gmra.mxu0 %v7946
        %v8012 = vpop.f32.mrf.mxu0
        %v8013 = vadd.f32 0.0, %v8012
        %v8014 = vpop.f32.mrf.mxu0
        %v8015 = vpop.f32.mrf.mxu0
        %v8016 = vadd.f32 0.0, %v8015
        %v8017 = vpop.f32.mrf.mxu0
        %8018 = vmatprep.mubr.bf16.mxu0 0
        %8019 = vmatmul.mubr.bf16.gmra.mxu0 %v7949
        %v8020 = vpop.f32.mrf.mxu0
        %v8021 = vadd.f32 0.0, %v8020
        %v8022 = vpop.f32.mrf.mxu0
        %v8023 = vpop.f32.mrf.mxu0
        %v8024 = vpop.f32.mrf.mxu0
        %8025 = vdwg.mxu0
        %v8026 = vld [vmem:[%s181] sm:$0xff]
        %v8027 = vld [vmem:[%s181 + $0x8] sm:$0xff]
        %v8028 = vld [vmem:[%s181 + $0x10] sm:$0xff]
        %v8029 = vld [vmem:[%s181 + $0x18] sm:$0xff]
        %v8030 = vld [vmem:[%s181 + $0x20] sm:$0xff]
        %v8031 = vld [vmem:[%s181 + $0x28] sm:$0xff]
        %v8032 = vld [vmem:[%s181 + $0x30] sm:$0xff]
        %v8033 = vld [vmem:[%s181 + $0x38] sm:$0xff]
        %v8034 = vld [vmem:[%s181 + $0x40] sm:$0x3f]
        %v8035 = vadd.f32 %v8026, %v7989
        %v8036 = vadd.f32 %v8027, %v7992
        %v8037 = vadd.f32 %v8028, %v7997
        %v8038 = vadd.f32 %v8029, %v8000
        %v8039 = vadd.f32 %v8030, %v8005
        %v8040 = vadd.f32 %v8031, %v8008
        %v8041 = vadd.f32 %v8032, %v8013
        %v8042 = vadd.f32 %v8033, %v8016
        %v8043 = vadd.f32 %v8034, %v8021
        %8044 = vst.msk [vmem:[%s181] sm:$0xff] %vm308, %v8035
        %8045 = vst.msk [vmem:[%s181 + $0x8] sm:$0xff] %vm308, %v8036
        %8046 = vst.msk [vmem:[%s181 + $0x10] sm:$0xff] %vm308, %v8037
        %8047 = vst.msk [vmem:[%s181 + $0x18] sm:$0xff] %vm308, %v8038
        %8048 = vst.msk [vmem:[%s181 + $0x20] sm:$0xff] %vm308, %v8039
        %8049 = vst.msk [vmem:[%s181 + $0x28] sm:$0xff] %vm308, %v8040
        %8050 = vst.msk [vmem:[%s181 + $0x30] sm:$0xff] %vm308, %v8041
        %8051 = vst.msk [vmem:[%s181 + $0x38] sm:$0xff] %vm308, %v8042
        %8052 = vst.msk [vmem:[%s181 + $0x40] sm:$0x3f] %vm317, %v8043
        %v8053 = vld [vmem:[%s176 + $0x44] sm:$0xc]
        %v8054 = vld [vmem:[%s176 + $0x48] sm:$0xf]
        %v8055 = vld [vmem:[%s176 + $0x4c] sm:$0xf]
        %v8056 = vld [vmem:[%s176 + $0x50] sm:$0xf]
        %v8057 = vld [vmem:[%s176 + $0x54] sm:$0xf]
        %v8058 = vld [vmem:[%s176 + $0x58] sm:$0xf]
        %v8059 = vld [vmem:[%s176 + $0x5c] sm:$0xf]
        %v8060 = vld [vmem:[%s176 + $0x60] sm:$0xf]
        %v8061 = vld [vmem:[%s176 + $0x64] sm:$0xf]
        %v8062 = vld [vmem:[%s176 + $0x68] sm:$0x3]
        %s8063 = scalar_lea.vmem %s1, 180
        %v8064 = vld [vmem:[%s8063] sm:$0xf]
        %v8075 = vunpack.c.l.b16 %v8053
        %v8076 = vunpack.c.l.b16 %v8054
        %v8077 = vunpack.c.l.b16 %v8055
        %v8078 = vunpack.c.l.b16 %v8056
        %v8079 = vunpack.c.l.b16 %v8057
        %v8080 = vunpack.c.l.b16 %v8058
        %v8081 = vunpack.c.l.b16 %v8059
        %v8082 = vunpack.c.l.b16 %v8060
        %v8083 = vunpack.c.l.b16 %v8061
        %v8084 = vunpack.c.l.b16 %v8062
        %v8085 = vpack.c.b16 %v8076, %v8075
        %v8086 = vpack.c.b16 %v8078, %v8077
        %v8087 = vpack.c.b16 %v8080, %v8079
        %v8088 = vpack.c.b16 %v8082, %v8081
        %v8089 = vpack.c.b16 %v8084, %v8083
        %v8091 = vshrl.u32 %v8085, 16
        %v8093 = vrot.slane %v8091, 2
        %v8094 = vshll.u32 %v8085, 16
        %v8096 = vrot.slane %v8094, 3
        %v8097 = vor.u32 %v8093, %v8096
        %v8099 = vshrl.u32 %v8086, 16
        %v8101 = vrot.slane %v8099, 2
        %v8102 = vshll.u32 %v8086, 16
        %v8104 = vrot.slane %v8102, 3
        %v8105 = vor.u32 %v8101, %v8104
        %v8106 = vsel %vm1745, %v8097, %v8105
        %v8108 = vshrl.u32 %v8087, 16
        %v8110 = vrot.slane %v8108, 2
        %v8111 = vshll.u32 %v8087, 16
        %v8113 = vrot.slane %v8111, 3
        %v8114 = vor.u32 %v8110, %v8113
        %v8115 = vsel %vm1745, %v8105, %v8114
        %v8117 = vshrl.u32 %v8088, 16
        %v8119 = vrot.slane %v8117, 2
        %v8120 = vshll.u32 %v8088, 16
        %v8122 = vrot.slane %v8120, 3
        %v8123 = vor.u32 %v8119, %v8122
        %v8124 = vsel %vm1745, %v8114, %v8123
        %v8126 = vshrl.u32 %v8089, 16
        %v8128 = vrot.slane %v8126, 2
        %v8129 = vshll.u32 %v8089, 16
        %v8131 = vrot.slane %v8129, 3
        %v8132 = vor.u32 %v8128, %v8131
        %v8133 = vsel %vm1745, %v8123, %v8132
        %v8135 = vsel %vm216, %v8106, 0
        %v8138 = vsel %vm216, %v8115, 0
        %v8141 = vsel %vm216, %v8124, 0
        %v8144 = vsel %vm216, %v8133, 0
        %v8147 = vsel %vm216, %v8132, 0
        %v8150 = vsel %vm232, %v8064, 0
        %8152 = vmatprep.subr.bf16.mxu0 0
        %8153 = vmatpush1.bf16.msra.mxu0 0
        %8154 = vmatprep.subr.bf16.mxu0 0
        %8155 = vmatpush1.bf16.msra.mxu0 0
        %8156 = vmatprep.subr.bf16.mxu0 0
        %8157 = vmatpush1.bf16.msra.mxu0 0
        %8158 = vmatprep.subr.bf16.mxu0 0
        %8159 = vmatpush1.bf16.msra.mxu0 0
        %8160 = vmatprep.subr.bf16.mxu0 0
        %8161 = vmatpush1.bf16.msra.mxu0 0
        %8162 = vmatprep.subr.bf16.mxu0 0
        %8163 = vmatpush1.bf16.msra.mxu0 0
        %8164 = vmatprep.subr.bf16.mxu0 0
        %8165 = vmatpush1.bf16.msra.mxu0 0
        %8166 = vmatprep.subr.bf16.mxu0 0
        %8167 = vmatpush1.bf16.msra.mxu0 %v8150
        %8168 = vmatprep.subr.bf16.mxu0 0
        %8169 = vmatpush2.bf16.msra.mxu0 0
        %8170 = vmatprep.subr.bf16.mxu0 0
        %8171 = vmatpush2.bf16.msra.mxu0 0
        %8172 = vmatprep.subr.bf16.mxu0 0
        %8173 = vmatpush2.bf16.msra.mxu0 0
        %8174 = vmatprep.subr.bf16.mxu0 0
        %8175 = vmatpush2.bf16.msra.mxu0 0
        %8176 = vmatprep.subr.bf16.mxu0 0
        %8177 = vmatpush2.bf16.msra.mxu0 0
        %8178 = vmatprep.subr.bf16.mxu0 0
        %8179 = vmatpush2.bf16.msra.mxu0 0
        %8180 = vmatprep.subr.bf16.mxu0 0
        %8181 = vmatpush2.bf16.msra.mxu0 0
        %8182 = vmatprep.subr.bf16.mxu0 0
        %8183 = vmatpush2.bf16.msra.mxu0 0
        %8184 = vmatprep.mubr.bf16.mxu0 0
        %8185 = vmatmul.mubr.bf16.gmra.mxu0 %v8135
        %v8186 = vpop.f32.mrf.mxu0
        %v8187 = vadd.f32 0.0, %v8186
        %v8188 = vpop.f32.mrf.mxu0
        %v8189 = vpop.f32.mrf.mxu0
        %v8190 = vadd.f32 0.0, %v8189
        %v8191 = vpop.f32.mrf.mxu0
        %8192 = vmatprep.mubr.bf16.mxu0 0
        %8193 = vmatmul.mubr.bf16.gmra.mxu0 %v8138
        %v8194 = vpop.f32.mrf.mxu0
        %v8195 = vadd.f32 0.0, %v8194
        %v8196 = vpop.f32.mrf.mxu0
        %v8197 = vpop.f32.mrf.mxu0
        %v8198 = vadd.f32 0.0, %v8197
        %v8199 = vpop.f32.mrf.mxu0
        %8200 = vmatprep.mubr.bf16.mxu0 0
        %8201 = vmatmul.mubr.bf16.gmra.mxu0 %v8141
        %v8202 = vpop.f32.mrf.mxu0
        %v8203 = vadd.f32 0.0, %v8202
        %v8204 = vpop.f32.mrf.mxu0
        %v8205 = vpop.f32.mrf.mxu0
        %v8206 = vadd.f32 0.0, %v8205
        %v8207 = vpop.f32.mrf.mxu0
        %8208 = vmatprep.mubr.bf16.mxu0 0
        %8209 = vmatmul.mubr.bf16.gmra.mxu0 %v8144
        %v8210 = vpop.f32.mrf.mxu0
        %v8211 = vadd.f32 0.0, %v8210
        %v8212 = vpop.f32.mrf.mxu0
        %v8213 = vpop.f32.mrf.mxu0
        %v8214 = vadd.f32 0.0, %v8213
        %v8215 = vpop.f32.mrf.mxu0
        %8216 = vmatprep.mubr.bf16.mxu0 0
        %8217 = vmatmul.mubr.bf16.gmra.mxu0 %v8147
        %v8218 = vpop.f32.mrf.mxu0
        %v8219 = vadd.f32 0.0, %v8218
        %v8220 = vpop.f32.mrf.mxu0
        %v8221 = vpop.f32.mrf.mxu0
        %v8222 = vpop.f32.mrf.mxu0
        %8223 = vdwg.mxu0
        %v8224 = vld [vmem:[%s181] sm:$0xff]
        %v8225 = vld [vmem:[%s181 + $0x8] sm:$0xff]
        %v8226 = vld [vmem:[%s181 + $0x10] sm:$0xff]
        %v8227 = vld [vmem:[%s181 + $0x18] sm:$0xff]
        %v8228 = vld [vmem:[%s181 + $0x20] sm:$0xff]
        %v8229 = vld [vmem:[%s181 + $0x28] sm:$0xff]
        %v8230 = vld [vmem:[%s181 + $0x30] sm:$0xff]
        %v8231 = vld [vmem:[%s181 + $0x38] sm:$0xff]
        %v8232 = vld [vmem:[%s181 + $0x40] sm:$0x3f]
        %v8233 = vadd.f32 %v8224, %v8187
        %v8234 = vadd.f32 %v8225, %v8190
        %v8235 = vadd.f32 %v8226, %v8195
        %v8236 = vadd.f32 %v8227, %v8198
        %v8237 = vadd.f32 %v8228, %v8203
        %v8238 = vadd.f32 %v8229, %v8206
        %v8239 = vadd.f32 %v8230, %v8211
        %v8240 = vadd.f32 %v8231, %v8214
        %v8241 = vadd.f32 %v8232, %v8219
        %8242 = vst.msk [vmem:[%s181] sm:$0xff] %vm308, %v8233
        %8243 = vst.msk [vmem:[%s181 + $0x8] sm:$0xff] %vm308, %v8234
        %8244 = vst.msk [vmem:[%s181 + $0x10] sm:$0xff] %vm308, %v8235
        %8245 = vst.msk [vmem:[%s181 + $0x18] sm:$0xff] %vm308, %v8236
        %8246 = vst.msk [vmem:[%s181 + $0x20] sm:$0xff] %vm308, %v8237
        %8247 = vst.msk [vmem:[%s181 + $0x28] sm:$0xff] %vm308, %v8238
        %8248 = vst.msk [vmem:[%s181 + $0x30] sm:$0xff] %vm308, %v8239
        %8249 = vst.msk [vmem:[%s181 + $0x38] sm:$0xff] %vm308, %v8240
        %8250 = vst.msk [vmem:[%s181 + $0x40] sm:$0x3f] %vm317, %v8241
        %v8251 = vld [vmem:[%s176 + $0x10] sm:$0xf]
        %v8252 = vld [vmem:[%s176 + $0x14] sm:$0xf]
        %v8253 = vld [vmem:[%s176 + $0x18] sm:$0xf]
        %v8254 = vld [vmem:[%s176 + $0x1c] sm:$0xf]
        %v8255 = vld [vmem:[%s176 + $0x20] sm:$0xf]
        %v8256 = vld [vmem:[%s176 + $0x24] sm:$0xf]
        %v8257 = vld [vmem:[%s176 + $0x28] sm:$0xf]
        %v8258 = vld [vmem:[%s176 + $0x2c] sm:$0xf]
        %v8259 = vld [vmem:[%s176 + $0x30] sm:$0x7]
        %s8260 = scalar_lea.vmem %s1, 184
        %v8261 = vld [vmem:[%s8260] sm:$0xf]
        %v8271 = vunpack.c.l.b16 %v8251
        %v8272 = vunpack.c.l.b16 %v8252
        %v8273 = vunpack.c.l.b16 %v8253
        %v8274 = vunpack.c.l.b16 %v8254
        %v8275 = vunpack.c.l.b16 %v8255
        %v8276 = vunpack.c.l.b16 %v8256
        %v8277 = vunpack.c.l.b16 %v8257
        %v8278 = vunpack.c.l.b16 %v8258
        %v8279 = vunpack.c.l.b16 %v8259
        %v8280 = vpack.c.b16 %v8272, %v8271
        %v8281 = vpack.c.b16 %v8274, %v8273
        %v8282 = vpack.c.b16 %v8276, %v8275
        %v8283 = vpack.c.b16 %v8278, %v8277
        %v8284 = vpack.c.b16 %v8279, %v8279
        %v8286 = vsel %vm216, %v8280, 0
        %v8289 = vsel %vm216, %v8281, 0
        %v8292 = vsel %vm216, %v8282, 0
        %v8295 = vsel %vm216, %v8283, 0
        %v8298 = vsel %vm216, %v8284, 0
        %v8301 = vsel %vm232, %v8261, 0
        %8303 = vmatprep.subr.bf16.mxu0 0
        %8304 = vmatpush1.bf16.msra.mxu0 0
        %8305 = vmatprep.subr.bf16.mxu0 0
        %8306 = vmatpush1.bf16.msra.mxu0 0
        %8307 = vmatprep.subr.bf16.mxu0 0
        %8308 = vmatpush1.bf16.msra.mxu0 0
        %8309 = vmatprep.subr.bf16.mxu0 0
        %8310 = vmatpush1.bf16.msra.mxu0 0
        %8311 = vmatprep.subr.bf16.mxu0 0
        %8312 = vmatpush1.bf16.msra.mxu0 0
        %8313 = vmatprep.subr.bf16.mxu0 0
        %8314 = vmatpush1.bf16.msra.mxu0 0
        %8315 = vmatprep.subr.bf16.mxu0 0
        %8316 = vmatpush1.bf16.msra.mxu0 0
        %8317 = vmatprep.subr.bf16.mxu0 0
        %8318 = vmatpush1.bf16.msra.mxu0 %v8301
        %8319 = vmatprep.subr.bf16.mxu0 0
        %8320 = vmatpush2.bf16.msra.mxu0 0
        %8321 = vmatprep.subr.bf16.mxu0 0
        %8322 = vmatpush2.bf16.msra.mxu0 0
        %8323 = vmatprep.subr.bf16.mxu0 0
        %8324 = vmatpush2.bf16.msra.mxu0 0
        %8325 = vmatprep.subr.bf16.mxu0 0
        %8326 = vmatpush2.bf16.msra.mxu0 0
        %8327 = vmatprep.subr.bf16.mxu0 0
        %8328 = vmatpush2.bf16.msra.mxu0 0
        %8329 = vmatprep.subr.bf16.mxu0 0
        %8330 = vmatpush2.bf16.msra.mxu0 0
        %8331 = vmatprep.subr.bf16.mxu0 0
        %8332 = vmatpush2.bf16.msra.mxu0 0
        %8333 = vmatprep.subr.bf16.mxu0 0
        %8334 = vmatpush2.bf16.msra.mxu0 0
        %8335 = vmatprep.mubr.bf16.mxu0 0
        %8336 = vmatmul.mubr.bf16.gmra.mxu0 %v8286
        %v8337 = vpop.f32.mrf.mxu0
        %v8338 = vadd.f32 0.0, %v8337
        %v8339 = vpop.f32.mrf.mxu0
        %v8340 = vpop.f32.mrf.mxu0
        %v8341 = vadd.f32 0.0, %v8340
        %v8342 = vpop.f32.mrf.mxu0
        %8343 = vmatprep.mubr.bf16.mxu0 0
        %8344 = vmatmul.mubr.bf16.gmra.mxu0 %v8289
        %v8345 = vpop.f32.mrf.mxu0
        %v8346 = vadd.f32 0.0, %v8345
        %v8347 = vpop.f32.mrf.mxu0
        %v8348 = vpop.f32.mrf.mxu0
        %v8349 = vadd.f32 0.0, %v8348
        %v8350 = vpop.f32.mrf.mxu0
        %8351 = vmatprep.mubr.bf16.mxu0 0
        %8352 = vmatmul.mubr.bf16.gmra.mxu0 %v8292
        %v8353 = vpop.f32.mrf.mxu0
        %v8354 = vadd.f32 0.0, %v8353
        %v8355 = vpop.f32.mrf.mxu0
        %v8356 = vpop.f32.mrf.mxu0
        %v8357 = vadd.f32 0.0, %v8356
        %v8358 = vpop.f32.mrf.mxu0
        %8359 = vmatprep.mubr.bf16.mxu0 0
        %8360 = vmatmul.mubr.bf16.gmra.mxu0 %v8295
        %v8361 = vpop.f32.mrf.mxu0
        %v8362 = vadd.f32 0.0, %v8361
        %v8363 = vpop.f32.mrf.mxu0
        %v8364 = vpop.f32.mrf.mxu0
        %v8365 = vadd.f32 0.0, %v8364
        %v8366 = vpop.f32.mrf.mxu0
        %8367 = vmatprep.mubr.bf16.mxu0 0
        %8368 = vmatmul.mubr.bf16.gmra.mxu0 %v8298
        %v8369 = vpop.f32.mrf.mxu0
        %v8370 = vadd.f32 0.0, %v8369
        %v8371 = vpop.f32.mrf.mxu0
        %v8372 = vpop.f32.mrf.mxu0
        %v8373 = vpop.f32.mrf.mxu0
        %8374 = vdwg.mxu0
        %v8375 = vld [vmem:[%s181] sm:$0xff]
        %v8376 = vld [vmem:[%s181 + $0x8] sm:$0xff]
        %v8377 = vld [vmem:[%s181 + $0x10] sm:$0xff]
        %v8378 = vld [vmem:[%s181 + $0x18] sm:$0xff]
        %v8379 = vld [vmem:[%s181 + $0x20] sm:$0xff]
        %v8380 = vld [vmem:[%s181 + $0x28] sm:$0xff]
        %v8381 = vld [vmem:[%s181 + $0x30] sm:$0xff]
        %v8382 = vld [vmem:[%s181 + $0x38] sm:$0xff]
        %v8383 = vld [vmem:[%s181 + $0x40] sm:$0x3f]
        %v8384 = vadd.f32 %v8375, %v8338
        %v8385 = vadd.f32 %v8376, %v8341
        %v8386 = vadd.f32 %v8377, %v8346
        %v8387 = vadd.f32 %v8378, %v8349
        %v8388 = vadd.f32 %v8379, %v8354
        %v8389 = vadd.f32 %v8380, %v8357
        %v8390 = vadd.f32 %v8381, %v8362
        %v8391 = vadd.f32 %v8382, %v8365
        %v8392 = vadd.f32 %v8383, %v8370
        %8393 = vst.msk [vmem:[%s181] sm:$0xff] %vm308, %v8384
        %8394 = vst.msk [vmem:[%s181 + $0x8] sm:$0xff] %vm308, %v8385
        %8395 = vst.msk [vmem:[%s181 + $0x10] sm:$0xff] %vm308, %v8386
        %8396 = vst.msk [vmem:[%s181 + $0x18] sm:$0xff] %vm308, %v8387
        %8397 = vst.msk [vmem:[%s181 + $0x20] sm:$0xff] %vm308, %v8388
        %8398 = vst.msk [vmem:[%s181 + $0x28] sm:$0xff] %vm308, %v8389
        %8399 = vst.msk [vmem:[%s181 + $0x30] sm:$0xff] %vm308, %v8390
        %8400 = vst.msk [vmem:[%s181 + $0x38] sm:$0xff] %vm308, %v8391
        %8401 = vst.msk [vmem:[%s181 + $0x40] sm:$0x3f] %vm317, %v8392
        %v8402 = vld [vmem:[%s176 + $0x44] sm:$0x8]
        %v8403 = vld [vmem:[%s176 + $0x48] sm:$0xf]
        %v8404 = vld [vmem:[%s176 + $0x4c] sm:$0xf]
        %v8405 = vld [vmem:[%s176 + $0x50] sm:$0xf]
        %v8406 = vld [vmem:[%s176 + $0x54] sm:$0xf]
        %v8407 = vld [vmem:[%s176 + $0x58] sm:$0xf]
        %v8408 = vld [vmem:[%s176 + $0x5c] sm:$0xf]
        %v8409 = vld [vmem:[%s176 + $0x60] sm:$0xf]
        %v8410 = vld [vmem:[%s176 + $0x64] sm:$0xf]
        %v8411 = vld [vmem:[%s176 + $0x68] sm:$0x3]
        %s8412 = scalar_lea.vmem %s1, 188
        %v8413 = vld [vmem:[%s8412] sm:$0xf]
        %v8424 = vunpack.c.l.b16 %v8402
        %v8425 = vunpack.c.l.b16 %v8403
        %v8426 = vunpack.c.l.b16 %v8404
        %v8427 = vunpack.c.l.b16 %v8405
        %v8428 = vunpack.c.l.b16 %v8406
        %v8429 = vunpack.c.l.b16 %v8407
        %v8430 = vunpack.c.l.b16 %v8408
        %v8431 = vunpack.c.l.b16 %v8409
        %v8432 = vunpack.c.l.b16 %v8410
        %v8433 = vunpack.c.l.b16 %v8411
        %v8434 = vpack.c.b16 %v8425, %v8424
        %v8435 = vpack.c.b16 %v8427, %v8426
        %v8436 = vpack.c.b16 %v8429, %v8428
        %v8437 = vpack.c.b16 %v8431, %v8430
        %v8438 = vpack.c.b16 %v8433, %v8432
        %v8439 = vrot.slane %v8434, 3
        %v8440 = vrot.slane %v8435, 3
        %v8441 = vsel %vm356, %v8439, %v8440
        %v8442 = vrot.slane %v8436, 3
        %v8443 = vsel %vm356, %v8440, %v8442
        %v8444 = vrot.slane %v8437, 3
        %v8445 = vsel %vm356, %v8442, %v8444
        %v8446 = vrot.slane %v8438, 3
        %v8447 = vsel %vm356, %v8444, %v8446
        %v8449 = vsel %vm216, %v8441, 0
        %v8452 = vsel %vm216, %v8443, 0
        %v8455 = vsel %vm216, %v8445, 0
        %v8458 = vsel %vm216, %v8447, 0
        %v8461 = vsel %vm216, %v8446, 0
        %v8464 = vsel %vm232, %v8413, 0
        %8466 = vmatprep.subr.bf16.mxu0 0
        %8467 = vmatpush1.bf16.msra.mxu0 0
        %8468 = vmatprep.subr.bf16.mxu0 0
        %8469 = vmatpush1.bf16.msra.mxu0 0
        %8470 = vmatprep.subr.bf16.mxu0 0
        %8471 = vmatpush1.bf16.msra.mxu0 0
        %8472 = vmatprep.subr.bf16.mxu0 0
        %8473 = vmatpush1.bf16.msra.mxu0 0
        %8474 = vmatprep.subr.bf16.mxu0 0
        %8475 = vmatpush1.bf16.msra.mxu0 0
        %8476 = vmatprep.subr.bf16.mxu0 0
        %8477 = vmatpush1.bf16.msra.mxu0 0
        %8478 = vmatprep.subr.bf16.mxu0 0
        %8479 = vmatpush1.bf16.msra.mxu0 0
        %8480 = vmatprep.subr.bf16.mxu0 0
        %8481 = vmatpush1.bf16.msra.mxu0 %v8464
        %8482 = vmatprep.subr.bf16.mxu0 0
        %8483 = vmatpush2.bf16.msra.mxu0 0
        %8484 = vmatprep.subr.bf16.mxu0 0
        %8485 = vmatpush2.bf16.msra.mxu0 0
        %8486 = vmatprep.subr.bf16.mxu0 0
        %8487 = vmatpush2.bf16.msra.mxu0 0
        %8488 = vmatprep.subr.bf16.mxu0 0
        %8489 = vmatpush2.bf16.msra.mxu0 0
        %8490 = vmatprep.subr.bf16.mxu0 0
        %8491 = vmatpush2.bf16.msra.mxu0 0
        %8492 = vmatprep.subr.bf16.mxu0 0
        %8493 = vmatpush2.bf16.msra.mxu0 0
        %8494 = vmatprep.subr.bf16.mxu0 0
        %8495 = vmatpush2.bf16.msra.mxu0 0
        %8496 = vmatprep.subr.bf16.mxu0 0
        %8497 = vmatpush2.bf16.msra.mxu0 0
        %8498 = vmatprep.mubr.bf16.mxu0 0
        %8499 = vmatmul.mubr.bf16.gmra.mxu0 %v8449
        %v8500 = vpop.f32.mrf.mxu0
        %v8501 = vadd.f32 0.0, %v8500
        %v8502 = vpop.f32.mrf.mxu0
        %v8503 = vpop.f32.mrf.mxu0
        %v8504 = vadd.f32 0.0, %v8503
        %v8505 = vpop.f32.mrf.mxu0
        %8506 = vmatprep.mubr.bf16.mxu0 0
        %8507 = vmatmul.mubr.bf16.gmra.mxu0 %v8452
        %v8508 = vpop.f32.mrf.mxu0
        %v8509 = vadd.f32 0.0, %v8508
        %v8510 = vpop.f32.mrf.mxu0
        %v8511 = vpop.f32.mrf.mxu0
        %v8512 = vadd.f32 0.0, %v8511
        %v8513 = vpop.f32.mrf.mxu0
        %8514 = vmatprep.mubr.bf16.mxu0 0
        %8515 = vmatmul.mubr.bf16.gmra.mxu0 %v8455
        %v8516 = vpop.f32.mrf.mxu0
        %v8517 = vadd.f32 0.0, %v8516
        %v8518 = vpop.f32.mrf.mxu0
        %v8519 = vpop.f32.mrf.mxu0
        %v8520 = vadd.f32 0.0, %v8519
        %v8521 = vpop.f32.mrf.mxu0
        %8522 = vmatprep.mubr.bf16.mxu0 0
        %8523 = vmatmul.mubr.bf16.gmra.mxu0 %v8458
        %v8524 = vpop.f32.mrf.mxu0
        %v8525 = vadd.f32 0.0, %v8524
        %v8526 = vpop.f32.mrf.mxu0
        %v8527 = vpop.f32.mrf.mxu0
        %v8528 = vadd.f32 0.0, %v8527
        %v8529 = vpop.f32.mrf.mxu0
        %8530 = vmatprep.mubr.bf16.mxu0 0
        %8531 = vmatmul.mubr.bf16.gmra.mxu0 %v8461
        %v8532 = vpop.f32.mrf.mxu0
        %v8533 = vadd.f32 0.0, %v8532
        %v8534 = vpop.f32.mrf.mxu0
        %v8535 = vpop.f32.mrf.mxu0
        %v8536 = vpop.f32.mrf.mxu0
        %8537 = vdwg.mxu0
        %v8538 = vld [vmem:[%s181] sm:$0xff]
        %v8539 = vld [vmem:[%s181 + $0x8] sm:$0xff]
        %v8540 = vld [vmem:[%s181 + $0x10] sm:$0xff]
        %v8541 = vld [vmem:[%s181 + $0x18] sm:$0xff]
        %v8542 = vld [vmem:[%s181 + $0x20] sm:$0xff]
        %v8543 = vld [vmem:[%s181 + $0x28] sm:$0xff]
        %v8544 = vld [vmem:[%s181 + $0x30] sm:$0xff]
        %v8545 = vld [vmem:[%s181 + $0x38] sm:$0xff]
        %v8546 = vld [vmem:[%s181 + $0x40] sm:$0x3f]
        %v8547 = vadd.f32 %v8538, %v8501
        %v8548 = vadd.f32 %v8539, %v8504
        %v8549 = vadd.f32 %v8540, %v8509
        %v8550 = vadd.f32 %v8541, %v8512
        %v8551 = vadd.f32 %v8542, %v8517
        %v8552 = vadd.f32 %v8543, %v8520
        %v8553 = vadd.f32 %v8544, %v8525
        %v8554 = vadd.f32 %v8545, %v8528
        %v8555 = vadd.f32 %v8546, %v8533
        %8556 = vst.msk [vmem:[%s181] sm:$0xff] %vm308, %v8547
        %8557 = vst.msk [vmem:[%s181 + $0x8] sm:$0xff] %vm308, %v8548
        %8558 = vst.msk [vmem:[%s181 + $0x10] sm:$0xff] %vm308, %v8549
        %8559 = vst.msk [vmem:[%s181 + $0x18] sm:$0xff] %vm308, %v8550
        %8560 = vst.msk [vmem:[%s181 + $0x20] sm:$0xff] %vm308, %v8551
        %8561 = vst.msk [vmem:[%s181 + $0x28] sm:$0xff] %vm308, %v8552
        %8562 = vst.msk [vmem:[%s181 + $0x30] sm:$0xff] %vm308, %v8553
        %8563 = vst.msk [vmem:[%s181 + $0x38] sm:$0xff] %vm308, %v8554
        %8564 = vst.msk [vmem:[%s181 + $0x40] sm:$0x3f] %vm317, %v8555
        %v8565 = vld [vmem:[%s176 + $0x10] sm:$0xf]
        %v8566 = vld [vmem:[%s176 + $0x14] sm:$0xf]
        %v8567 = vld [vmem:[%s176 + $0x18] sm:$0xf]
        %v8568 = vld [vmem:[%s176 + $0x1c] sm:$0xf]
        %v8569 = vld [vmem:[%s176 + $0x20] sm:$0xf]
        %v8570 = vld [vmem:[%s176 + $0x24] sm:$0xf]
        %v8571 = vld [vmem:[%s176 + $0x28] sm:$0xf]
        %v8572 = vld [vmem:[%s176 + $0x2c] sm:$0xf]
        %v8573 = vld [vmem:[%s176 + $0x30] sm:$0xf]
        %s8574 = scalar_lea.vmem %s1, 192
        %v8575 = vld [vmem:[%s8574] sm:$0xf]
        %v8585 = vunpack.c.l.b16 %v8565
        %v8586 = vunpack.c.l.b16 %v8566
        %v8587 = vunpack.c.l.b16 %v8567
        %v8588 = vunpack.c.l.b16 %v8568
        %v8589 = vunpack.c.l.b16 %v8569
        %v8590 = vunpack.c.l.b16 %v8570
        %v8591 = vunpack.c.l.b16 %v8571
        %v8592 = vunpack.c.l.b16 %v8572
        %v8593 = vunpack.c.l.b16 %v8573
        %v8594 = vpack.c.b16 %v8586, %v8585
        %v8595 = vpack.c.b16 %v8588, %v8587
        %v8596 = vpack.c.b16 %v8590, %v8589
        %v8597 = vpack.c.b16 %v8592, %v8591
        %v8598 = vpack.c.b16 %v8593, %v8593
        %v8600 = vshrl.u32 %v8594, 16
        %v8602 = vshll.u32 %v8594, 16
        %v8604 = vrot.slane %v8602, 1
        %v8605 = vor.u32 %v8600, %v8604
        %v8607 = vshll.u32 %v8595, 16
        %v8609 = vrot.slane %v8607, 1
        %v8610 = vsel %vm517, %v8605, %v8609
        %v8611 = vshrl.u32 %v8595, 16
        %v8613 = vor.u32 %v8611, %v8609
        %v8615 = vshll.u32 %v8596, 16
        %v8617 = vrot.slane %v8615, 1
        %v8618 = vsel %vm517, %v8613, %v8617
        %v8619 = vshrl.u32 %v8596, 16
        %v8621 = vor.u32 %v8619, %v8617
        %v8623 = vshll.u32 %v8597, 16
        %v8625 = vrot.slane %v8623, 1
        %v8626 = vsel %vm517, %v8621, %v8625
        %v8627 = vshrl.u32 %v8597, 16
        %v8629 = vor.u32 %v8627, %v8625
        %v8631 = vshll.u32 %v8598, 16
        %v8633 = vrot.slane %v8631, 1
        %v8634 = vsel %vm517, %v8629, %v8633
        %v8635 = vshrl.u32 %v8598, 16
        %v8637 = vor.u32 %v8635, %v8633
        %v8639 = vsel %vm216, %v8610, 0
        %v8642 = vsel %vm216, %v8618, 0
        %v8645 = vsel %vm216, %v8626, 0
        %v8648 = vsel %vm216, %v8634, 0
        %v8651 = vsel %vm216, %v8637, 0
        %v8654 = vsel %vm232, %v8575, 0
        %8656 = vmatprep.subr.bf16.mxu0 0
        %8657 = vmatpush1.bf16.msra.mxu0 0
        %8658 = vmatprep.subr.bf16.mxu0 0
        %8659 = vmatpush1.bf16.msra.mxu0 0
        %8660 = vmatprep.subr.bf16.mxu0 0
        %8661 = vmatpush1.bf16.msra.mxu0 0
        %8662 = vmatprep.subr.bf16.mxu0 0
        %8663 = vmatpush1.bf16.msra.mxu0 0
        %8664 = vmatprep.subr.bf16.mxu0 0
        %8665 = vmatpush1.bf16.msra.mxu0 0
        %8666 = vmatprep.subr.bf16.mxu0 0
        %8667 = vmatpush1.bf16.msra.mxu0 0
        %8668 = vmatprep.subr.bf16.mxu0 0
        %8669 = vmatpush1.bf16.msra.mxu0 0
        %8670 = vmatprep.subr.bf16.mxu0 0
        %8671 = vmatpush1.bf16.msra.mxu0 %v8654
        %8672 = vmatprep.subr.bf16.mxu0 0
        %8673 = vmatpush2.bf16.msra.mxu0 0
        %8674 = vmatprep.subr.bf16.mxu0 0
        %8675 = vmatpush2.bf16.msra.mxu0 0
        %8676 = vmatprep.subr.bf16.mxu0 0
        %8677 = vmatpush2.bf16.msra.mxu0 0
        %8678 = vmatprep.subr.bf16.mxu0 0
        %8679 = vmatpush2.bf16.msra.mxu0 0
        %8680 = vmatprep.subr.bf16.mxu0 0
        %8681 = vmatpush2.bf16.msra.mxu0 0
        %8682 = vmatprep.subr.bf16.mxu0 0
        %8683 = vmatpush2.bf16.msra.mxu0 0
        %8684 = vmatprep.subr.bf16.mxu0 0
        %8685 = vmatpush2.bf16.msra.mxu0 0
        %8686 = vmatprep.subr.bf16.mxu0 0
        %8687 = vmatpush2.bf16.msra.mxu0 0
        %8688 = vmatprep.mubr.bf16.mxu0 0
        %8689 = vmatmul.mubr.bf16.gmra.mxu0 %v8639
        %v8690 = vpop.f32.mrf.mxu0
        %v8691 = vadd.f32 0.0, %v8690
        %v8692 = vpop.f32.mrf.mxu0
        %v8693 = vpop.f32.mrf.mxu0
        %v8694 = vadd.f32 0.0, %v8693
        %v8695 = vpop.f32.mrf.mxu0
        %8696 = vmatprep.mubr.bf16.mxu0 0
        %8697 = vmatmul.mubr.bf16.gmra.mxu0 %v8642
        %v8698 = vpop.f32.mrf.mxu0
        %v8699 = vadd.f32 0.0, %v8698
        %v8700 = vpop.f32.mrf.mxu0
        %v8701 = vpop.f32.mrf.mxu0
        %v8702 = vadd.f32 0.0, %v8701
        %v8703 = vpop.f32.mrf.mxu0
        %8704 = vmatprep.mubr.bf16.mxu0 0
        %8705 = vmatmul.mubr.bf16.gmra.mxu0 %v8645
        %v8706 = vpop.f32.mrf.mxu0
        %v8707 = vadd.f32 0.0, %v8706
        %v8708 = vpop.f32.mrf.mxu0
        %v8709 = vpop.f32.mrf.mxu0
        %v8710 = vadd.f32 0.0, %v8709
        %v8711 = vpop.f32.mrf.mxu0
        %8712 = vmatprep.mubr.bf16.mxu0 0
        %8713 = vmatmul.mubr.bf16.gmra.mxu0 %v8648
        %v8714 = vpop.f32.mrf.mxu0
        %v8715 = vadd.f32 0.0, %v8714
        %v8716 = vpop.f32.mrf.mxu0
        %v8717 = vpop.f32.mrf.mxu0
        %v8718 = vadd.f32 0.0, %v8717
        %v8719 = vpop.f32.mrf.mxu0
        %8720 = vmatprep.mubr.bf16.mxu0 0
        %8721 = vmatmul.mubr.bf16.gmra.mxu0 %v8651
        %v8722 = vpop.f32.mrf.mxu0
        %v8723 = vadd.f32 0.0, %v8722
        %v8724 = vpop.f32.mrf.mxu0
        %v8725 = vpop.f32.mrf.mxu0
        %v8726 = vpop.f32.mrf.mxu0
        %8727 = vdwg.mxu0
        %v8728 = vld [vmem:[%s181] sm:$0xff]
        %v8729 = vld [vmem:[%s181 + $0x8] sm:$0xff]
        %v8730 = vld [vmem:[%s181 + $0x10] sm:$0xff]
        %v8731 = vld [vmem:[%s181 + $0x18] sm:$0xff]
        %v8732 = vld [vmem:[%s181 + $0x20] sm:$0xff]
        %v8733 = vld [vmem:[%s181 + $0x28] sm:$0xff]
        %v8734 = vld [vmem:[%s181 + $0x30] sm:$0xff]
        %v8735 = vld [vmem:[%s181 + $0x38] sm:$0xff]
        %v8736 = vld [vmem:[%s181 + $0x40] sm:$0x3f]
        %v8737 = vadd.f32 %v8728, %v8691
        %v8738 = vadd.f32 %v8729, %v8694
        %v8739 = vadd.f32 %v8730, %v8699
        %v8740 = vadd.f32 %v8731, %v8702
        %v8741 = vadd.f32 %v8732, %v8707
        %v8742 = vadd.f32 %v8733, %v8710
        %v8743 = vadd.f32 %v8734, %v8715
        %v8744 = vadd.f32 %v8735, %v8718
        %v8745 = vadd.f32 %v8736, %v8723
        %8746 = vst.msk [vmem:[%s181] sm:$0xff] %vm308, %v8737
        %8747 = vst.msk [vmem:[%s181 + $0x8] sm:$0xff] %vm308, %v8738
        %8748 = vst.msk [vmem:[%s181 + $0x10] sm:$0xff] %vm308, %v8739
        %8749 = vst.msk [vmem:[%s181 + $0x18] sm:$0xff] %vm308, %v8740
        %8750 = vst.msk [vmem:[%s181 + $0x20] sm:$0xff] %vm308, %v8741
        %8751 = vst.msk [vmem:[%s181 + $0x28] sm:$0xff] %vm308, %v8742
        %8752 = vst.msk [vmem:[%s181 + $0x30] sm:$0xff] %vm308, %v8743
        %8753 = vst.msk [vmem:[%s181 + $0x38] sm:$0xff] %vm308, %v8744
        %8754 = vst.msk [vmem:[%s181 + $0x40] sm:$0x3f] %vm317, %v8745
        %v8755 = vld [vmem:[%s181] sm:$0xff]
        %v8756 = vld [vmem:[%s181 + $0x8] sm:$0xff]
        %v8757 = vld [vmem:[%s181 + $0x10] sm:$0xff]
        %v8758 = vld [vmem:[%s181 + $0x18] sm:$0xff]
        %v8759 = vld [vmem:[%s181 + $0x20] sm:$0xff]
        %v8760 = vld [vmem:[%s181 + $0x28] sm:$0xff]
        %v8761 = vld [vmem:[%s181 + $0x30] sm:$0xff]
        %v8762 = vld [vmem:[%s181 + $0x38] sm:$0xff]
        %v8763 = vld [vmem:[%s181 + $0x40] sm:$0x3f]
        %v8764 = vlaneseq
        %v8765 = vshrl.u32 %v8764, 7
        %v8766 = vadd.s32 %v8765, 8
        %v8767 = vadd.s32 %v8765, 16
        %v8768 = vadd.s32 %v8765, 24
        %v8769 = vadd.s32 %v8765, 32
        %v8770 = vadd.s32 %v8765, 40
        %v8771 = vadd.s32 %v8765, 48
        %v8772 = vadd.s32 %v8765, 56
        %v8773 = vadd.s32 %v8765, 64
        %vm8774 = vcmp.lt.s32.totalorder %v8765, 0
        %v8775 = vsub.s32 0, %v8765
        %v8776 = vsel %vm8774, %v8775, %v8765
        %v8777 = vmul.u32.u64.compose %v8776, 3435973837
        %v8778 = vextract.low.u32 %v8777
        %v8779 = vextract.high.u32 %v8777
        %v8780 = vshrl.u32 %v8779, 3
        %v8781 = vmul.u32 %v8780, 10
        %v8782 = vsub.s32 %v8776, %v8781
        %v8783 = vsub.s32 0, %v8782
        %v8784 = vsel %vm8774, %v8783, %v8782
        %vm8785 = vcmp.lt.s32.totalorder %v8766, 0
        %v8786 = vsub.s32 0, %v8766
        %v8787 = vsel %vm8785, %v8786, %v8766
        %v8788 = vmul.u32.u64.compose %v8787, 3435973837
        %v8789 = vextract.low.u32 %v8788
        %v8790 = vextract.high.u32 %v8788
        %v8791 = vshrl.u32 %v8790, 3
        %v8792 = vmul.u32 %v8791, 10
        %v8793 = vsub.s32 %v8787, %v8792
        %v8794 = vsub.s32 0, %v8793
        %v8795 = vsel %vm8785, %v8794, %v8793
        %vm8796 = vcmp.lt.s32.totalorder %v8767, 0
        %v8797 = vsub.s32 0, %v8767
        %v8798 = vsel %vm8796, %v8797, %v8767
        %v8799 = vmul.u32.u64.compose %v8798, 3435973837
        %v8800 = vextract.low.u32 %v8799
        %v8801 = vextract.high.u32 %v8799
        %v8802 = vshrl.u32 %v8801, 3
        %v8803 = vmul.u32 %v8802, 10
        %v8804 = vsub.s32 %v8798, %v8803
        %v8805 = vsub.s32 0, %v8804
        %v8806 = vsel %vm8796, %v8805, %v8804
        %vm8807 = vcmp.lt.s32.totalorder %v8768, 0
        %v8808 = vsub.s32 0, %v8768
        %v8809 = vsel %vm8807, %v8808, %v8768
        %v8810 = vmul.u32.u64.compose %v8809, 3435973837
        %v8811 = vextract.low.u32 %v8810
        %v8812 = vextract.high.u32 %v8810
        %v8813 = vshrl.u32 %v8812, 3
        %v8814 = vmul.u32 %v8813, 10
        %v8815 = vsub.s32 %v8809, %v8814
        %v8816 = vsub.s32 0, %v8815
        %v8817 = vsel %vm8807, %v8816, %v8815
        %vm8818 = vcmp.lt.s32.totalorder %v8769, 0
        %v8819 = vsub.s32 0, %v8769
        %v8820 = vsel %vm8818, %v8819, %v8769
        %v8821 = vmul.u32.u64.compose %v8820, 3435973837
        %v8822 = vextract.low.u32 %v8821
        %v8823 = vextract.high.u32 %v8821
        %v8824 = vshrl.u32 %v8823, 3
        %v8825 = vmul.u32 %v8824, 10
        %v8826 = vsub.s32 %v8820, %v8825
        %v8827 = vsub.s32 0, %v8826
        %v8828 = vsel %vm8818, %v8827, %v8826
        %vm8829 = vcmp.lt.s32.totalorder %v8770, 0
        %v8830 = vsub.s32 0, %v8770
        %v8831 = vsel %vm8829, %v8830, %v8770
        %v8832 = vmul.u32.u64.compose %v8831, 3435973837
        %v8833 = vextract.low.u32 %v8832
        %v8834 = vextract.high.u32 %v8832
        %v8835 = vshrl.u32 %v8834, 3
        %v8836 = vmul.u32 %v8835, 10
        %v8837 = vsub.s32 %v8831, %v8836
        %v8838 = vsub.s32 0, %v8837
        %v8839 = vsel %vm8829, %v8838, %v8837
        %vm8840 = vcmp.lt.s32.totalorder %v8771, 0
        %v8841 = vsub.s32 0, %v8771
        %v8842 = vsel %vm8840, %v8841, %v8771
        %v8843 = vmul.u32.u64.compose %v8842, 3435973837
        %v8844 = vextract.low.u32 %v8843
        %v8845 = vextract.high.u32 %v8843
        %v8846 = vshrl.u32 %v8845, 3
        %v8847 = vmul.u32 %v8846, 10
        %v8848 = vsub.s32 %v8842, %v8847
        %v8849 = vsub.s32 0, %v8848
        %v8850 = vsel %vm8840, %v8849, %v8848
        %vm8851 = vcmp.lt.s32.totalorder %v8772, 0
        %v8852 = vsub.s32 0, %v8772
        %v8853 = vsel %vm8851, %v8852, %v8772
        %v8854 = vmul.u32.u64.compose %v8853, 3435973837
        %v8855 = vextract.low.u32 %v8854
        %v8856 = vextract.high.u32 %v8854
        %v8857 = vshrl.u32 %v8856, 3
        %v8858 = vmul.u32 %v8857, 10
        %v8859 = vsub.s32 %v8853, %v8858
        %v8860 = vsub.s32 0, %v8859
        %v8861 = vsel %vm8851, %v8860, %v8859
        %vm8862 = vcmp.lt.s32.totalorder %v8773, 0
        %v8863 = vsub.s32 0, %v8773
        %v8864 = vsel %vm8862, %v8863, %v8773
        %v8865 = vmul.u32.u64.compose %v8864, 3435973837
        %v8866 = vextract.low.u32 %v8865
        %v8867 = vextract.high.u32 %v8865
        %v8868 = vshrl.u32 %v8867, 3
        %v8869 = vmul.u32 %v8868, 10
        %v8870 = vsub.s32 %v8864, %v8869
        %v8871 = vsub.s32 0, %v8870
        %v8872 = vsel %vm8862, %v8871, %v8870
        %vm8873 = vcmp.ne.s32.totalorder %v8784, 0
        %vm8874 = vcmp.ne.s32.totalorder %v8795, 0
        %vm8875 = vcmp.ne.s32.totalorder %v8806, 0
        %vm8876 = vcmp.ne.s32.totalorder %v8817, 0
        %vm8877 = vcmp.ne.s32.totalorder %v8828, 0
        %vm8878 = vcmp.ne.s32.totalorder %v8839, 0
        %vm8879 = vcmp.ne.s32.totalorder %v8850, 0
        %vm8880 = vcmp.ne.s32.totalorder %v8861, 0
        %vm8881 = vcmp.ne.s32.totalorder %v8872, 0
        %vm8882 = vcmp.lt.s32.totalorder %v8784, 0
        %vm8883 = vcmp.lt.s32.totalorder %v8795, 0
        %vm8884 = vcmp.lt.s32.totalorder %v8806, 0
        %vm8885 = vcmp.lt.s32.totalorder %v8817, 0
        %vm8886 = vcmp.lt.s32.totalorder %v8828, 0
        %vm8887 = vcmp.lt.s32.totalorder %v8839, 0
        %vm8888 = vcmp.lt.s32.totalorder %v8850, 0
        %vm8889 = vcmp.lt.s32.totalorder %v8861, 0
        %vm8890 = vcmp.lt.s32.totalorder %v8872, 0
        %vm8891 = vmand %vm8882, %vm8873
        %vm8892 = vmand %vm8883, %vm8874
        %vm8893 = vmand %vm8884, %vm8875
        %vm8894 = vmand %vm8885, %vm8876
        %vm8895 = vmand %vm8886, %vm8877
        %vm8896 = vmand %vm8887, %vm8878
        %vm8897 = vmand %vm8888, %vm8879
        %vm8898 = vmand %vm8889, %vm8880
        %vm8899 = vmand %vm8890, %vm8881
        %v8900 = vadd.s32 %v8784, 10
        %v8901 = vadd.s32 %v8795, 10
        %v8902 = vadd.s32 %v8806, 10
        %v8903 = vadd.s32 %v8817, 10
        %v8904 = vadd.s32 %v8828, 10
        %v8905 = vadd.s32 %v8839, 10
        %v8906 = vadd.s32 %v8850, 10
        %v8907 = vadd.s32 %v8861, 10
        %v8908 = vadd.s32 %v8872, 10
        %v8909 = vsel %vm8891, %v8900, %v8784
        %v8910 = vsel %vm8892, %v8901, %v8795
        %v8911 = vsel %vm8893, %v8902, %v8806
        %v8912 = vsel %vm8894, %v8903, %v8817
        %v8913 = vsel %vm8895, %v8904, %v8828
        %v8914 = vsel %vm8896, %v8905, %v8839
        %v8915 = vsel %vm8897, %v8906, %v8850
        %v8916 = vsel %vm8898, %v8907, %v8861
        %v8917 = vsel %vm8899, %v8908, %v8872
        %vm8918 = vcmp.lt.s32.totalorder %v8909, 7
        %vm8919 = vcmp.lt.s32.totalorder %v8910, 7
        %vm8920 = vcmp.lt.s32.totalorder %v8911, 7
        %vm8921 = vcmp.lt.s32.totalorder %v8912, 7
        %vm8922 = vcmp.lt.s32.totalorder %v8913, 7
        %vm8923 = vcmp.lt.s32.totalorder %v8914, 7
        %vm8924 = vcmp.lt.s32.totalorder %v8915, 7
        %vm8925 = vcmp.lt.s32.totalorder %v8916, 7
        %vm8926 = vcmp.lt.s32.totalorder %v8917, 7
        %v8927 = vsel %vm8918, 1, 0
        %v8928 = vsel %vm8919, 1, 0
        %v8929 = vsel %vm8920, 1, 0
        %v8930 = vsel %vm8921, 1, 0
        %v8931 = vsel %vm8922, 1, 0
        %v8932 = vsel %vm8923, 1, 0
        %v8933 = vsel %vm8924, 1, 0
        %v8934 = vsel %vm8925, 1, 0
        %v8935 = vsel %vm8926, 1, 0
        %vm8936 = vcmp.eq.s32.totalorder %v8927, 1
        %vm8937 = vcmp.eq.s32.totalorder %v8928, 1
        %vm8938 = vcmp.eq.s32.totalorder %v8929, 1
        %vm8939 = vcmp.eq.s32.totalorder %v8930, 1
        %vm8940 = vcmp.eq.s32.totalorder %v8931, 1
        %vm8941 = vcmp.eq.s32.totalorder %v8932, 1
        %vm8942 = vcmp.eq.s32.totalorder %v8933, 1
        %vm8943 = vcmp.eq.s32.totalorder %v8934, 1
        %vm8944 = vcmp.eq.s32.totalorder %v8935, 1
        %v8945 = vsel %vm8936, %v8755, 0.0
        %v8946 = vsel %vm8937, %v8756, 0.0
        %v8947 = vsel %vm8938, %v8757, 0.0
        %v8948 = vsel %vm8939, %v8758, 0.0
        %v8949 = vsel %vm8940, %v8759, 0.0
        %v8950 = vsel %vm8941, %v8760, 0.0
        %v8951 = vsel %vm8942, %v8761, 0.0
        %v8952 = vsel %vm8943, %v8762, 0.0
        %v8953 = vsel %vm8944, %v8763, 0.0
        %v8954 = vsel %vm308, %v8945, 0.0
        %v8955 = vsel %vm308, %v8946, 0.0
        %v8956 = vadd.f32 %v8954, %v8955
        %v8957 = vsel %vm308, %v8947, 0.0
        %v8958 = vadd.f32 %v8956, %v8957
        %v8959 = vsel %vm308, %v8948, 0.0
        %v8960 = vadd.f32 %v8958, %v8959
        %v8961 = vsel %vm308, %v8949, 0.0
        %v8962 = vadd.f32 %v8960, %v8961
        %v8963 = vsel %vm308, %v8950, 0.0
        %v8964 = vadd.f32 %v8962, %v8963
        %v8965 = vsel %vm308, %v8951, 0.0
        %v8966 = vadd.f32 %v8964, %v8965
        %v8967 = vsel %vm308, %v8952, 0.0
        %v8968 = vadd.f32 %v8966, %v8967
        %v8969 = vsel %vm317, %v8953, 0.0
        %v8970 = vadd.f32 %v8968, %v8969
        %v8971 = vrot.slane %v8970, 4
        %v8972 = vadd.f32 %v8970, %v8971
        %v8973 = vrot.slane %v8972, 2
        %v8974 = vadd.f32 %v8972, %v8973
        %v8975 = vrot.slane %v8974, 1
        %v8976 = vadd.f32 %v8974, %v8975
        %vm8977 = vcmask 516096
        %8978 = vst.msk [vmem:[%s171] sm:$0x1] %vm8977, %v8976
        %v8979 = vmul.f32 %v8945, %v8945
        %v8980 = vmul.f32 %v8946, %v8946
        %v8981 = vmul.f32 %v8947, %v8947
        %v8982 = vmul.f32 %v8948, %v8948
        %v8983 = vmul.f32 %v8949, %v8949
        %v8984 = vmul.f32 %v8950, %v8950
        %v8985 = vmul.f32 %v8951, %v8951
        %v8986 = vmul.f32 %v8952, %v8952
        %v8987 = vmul.f32 %v8953, %v8953
        %v8988 = vsel %vm308, %v8979, 0.0
        %v8989 = vsel %vm308, %v8980, 0.0
        %v8990 = vadd.f32 %v8988, %v8989
        %v8991 = vsel %vm308, %v8981, 0.0
        %v8992 = vadd.f32 %v8990, %v8991
        %v8993 = vsel %vm308, %v8982, 0.0
        %v8994 = vadd.f32 %v8992, %v8993
        %v8995 = vsel %vm308, %v8983, 0.0
        %v8996 = vadd.f32 %v8994, %v8995
        %v8997 = vsel %vm308, %v8984, 0.0
        %v8998 = vadd.f32 %v8996, %v8997
        %v8999 = vsel %vm308, %v8985, 0.0
        %v9000 = vadd.f32 %v8998, %v8999
        %v9001 = vsel %vm308, %v8986, 0.0
        %v9002 = vadd.f32 %v9000, %v9001
        %v9003 = vsel %vm317, %v8987, 0.0
        %v9004 = vadd.f32 %v9002, %v9003
        %v9005 = vrot.slane %v9004, 4
        %v9006 = vadd.f32 %v9004, %v9005
        %v9007 = vrot.slane %v9006, 2
        %v9008 = vadd.f32 %v9006, %v9007
        %v9009 = vrot.slane %v9008, 1
        %v9010 = vadd.f32 %v9008, %v9009
        %9011 = vst.msk [vmem:[%s171 + $0x1] sm:$0x1] %vm8977, %v9010
        %p9012 = scmp.lt.s32.totalorder %s18, 1
        %s9013 = scalar_select %p9012, %s18, 1
        %s9014 = smul.addr %s9013, 9
        %s9015 = smul.addr %s9014, 8
        %s9016 = scalar_lea.vmem %s2, %s9015
        %s9017 = sand.u32 %s99, 1
        %s9018 = scalar_lea.sflag [#allocation3], %s9017
        %s9019 = sand.u32 %s99, 1
        %s9020 = smul.addr %s9019, 2
        %s9021 = scalar_lea.vmem [#allocation2], %s9020
        // Predicated region
        $region29: #{tpu_custom_call.1} parent=27 // pred_check
          %p9022 = pneg %p83
        $region30: #{tpu_custom_call.1} parent=27 // pred_check_branch
          %9024 = sbr.rel (%p9022) target = $region32
        $region31: #{tpu_custom_call.1} parent=27 // pred_region
          _
        $region32: #{tpu_custom_call.1} parent=27 // pred_fallthru
          _
        // Predicated region
        $region33: #{tpu_custom_call.1} parent=27 // pred_check
          %p9025 = pneg %p109
        $region34: #{tpu_custom_call.1} parent=27 // pred_check_branch
          %9027 = sbr.rel (%p9025) target = $region36
        $region35: #{tpu_custom_call.1} parent=27 // pred_region
          %s9029 = ssub.s32 32, 32
          %9030 = vsyncadd %s9018, %s9029
          %s9031 = smul.addr %s18, 32
          %s9032 = scalar_lea.hbm %s3, %s9031
          %s9034 = sshll.u32 %s9021, 4
          %s9035 = int_to_ptr.vmem [resolvable:$true] %s9034
          %9037 = dma.vmem_to_hbm [thread:$0]  %s9035, 32, %s9032, %s9018
        $region36: #{tpu_custom_call.1} parent=27 // pred_fallthru
          _
      $region28: #{tpu_custom_call.1} parent=5 // pred_fallthru
        _
      %p9038 = scmp.le.s32.totalorder 2, %s13
      // Predicated region
      $region37: #{tpu_custom_call.1} parent=5 // pred_check
        %p9039 = pneg %p9038
      $region38: #{tpu_custom_call.1} parent=5 // pred_check_branch
        %9041 = sbr.rel (%p9039) target = $region40
      $region39: #{tpu_custom_call.1} parent=5 // pred_region
        %s9042 = ssub.s32 %s13, 2
        // Predicated region
        $region41: #{tpu_custom_call.1} parent=39 // pred_check
          %p9043 = pneg %p89
        $region42: #{tpu_custom_call.1} parent=39 // pred_check_branch
          %9045 = sbr.rel (%p9043) target = $region44
        $region43: #{tpu_custom_call.1} parent=39 // pred_region
          %p9046 = scmp.lt.s32.totalorder %s19, 1
          %s9047 = scalar_select %p9046, %s19, 1
          %s9048 = smul.addr %s9047, 9
          %s9049 = smul.addr %s9048, 8
          %s9050 = scalar_lea.vmem %s2, %s9049
        $region44: #{tpu_custom_call.1} parent=39 // pred_fallthru
          _
        // Predicated region
        $region45: #{tpu_custom_call.1} parent=39 // pred_check
          %p9051 = pneg %p115
        $region46: #{tpu_custom_call.1} parent=39 // pred_check_branch
          %9053 = sbr.rel (%p9051) target = $region48
        $region47: #{tpu_custom_call.1} parent=39 // pred_region
          %s9054 = sand.u32 %s100, 1
          %s9055 = scalar_lea.sflag [#allocation3], %s9054
          %s9056 = sand.u32 %s100, 1
          %s9057 = smul.addr %s9056, 2
          %s9058 = scalar_lea.vmem [#allocation2], %s9057
          %9059 = dma.done %s9055, 32
        $region48: #{tpu_custom_call.1} parent=39 // pred_fallthru
          _
      $region40: #{tpu_custom_call.1} parent=5 // pred_fallthru
        _
    $region6: #{tpu_custom_call.1} parent=1 // loop_footer
      %s17 = sadd.s32 1, %s13
    $region7: #{tpu_custom_call.1} parent=1 // loop_footer_branch
      %12 = sbr.rel target = $region3
    $region8: #{tpu_custom_call.1} parent=1 // loop_exit
      _
    %9060 = vsyncpa [#allocation3], 1
    %s9061 = scalar_lea.sflag [#allocation3], 1
    %9062 = vsyncpa %s9061, 1

</llo_original>
